<compile_context>
chip_gen: v6e
topology: v6e:2x2x1
jax: 0.10.0
libtpu: 0.0.40
codegen_flags: <defaults>
</compile_context>

<pallas_src>
import numpy as np
import jax
import jax.numpy as jnp
from jax import lax
from jax.experimental import pallas as pl
from jax.experimental.pallas import tpu as pltpu


def _round_up(x, m):
    return (x + m - 1) // m * m


# --------------------------------------------------------------------------
# Pallas kernels
# --------------------------------------------------------------------------

def _nin_block_kernel(a_ref, w0_ref, b0_ref, w1_ref, b1_ref, w2_ref, b2_ref,
                      o_ref):
    """Fused NIN block: relu(relu(relu(A@W0+b0)@W1+b1)@W2+b2).

    Grid = (M tiles, K tiles).  The f32 output tile is resident across the K
    axis and used directly as the accumulator for the first matmul; the two
    1x1 convs run in the epilogue on the last K step (W1/W2 stay in VMEM).
    """
    @pl.when(pl.program_id(1) == 0)
    def _():
        o_ref[...] = jnp.zeros_like(o_ref)

    o_ref[...] += jnp.dot(a_ref[...], w0_ref[...],
                          preferred_element_type=jnp.float32)

    @pl.when(pl.program_id(1) == pl.num_programs(1) - 1)
    def _():
        h0 = jnp.maximum(o_ref[...] + b0_ref[...], 0.0)
        h1 = jnp.maximum(
            jnp.dot(h0.astype(w1_ref.dtype), w1_ref[...],
                    preferred_element_type=jnp.float32) + b1_ref[...], 0.0)
        h2 = jnp.maximum(
            jnp.dot(h1.astype(w2_ref.dtype), w2_ref[...],
                    preferred_element_type=jnp.float32) + b2_ref[...], 0.0)
        o_ref[...] = h2


def nin_block_matmul(patches, w0m, b0, w1m, b1, w2m, b2):
    """patches: (M, K) bf16; w0m: (K, Cp) bf16; w1m/w2m: (Cp, Cp) bf16;
    biases: (1, Cp) f32.  Returns (M, Cp) f32."""
    M, K = patches.shape
    Cp = w0m.shape[1]

    # Bounded M tile: never let the tile grow with M (VMEM-safe on v7x).
    if M >= 256:
        Mp, tm = _round_up(M, 256), 256
    else:
        Mp = _round_up(M, 8)
        tm = Mp
    Kp = _round_up(K, 128)
    tk = 256 if Kp % 256 == 0 else 128   # native 256 on v6e/v7x when possible

    a_p = jnp.pad(patches, ((0, Mp - M), (0, Kp - K))).astype(jnp.bfloat16)
    w0_p = jnp.pad(w0m, ((0, Kp - K), (0, 0)))

    out = pl.pallas_call(
        _nin_block_kernel,
        out_shape=jax.ShapeDtypeStruct((Mp, Cp), jnp.float32),
        grid_spec=pltpu.PrefetchScalarGridSpec(
            num_scalar_prefetch=0,
            grid=(Mp // tm, Kp // tk),
            in_specs=[
                pl.BlockSpec((tm, tk), lambda i, k: (i, k)),   # patches
                pl.BlockSpec((tk, Cp), lambda i, k: (k, 0)),   # W0
                pl.BlockSpec((1, Cp), lambda i, k: (0, 0)),    # b0
                pl.BlockSpec((Cp, Cp), lambda i, k: (0, 0)),   # W1 (resident)
                pl.BlockSpec((1, Cp), lambda i, k: (0, 0)),    # b1
                pl.BlockSpec((Cp, Cp), lambda i, k: (0, 0)),   # W2 (resident)
                pl.BlockSpec((1, Cp), lambda i, k: (0, 0)),    # b2
            ],
            out_specs=pl.BlockSpec((tm, Cp), lambda i, k: (i, 0)),
        ),
        compiler_params=pltpu.CompilerParams(
            dimension_semantics=("parallel", "arbitrary"),
            vmem_limit_bytes=32 * 1024 * 1024),
    )(a_p, w0_p, b0, w1m, b1, w2m, b2)
    return out[:M]


def _max9_kernel(x0, x1, x2, x3, x4, x5, x6, x7, x8, o_ref):
    m = jnp.maximum(x0[...], x1[...])
    m = jnp.maximum(m, x2[...])
    m = jnp.maximum(m, x3[...])
    m = jnp.maximum(m, x4[...])
    m = jnp.maximum(m, x5[...])
    m = jnp.maximum(m, x6[...])
    m = jnp.maximum(m, x7[...])
    m = jnp.maximum(m, x8[...])
    o_ref[...] = m


def maxpool3x3s2(x):
    """MaxPool2d(3, stride=2), floor mode, no padding.  x: NHWC (C lane-dense)."""
    N, H, W, C = x.shape
    Ho = (H - 3) // 2 + 1
    Wo = (W - 3) // 2 + 1
    M = N * Ho * Wo
    views = []
    for i in range(3):
        for j in range(3):
            v = x[:, i:i + 2 * (Ho - 1) + 1:2, j:j + 2 * (Wo - 1) + 1:2, :]
            views.append(v.reshape(M, C))

    tm = 512 if M > 512 else M   # tile rows; whole-array block only when tiny
    out = pl.pallas_call(
        _max9_kernel,
        out_shape=jax.ShapeDtypeStruct((M, C), x.dtype),
        grid=(pl.cdiv(M, tm),),
        in_specs=[pl.BlockSpec((tm, C), lambda i: (i, 0))] * 9,
        out_specs=pl.BlockSpec((tm, C), lambda i: (i, 0)),
        compiler_params=pltpu.CompilerParams(
            dimension_semantics=("parallel",)),
    )(*views)
    return out.reshape(N, Ho, Wo, C)


def _gap_kernel(x_ref, o_ref):
    o_ref[...] = jnp.mean(x_ref[...], axis=1, keepdims=True)


def global_avg_pool(x):
    """AdaptiveAvgPool2d((1,1)) + Flatten.  x: NHWC -> (N, C)."""
    N, H, W, C = x.shape
    HW = H * W
    xr = x.reshape(N, HW, C)
    out = pl.pallas_call(
        _gap_kernel,
        out_shape=jax.ShapeDtypeStruct((N, 1, C), x.dtype),
        grid=(N,),
        in_specs=[pl.BlockSpec((1, HW, C), lambda n: (n, 0, 0))],
        out_specs=pl.BlockSpec((1, 1, C), lambda n: (n, 0, 0)),
        compiler_params=pltpu.CompilerParams(
            dimension_semantics=("parallel",)),
    )(xr)
    return out.reshape(N, C)


# --------------------------------------------------------------------------
# Glue (im2col) + block wrapper
# --------------------------------------------------------------------------

def _im2col(x, kh, kw, stride, pad):
    """x: NHWC -> (N*Ho*Wo, C*kh*kw), flattened in (C, kh, kw) order to match
    PyTorch's (C_out, C_in, kh, kw) weight layout."""
    N, H, W, C = x.shape
    if pad:
        x = jnp.pad(x, ((0, 0), (pad, pad), (pad, pad), (0, 0)))
    Hp, Wp = H + 2 * pad, W + 2 * pad
    Ho = (Hp - kh) // stride + 1
    Wo = (Wp - kw) // stride + 1
    cols = []
    for i in range(kh):
        for j in range(kw):
            cols.append(x[:, i:i + stride * (Ho - 1) + 1:stride,
                          j:j + stride * (Wo - 1) + 1:stride, :])
    p = jnp.stack(cols, axis=0)                    # (kh*kw, N, Ho, Wo, C)
    p = jnp.transpose(p, (1, 2, 3, 4, 0))          # (N, Ho, Wo, C, kh*kw)
    return p.reshape(N * Ho * Wo, C * kh * kw), Ho, Wo


def nin_block(x, w0, b0, w1, b1, w2, b2, k, s, p):
    """One NIN block on NHWC input whose channel dim may already be padded.
    Returns NHWC output with channels padded to a multiple of 128."""
    N = x.shape[0]
    cin_carried = x.shape[-1]
    cout, cin_true = w0.shape[0], w0.shape[1]
    cp = _round_up(cout, 128)

    # Weights/biases: pad Cin to the carried channel count, pad Cout to 128
    # multiple, cast matmul operands to bf16 (f32 accumulation in-kernel).
    w0p = jnp.pad(w0, ((0, 0), (0, cin_carried - cin_true), (0, 0), (0, 0)))
    w0m = jnp.pad(w0p.reshape(cout, cin_carried * k * k).T,
                  ((0, 0), (0, cp - cout))).astype(jnp.bfloat16)
    b0m = jnp.pad(b0, (0, cp - cout)).astype(jnp.float32).reshape(1, cp)

    def prep_1x1(w, b):
        wm = jnp.pad(w.reshape(cout, cout).T,
                     ((0, cp - cout), (0, cp - cout))).astype(jnp.bfloat16)
        bm = jnp.pad(b, (0, cp - cout)).astype(jnp.float32).reshape(1, cp)
        return wm, bm

    w1m, b1m = prep_1x1(w1, b1)
    w2m, b2m = prep_1x1(w2, b2)

    patches, Ho, Wo = _im2col(x.astype(jnp.bfloat16), k, k, s, p)
    out = nin_block_matmul(patches, w0m, b0m, w1m, b1m, w2m, b2m)
    return out.reshape(N, Ho, Wo, cp)


# --------------------------------------------------------------------------
# NIN model
# --------------------------------------------------------------------------

_BLOCK_CFG = [(11, 4, 0), (5, 1, 2), (3, 1, 1), (3, 1, 1)]   # (k, stride, pad)


def nin_forward(x_nchw, params):
    """Forward pass of the NIN module (inference).  x_nchw: (N, C, H, W)."""
    x = jnp.transpose(x_nchw, (0, 2, 3, 1)).astype(jnp.float32)   # NHWC
    idx = 0
    for bi, (k, s, p) in enumerate(_BLOCK_CFG):
        (w0, b0) = params[idx]
        (w1, b1) = params[idx + 1]
        (w2, b2) = params[idx + 2]
        idx += 3
        x = nin_block(x, w0, b0, w1, b1, w2, b2, k, s, p)
        if bi < 3:
            x = maxpool3x3s2(x)
        # Dropout(0.5) sits after the 3rd maxpool; identity at inference.
        # TODO(synk): training-mode dropout would use pltpu.prng_* in-kernel.
    feats = global_avg_pool(x)                   # (N, Cp_classes)
    n_classes = params[-1][1].shape[0]
    return feats[:, :n_classes]


def init_params(key, input_channel, n_classes):
    cfgs = [
        (input_channel, 96, 11), (96, 96, 1), (96, 96, 1),
        (96, 256, 5), (256, 256, 1), (256, 256, 1),
        (256, 384, 3), (384, 384, 1), (384, 384, 1),
        (384, n_classes, 3), (n_classes, n_classes, 1), (n_classes, n_classes, 1),
    ]
    params = []
    for cin, cout, k in cfgs:
        key, kw_, kb_ = jax.random.split(key, 3)
        fan_in = cin * k * k
        fan_out = cout * k * k
        limit = float(np.sqrt(6.0 / (fan_in + fan_out)))          # xavier_uniform_
        w = jax.random.uniform(kw_, (cout, cin, k, k), jnp.float32, -limit, limit)
        bb = float(1.0 / np.sqrt(fan_in))                         # PyTorch default bias init
        b = jax.random.uniform(kb_, (cout,), jnp.float32, -bb, bb)
        params.append((w, b))
    return params


# --------------------------------------------------------------------------
# Pure-JAX reference (for correctness check)
# --------------------------------------------------------------------------

def nin_reference(x_nchw, params):
    def conv(x, w, b, stride, pad):
        y = lax.conv_general_dilated(
            x, w, (stride, stride), ((pad, pad), (pad, pad)),
            dimension_numbers=('NCHW', 'OIHW', 'NCHW'),
            precision=lax.Precision.HIGHEST)
        return jnp.maximum(y + b[None, :, None, None], 0.0)

    def maxpool(x):
        return lax.reduce_window(x, -jnp.inf, lax.max,
                                 (1, 1, 3, 3), (1, 1, 2, 2), 'VALID')

    x = x_nchw
    idx = 0
    for bi, (k, s, p) in enumerate(_BLOCK_CFG):
        w, b = params[idx]; idx += 1
        x = conv(x, w, b, s, p)
        for _ in range(2):
            w, b = params[idx]; idx += 1
            x = conv(x, w, b, 1, 0)
        if bi < 3:
            x = maxpool(x)
    return jnp.mean(x, axis=(2, 3))


# --------------------------------------------------------------------------

if __name__ == "__main__":
    key = jax.random.PRNGKey(0)
    kx, kp = jax.random.split(key)

    # Smallest spatial size surviving the conv/pool chain: 71 -> 16 -> 7 -> 3 -> 1
    N, Cin, H, W = 2, 3, 71, 71
    n_classes = 10

    x = jax.random.normal(kx, (N, Cin, H, W), jnp.float32)
    params = init_params(kp, Cin, n_classes)

    out = jax.jit(nin_forward)(x, params)
    out = jax.block_until_ready(out)

    assert out.shape == (N, n_classes)

    ref = nin_reference(x, params)
    # Kernel uses bf16 operands with f32 accumulation; compare loosely vs f32 ref.
    np.testing.assert_allclose(np.asarray(out), np.asarray(ref),
                               rtol=5e-2, atol=2e-2)

    print("KERNEL_OK")
</pallas_src>

<mosaic_0001>
module attributes {stable_mosaic.version = 11 : i64} {
  func.func @_nin_block_kernel(%arg0: i32, %arg1: i32, %arg2: memref<256x128xbf16, #tpu.memory_space<vmem>>, %arg3: memref<128x128xbf16, #tpu.memory_space<vmem>>, %arg4: memref<1x128xf32, #tpu.memory_space<vmem>>, %arg5: memref<128x128xbf16, #tpu.memory_space<vmem>>, %arg6: memref<1x128xf32, #tpu.memory_space<vmem>>, %arg7: memref<128x128xbf16, #tpu.memory_space<vmem>>, %arg8: memref<1x128xf32, #tpu.memory_space<vmem>>, %arg9: memref<256x128xf32, #tpu.memory_space<vmem>>) attributes {dimension_semantics = [#tpu.dimension_semantics<parallel>, #tpu.dimension_semantics<arbitrary>], iteration_bounds = array<i64: 2, 3>, scalar_prefetch = 0 : i64, scratch_operands = 0 : i64, tpu.core_type = #tpu.core_type<tc>, window_params = [{transform_indices = @transform_0, window_bounds = array<i64: 256, 128>}, {transform_indices = @transform_1, window_bounds = array<i64: 128, 128>}, {pipeline_mode = #tpu.pipeline_mode<synchronous>, transform_indices = @transform_2, window_bounds = array<i64: 1, 128>}, {pipeline_mode = #tpu.pipeline_mode<synchronous>, transform_indices = @transform_3, window_bounds = array<i64: 128, 128>}, {pipeline_mode = #tpu.pipeline_mode<synchronous>, transform_indices = @transform_4, window_bounds = array<i64: 1, 128>}, {pipeline_mode = #tpu.pipeline_mode<synchronous>, transform_indices = @transform_5, window_bounds = array<i64: 128, 128>}, {pipeline_mode = #tpu.pipeline_mode<synchronous>, transform_indices = @transform_6, window_bounds = array<i64: 1, 128>}, {transform_indices = @transform_7, window_bounds = array<i64: 256, 128>}]} {
    %c0_i32 = arith.constant 0 : i32
    %0 = arith.cmpi eq, %arg1, %c0_i32 : i32
    %1 = arith.extui %0 : i1 to i32
    %c0_i32_0 = arith.constant 0 : i32
    %2 = arith.cmpi ne, %1, %c0_i32_0 : i32
    scf.if %2 {
      %cst_9 = arith.constant 0.000000e+00 : f32
      %12 = vector.broadcast %cst_9 : f32 to vector<256x128xf32>
      %c0_10 = arith.constant 0 : index
      %c0_11 = arith.constant 0 : index
      %13 = vector.load %arg9[%c0_10, %c0_11] : memref<256x128xf32, #tpu.memory_space<vmem>>, vector<256x128xf32>
      tpu.vector_store %arg9[%c0_10, %c0_11], %12 {strides = array<i32>} : memref<256x128xf32, #tpu.memory_space<vmem>>, vector<256x128xf32>,
    } else {
    }
    %c0 = arith.constant 0 : index
    %c0_1 = arith.constant 0 : index
    %3 = vector.load %arg9[%c0, %c0_1] : memref<256x128xf32, #tpu.memory_space<vmem>>, vector<256x128xf32>
    %c0_2 = arith.constant 0 : index
    %c0_3 = arith.constant 0 : index
    %4 = vector.load %arg2[%c0_2, %c0_3] : memref<256x128xbf16, #tpu.memory_space<vmem>>, vector<256x128xbf16>
    %c0_4 = arith.constant 0 : index
    %c0_5 = arith.constant 0 : index
    %5 = vector.load %arg3[%c0_4, %c0_5] : memref<128x128xbf16, #tpu.memory_space<vmem>>, vector<128x128xbf16>
    %cst = arith.constant dense<0.000000e+00> : vector<256x128xf32>
    %6 = tpu.matmul %4, %5, %cst {dimension_numbers = #tpu.dot_dimension_numbers<[1], [0], [0], [1], [0, 0, 1, 1], [], []>} : vector<256x128xbf16>, vector<128x128xbf16>, vector<256x128xf32> -> vector<256x128xf32>
    %7 = arith.addf %3, %6 : vector<256x128xf32>
    %c0_6 = arith.constant 0 : index
    %c0_7 = arith.constant 0 : index
    %8 = vector.load %arg9[%c0_6, %c0_7] : memref<256x128xf32, #tpu.memory_space<vmem>>, vector<256x128xf32>
    tpu.vector_store %arg9[%c0_6, %c0_7], %7 {strides = array<i32>} : memref<256x128xf32, #tpu.memory_space<vmem>>, vector<256x128xf32>,
    %c2_i32 = arith.constant 2 : i32
    %9 = arith.cmpi eq, %arg1, %c2_i32 : i32
    %10 = arith.extui %9 : i1 to i32
    %c0_i32_8 = arith.constant 0 : i32
    %11 = arith.cmpi ne, %10, %c0_i32_8 : i32
    scf.if %11 {
      %c0_9 = arith.constant 0 : index
      %c0_10 = arith.constant 0 : index
      %12 = vector.load %arg9[%c0_9, %c0_10] : memref<256x128xf32, #tpu.memory_space<vmem>>, vector<256x128xf32>
      %c0_11 = arith.constant 0 : index
      %c0_12 = arith.constant 0 : index
      %13 = vector.load %arg4[%c0_11, %c0_12] : memref<1x128xf32, #tpu.memory_space<vmem>>, vector<1x128xf32>
      %14 = vector.broadcast %13 : vector<1x128xf32> to vector<256x128xf32>
      %15 = arith.addf %12, %14 : vector<256x128xf32>
      %cst_13 = arith.constant 0.000000e+00 : f32
      %16 = vector.broadcast %cst_13 : f32 to vector<256x128xf32>
      %17 = arith.maximumf %15, %16 : vector<256x128xf32>
      %18 = arith.truncf %17 : vector<256x128xf32> to vector<256x128xbf16>
      %c0_14 = arith.constant 0 : index
      %c0_15 = arith.constant 0 : index
      %19 = vector.load %arg5[%c0_14, %c0_15] : memref<128x128xbf16, #tpu.memory_space<vmem>>, vector<128x128xbf16>
      %cst_16 = arith.constant dense<0.000000e+00> : vector<256x128xf32>
      %20 = tpu.matmul %18, %19, %cst_16 {dimension_numbers = #tpu.dot_dimension_numbers<[1], [0], [0], [1], [0, 0, 1, 1], [], []>} : vector<256x128xbf16>, vector<128x128xbf16>, vector<256x128xf32> -> vector<256x128xf32>
      %c0_17 = arith.constant 0 : index
      %c0_18 = arith.constant 0 : index
      %21 = vector.load %arg6[%c0_17, %c0_18] : memref<1x128xf32, #tpu.memory_space<vmem>>, vector<1x128xf32>
      %22 = vector.broadcast %21 : vector<1x128xf32> to vector<256x128xf32>
      %23 = arith.addf %20, %22 : vector<256x128xf32>
      %cst_19 = arith.constant 0.000000e+00 : f32
      %24 = vector.broadcast %cst_19 : f32 to vector<256x128xf32>
      %25 = arith.maximumf %23, %24 : vector<256x128xf32>
      %26 = arith.truncf %25 : vector<256x128xf32> to vector<256x128xbf16>
      %c0_20 = arith.constant 0 : index
      %c0_21 = arith.constant 0 : index
      %27 = vector.load %arg7[%c0_20, %c0_21] : memref<128x128xbf16, #tpu.memory_space<vmem>>, vector<128x128xbf16>
      %cst_22 = arith.constant dense<0.000000e+00> : vector<256x128xf32>
      %28 = tpu.matmul %26, %27, %cst_22 {dimension_numbers = #tpu.dot_dimension_numbers<[1], [0], [0], [1], [0, 0, 1, 1], [], []>} : vector<256x128xbf16>, vector<128x128xbf16>, vector<256x128xf32> -> vector<256x128xf32>
      %c0_23 = arith.constant 0 : index
      %c0_24 = arith.constant 0 : index
      %29 = vector.load %arg8[%c0_23, %c0_24] : memref<1x128xf32, #tpu.memory_space<vmem>>, vector<1x128xf32>
      %30 = vector.broadcast %29 : vector<1x128xf32> to vector<256x128xf32>
      %31 = arith.addf %28, %30 : vector<256x128xf32>
      %cst_25 = arith.constant 0.000000e+00 : f32
      %32 = vector.broadcast %cst_25 : f32 to vector<256x128xf32>
      %33 = arith.maximumf %31, %32 : vector<256x128xf32>
      %c0_26 = arith.constant 0 : index
      %c0_27 = arith.constant 0 : index
      %34 = vector.load %arg9[%c0_26, %c0_27] : memref<256x128xf32, #tpu.memory_space<vmem>>, vector<256x128xf32>
      tpu.vector_store %arg9[%c0_26, %c0_27], %33 {strides = array<i32>} : memref<256x128xf32, #tpu.memory_space<vmem>>, vector<256x128xf32>,
    } else {
    }
    return
  }
  func.func @transform_0(%arg0: i32, %arg1: i32) -> (i32, i32) {
    %c0_i32 = arith.constant 0 : i32
    return %arg0, %arg1 : i32, i32
  }
  func.func @transform_1(%arg0: i32, %arg1: i32) -> (i32, i32) {
    %c0_i32 = arith.constant 0 : i32
    %c0_i32_0 = arith.constant 0 : i32
    return %arg1, %c0_i32 : i32, i32
  }
  func.func @transform_2(%arg0: i32, %arg1: i32) -> (i32, i32) {
    %c0_i32 = arith.constant 0 : i32
    %c0_i32_0 = arith.constant 0 : i32
    %c0_i32_1 = arith.constant 0 : i32
    return %c0_i32, %c0_i32_0 : i32, i32
  }
  func.func @transform_3(%arg0: i32, %arg1: i32) -> (i32, i32) {
    %c0_i32 = arith.constant 0 : i32
    %c0_i32_0 = arith.constant 0 : i32
    %c0_i32_1 = arith.constant 0 : i32
    return %c0_i32, %c0_i32_0 : i32, i32
  }
  func.func @transform_4(%arg0: i32, %arg1: i32) -> (i32, i32) {
    %c0_i32 = arith.constant 0 : i32
    %c0_i32_0 = arith.constant 0 : i32
    %c0_i32_1 = arith.constant 0 : i32
    return %c0_i32, %c0_i32_0 : i32, i32
  }
  func.func @transform_5(%arg0: i32, %arg1: i32) -> (i32, i32) {
    %c0_i32 = arith.constant 0 : i32
    %c0_i32_0 = arith.constant 0 : i32
    %c0_i32_1 = arith.constant 0 : i32
    return %c0_i32, %c0_i32_0 : i32, i32
  }
  func.func @transform_6(%arg0: i32, %arg1: i32) -> (i32, i32) {
    %c0_i32 = arith.constant 0 : i32
    %c0_i32_0 = arith.constant 0 : i32
    %c0_i32_1 = arith.constant 0 : i32
    return %c0_i32, %c0_i32_0 : i32, i32
  }
  func.func @transform_7(%arg0: i32, %arg1: i32) -> (i32, i32) {
    %c0_i32 = arith.constant 0 : i32
    %c0_i32_0 = arith.constant 0 : i32
    return %arg0, %c0_i32 : i32, i32
  }
}

module attributes {stable_mosaic.version = 11 : i64} {
  func.func @_max9_kernel(%arg0: i32, %arg1: memref<98x128xf32, #tpu.memory_space<vmem>>, %arg2: memref<98x128xf32, #tpu.memory_space<vmem>>, %arg3: memref<98x128xf32, #tpu.memory_space<vmem>>, %arg4: memref<98x128xf32, #tpu.memory_space<vmem>>, %arg5: memref<98x128xf32, #tpu.memory_space<vmem>>, %arg6: memref<98x128xf32, #tpu.memory_space<vmem>>, %arg7: memref<98x128xf32, #tpu.memory_space<vmem>>, %arg8: memref<98x128xf32, #tpu.memory_space<vmem>>, %arg9: memref<98x128xf32, #tpu.memory_space<vmem>>, %arg10: memref<98x128xf32, #tpu.memory_space<vmem>>) attributes {dimension_semantics = [#tpu.dimension_semantics<parallel>], iteration_bounds = array<i64: 1>, scalar_prefetch = 0 : i64, scratch_operands = 0 : i64, tpu.core_type = #tpu.core_type<tc>, window_params = [{transform_indices = @transform_0, window_bounds = array<i64: 98, 128>}, {transform_indices = @transform_1, window_bounds = array<i64: 98, 128>}, {transform_indices = @transform_2, window_bounds = array<i64: 98, 128>}, {transform_indices = @transform_3, window_bounds = array<i64: 98, 128>}, {transform_indices = @transform_4, window_bounds = array<i64: 98, 128>}, {transform_indices = @transform_5, window_bounds = array<i64: 98, 128>}, {transform_indices = @transform_6, window_bounds = array<i64: 98, 128>}, {transform_indices = @transform_7, window_bounds = array<i64: 98, 128>}, {transform_indices = @transform_8, window_bounds = array<i64: 98, 128>}, {transform_indices = @transform_9, window_bounds = array<i64: 98, 128>}]} {
    %c0 = arith.constant 0 : index
    %c0_0 = arith.constant 0 : index
    %0 = vector.load %arg1[%c0, %c0_0] : memref<98x128xf32, #tpu.memory_space<vmem>>, vector<98x128xf32>
    %c0_1 = arith.constant 0 : index
    %c0_2 = arith.constant 0 : index
    %1 = vector.load %arg2[%c0_1, %c0_2] : memref<98x128xf32, #tpu.memory_space<vmem>>, vector<98x128xf32>
    %2 = arith.maximumf %0, %1 : vector<98x128xf32>
    %c0_3 = arith.constant 0 : index
    %c0_4 = arith.constant 0 : index
    %3 = vector.load %arg3[%c0_3, %c0_4] : memref<98x128xf32, #tpu.memory_space<vmem>>, vector<98x128xf32>
    %4 = arith.maximumf %2, %3 : vector<98x128xf32>
    %c0_5 = arith.constant 0 : index
    %c0_6 = arith.constant 0 : index
    %5 = vector.load %arg4[%c0_5, %c0_6] : memref<98x128xf32, #tpu.memory_space<vmem>>, vector<98x128xf32>
    %6 = arith.maximumf %4, %5 : vector<98x128xf32>
    %c0_7 = arith.constant 0 : index
    %c0_8 = arith.constant 0 : index
    %7 = vector.load %arg5[%c0_7, %c0_8] : memref<98x128xf32, #tpu.memory_space<vmem>>, vector<98x128xf32>
    %8 = arith.maximumf %6, %7 : vector<98x128xf32>
    %c0_9 = arith.constant 0 : index
    %c0_10 = arith.constant 0 : index
    %9 = vector.load %arg6[%c0_9, %c0_10] : memref<98x128xf32, #tpu.memory_space<vmem>>, vector<98x128xf32>
    %10 = arith.maximumf %8, %9 : vector<98x128xf32>
    %c0_11 = arith.constant 0 : index
    %c0_12 = arith.constant 0 : index
    %11 = vector.load %arg7[%c0_11, %c0_12] : memref<98x128xf32, #tpu.memory_space<vmem>>, vector<98x128xf32>
    %12 = arith.maximumf %10, %11 : vector<98x128xf32>
    %c0_13 = arith.constant 0 : index
    %c0_14 = arith.constant 0 : index
    %13 = vector.load %arg8[%c0_13, %c0_14] : memref<98x128xf32, #tpu.memory_space<vmem>>, vector<98x128xf32>
    %14 = arith.maximumf %12, %13 : vector<98x128xf32>
    %c0_15 = arith.constant 0 : index
    %c0_16 = arith.constant 0 : index
    %15 = vector.load %arg9[%c0_15, %c0_16] : memref<98x128xf32, #tpu.memory_space<vmem>>, vector<98x128xf32>
    %16 = arith.maximumf %14, %15 : vector<98x128xf32>
    %c0_17 = arith.constant 0 : index
    %c0_18 = arith.constant 0 : index
    %17 = vector.load %arg10[%c0_17, %c0_18] : memref<98x128xf32, #tpu.memory_space<vmem>>, vector<98x128xf32>
    tpu.vector_store %arg10[%c0_17, %c0_18], %16 {strides = array<i32>} : memref<98x128xf32, #tpu.memory_space<vmem>>, vector<98x128xf32>,
    return
  }
  func.func @transform_0(%arg0: i32) -> (i32, i32) {
    %c0_i32 = arith.constant 0 : i32
    %c0_i32_0 = arith.constant 0 : i32
    return %arg0, %c0_i32 : i32, i32
  }
  func.func @transform_1(%arg0: i32) -> (i32, i32) {
    %c0_i32 = arith.constant 0 : i32
    %c0_i32_0 = arith.constant 0 : i32
    return %arg0, %c0_i32 : i32, i32
  }
  func.func @transform_2(%arg0: i32) -> (i32, i32) {
    %c0_i32 = arith.constant 0 : i32
    %c0_i32_0 = arith.constant 0 : i32
    return %arg0, %c0_i32 : i32, i32
  }
  func.func @transform_3(%arg0: i32) -> (i32, i32) {
    %c0_i32 = arith.constant 0 : i32
    %c0_i32_0 = arith.constant 0 : i32
    return %arg0, %c0_i32 : i32, i32
  }
  func.func @transform_4(%arg0: i32) -> (i32, i32) {
    %c0_i32 = arith.constant 0 : i32
    %c0_i32_0 = arith.constant 0 : i32
    return %arg0, %c0_i32 : i32, i32
  }
  func.func @transform_5(%arg0: i32) -> (i32, i32) {
    %c0_i32 = arith.constant 0 : i32
    %c0_i32_0 = arith.constant 0 : i32
    return %arg0, %c0_i32 : i32, i32
  }
  func.func @transform_6(%arg0: i32) -> (i32, i32) {
    %c0_i32 = arith.constant 0 : i32
    %c0_i32_0 = arith.constant 0 : i32
    return %arg0, %c0_i32 : i32, i32
  }
  func.func @transform_7(%arg0: i32) -> (i32, i32) {
    %c0_i32 = arith.constant 0 : i32
    %c0_i32_0 = arith.constant 0 : i32
    return %arg0, %c0_i32 : i32, i32
  }
  func.func @transform_8(%arg0: i32) -> (i32, i32) {
    %c0_i32 = arith.constant 0 : i32
    %c0_i32_0 = arith.constant 0 : i32
    return %arg0, %c0_i32 : i32, i32
  }
  func.func @transform_9(%arg0: i32) -> (i32, i32) {
    %c0_i32 = arith.constant 0 : i32
    %c0_i32_0 = arith.constant 0 : i32
    return %arg0, %c0_i32 : i32, i32
  }
}

module attributes {stable_mosaic.version = 11 : i64} {
  func.func @_nin_block_kernel(%arg0: i32, %arg1: i32, %arg2: memref<104x128xbf16, #tpu.memory_space<vmem>>, %arg3: memref<128x256xbf16, #tpu.memory_space<vmem>>, %arg4: memref<1x256xf32, #tpu.memory_space<vmem>>, %arg5: memref<256x256xbf16, #tpu.memory_space<vmem>>, %arg6: memref<1x256xf32, #tpu.memory_space<vmem>>, %arg7: memref<256x256xbf16, #tpu.memory_space<vmem>>, %arg8: memref<1x256xf32, #tpu.memory_space<vmem>>, %arg9: memref<104x256xf32, #tpu.memory_space<vmem>>) attributes {dimension_semantics = [#tpu.dimension_semantics<parallel>, #tpu.dimension_semantics<arbitrary>], iteration_bounds = array<i64: 1, 25>, scalar_prefetch = 0 : i64, scratch_operands = 0 : i64, tpu.core_type = #tpu.core_type<tc>, window_params = [{transform_indices = @transform_0, window_bounds = array<i64: 104, 128>}, {transform_indices = @transform_1, window_bounds = array<i64: 128, 256>}, {pipeline_mode = #tpu.pipeline_mode<synchronous>, transform_indices = @transform_2, window_bounds = array<i64: 1, 256>}, {pipeline_mode = #tpu.pipeline_mode<synchronous>, transform_indices = @transform_3, window_bounds = array<i64: 256, 256>}, {pipeline_mode = #tpu.pipeline_mode<synchronous>, transform_indices = @transform_4, window_bounds = array<i64: 1, 256>}, {pipeline_mode = #tpu.pipeline_mode<synchronous>, transform_indices = @transform_5, window_bounds = array<i64: 256, 256>}, {pipeline_mode = #tpu.pipeline_mode<synchronous>, transform_indices = @transform_6, window_bounds = array<i64: 1, 256>}, {transform_indices = @transform_7, window_bounds = array<i64: 104, 256>}]} {
    %c0_i32 = arith.constant 0 : i32
    %0 = arith.cmpi eq, %arg1, %c0_i32 : i32
    %1 = arith.extui %0 : i1 to i32
    %c0_i32_0 = arith.constant 0 : i32
    %2 = arith.cmpi ne, %1, %c0_i32_0 : i32
    scf.if %2 {
      %cst_9 = arith.constant 0.000000e+00 : f32
      %12 = vector.broadcast %cst_9 : f32 to vector<104x256xf32>
      %c0_10 = arith.constant 0 : index
      %c0_11 = arith.constant 0 : index
      %13 = vector.load %arg9[%c0_10, %c0_11] : memref<104x256xf32, #tpu.memory_space<vmem>>, vector<104x256xf32>
      tpu.vector_store %arg9[%c0_10, %c0_11], %12 {strides = array<i32>} : memref<104x256xf32, #tpu.memory_space<vmem>>, vector<104x256xf32>,
    } else {
    }
    %c0 = arith.constant 0 : index
    %c0_1 = arith.constant 0 : index
    %3 = vector.load %arg9[%c0, %c0_1] : memref<104x256xf32, #tpu.memory_space<vmem>>, vector<104x256xf32>
    %c0_2 = arith.constant 0 : index
    %c0_3 = arith.constant 0 : index
    %4 = vector.load %arg2[%c0_2, %c0_3] : memref<104x128xbf16, #tpu.memory_space<vmem>>, vector<104x128xbf16>
    %c0_4 = arith.constant 0 : index
    %c0_5 = arith.constant 0 : index
    %5 = vector.load %arg3[%c0_4, %c0_5] : memref<128x256xbf16, #tpu.memory_space<vmem>>, vector<128x256xbf16>
    %cst = arith.constant dense<0.000000e+00> : vector<104x256xf32>
    %6 = tpu.matmul %4, %5, %cst {dimension_numbers = #tpu.dot_dimension_numbers<[1], [0], [0], [1], [0, 0, 1, 1], [], []>} : vector<104x128xbf16>, vector<128x256xbf16>, vector<104x256xf32> -> vector<104x256xf32>
    %7 = arith.addf %3, %6 : vector<104x256xf32>
    %c0_6 = arith.constant 0 : index
    %c0_7 = arith.constant 0 : index
    %8 = vector.load %arg9[%c0_6, %c0_7] : memref<104x256xf32, #tpu.memory_space<vmem>>, vector<104x256xf32>
    tpu.vector_store %arg9[%c0_6, %c0_7], %7 {strides = array<i32>} : memref<104x256xf32, #tpu.memory_space<vmem>>, vector<104x256xf32>,
    %c24_i32 = arith.constant 24 : i32
    %9 = arith.cmpi eq, %arg1, %c24_i32 : i32
    %10 = arith.extui %9 : i1 to i32
    %c0_i32_8 = arith.constant 0 : i32
    %11 = arith.cmpi ne, %10, %c0_i32_8 : i32
    scf.if %11 {
      %c0_9 = arith.constant 0 : index
      %c0_10 = arith.constant 0 : index
      %12 = vector.load %arg9[%c0_9, %c0_10] : memref<104x256xf32, #tpu.memory_space<vmem>>, vector<104x256xf32>
      %c0_11 = arith.constant 0 : index
      %c0_12 = arith.constant 0 : index
      %13 = vector.load %arg4[%c0_11, %c0_12] : memref<1x256xf32, #tpu.memory_space<vmem>>, vector<1x256xf32>
      %14 = vector.broadcast %13 : vector<1x256xf32> to vector<104x256xf32>
      %15 = arith.addf %12, %14 : vector<104x256xf32>
      %cst_13 = arith.constant 0.000000e+00 : f32
      %16 = vector.broadcast %cst_13 : f32 to vector<104x256xf32>
      %17 = arith.maximumf %15, %16 : vector<104x256xf32>
      %18 = arith.truncf %17 : vector<104x256xf32> to vector<104x256xbf16>
      %c0_14 = arith.constant 0 : index
      %c0_15 = arith.constant 0 : index
      %19 = vector.load %arg5[%c0_14, %c0_15] : memref<256x256xbf16, #tpu.memory_space<vmem>>, vector<256x256xbf16>
      %cst_16 = arith.constant dense<0.000000e+00> : vector<104x256xf32>
      %20 = tpu.matmul %18, %19, %cst_16 {dimension_numbers = #tpu.dot_dimension_numbers<[1], [0], [0], [1], [0, 0, 1, 1], [], []>} : vector<104x256xbf16>, vector<256x256xbf16>, vector<104x256xf32> -> vector<104x256xf32>
      %c0_17 = arith.constant 0 : index
      %c0_18 = arith.constant 0 : index
      %21 = vector.load %arg6[%c0_17, %c0_18] : memref<1x256xf32, #tpu.memory_space<vmem>>, vector<1x256xf32>
      %22 = vector.broadcast %21 : vector<1x256xf32> to vector<104x256xf32>
      %23 = arith.addf %20, %22 : vector<104x256xf32>
      %cst_19 = arith.constant 0.000000e+00 : f32
      %24 = vector.broadcast %cst_19 : f32 to vector<104x256xf32>
      %25 = arith.maximumf %23, %24 : vector<104x256xf32>
      %26 = arith.truncf %25 : vector<104x256xf32> to vector<104x256xbf16>
      %c0_20 = arith.constant 0 : index
      %c0_21 = arith.constant 0 : index
      %27 = vector.load %arg7[%c0_20, %c0_21] : memref<256x256xbf16, #tpu.memory_space<vmem>>, vector<256x256xbf16>
      %cst_22 = arith.constant dense<0.000000e+00> : vector<104x256xf32>
      %28 = tpu.matmul %26, %27, %cst_22 {dimension_numbers = #tpu.dot_dimension_numbers<[1], [0], [0], [1], [0, 0, 1, 1], [], []>} : vector<104x256xbf16>, vector<256x256xbf16>, vector<104x256xf32> -> vector<104x256xf32>
      %c0_23 = arith.constant 0 : index
      %c0_24 = arith.constant 0 : index
      %29 = vector.load %arg8[%c0_23, %c0_24] : memref<1x256xf32, #tpu.memory_space<vmem>>, vector<1x256xf32>
      %30 = vector.broadcast %29 : vector<1x256xf32> to vector<104x256xf32>
      %31 = arith.addf %28, %30 : vector<104x256xf32>
      %cst_25 = arith.constant 0.000000e+00 : f32
      %32 = vector.broadcast %cst_25 : f32 to vector<104x256xf32>
      %33 = arith.maximumf %31, %32 : vector<104x256xf32>
      %c0_26 = arith.constant 0 : index
      %c0_27 = arith.constant 0 : index
      %34 = vector.load %arg9[%c0_26, %c0_27] : memref<104x256xf32, #tpu.memory_space<vmem>>, vector<104x256xf32>
      tpu.vector_store %arg9[%c0_26, %c0_27], %33 {strides = array<i32>} : memref<104x256xf32, #tpu.memory_space<vmem>>, vector<104x256xf32>,
    } else {
    }
    return
  }
  func.func @transform_0(%arg0: i32, %arg1: i32) -> (i32, i32) {
    %c0_i32 = arith.constant 0 : i32
    return %arg0, %arg1 : i32, i32
  }
  func.func @transform_1(%arg0: i32, %arg1: i32) -> (i32, i32) {
    %c0_i32 = arith.constant 0 : i32
    %c0_i32_0 = arith.constant 0 : i32
    return %arg1, %c0_i32 : i32, i32
  }
  func.func @transform_2(%arg0: i32, %arg1: i32) -> (i32, i32) {
    %c0_i32 = arith.constant 0 : i32
    %c0_i32_0 = arith.constant 0 : i32
    %c0_i32_1 = arith.constant 0 : i32
    return %c0_i32, %c0_i32_0 : i32, i32
  }
  func.func @transform_3(%arg0: i32, %arg1: i32) -> (i32, i32) {
    %c0_i32 = arith.constant 0 : i32
    %c0_i32_0 = arith.constant 0 : i32
    %c0_i32_1 = arith.constant 0 : i32
    return %c0_i32, %c0_i32_0 : i32, i32
  }
  func.func @transform_4(%arg0: i32, %arg1: i32) -> (i32, i32) {
    %c0_i32 = arith.constant 0 : i32
    %c0_i32_0 = arith.constant 0 : i32
    %c0_i32_1 = arith.constant 0 : i32
    return %c0_i32, %c0_i32_0 : i32, i32
  }
  func.func @transform_5(%arg0: i32, %arg1: i32) -> (i32, i32) {
    %c0_i32 = arith.constant 0 : i32
    %c0_i32_0 = arith.constant 0 : i32
    %c0_i32_1 = arith.constant 0 : i32
    return %c0_i32, %c0_i32_0 : i32, i32
  }
  func.func @transform_6(%arg0: i32, %arg1: i32) -> (i32, i32) {
    %c0_i32 = arith.constant 0 : i32
    %c0_i32_0 = arith.constant 0 : i32
    %c0_i32_1 = arith.constant 0 : i32
    return %c0_i32, %c0_i32_0 : i32, i32
  }
  func.func @transform_7(%arg0: i32, %arg1: i32) -> (i32, i32) {
    %c0_i32 = arith.constant 0 : i32
    %c0_i32_0 = arith.constant 0 : i32
    return %arg0, %c0_i32 : i32, i32
  }
}

module attributes {stable_mosaic.version = 11 : i64} {
  func.func @_max9_kernel(%arg0: i32, %arg1: memref<18x256xf32, #tpu.memory_space<vmem>>, %arg2: memref<18x256xf32, #tpu.memory_space<vmem>>, %arg3: memref<18x256xf32, #tpu.memory_space<vmem>>, %arg4: memref<18x256xf32, #tpu.memory_space<vmem>>, %arg5: memref<18x256xf32, #tpu.memory_space<vmem>>, %arg6: memref<18x256xf32, #tpu.memory_space<vmem>>, %arg7: memref<18x256xf32, #tpu.memory_space<vmem>>, %arg8: memref<18x256xf32, #tpu.memory_space<vmem>>, %arg9: memref<18x256xf32, #tpu.memory_space<vmem>>, %arg10: memref<18x256xf32, #tpu.memory_space<vmem>>) attributes {dimension_semantics = [#tpu.dimension_semantics<parallel>], iteration_bounds = array<i64: 1>, scalar_prefetch = 0 : i64, scratch_operands = 0 : i64, tpu.core_type = #tpu.core_type<tc>, window_params = [{transform_indices = @transform_0, window_bounds = array<i64: 18, 256>}, {transform_indices = @transform_1, window_bounds = array<i64: 18, 256>}, {transform_indices = @transform_2, window_bounds = array<i64: 18, 256>}, {transform_indices = @transform_3, window_bounds = array<i64: 18, 256>}, {transform_indices = @transform_4, window_bounds = array<i64: 18, 256>}, {transform_indices = @transform_5, window_bounds = array<i64: 18, 256>}, {transform_indices = @transform_6, window_bounds = array<i64: 18, 256>}, {transform_indices = @transform_7, window_bounds = array<i64: 18, 256>}, {transform_indices = @transform_8, window_bounds = array<i64: 18, 256>}, {transform_indices = @transform_9, window_bounds = array<i64: 18, 256>}]} {
    %c0 = arith.constant 0 : index
    %c0_0 = arith.constant 0 : index
    %0 = vector.load %arg1[%c0, %c0_0] : memref<18x256xf32, #tpu.memory_space<vmem>>, vector<18x256xf32>
    %c0_1 = arith.constant 0 : index
    %c0_2 = arith.constant 0 : index
    %1 = vector.load %arg2[%c0_1, %c0_2] : memref<18x256xf32, #tpu.memory_space<vmem>>, vector<18x256xf32>
    %2 = arith.maximumf %0, %1 : vector<18x256xf32>
    %c0_3 = arith.constant 0 : index
    %c0_4 = arith.constant 0 : index
    %3 = vector.load %arg3[%c0_3, %c0_4] : memref<18x256xf32, #tpu.memory_space<vmem>>, vector<18x256xf32>
    %4 = arith.maximumf %2, %3 : vector<18x256xf32>
    %c0_5 = arith.constant 0 : index
    %c0_6 = arith.constant 0 : index
    %5 = vector.load %arg4[%c0_5, %c0_6] : memref<18x256xf32, #tpu.memory_space<vmem>>, vector<18x256xf32>
    %6 = arith.maximumf %4, %5 : vector<18x256xf32>
    %c0_7 = arith.constant 0 : index
    %c0_8 = arith.constant 0 : index
    %7 = vector.load %arg5[%c0_7, %c0_8] : memref<18x256xf32, #tpu.memory_space<vmem>>, vector<18x256xf32>
    %8 = arith.maximumf %6, %7 : vector<18x256xf32>
    %c0_9 = arith.constant 0 : index
    %c0_10 = arith.constant 0 : index
    %9 = vector.load %arg6[%c0_9, %c0_10] : memref<18x256xf32, #tpu.memory_space<vmem>>, vector<18x256xf32>
    %10 = arith.maximumf %8, %9 : vector<18x256xf32>
    %c0_11 = arith.constant 0 : index
    %c0_12 = arith.constant 0 : index
    %11 = vector.load %arg7[%c0_11, %c0_12] : memref<18x256xf32, #tpu.memory_space<vmem>>, vector<18x256xf32>
    %12 = arith.maximumf %10, %11 : vector<18x256xf32>
    %c0_13 = arith.constant 0 : index
    %c0_14 = arith.constant 0 : index
    %13 = vector.load %arg8[%c0_13, %c0_14] : memref<18x256xf32, #tpu.memory_space<vmem>>, vector<18x256xf32>
    %14 = arith.maximumf %12, %13 : vector<18x256xf32>
    %c0_15 = arith.constant 0 : index
    %c0_16 = arith.constant 0 : index
    %15 = vector.load %arg9[%c0_15, %c0_16] : memref<18x256xf32, #tpu.memory_space<vmem>>, vector<18x256xf32>
    %16 = arith.maximumf %14, %15 : vector<18x256xf32>
    %c0_17 = arith.constant 0 : index
    %c0_18 = arith.constant 0 : index
    %17 = vector.load %arg10[%c0_17, %c0_18] : memref<18x256xf32, #tpu.memory_space<vmem>>, vector<18x256xf32>
    tpu.vector_store %arg10[%c0_17, %c0_18], %16 {strides = array<i32>} : memref<18x256xf32, #tpu.memory_space<vmem>>, vector<18x256xf32>,
    return
  }
  func.func @transform_0(%arg0: i32) -> (i32, i32) {
    %c0_i32 = arith.constant 0 : i32
    %c0_i32_0 = arith.constant 0 : i32
    return %arg0, %c0_i32 : i32, i32
  }
  func.func @transform_1(%arg0: i32) -> (i32, i32) {
    %c0_i32 = arith.constant 0 : i32
    %c0_i32_0 = arith.constant 0 : i32
    return %arg0, %c0_i32 : i32, i32
  }
  func.func @transform_2(%arg0: i32) -> (i32, i32) {
    %c0_i32 = arith.constant 0 : i32
    %c0_i32_0 = arith.constant 0 : i32
    return %arg0, %c0_i32 : i32, i32
  }
  func.func @transform_3(%arg0: i32) -> (i32, i32) {
    %c0_i32 = arith.constant 0 : i32
    %c0_i32_0 = arith.constant 0 : i32
    return %arg0, %c0_i32 : i32, i32
  }
  func.func @transform_4(%arg0: i32) -> (i32, i32) {
    %c0_i32 = arith.constant 0 : i32
    %c0_i32_0 = arith.constant 0 : i32
    return %arg0, %c0_i32 : i32, i32
  }
  func.func @transform_5(%arg0: i32) -> (i32, i32) {
    %c0_i32 = arith.constant 0 : i32
    %c0_i32_0 = arith.constant 0 : i32
    return %arg0, %c0_i32 : i32, i32
  }
  func.func @transform_6(%arg0: i32) -> (i32, i32) {
    %c0_i32 = arith.constant 0 : i32
    %c0_i32_0 = arith.constant 0 : i32
    return %arg0, %c0_i32 : i32, i32
  }
  func.func @transform_7(%arg0: i32) -> (i32, i32) {
    %c0_i32 = arith.constant 0 : i32
    %c0_i32_0 = arith.constant 0 : i32
    return %arg0, %c0_i32 : i32, i32
  }
  func.func @transform_8(%arg0: i32) -> (i32, i32) {
    %c0_i32 = arith.constant 0 : i32
    %c0_i32_0 = arith.constant 0 : i32
    return %arg0, %c0_i32 : i32, i32
  }
  func.func @transform_9(%arg0: i32) -> (i32, i32) {
    %c0_i32 = arith.constant 0 : i32
    %c0_i32_0 = arith.constant 0 : i32
    return %arg0, %c0_i32 : i32, i32
  }
}

module attributes {stable_mosaic.version = 11 : i64} {
  func.func @_nin_block_kernel(%arg0: i32, %arg1: i32, %arg2: memref<24x256xbf16, #tpu.memory_space<vmem>>, %arg3: memref<256x384xbf16, #tpu.memory_space<vmem>>, %arg4: memref<1x384xf32, #tpu.memory_space<vmem>>, %arg5: memref<384x384xbf16, #tpu.memory_space<vmem>>, %arg6: memref<1x384xf32, #tpu.memory_space<vmem>>, %arg7: memref<384x384xbf16, #tpu.memory_space<vmem>>, %arg8: memref<1x384xf32, #tpu.memory_space<vmem>>, %arg9: memref<24x384xf32, #tpu.memory_space<vmem>>) attributes {dimension_semantics = [#tpu.dimension_semantics<parallel>, #tpu.dimension_semantics<arbitrary>], iteration_bounds = array<i64: 1, 9>, scalar_prefetch = 0 : i64, scratch_operands = 0 : i64, tpu.core_type = #tpu.core_type<tc>, window_params = [{transform_indices = @transform_0, window_bounds = array<i64: 24, 256>}, {transform_indices = @transform_1, window_bounds = array<i64: 256, 384>}, {pipeline_mode = #tpu.pipeline_mode<synchronous>, transform_indices = @transform_2, window_bounds = array<i64: 1, 384>}, {pipeline_mode = #tpu.pipeline_mode<synchronous>, transform_indices = @transform_3, window_bounds = array<i64: 384, 384>}, {pipeline_mode = #tpu.pipeline_mode<synchronous>, transform_indices = @transform_4, window_bounds = array<i64: 1, 384>}, {pipeline_mode = #tpu.pipeline_mode<synchronous>, transform_indices = @transform_5, window_bounds = array<i64: 384, 384>}, {pipeline_mode = #tpu.pipeline_mode<synchronous>, transform_indices = @transform_6, window_bounds = array<i64: 1, 384>}, {transform_indices = @transform_7, window_bounds = array<i64: 24, 384>}]} {
    %c0_i32 = arith.constant 0 : i32
    %0 = arith.cmpi eq, %arg1, %c0_i32 : i32
    %1 = arith.extui %0 : i1 to i32
    %c0_i32_0 = arith.constant 0 : i32
    %2 = arith.cmpi ne, %1, %c0_i32_0 : i32
    scf.if %2 {
      %cst_9 = arith.constant 0.000000e+00 : f32
      %12 = vector.broadcast %cst_9 : f32 to vector<24x384xf32>
      %c0_10 = arith.constant 0 : index
      %c0_11 = arith.constant 0 : index
      %13 = vector.load %arg9[%c0_10, %c0_11] : memref<24x384xf32, #tpu.memory_space<vmem>>, vector<24x384xf32>
      tpu.vector_store %arg9[%c0_10, %c0_11], %12 {strides = array<i32>} : memref<24x384xf32, #tpu.memory_space<vmem>>, vector<24x384xf32>,
    } else {
    }
    %c0 = arith.constant 0 : index
    %c0_1 = arith.constant 0 : index
    %3 = vector.load %arg9[%c0, %c0_1] : memref<24x384xf32, #tpu.memory_space<vmem>>, vector<24x384xf32>
    %c0_2 = arith.constant 0 : index
    %c0_3 = arith.constant 0 : index
    %4 = vector.load %arg2[%c0_2, %c0_3] : memref<24x256xbf16, #tpu.memory_space<vmem>>, vector<24x256xbf16>
    %c0_4 = arith.constant 0 : index
    %c0_5 = arith.constant 0 : index
    %5 = vector.load %arg3[%c0_4, %c0_5] : memref<256x384xbf16, #tpu.memory_space<vmem>>, vector<256x384xbf16>
    %cst = arith.constant dense<0.000000e+00> : vector<24x384xf32>
    %6 = tpu.matmul %4, %5, %cst {dimension_numbers = #tpu.dot_dimension_numbers<[1], [0], [0], [1], [0, 0, 1, 1], [], []>} : vector<24x256xbf16>, vector<256x384xbf16>, vector<24x384xf32> -> vector<24x384xf32>
    %7 = arith.addf %3, %6 : vector<24x384xf32>
    %c0_6 = arith.constant 0 : index
    %c0_7 = arith.constant 0 : index
    %8 = vector.load %arg9[%c0_6, %c0_7] : memref<24x384xf32, #tpu.memory_space<vmem>>, vector<24x384xf32>
    tpu.vector_store %arg9[%c0_6, %c0_7], %7 {strides = array<i32>} : memref<24x384xf32, #tpu.memory_space<vmem>>, vector<24x384xf32>,
    %c8_i32 = arith.constant 8 : i32
    %9 = arith.cmpi eq, %arg1, %c8_i32 : i32
    %10 = arith.extui %9 : i1 to i32
    %c0_i32_8 = arith.constant 0 : i32
    %11 = arith.cmpi ne, %10, %c0_i32_8 : i32
    scf.if %11 {
      %c0_9 = arith.constant 0 : index
      %c0_10 = arith.constant 0 : index
      %12 = vector.load %arg9[%c0_9, %c0_10] : memref<24x384xf32, #tpu.memory_space<vmem>>, vector<24x384xf32>
      %c0_11 = arith.constant 0 : index
      %c0_12 = arith.constant 0 : index
      %13 = vector.load %arg4[%c0_11, %c0_12] : memref<1x384xf32, #tpu.memory_space<vmem>>, vector<1x384xf32>
      %14 = vector.broadcast %13 : vector<1x384xf32> to vector<24x384xf32>
      %15 = arith.addf %12, %14 : vector<24x384xf32>
      %cst_13 = arith.constant 0.000000e+00 : f32
      %16 = vector.broadcast %cst_13 : f32 to vector<24x384xf32>
      %17 = arith.maximumf %15, %16 : vector<24x384xf32>
      %18 = arith.truncf %17 : vector<24x384xf32> to vector<24x384xbf16>
      %c0_14 = arith.constant 0 : index
      %c0_15 = arith.constant 0 : index
      %19 = vector.load %arg5[%c0_14, %c0_15] : memref<384x384xbf16, #tpu.memory_space<vmem>>, vector<384x384xbf16>
      %cst_16 = arith.constant dense<0.000000e+00> : vector<24x384xf32>
      %20 = tpu.matmul %18, %19, %cst_16 {dimension_numbers = #tpu.dot_dimension_numbers<[1], [0], [0], [1], [0, 0, 1, 1], [], []>} : vector<24x384xbf16>, vector<384x384xbf16>, vector<24x384xf32> -> vector<24x384xf32>
      %c0_17 = arith.constant 0 : index
      %c0_18 = arith.constant 0 : index
      %21 = vector.load %arg6[%c0_17, %c0_18] : memref<1x384xf32, #tpu.memory_space<vmem>>, vector<1x384xf32>
      %22 = vector.broadcast %21 : vector<1x384xf32> to vector<24x384xf32>
      %23 = arith.addf %20, %22 : vector<24x384xf32>
      %cst_19 = arith.constant 0.000000e+00 : f32
      %24 = vector.broadcast %cst_19 : f32 to vector<24x384xf32>
      %25 = arith.maximumf %23, %24 : vector<24x384xf32>
      %26 = arith.truncf %25 : vector<24x384xf32> to vector<24x384xbf16>
      %c0_20 = arith.constant 0 : index
      %c0_21 = arith.constant 0 : index
      %27 = vector.load %arg7[%c0_20, %c0_21] : memref<384x384xbf16, #tpu.memory_space<vmem>>, vector<384x384xbf16>
      %cst_22 = arith.constant dense<0.000000e+00> : vector<24x384xf32>
      %28 = tpu.matmul %26, %27, %cst_22 {dimension_numbers = #tpu.dot_dimension_numbers<[1], [0], [0], [1], [0, 0, 1, 1], [], []>} : vector<24x384xbf16>, vector<384x384xbf16>, vector<24x384xf32> -> vector<24x384xf32>
      %c0_23 = arith.constant 0 : index
      %c0_24 = arith.constant 0 : index
      %29 = vector.load %arg8[%c0_23, %c0_24] : memref<1x384xf32, #tpu.memory_space<vmem>>, vector<1x384xf32>
      %30 = vector.broadcast %29 : vector<1x384xf32> to vector<24x384xf32>
      %31 = arith.addf %28, %30 : vector<24x384xf32>
      %cst_25 = arith.constant 0.000000e+00 : f32
      %32 = vector.broadcast %cst_25 : f32 to vector<24x384xf32>
      %33 = arith.maximumf %31, %32 : vector<24x384xf32>
      %c0_26 = arith.constant 0 : index
      %c0_27 = arith.constant 0 : index
      %34 = vector.load %arg9[%c0_26, %c0_27] : memref<24x384xf32, #tpu.memory_space<vmem>>, vector<24x384xf32>
      tpu.vector_store %arg9[%c0_26, %c0_27], %33 {strides = array<i32>} : memref<24x384xf32, #tpu.memory_space<vmem>>, vector<24x384xf32>,
    } else {
    }
    return
  }
  func.func @transform_0(%arg0: i32, %arg1: i32) -> (i32, i32) {
    %c0_i32 = arith.constant 0 : i32
    return %arg0, %arg1 : i32, i32
  }
  func.func @transform_1(%arg0: i32, %arg1: i32) -> (i32, i32) {
    %c0_i32 = arith.constant 0 : i32
    %c0_i32_0 = arith.constant 0 : i32
    return %arg1, %c0_i32 : i32, i32
  }
  func.func @transform_2(%arg0: i32, %arg1: i32) -> (i32, i32) {
    %c0_i32 = arith.constant 0 : i32
    %c0_i32_0 = arith.constant 0 : i32
    %c0_i32_1 = arith.constant 0 : i32
    return %c0_i32, %c0_i32_0 : i32, i32
  }
  func.func @transform_3(%arg0: i32, %arg1: i32) -> (i32, i32) {
    %c0_i32 = arith.constant 0 : i32
    %c0_i32_0 = arith.constant 0 : i32
    %c0_i32_1 = arith.constant 0 : i32
    return %c0_i32, %c0_i32_0 : i32, i32
  }
  func.func @transform_4(%arg0: i32, %arg1: i32) -> (i32, i32) {
    %c0_i32 = arith.constant 0 : i32
    %c0_i32_0 = arith.constant 0 : i32
    %c0_i32_1 = arith.constant 0 : i32
    return %c0_i32, %c0_i32_0 : i32, i32
  }
  func.func @transform_5(%arg0: i32, %arg1: i32) -> (i32, i32) {
    %c0_i32 = arith.constant 0 : i32
    %c0_i32_0 = arith.constant 0 : i32
    %c0_i32_1 = arith.constant 0 : i32
    return %c0_i32, %c0_i32_0 : i32, i32
  }
  func.func @transform_6(%arg0: i32, %arg1: i32) -> (i32, i32) {
    %c0_i32 = arith.constant 0 : i32
    %c0_i32_0 = arith.constant 0 : i32
    %c0_i32_1 = arith.constant 0 : i32
    return %c0_i32, %c0_i32_0 : i32, i32
  }
  func.func @transform_7(%arg0: i32, %arg1: i32) -> (i32, i32) {
    %c0_i32 = arith.constant 0 : i32
    %c0_i32_0 = arith.constant 0 : i32
    return %arg0, %c0_i32 : i32, i32
  }
}

module attributes {stable_mosaic.version = 11 : i64} {
  func.func @_max9_kernel(%arg0: i32, %arg1: memref<2x384xf32, #tpu.memory_space<vmem>>, %arg2: memref<2x384xf32, #tpu.memory_space<vmem>>, %arg3: memref<2x384xf32, #tpu.memory_space<vmem>>, %arg4: memref<2x384xf32, #tpu.memory_space<vmem>>, %arg5: memref<2x384xf32, #tpu.memory_space<vmem>>, %arg6: memref<2x384xf32, #tpu.memory_space<vmem>>, %arg7: memref<2x384xf32, #tpu.memory_space<vmem>>, %arg8: memref<2x384xf32, #tpu.memory_space<vmem>>, %arg9: memref<2x384xf32, #tpu.memory_space<vmem>>, %arg10: memref<2x384xf32, #tpu.memory_space<vmem>>) attributes {dimension_semantics = [#tpu.dimension_semantics<parallel>], iteration_bounds = array<i64: 1>, scalar_prefetch = 0 : i64, scratch_operands = 0 : i64, tpu.core_type = #tpu.core_type<tc>, window_params = [{transform_indices = @transform_0, window_bounds = array<i64: 2, 384>}, {transform_indices = @transform_1, window_bounds = array<i64: 2, 384>}, {transform_indices = @transform_2, window_bounds = array<i64: 2, 384>}, {transform_indices = @transform_3, window_bounds = array<i64: 2, 384>}, {transform_indices = @transform_4, window_bounds = array<i64: 2, 384>}, {transform_indices = @transform_5, window_bounds = array<i64: 2, 384>}, {transform_indices = @transform_6, window_bounds = array<i64: 2, 384>}, {transform_indices = @transform_7, window_bounds = array<i64: 2, 384>}, {transform_indices = @transform_8, window_bounds = array<i64: 2, 384>}, {transform_indices = @transform_9, window_bounds = array<i64: 2, 384>}]} {
    %c0 = arith.constant 0 : index
    %c0_0 = arith.constant 0 : index
    %0 = vector.load %arg1[%c0, %c0_0] : memref<2x384xf32, #tpu.memory_space<vmem>>, vector<2x384xf32>
    %c0_1 = arith.constant 0 : index
    %c0_2 = arith.constant 0 : index
    %1 = vector.load %arg2[%c0_1, %c0_2] : memref<2x384xf32, #tpu.memory_space<vmem>>, vector<2x384xf32>
    %2 = arith.maximumf %0, %1 : vector<2x384xf32>
    %c0_3 = arith.constant 0 : index
    %c0_4 = arith.constant 0 : index
    %3 = vector.load %arg3[%c0_3, %c0_4] : memref<2x384xf32, #tpu.memory_space<vmem>>, vector<2x384xf32>
    %4 = arith.maximumf %2, %3 : vector<2x384xf32>
    %c0_5 = arith.constant 0 : index
    %c0_6 = arith.constant 0 : index
    %5 = vector.load %arg4[%c0_5, %c0_6] : memref<2x384xf32, #tpu.memory_space<vmem>>, vector<2x384xf32>
    %6 = arith.maximumf %4, %5 : vector<2x384xf32>
    %c0_7 = arith.constant 0 : index
    %c0_8 = arith.constant 0 : index
    %7 = vector.load %arg5[%c0_7, %c0_8] : memref<2x384xf32, #tpu.memory_space<vmem>>, vector<2x384xf32>
    %8 = arith.maximumf %6, %7 : vector<2x384xf32>
    %c0_9 = arith.constant 0 : index
    %c0_10 = arith.constant 0 : index
    %9 = vector.load %arg6[%c0_9, %c0_10] : memref<2x384xf32, #tpu.memory_space<vmem>>, vector<2x384xf32>
    %10 = arith.maximumf %8, %9 : vector<2x384xf32>
    %c0_11 = arith.constant 0 : index
    %c0_12 = arith.constant 0 : index
    %11 = vector.load %arg7[%c0_11, %c0_12] : memref<2x384xf32, #tpu.memory_space<vmem>>, vector<2x384xf32>
    %12 = arith.maximumf %10, %11 : vector<2x384xf32>
    %c0_13 = arith.constant 0 : index
    %c0_14 = arith.constant 0 : index
    %13 = vector.load %arg8[%c0_13, %c0_14] : memref<2x384xf32, #tpu.memory_space<vmem>>, vector<2x384xf32>
    %14 = arith.maximumf %12, %13 : vector<2x384xf32>
    %c0_15 = arith.constant 0 : index
    %c0_16 = arith.constant 0 : index
    %15 = vector.load %arg9[%c0_15, %c0_16] : memref<2x384xf32, #tpu.memory_space<vmem>>, vector<2x384xf32>
    %16 = arith.maximumf %14, %15 : vector<2x384xf32>
    %c0_17 = arith.constant 0 : index
    %c0_18 = arith.constant 0 : index
    %17 = vector.load %arg10[%c0_17, %c0_18] : memref<2x384xf32, #tpu.memory_space<vmem>>, vector<2x384xf32>
    tpu.vector_store %arg10[%c0_17, %c0_18], %16 {strides = array<i32>} : memref<2x384xf32, #tpu.memory_space<vmem>>, vector<2x384xf32>,
    return
  }
  func.func @transform_0(%arg0: i32) -> (i32, i32) {
    %c0_i32 = arith.constant 0 : i32
    %c0_i32_0 = arith.constant 0 : i32
    return %arg0, %c0_i32 : i32, i32
  }
  func.func @transform_1(%arg0: i32) -> (i32, i32) {
    %c0_i32 = arith.constant 0 : i32
    %c0_i32_0 = arith.constant 0 : i32
    return %arg0, %c0_i32 : i32, i32
  }
  func.func @transform_2(%arg0: i32) -> (i32, i32) {
    %c0_i32 = arith.constant 0 : i32
    %c0_i32_0 = arith.constant 0 : i32
    return %arg0, %c0_i32 : i32, i32
  }
  func.func @transform_3(%arg0: i32) -> (i32, i32) {
    %c0_i32 = arith.constant 0 : i32
    %c0_i32_0 = arith.constant 0 : i32
    return %arg0, %c0_i32 : i32, i32
  }
  func.func @transform_4(%arg0: i32) -> (i32, i32) {
    %c0_i32 = arith.constant 0 : i32
    %c0_i32_0 = arith.constant 0 : i32
    return %arg0, %c0_i32 : i32, i32
  }
  func.func @transform_5(%arg0: i32) -> (i32, i32) {
    %c0_i32 = arith.constant 0 : i32
    %c0_i32_0 = arith.constant 0 : i32
    return %arg0, %c0_i32 : i32, i32
  }
  func.func @transform_6(%arg0: i32) -> (i32, i32) {
    %c0_i32 = arith.constant 0 : i32
    %c0_i32_0 = arith.constant 0 : i32
    return %arg0, %c0_i32 : i32, i32
  }
  func.func @transform_7(%arg0: i32) -> (i32, i32) {
    %c0_i32 = arith.constant 0 : i32
    %c0_i32_0 = arith.constant 0 : i32
    return %arg0, %c0_i32 : i32, i32
  }
  func.func @transform_8(%arg0: i32) -> (i32, i32) {
    %c0_i32 = arith.constant 0 : i32
    %c0_i32_0 = arith.constant 0 : i32
    return %arg0, %c0_i32 : i32, i32
  }
  func.func @transform_9(%arg0: i32) -> (i32, i32) {
    %c0_i32 = arith.constant 0 : i32
    %c0_i32_0 = arith.constant 0 : i32
    return %arg0, %c0_i32 : i32, i32
  }
}

module attributes {stable_mosaic.version = 11 : i64} {
  func.func @_nin_block_kernel(%arg0: i32, %arg1: i32, %arg2: memref<8x128xbf16, #tpu.memory_space<vmem>>, %arg3: memref<128x128xbf16, #tpu.memory_space<vmem>>, %arg4: memref<1x128xf32, #tpu.memory_space<vmem>>, %arg5: memref<128x128xbf16, #tpu.memory_space<vmem>>, %arg6: memref<1x128xf32, #tpu.memory_space<vmem>>, %arg7: memref<128x128xbf16, #tpu.memory_space<vmem>>, %arg8: memref<1x128xf32, #tpu.memory_space<vmem>>, %arg9: memref<8x128xf32, #tpu.memory_space<vmem>>) attributes {dimension_semantics = [#tpu.dimension_semantics<parallel>, #tpu.dimension_semantics<arbitrary>], iteration_bounds = array<i64: 1, 27>, scalar_prefetch = 0 : i64, scratch_operands = 0 : i64, tpu.core_type = #tpu.core_type<tc>, window_params = [{transform_indices = @transform_0, window_bounds = array<i64: 8, 128>}, {transform_indices = @transform_1, window_bounds = array<i64: 128, 128>}, {pipeline_mode = #tpu.pipeline_mode<synchronous>, transform_indices = @transform_2, window_bounds = array<i64: 1, 128>}, {pipeline_mode = #tpu.pipeline_mode<synchronous>, transform_indices = @transform_3, window_bounds = array<i64: 128, 128>}, {pipeline_mode = #tpu.pipeline_mode<synchronous>, transform_indices = @transform_4, window_bounds = array<i64: 1, 128>}, {pipeline_mode = #tpu.pipeline_mode<synchronous>, transform_indices = @transform_5, window_bounds = array<i64: 128, 128>}, {pipeline_mode = #tpu.pipeline_mode<synchronous>, transform_indices = @transform_6, window_bounds = array<i64: 1, 128>}, {transform_indices = @transform_7, window_bounds = array<i64: 8, 128>}]} {
    %c0_i32 = arith.constant 0 : i32
    %0 = arith.cmpi eq, %arg1, %c0_i32 : i32
    %1 = arith.extui %0 : i1 to i32
    %c0_i32_0 = arith.constant 0 : i32
    %2 = arith.cmpi ne, %1, %c0_i32_0 : i32
    scf.if %2 {
      %cst_9 = arith.constant 0.000000e+00 : f32
      %12 = vector.broadcast %cst_9 : f32 to vector<8x128xf32>
      %c0_10 = arith.constant 0 : index
      %c0_11 = arith.constant 0 : index
      %13 = vector.load %arg9[%c0_10, %c0_11] : memref<8x128xf32, #tpu.memory_space<vmem>>, vector<8x128xf32>
      tpu.vector_store %arg9[%c0_10, %c0_11], %12 {strides = array<i32>} : memref<8x128xf32, #tpu.memory_space<vmem>>, vector<8x128xf32>,
    } else {
    }
    %c0 = arith.constant 0 : index
    %c0_1 = arith.constant 0 : index
    %3 = vector.load %arg9[%c0, %c0_1] : memref<8x128xf32, #tpu.memory_space<vmem>>, vector<8x128xf32>
    %c0_2 = arith.constant 0 : index
    %c0_3 = arith.constant 0 : index
    %4 = vector.load %arg2[%c0_2, %c0_3] : memref<8x128xbf16, #tpu.memory_space<vmem>>, vector<8x128xbf16>
    %c0_4 = arith.constant 0 : index
    %c0_5 = arith.constant 0 : index
    %5 = vector.load %arg3[%c0_4, %c0_5] : memref<128x128xbf16, #tpu.memory_space<vmem>>, vector<128x128xbf16>
    %cst = arith.constant dense<0.000000e+00> : vector<8x128xf32>
    %6 = tpu.matmul %4, %5, %cst {dimension_numbers = #tpu.dot_dimension_numbers<[1], [0], [0], [1], [0, 0, 1, 1], [], []>} : vector<8x128xbf16>, vector<128x128xbf16>, vector<8x128xf32> -> vector<8x128xf32>
    %7 = arith.addf %3, %6 : vector<8x128xf32>
    %c0_6 = arith.constant 0 : index
    %c0_7 = arith.constant 0 : index
    %8 = vector.load %arg9[%c0_6, %c0_7] : memref<8x128xf32, #tpu.memory_space<vmem>>, vector<8x128xf32>
    tpu.vector_store %arg9[%c0_6, %c0_7], %7 {strides = array<i32>} : memref<8x128xf32, #tpu.memory_space<vmem>>, vector<8x128xf32>,
    %c26_i32 = arith.constant 26 : i32
    %9 = arith.cmpi eq, %arg1, %c26_i32 : i32
    %10 = arith.extui %9 : i1 to i32
    %c0_i32_8 = arith.constant 0 : i32
    %11 = arith.cmpi ne, %10, %c0_i32_8 : i32
    scf.if %11 {
      %c0_9 = arith.constant 0 : index
      %c0_10 = arith.constant 0 : index
      %12 = vector.load %arg9[%c0_9, %c0_10] : memref<8x128xf32, #tpu.memory_space<vmem>>, vector<8x128xf32>
      %c0_11 = arith.constant 0 : index
      %c0_12 = arith.constant 0 : index
      %13 = vector.load %arg4[%c0_11, %c0_12] : memref<1x128xf32, #tpu.memory_space<vmem>>, vector<1x128xf32>
      %14 = vector.broadcast %13 : vector<1x128xf32> to vector<8x128xf32>
      %15 = arith.addf %12, %14 : vector<8x128xf32>
      %cst_13 = arith.constant 0.000000e+00 : f32
      %16 = vector.broadcast %cst_13 : f32 to vector<8x128xf32>
      %17 = arith.maximumf %15, %16 : vector<8x128xf32>
      %18 = arith.truncf %17 : vector<8x128xf32> to vector<8x128xbf16>
      %c0_14 = arith.constant 0 : index
      %c0_15 = arith.constant 0 : index
      %19 = vector.load %arg5[%c0_14, %c0_15] : memref<128x128xbf16, #tpu.memory_space<vmem>>, vector<128x128xbf16>
      %cst_16 = arith.constant dense<0.000000e+00> : vector<8x128xf32>
      %20 = tpu.matmul %18, %19, %cst_16 {dimension_numbers = #tpu.dot_dimension_numbers<[1], [0], [0], [1], [0, 0, 1, 1], [], []>} : vector<8x128xbf16>, vector<128x128xbf16>, vector<8x128xf32> -> vector<8x128xf32>
      %c0_17 = arith.constant 0 : index
      %c0_18 = arith.constant 0 : index
      %21 = vector.load %arg6[%c0_17, %c0_18] : memref<1x128xf32, #tpu.memory_space<vmem>>, vector<1x128xf32>
      %22 = vector.broadcast %21 : vector<1x128xf32> to vector<8x128xf32>
      %23 = arith.addf %20, %22 : vector<8x128xf32>
      %cst_19 = arith.constant 0.000000e+00 : f32
      %24 = vector.broadcast %cst_19 : f32 to vector<8x128xf32>
      %25 = arith.maximumf %23, %24 : vector<8x128xf32>
      %26 = arith.truncf %25 : vector<8x128xf32> to vector<8x128xbf16>
      %c0_20 = arith.constant 0 : index
      %c0_21 = arith.constant 0 : index
      %27 = vector.load %arg7[%c0_20, %c0_21] : memref<128x128xbf16, #tpu.memory_space<vmem>>, vector<128x128xbf16>
      %cst_22 = arith.constant dense<0.000000e+00> : vector<8x128xf32>
      %28 = tpu.matmul %26, %27, %cst_22 {dimension_numbers = #tpu.dot_dimension_numbers<[1], [0], [0], [1], [0, 0, 1, 1], [], []>} : vector<8x128xbf16>, vector<128x128xbf16>, vector<8x128xf32> -> vector<8x128xf32>
      %c0_23 = arith.constant 0 : index
      %c0_24 = arith.constant 0 : index
      %29 = vector.load %arg8[%c0_23, %c0_24] : memref<1x128xf32, #tpu.memory_space<vmem>>, vector<1x128xf32>
      %30 = vector.broadcast %29 : vector<1x128xf32> to vector<8x128xf32>
      %31 = arith.addf %28, %30 : vector<8x128xf32>
      %cst_25 = arith.constant 0.000000e+00 : f32
      %32 = vector.broadcast %cst_25 : f32 to vector<8x128xf32>
      %33 = arith.maximumf %31, %32 : vector<8x128xf32>
      %c0_26 = arith.constant 0 : index
      %c0_27 = arith.constant 0 : index
      %34 = vector.load %arg9[%c0_26, %c0_27] : memref<8x128xf32, #tpu.memory_space<vmem>>, vector<8x128xf32>
      tpu.vector_store %arg9[%c0_26, %c0_27], %33 {strides = array<i32>} : memref<8x128xf32, #tpu.memory_space<vmem>>, vector<8x128xf32>,
    } else {
    }
    return
  }
  func.func @transform_0(%arg0: i32, %arg1: i32) -> (i32, i32) {
    %c0_i32 = arith.constant 0 : i32
    return %arg0, %arg1 : i32, i32
  }
  func.func @transform_1(%arg0: i32, %arg1: i32) -> (i32, i32) {
    %c0_i32 = arith.constant 0 : i32
    %c0_i32_0 = arith.constant 0 : i32
    return %arg1, %c0_i32 : i32, i32
  }
  func.func @transform_2(%arg0: i32, %arg1: i32) -> (i32, i32) {
    %c0_i32 = arith.constant 0 : i32
    %c0_i32_0 = arith.constant 0 : i32
    %c0_i32_1 = arith.constant 0 : i32
    return %c0_i32, %c0_i32_0 : i32, i32
  }
  func.func @transform_3(%arg0: i32, %arg1: i32) -> (i32, i32) {
    %c0_i32 = arith.constant 0 : i32
    %c0_i32_0 = arith.constant 0 : i32
    %c0_i32_1 = arith.constant 0 : i32
    return %c0_i32, %c0_i32_0 : i32, i32
  }
  func.func @transform_4(%arg0: i32, %arg1: i32) -> (i32, i32) {
    %c0_i32 = arith.constant 0 : i32
    %c0_i32_0 = arith.constant 0 : i32
    %c0_i32_1 = arith.constant 0 : i32
    return %c0_i32, %c0_i32_0 : i32, i32
  }
  func.func @transform_5(%arg0: i32, %arg1: i32) -> (i32, i32) {
    %c0_i32 = arith.constant 0 : i32
    %c0_i32_0 = arith.constant 0 : i32
    %c0_i32_1 = arith.constant 0 : i32
    return %c0_i32, %c0_i32_0 : i32, i32
  }
  func.func @transform_6(%arg0: i32, %arg1: i32) -> (i32, i32) {
    %c0_i32 = arith.constant 0 : i32
    %c0_i32_0 = arith.constant 0 : i32
    %c0_i32_1 = arith.constant 0 : i32
    return %c0_i32, %c0_i32_0 : i32, i32
  }
  func.func @transform_7(%arg0: i32, %arg1: i32) -> (i32, i32) {
    %c0_i32 = arith.constant 0 : i32
    %c0_i32_0 = arith.constant 0 : i32
    return %arg0, %c0_i32 : i32, i32
  }
}

module attributes {stable_mosaic.version = 11 : i64} {
  func.func @_gap_kernel(%arg0: i32, %arg1: memref<1x1x128xf32, #tpu.memory_space<vmem>>, %arg2: memref<1x1x128xf32, #tpu.memory_space<vmem>>) attributes {dimension_semantics = [#tpu.dimension_semantics<parallel>], iteration_bounds = array<i64: 2>, scalar_prefetch = 0 : i64, scratch_operands = 0 : i64, tpu.core_type = #tpu.core_type<tc>, window_params = [{transform_indices = @transform_0, window_bounds = array<i64: 1, 1, 128>}, {transform_indices = @transform_1, window_bounds = array<i64: 1, 1, 128>}]} {
    %c0 = arith.constant 0 : index
    %c0_0 = arith.constant 0 : index
    %c0_1 = arith.constant 0 : index
    %0 = vector.load %arg1[%c0, %c0_0, %c0_1] : memref<1x1x128xf32, #tpu.memory_space<vmem>>, vector<1x1x128xf32>
    %cst = arith.constant dense<0.000000e+00> : vector<1x128xf32>
    %1 = vector.multi_reduction <add>, %0, %cst [1] : vector<1x1x128xf32> to vector<1x128xf32>
    %2 = vector.shape_cast %1 : vector<1x128xf32> to vector<1x1x128xf32>
    %cst_2 = arith.constant 1.000000e+00 : f32
    %3 = vector.broadcast %cst_2 : f32 to vector<1x1x128xf32>
    %4 = arith.divf %2, %3 : vector<1x1x128xf32>
    %c0_3 = arith.constant 0 : index
    %c0_4 = arith.constant 0 : index
    %c0_5 = arith.constant 0 : index
    %5 = vector.load %arg2[%c0_3, %c0_4, %c0_5] : memref<1x1x128xf32, #tpu.memory_space<vmem>>, vector<1x1x128xf32>
    tpu.vector_store %arg2[%c0_3, %c0_4, %c0_5], %4 {strides = array<i32>} : memref<1x1x128xf32, #tpu.memory_space<vmem>>, vector<1x1x128xf32>,
    return
  }
  func.func @transform_0(%arg0: i32) -> (i32, i32, i32) {
    %c0_i32 = arith.constant 0 : i32
    %c0_i32_0 = arith.constant 0 : i32
    %c0_i32_1 = arith.constant 0 : i32
    return %arg0, %c0_i32, %c0_i32_0 : i32, i32, i32
  }
  func.func @transform_1(%arg0: i32) -> (i32, i32, i32) {
    %c0_i32 = arith.constant 0 : i32
    %c0_i32_0 = arith.constant 0 : i32
    %c0_i32_1 = arith.constant 0 : i32
    return %arg0, %c0_i32, %c0_i32_0 : i32, i32, i32
  }
}

</mosaic_0001>

<llo_original>
// kernel: nin_forward.9
$region0: #{nin_forward.9}
  #allocation0 [shape = 'u32[]', space=smem, size = 0x4, offset = 0x4, fixed_abs, tag = 'smem constant byte address 0x4 - core index']
  #allocation1 [shape = 'u32[144,128]{1,0:T(1,128)}', space=vmem, size = 0x12000, scoped, tag = 'internal scratch']
  %s0 = inlined_call_operand.vmem [shape: f32[98,128], index: 0, kind: input, shape index: {}]
  %s1 = inlined_call_operand.vmem [shape: f32[98,128], index: 1, kind: input, shape index: {}]
  %s2 = inlined_call_operand.vmem [shape: f32[98,128], index: 2, kind: input, shape index: {}]
  %s3 = inlined_call_operand.vmem [shape: f32[98,128], index: 3, kind: input, shape index: {}]
  %s4 = inlined_call_operand.vmem [shape: f32[98,128], index: 4, kind: input, shape index: {}]
  %s5 = inlined_call_operand.vmem [shape: f32[98,128], index: 5, kind: input, shape index: {}]
  %s6 = inlined_call_operand.vmem [shape: f32[98,128], index: 6, kind: input, shape index: {}]
  %s7 = inlined_call_operand.vmem [shape: f32[98,128], index: 7, kind: input, shape index: {}]
  %s8 = inlined_call_operand.vmem [shape: f32[98,128], index: 8, kind: input, shape index: {}]
  %s9 = inlined_call_operand.vmem [shape: f32[98,128], index: 9, kind: output, shape index: {}]
  %s10 = sld [smem:[#allocation0]]
  $region46: #{nin_forward.9} parent=0
    _
  %s12 = ssub.s32 1, %s10
  %s13 = scalar_select 0, %s12, %s10
  // Predicated region
  $region2: #{nin_forward.9} parent=0 // pred_check
    _
  $region3: #{nin_forward.9} parent=0 // pred_check_branch
    %15 = sbr.rel (0) target = $region5
  $region4: #{nin_forward.9} parent=0 // pred_region
    _
  $region5: #{nin_forward.9} parent=0 // pred_fallthru
    _
  // Predicated region
  $region6: #{nin_forward.9} parent=0 // pred_check
    _
  $region7: #{nin_forward.9} parent=0 // pred_check_branch
    %17 = sbr.rel (0) target = $region9
  $region8: #{nin_forward.9} parent=0 // pred_region
    _
  $region9: #{nin_forward.9} parent=0 // pred_fallthru
    _
  // Predicated region
  $region10: #{nin_forward.9} parent=0 // pred_check
    _
  $region11: #{nin_forward.9} parent=0 // pred_check_branch
    %19 = sbr.rel (0) target = $region13
  $region12: #{nin_forward.9} parent=0 // pred_region
    _
  $region13: #{nin_forward.9} parent=0 // pred_fallthru
    _
  // Predicated region
  $region14: #{nin_forward.9} parent=0 // pred_check
    _
  $region15: #{nin_forward.9} parent=0 // pred_check_branch
    %21 = sbr.rel (0) target = $region17
  $region16: #{nin_forward.9} parent=0 // pred_region
    _
  $region17: #{nin_forward.9} parent=0 // pred_fallthru
    _
  // Predicated region
  $region18: #{nin_forward.9} parent=0 // pred_check
    _
  $region19: #{nin_forward.9} parent=0 // pred_check_branch
    %23 = sbr.rel (0) target = $region21
  $region20: #{nin_forward.9} parent=0 // pred_region
    _
  $region21: #{nin_forward.9} parent=0 // pred_fallthru
    _
  // Predicated region
  $region22: #{nin_forward.9} parent=0 // pred_check
    _
  $region23: #{nin_forward.9} parent=0 // pred_check_branch
    %25 = sbr.rel (0) target = $region25
  $region24: #{nin_forward.9} parent=0 // pred_region
    _
  $region25: #{nin_forward.9} parent=0 // pred_fallthru
    _
  // Predicated region
  $region26: #{nin_forward.9} parent=0 // pred_check
    _
  $region27: #{nin_forward.9} parent=0 // pred_check_branch
    %27 = sbr.rel (0) target = $region29
  $region28: #{nin_forward.9} parent=0 // pred_region
    _
  $region29: #{nin_forward.9} parent=0 // pred_fallthru
    _
  // Predicated region
  $region30: #{nin_forward.9} parent=0 // pred_check
    _
  $region31: #{nin_forward.9} parent=0 // pred_check_branch
    %29 = sbr.rel (0) target = $region33
  $region32: #{nin_forward.9} parent=0 // pred_region
    _
  $region33: #{nin_forward.9} parent=0 // pred_fallthru
    _
  // Predicated region
  $region34: #{nin_forward.9} parent=0 // pred_check
    _
  $region35: #{nin_forward.9} parent=0 // pred_check_branch
    %31 = sbr.rel (0) target = $region37
  $region36: #{nin_forward.9} parent=0 // pred_region
    _
  $region37: #{nin_forward.9} parent=0 // pred_fallthru
    _
  %v32 = vld [vmem:[%s0] sm:$0xff]
  %v33 = vld [vmem:[%s0 + $0x8] sm:$0xff]
  %v34 = vld [vmem:[%s0 + $0x10] sm:$0xff]
  %v35 = vld [vmem:[%s0 + $0x18] sm:$0xff]
  %v36 = vld [vmem:[%s0 + $0x20] sm:$0xff]
  %v37 = vld [vmem:[%s0 + $0x28] sm:$0xff]
  %v38 = vld [vmem:[%s0 + $0x30] sm:$0xff]
  %v39 = vld [vmem:[%s0 + $0x38] sm:$0xff]
  %v40 = vld [vmem:[%s0 + $0x40] sm:$0xff]
  %v41 = vld [vmem:[%s0 + $0x48] sm:$0xff]
  %v42 = vld [vmem:[%s0 + $0x50] sm:$0xff]
  %v43 = vld [vmem:[%s0 + $0x58] sm:$0xff]
  %v44 = vld [vmem:[%s0 + $0x60] sm:$0x3]
  %v45 = vld [vmem:[%s1] sm:$0xff]
  %v46 = vld [vmem:[%s1 + $0x8] sm:$0xff]
  %v47 = vld [vmem:[%s1 + $0x10] sm:$0xff]
  %v48 = vld [vmem:[%s1 + $0x18] sm:$0xff]
  %v49 = vld [vmem:[%s1 + $0x20] sm:$0xff]
  %v50 = vld [vmem:[%s1 + $0x28] sm:$0xff]
  %v51 = vld [vmem:[%s1 + $0x30] sm:$0xff]
  %v52 = vld [vmem:[%s1 + $0x38] sm:$0xff]
  %v53 = vld [vmem:[%s1 + $0x40] sm:$0xff]
  %v54 = vld [vmem:[%s1 + $0x48] sm:$0xff]
  %v55 = vld [vmem:[%s1 + $0x50] sm:$0xff]
  %v56 = vld [vmem:[%s1 + $0x58] sm:$0xff]
  %v57 = vld [vmem:[%s1 + $0x60] sm:$0x3]
  %v58 = vmax.f32 %v32, %v45
  %v59 = vmax.f32 %v33, %v46
  %v60 = vmax.f32 %v34, %v47
  %v61 = vmax.f32 %v35, %v48
  %v62 = vmax.f32 %v36, %v49
  %v63 = vmax.f32 %v37, %v50
  %v64 = vmax.f32 %v38, %v51
  %v65 = vmax.f32 %v39, %v52
  %v66 = vmax.f32 %v40, %v53
  %v67 = vmax.f32 %v41, %v54
  %v68 = vmax.f32 %v42, %v55
  %v69 = vmax.f32 %v43, %v56
  %v70 = vmax.f32 %v44, %v57
  %v71 = vld [vmem:[%s2] sm:$0xff]
  %v72 = vld [vmem:[%s2 + $0x8] sm:$0xff]
  %v73 = vld [vmem:[%s2 + $0x10] sm:$0xff]
  %v74 = vld [vmem:[%s2 + $0x18] sm:$0xff]
  %v75 = vld [vmem:[%s2 + $0x20] sm:$0xff]
  %v76 = vld [vmem:[%s2 + $0x28] sm:$0xff]
  %v77 = vld [vmem:[%s2 + $0x30] sm:$0xff]
  %v78 = vld [vmem:[%s2 + $0x38] sm:$0xff]
  %v79 = vld [vmem:[%s2 + $0x40] sm:$0xff]
  %v80 = vld [vmem:[%s2 + $0x48] sm:$0xff]
  %v81 = vld [vmem:[%s2 + $0x50] sm:$0xff]
  %v82 = vld [vmem:[%s2 + $0x58] sm:$0xff]
  %v83 = vld [vmem:[%s2 + $0x60] sm:$0x3]
  %v84 = vmax.f32 %v58, %v71
  %v85 = vmax.f32 %v59, %v72
  %v86 = vmax.f32 %v60, %v73
  %v87 = vmax.f32 %v61, %v74
  %v88 = vmax.f32 %v62, %v75
  %v89 = vmax.f32 %v63, %v76
  %v90 = vmax.f32 %v64, %v77
  %v91 = vmax.f32 %v65, %v78
  %v92 = vmax.f32 %v66, %v79
  %v93 = vmax.f32 %v67, %v80
  %v94 = vmax.f32 %v68, %v81
  %v95 = vmax.f32 %v69, %v82
  %v96 = vmax.f32 %v70, %v83
  %v97 = vld [vmem:[%s3] sm:$0xff]
  %v98 = vld [vmem:[%s3 + $0x8] sm:$0xff]
  %v99 = vld [vmem:[%s3 + $0x10] sm:$0xff]
  %v100 = vld [vmem:[%s3 + $0x18] sm:$0xff]
  %v101 = vld [vmem:[%s3 + $0x20] sm:$0xff]
  %v102 = vld [vmem:[%s3 + $0x28] sm:$0xff]
  %v103 = vld [vmem:[%s3 + $0x30] sm:$0xff]
  %v104 = vld [vmem:[%s3 + $0x38] sm:$0xff]
  %v105 = vld [vmem:[%s3 + $0x40] sm:$0xff]
  %v106 = vld [vmem:[%s3 + $0x48] sm:$0xff]
  %v107 = vld [vmem:[%s3 + $0x50] sm:$0xff]
  %v108 = vld [vmem:[%s3 + $0x58] sm:$0xff]
  %v109 = vld [vmem:[%s3 + $0x60] sm:$0x3]
  %v110 = vmax.f32 %v84, %v97
  %v111 = vmax.f32 %v85, %v98
  %v112 = vmax.f32 %v86, %v99
  %v113 = vmax.f32 %v87, %v100
  %v114 = vmax.f32 %v88, %v101
  %v115 = vmax.f32 %v89, %v102
  %v116 = vmax.f32 %v90, %v103
  %v117 = vmax.f32 %v91, %v104
  %v118 = vmax.f32 %v92, %v105
  %v119 = vmax.f32 %v93, %v106
  %v120 = vmax.f32 %v94, %v107
  %v121 = vmax.f32 %v95, %v108
  %v122 = vmax.f32 %v96, %v109
  %v123 = vld [vmem:[%s4] sm:$0xff]
  %v124 = vld [vmem:[%s4 + $0x8] sm:$0xff]
  %v125 = vld [vmem:[%s4 + $0x10] sm:$0xff]
  %v126 = vld [vmem:[%s4 + $0x18] sm:$0xff]
  %v127 = vld [vmem:[%s4 + $0x20] sm:$0xff]
  %v128 = vld [vmem:[%s4 + $0x28] sm:$0xff]
  %v129 = vld [vmem:[%s4 + $0x30] sm:$0xff]
  %v130 = vld [vmem:[%s4 + $0x38] sm:$0xff]
  %v131 = vld [vmem:[%s4 + $0x40] sm:$0xff]
  %v132 = vld [vmem:[%s4 + $0x48] sm:$0xff]
  %v133 = vld [vmem:[%s4 + $0x50] sm:$0xff]
  %v134 = vld [vmem:[%s4 + $0x58] sm:$0xff]
  %v135 = vld [vmem:[%s4 + $0x60] sm:$0x3]
  %v136 = vmax.f32 %v110, %v123
  %v137 = vmax.f32 %v111, %v124
  %v138 = vmax.f32 %v112, %v125
  %v139 = vmax.f32 %v113, %v126
  %v140 = vmax.f32 %v114, %v127
  %v141 = vmax.f32 %v115, %v128
  %v142 = vmax.f32 %v116, %v129
  %v143 = vmax.f32 %v117, %v130
  %v144 = vmax.f32 %v118, %v131
  %v145 = vmax.f32 %v119, %v132
  %v146 = vmax.f32 %v120, %v133
  %v147 = vmax.f32 %v121, %v134
  %v148 = vmax.f32 %v122, %v135
  %v149 = vld [vmem:[%s5] sm:$0xff]
  %v150 = vld [vmem:[%s5 + $0x8] sm:$0xff]
  %v151 = vld [vmem:[%s5 + $0x10] sm:$0xff]
  %v152 = vld [vmem:[%s5 + $0x18] sm:$0xff]
  %v153 = vld [vmem:[%s5 + $0x20] sm:$0xff]
  %v154 = vld [vmem:[%s5 + $0x28] sm:$0xff]
  %v155 = vld [vmem:[%s5 + $0x30] sm:$0xff]
  %v156 = vld [vmem:[%s5 + $0x38] sm:$0xff]
  %v157 = vld [vmem:[%s5 + $0x40] sm:$0xff]
  %v158 = vld [vmem:[%s5 + $0x48] sm:$0xff]
  %v159 = vld [vmem:[%s5 + $0x50] sm:$0xff]
  %v160 = vld [vmem:[%s5 + $0x58] sm:$0xff]
  %v161 = vld [vmem:[%s5 + $0x60] sm:$0x3]
  %v162 = vmax.f32 %v136, %v149
  %v163 = vmax.f32 %v137, %v150
  %v164 = vmax.f32 %v138, %v151
  %v165 = vmax.f32 %v139, %v152
  %v166 = vmax.f32 %v140, %v153
  %v167 = vmax.f32 %v141, %v154
  %v168 = vmax.f32 %v142, %v155
  %v169 = vmax.f32 %v143, %v156
  %v170 = vmax.f32 %v144, %v157
  %v171 = vmax.f32 %v145, %v158
  %v172 = vmax.f32 %v146, %v159
  %v173 = vmax.f32 %v147, %v160
  %v174 = vmax.f32 %v148, %v161
  %v175 = vld [vmem:[%s6] sm:$0xff]
  %v176 = vld [vmem:[%s6 + $0x8] sm:$0xff]
  %v177 = vld [vmem:[%s6 + $0x10] sm:$0xff]
  %v178 = vld [vmem:[%s6 + $0x18] sm:$0xff]
  %v179 = vld [vmem:[%s6 + $0x20] sm:$0xff]
  %v180 = vld [vmem:[%s6 + $0x28] sm:$0xff]
  %v181 = vld [vmem:[%s6 + $0x30] sm:$0xff]
  %v182 = vld [vmem:[%s6 + $0x38] sm:$0xff]
  %v183 = vld [vmem:[%s6 + $0x40] sm:$0xff]
  %v184 = vld [vmem:[%s6 + $0x48] sm:$0xff]
  %v185 = vld [vmem:[%s6 + $0x50] sm:$0xff]
  %v186 = vld [vmem:[%s6 + $0x58] sm:$0xff]
  %v187 = vld [vmem:[%s6 + $0x60] sm:$0x3]
  %v188 = vmax.f32 %v162, %v175
  %v189 = vmax.f32 %v163, %v176
  %v190 = vmax.f32 %v164, %v177
  %v191 = vmax.f32 %v165, %v178
  %v192 = vmax.f32 %v166, %v179
  %v193 = vmax.f32 %v167, %v180
  %v194 = vmax.f32 %v168, %v181
  %v195 = vmax.f32 %v169, %v182
  %v196 = vmax.f32 %v170, %v183
  %v197 = vmax.f32 %v171, %v184
  %v198 = vmax.f32 %v172, %v185
  %v199 = vmax.f32 %v173, %v186
  %v200 = vmax.f32 %v174, %v187
  %v201 = vld [vmem:[%s7] sm:$0xff]
  %v202 = vld [vmem:[%s7 + $0x8] sm:$0xff]
  %v203 = vld [vmem:[%s7 + $0x10] sm:$0xff]
  %v204 = vld [vmem:[%s7 + $0x18] sm:$0xff]
  %v205 = vld [vmem:[%s7 + $0x20] sm:$0xff]
  %v206 = vld [vmem:[%s7 + $0x28] sm:$0xff]
  %v207 = vld [vmem:[%s7 + $0x30] sm:$0xff]
  %v208 = vld [vmem:[%s7 + $0x38] sm:$0xff]
  %v209 = vld [vmem:[%s7 + $0x40] sm:$0xff]
  %v210 = vld [vmem:[%s7 + $0x48] sm:$0xff]
  %v211 = vld [vmem:[%s7 + $0x50] sm:$0xff]
  %v212 = vld [vmem:[%s7 + $0x58] sm:$0xff]
  %v213 = vld [vmem:[%s7 + $0x60] sm:$0x3]
  %v214 = vmax.f32 %v188, %v201
  %v215 = vmax.f32 %v189, %v202
  %v216 = vmax.f32 %v190, %v203
  %v217 = vmax.f32 %v191, %v204
  %v218 = vmax.f32 %v192, %v205
  %v219 = vmax.f32 %v193, %v206
  %v220 = vmax.f32 %v194, %v207
  %v221 = vmax.f32 %v195, %v208
  %v222 = vmax.f32 %v196, %v209
  %v223 = vmax.f32 %v197, %v210
  %v224 = vmax.f32 %v198, %v211
  %v225 = vmax.f32 %v199, %v212
  %v226 = vmax.f32 %v200, %v213
  %v227 = vld [vmem:[%s8] sm:$0xff]
  %v228 = vld [vmem:[%s8 + $0x8] sm:$0xff]
  %v229 = vld [vmem:[%s8 + $0x10] sm:$0xff]
  %v230 = vld [vmem:[%s8 + $0x18] sm:$0xff]
  %v231 = vld [vmem:[%s8 + $0x20] sm:$0xff]
  %v232 = vld [vmem:[%s8 + $0x28] sm:$0xff]
  %v233 = vld [vmem:[%s8 + $0x30] sm:$0xff]
  %v234 = vld [vmem:[%s8 + $0x38] sm:$0xff]
  %v235 = vld [vmem:[%s8 + $0x40] sm:$0xff]
  %v236 = vld [vmem:[%s8 + $0x48] sm:$0xff]
  %v237 = vld [vmem:[%s8 + $0x50] sm:$0xff]
  %v238 = vld [vmem:[%s8 + $0x58] sm:$0xff]
  %v239 = vld [vmem:[%s8 + $0x60] sm:$0x3]
  %v240 = vmax.f32 %v214, %v227
  %v241 = vmax.f32 %v215, %v228
  %v242 = vmax.f32 %v216, %v229
  %v243 = vmax.f32 %v217, %v230
  %v244 = vmax.f32 %v218, %v231
  %v245 = vmax.f32 %v219, %v232
  %v246 = vmax.f32 %v220, %v233
  %v247 = vmax.f32 %v221, %v234
  %v248 = vmax.f32 %v222, %v235
  %v249 = vmax.f32 %v223, %v236
  %v250 = vmax.f32 %v224, %v237
  %v251 = vmax.f32 %v225, %v238
  %v252 = vmax.f32 %v226, %v239
  %253 = vst [vmem:[%s9] sm:$0xff] %v240
  %254 = vst [vmem:[%s9 + $0x8] sm:$0xff] %v241
  %255 = vst [vmem:[%s9 + $0x10] sm:$0xff] %v242
  %256 = vst [vmem:[%s9 + $0x18] sm:$0xff] %v243
  %257 = vst [vmem:[%s9 + $0x20] sm:$0xff] %v244
  %258 = vst [vmem:[%s9 + $0x28] sm:$0xff] %v245
  %259 = vst [vmem:[%s9 + $0x30] sm:$0xff] %v246
  %260 = vst [vmem:[%s9 + $0x38] sm:$0xff] %v247
  %261 = vst [vmem:[%s9 + $0x40] sm:$0xff] %v248
  %262 = vst [vmem:[%s9 + $0x48] sm:$0xff] %v249
  %263 = vst [vmem:[%s9 + $0x50] sm:$0xff] %v250
  %264 = vst [vmem:[%s9 + $0x58] sm:$0xff] %v251
  %265 = vst [vmem:[%s9 + $0x60] sm:$0x3] %v252
  // Predicated region
  $region38: #{nin_forward.9} parent=0 // pred_check
    _
  $region39: #{nin_forward.9} parent=0 // pred_check_branch
    %267 = sbr.rel (0) target = $region41
  $region40: #{nin_forward.9} parent=0 // pred_region
    _
  $region41: #{nin_forward.9} parent=0 // pred_fallthru
    _
  // Predicated region
  $region42: #{nin_forward.9} parent=0 // pred_check
    _
  $region43: #{nin_forward.9} parent=0 // pred_check_branch
    %269 = sbr.rel (0) target = $region45
  $region44: #{nin_forward.9} parent=0 // pred_region
    _
  $region45: #{nin_forward.9} parent=0 // pred_fallthru
    _

// kernel: nin_forward.8
$region0: #{nin_forward.8}
  #allocation0 [shape = 'u32[]', space=smem, size = 0x4, offset = 0x4, fixed_abs, tag = 'smem constant byte address 0x4 - core index']
  #allocation1 [shape = 'u32[144,128]{1,0:T(1,128)}', space=vmem, size = 0x12000, scoped, tag = 'internal scratch']
  %s0 = inlined_call_operand.vmem [shape: bf16[512,384], index: 0, kind: input, shape index: {}]
  %s1 = inlined_call_operand.vmem [shape: bf16[384,128], index: 1, kind: input, shape index: {}]
  %s2 = inlined_call_operand.vmem [shape: f32[1,128], index: 2, kind: input, shape index: {}]
  %s3 = inlined_call_operand.vmem [shape: bf16[128,128], index: 3, kind: input, shape index: {}]
  %s4 = inlined_call_operand.vmem [shape: f32[1,128], index: 4, kind: input, shape index: {}]
  %s5 = inlined_call_operand.vmem [shape: bf16[128,128], index: 5, kind: input, shape index: {}]
  %s6 = inlined_call_operand.vmem [shape: f32[1,128], index: 6, kind: input, shape index: {}]
  %s7 = inlined_call_operand.vmem [shape: f32[512,128], index: 7, kind: output, shape index: {}]
  %s8 = sld [smem:[#allocation0]]
  $region110: #{nin_forward.8} parent=0
    _
  %s10 = ssub.s32 1, %s8
  %s11 = scalar_select 0, %s10, %s8
  $region1: #{nin_forward.8} parent=0
    #allocation2 [shape = 'u8[131072]{0}', space=vmem, size = 0x20000, scoped, tag = 'input window, operand 0']
    loop: start=0, step=1, limit=8
    $region2: #{nin_forward.8} parent=1 // loop_pre_header
      _
    $region3: #{nin_forward.8} parent=1 // loop_header
      %s13 = sphi 0, %s17
      %p14 = scmp.ge.s32.totalorder %s13, 8
      %s20 = sphi 0, %s32
      %s21 = sphi 0, %s28
      %s22 = sphi 0, %s20
      %s23 = sphi 0, %s21
      %s24 = sphi 0, %s22
      %s25 = sphi 0, %s23
      %s37 = sphi 0, %s39
      %s40 = sphi 0, %s37
      %s41 = sphi 0, %s40
      %s57 = sphi 0, %s41
      %s63 = sphi 0, %s65
      %s66 = sphi 0, %s63
      %s67 = sphi 0, %s66
      %s83 = sphi 0, %s67
      %s87 = sphi 0, %s87
      %s89 = sphi 0, %s87
      %s90 = sphi 0, %s89
      %s104 = sphi 0, %s90
      %s108 = sphi 0, %s108
      %s110 = sphi 0, %s108
      %s111 = sphi 0, %s110
      %s125 = sphi 0, %s111
      %s129 = sphi 0, %s129
      %s131 = sphi 0, %s129
      %s132 = sphi 0, %s131
      %s146 = sphi 0, %s132
      %s150 = sphi 0, %s150
      %s152 = sphi 0, %s150
      %s153 = sphi 0, %s152
      %s167 = sphi 0, %s153
      %s171 = sphi 0, %s171
      %s173 = sphi 0, %s171
      %s174 = sphi 0, %s173
      %s188 = sphi 0, %s174
      %s194 = sphi 0, %s196
      %s197 = sphi 0, %s194
      %s198 = sphi 0, %s197
      %s214 = sphi 0, %s198
    $region4: #{nin_forward.8} parent=1 // loop_header_branch
      %16 = sbr.rel (%p14) target = $region8
    $region5: #{nin_forward.8} parent=1 // loop_body
      %s18 = ssub.s32 %s13, 1
      %s19 = ssub.s32 %s13, 2
      %s26 = sadd.s32 1, %s21
      %p27 = scmp.ge.s32.totalorder %s26, 3
      %s28 = scalar_select %p27, 0, %s26
      %s29 = sadd.s32 1, %s20
      %s30 = scalar_select %p27, %s29, %s20
      %p31 = scmp.ge.s32.totalorder %s30, 2
      %s32 = scalar_select %p31, 0, %s30
      %s33 = ssub.s32 %s20, %s32
      %s34 = ssub.s32 %s21, %s28
      %s35 = sor.u32 %s33, %s34
      %p36 = scmp.eq.s32.totalorder %s35, 0
      %s38 = sadd.s32 %s37, 1
      %s39 = scalar_select %p36, %s37, %s38
      %p42 = pneg %p36
      %p43 = scmp.eq.s32.totalorder %s13, 5
      %p44 = por %p42, %p43
      %p45 = scmp.ne.s32.totalorder %s37, %s40
      %p46 = scmp.eq.s32.totalorder %s13, 0
      %p47 = por %p45, %p46
      %p48 = scmp.ne.s32.totalorder %s37, %s40
      %p49 = scmp.eq.s32.totalorder %s18, 5
      %p50 = por %p48, %p49
      %p51 = scmp.ne.s32.totalorder %s40, %s41
      %p52 = scmp.eq.s32.totalorder %s18, 0
      %p53 = por %p51, %p52
      %p54 = scmp.ne.s32.totalorder %s40, %s41
      %p55 = scmp.eq.s32.totalorder %s19, 5
      %p56 = por %p54, %p55
      %p58 = scmp.ne.s32.totalorder %s41, %s57
      %p59 = scmp.eq.s32.totalorder %s19, 0
      %p60 = por %p58, %p59
      %s61 = ssub.s32 %s21, %s28
      %p62 = scmp.eq.s32.totalorder %s61, 0
      %s64 = sadd.s32 %s63, 1
      %s65 = scalar_select %p62, %s63, %s64
      %p68 = pneg %p62
      %p69 = scmp.eq.s32.totalorder %s13, 5
      %p70 = por %p68, %p69
      %p71 = scmp.ne.s32.totalorder %s63, %s66
      %p72 = scmp.eq.s32.totalorder %s13, 0
      %p73 = por %p71, %p72
      %p74 = scmp.ne.s32.totalorder %s63, %s66
      %p75 = scmp.eq.s32.totalorder %s18, 5
      %p76 = por %p74, %p75
      %p77 = scmp.ne.s32.totalorder %s66, %s67
      %p78 = scmp.eq.s32.totalorder %s18, 0
      %p79 = por %p77, %p78
      %p80 = scmp.ne.s32.totalorder %s66, %s67
      %p81 = scmp.eq.s32.totalorder %s19, 5
      %p82 = por %p80, %p81
      %p84 = scmp.ne.s32.totalorder %s67, %s83
      %p85 = scmp.eq.s32.totalorder %s19, 0
      %p86 = por %p84, %p85
      %s88 = sadd.s32 %s87, 1
      %p91 = scmp.eq.s32.totalorder %s13, 5
      %p92 = scmp.ne.s32.totalorder %s87, %s89
      %p93 = scmp.eq.s32.totalorder %s13, 0
      %p94 = por %p92, %p93
      %p95 = scmp.ne.s32.totalorder %s87, %s89
      %p96 = scmp.eq.s32.totalorder %s18, 5
      %p97 = por %p95, %p96
      %p98 = scmp.ne.s32.totalorder %s89, %s90
      %p99 = scmp.eq.s32.totalorder %s18, 0
      %p100 = por %p98, %p99
      %p101 = scmp.ne.s32.totalorder %s89, %s90
      %p102 = scmp.eq.s32.totalorder %s19, 5
      %p103 = por %p101, %p102
      %p105 = scmp.ne.s32.totalorder %s90, %s104
      %p106 = scmp.eq.s32.totalorder %s19, 0
      %p107 = por %p105, %p106
      %s109 = sadd.s32 %s108, 1
      %p112 = scmp.eq.s32.totalorder %s13, 5
      %p113 = scmp.ne.s32.totalorder %s108, %s110
      %p114 = scmp.eq.s32.totalorder %s13, 0
      %p115 = por %p113, %p114
      %p116 = scmp.ne.s32.totalorder %s108, %s110
      %p117 = scmp.eq.s32.totalorder %s18, 5
      %p118 = por %p116, %p117
      %p119 = scmp.ne.s32.totalorder %s110, %s111
      %p120 = scmp.eq.s32.totalorder %s18, 0
      %p121 = por %p119, %p120
      %p122 = scmp.ne.s32.totalorder %s110, %s111
      %p123 = scmp.eq.s32.totalorder %s19, 5
      %p124 = por %p122, %p123
      %p126 = scmp.ne.s32.totalorder %s111, %s125
      %p127 = scmp.eq.s32.totalorder %s19, 0
      %p128 = por %p126, %p127
      %s130 = sadd.s32 %s129, 1
      %p133 = scmp.eq.s32.totalorder %s13, 5
      %p134 = scmp.ne.s32.totalorder %s129, %s131
      %p135 = scmp.eq.s32.totalorder %s13, 0
      %p136 = por %p134, %p135
      %p137 = scmp.ne.s32.totalorder %s129, %s131
      %p138 = scmp.eq.s32.totalorder %s18, 5
      %p139 = por %p137, %p138
      %p140 = scmp.ne.s32.totalorder %s131, %s132
      %p141 = scmp.eq.s32.totalorder %s18, 0
      %p142 = por %p140, %p141
      %p143 = scmp.ne.s32.totalorder %s131, %s132
      %p144 = scmp.eq.s32.totalorder %s19, 5
      %p145 = por %p143, %p144
      %p147 = scmp.ne.s32.totalorder %s132, %s146
      %p148 = scmp.eq.s32.totalorder %s19, 0
      %p149 = por %p147, %p148
      %s151 = sadd.s32 %s150, 1
      %p154 = scmp.eq.s32.totalorder %s13, 5
      %p155 = scmp.ne.s32.totalorder %s150, %s152
      %p156 = scmp.eq.s32.totalorder %s13, 0
      %p157 = por %p155, %p156
      %p158 = scmp.ne.s32.totalorder %s150, %s152
      %p159 = scmp.eq.s32.totalorder %s18, 5
      %p160 = por %p158, %p159
      %p161 = scmp.ne.s32.totalorder %s152, %s153
      %p162 = scmp.eq.s32.totalorder %s18, 0
      %p163 = por %p161, %p162
      %p164 = scmp.ne.s32.totalorder %s152, %s153
      %p165 = scmp.eq.s32.totalorder %s19, 5
      %p166 = por %p164, %p165
      %p168 = scmp.ne.s32.totalorder %s153, %s167
      %p169 = scmp.eq.s32.totalorder %s19, 0
      %p170 = por %p168, %p169
      %s172 = sadd.s32 %s171, 1
      %p175 = scmp.eq.s32.totalorder %s13, 5
      %p176 = scmp.ne.s32.totalorder %s171, %s173
      %p177 = scmp.eq.s32.totalorder %s13, 0
      %p178 = por %p176, %p177
      %p179 = scmp.ne.s32.totalorder %s171, %s173
      %p180 = scmp.eq.s32.totalorder %s18, 5
      %p181 = por %p179, %p180
      %p182 = scmp.ne.s32.totalorder %s173, %s174
      %p183 = scmp.eq.s32.totalorder %s18, 0
      %p184 = por %p182, %p183
      %p185 = scmp.ne.s32.totalorder %s173, %s174
      %p186 = scmp.eq.s32.totalorder %s19, 5
      %p187 = por %p185, %p186
      %p189 = scmp.ne.s32.totalorder %s174, %s188
      %p190 = scmp.eq.s32.totalorder %s19, 0
      %p191 = por %p189, %p190
      %s192 = ssub.s32 %s20, %s32
      %p193 = scmp.eq.s32.totalorder %s192, 0
      %s195 = sadd.s32 %s194, 1
      %s196 = scalar_select %p193, %s194, %s195
      %p199 = pneg %p193
      %p200 = scmp.eq.s32.totalorder %s13, 5
      %p201 = por %p199, %p200
      %p202 = scmp.ne.s32.totalorder %s194, %s197
      %p203 = scmp.eq.s32.totalorder %s13, 0
      %p204 = por %p202, %p203
      %p205 = scmp.ne.s32.totalorder %s194, %s197
      %p206 = scmp.eq.s32.totalorder %s18, 5
      %p207 = por %p205, %p206
      %p208 = scmp.ne.s32.totalorder %s197, %s198
      %p209 = scmp.eq.s32.totalorder %s18, 0
      %p210 = por %p208, %p209
      %p211 = scmp.ne.s32.totalorder %s197, %s198
      %p212 = scmp.eq.s32.totalorder %s19, 5
      %p213 = por %p211, %p212
      %p215 = scmp.ne.s32.totalorder %s198, %s214
      %p216 = scmp.eq.s32.totalorder %s19, 0
      %p217 = por %p215, %p216
      %p218 = scmp.le.s32.totalorder 1, %s13
      %p219 = scmp.lt.s32.totalorder %s13, 7
      %p220 = pnand %p218, %p219
      %p221 = pneg %p220
      // Predicated region
      $region9: #{nin_forward.8} parent=5 // pred_check
        _
      $region10: #{nin_forward.8} parent=5 // pred_check_branch
        %223 = sbr.rel (%p220) target = $region12
      $region11: #{nin_forward.8} parent=5 // pred_region
        %s224 = ssub.s32 %s13, 1
        // Predicated region
        $region13: #{nin_forward.8} parent=11 // pred_check
          %p225 = pneg %p100
        $region14: #{nin_forward.8} parent=11 // pred_check_branch
          %227 = sbr.rel (%p225) target = $region16
        $region15: #{nin_forward.8} parent=11 // pred_region
          _
        $region16: #{nin_forward.8} parent=11 // pred_fallthru
          _
        // Predicated region
        $region17: #{nin_forward.8} parent=11 // pred_check
          %p228 = pneg %p121
        $region18: #{nin_forward.8} parent=11 // pred_check_branch
          %230 = sbr.rel (%p228) target = $region20
        $region19: #{nin_forward.8} parent=11 // pred_region
          _
        $region20: #{nin_forward.8} parent=11 // pred_fallthru
          _
        // Predicated region
        $region21: #{nin_forward.8} parent=11 // pred_check
          %p231 = pneg %p142
        $region22: #{nin_forward.8} parent=11 // pred_check_branch
          %233 = sbr.rel (%p231) target = $region24
        $region23: #{nin_forward.8} parent=11 // pred_region
          _
        $region24: #{nin_forward.8} parent=11 // pred_fallthru
          _
        // Predicated region
        $region25: #{nin_forward.8} parent=11 // pred_check
          %p234 = pneg %p163
        $region26: #{nin_forward.8} parent=11 // pred_check_branch
          %236 = sbr.rel (%p234) target = $region28
        $region27: #{nin_forward.8} parent=11 // pred_region
          _
        $region28: #{nin_forward.8} parent=11 // pred_fallthru
          _
        // Predicated region
        $region29: #{nin_forward.8} parent=11 // pred_check
          %p237 = pneg %p184
        $region30: #{nin_forward.8} parent=11 // pred_check_branch
          %239 = sbr.rel (%p237) target = $region32
        $region31: #{nin_forward.8} parent=11 // pred_region
          _
        $region32: #{nin_forward.8} parent=11 // pred_fallthru
          _
      $region12: #{nin_forward.8} parent=5 // pred_fallthru
        _
      %p240 = scmp.lt.s32.totalorder %s13, 6
      // Predicated region
      $region33: #{nin_forward.8} parent=5 // pred_check
        %p241 = pneg %p240
      $region34: #{nin_forward.8} parent=5 // pred_check_branch
        %243 = sbr.rel (%p241) target = $region36
      $region35: #{nin_forward.8} parent=5 // pred_region
        // Predicated region
        $region37: #{nin_forward.8} parent=35 // pred_check
          %p244 = pneg %p47
        $region38: #{nin_forward.8} parent=35 // pred_check_branch
          %246 = sbr.rel (%p244) target = $region40
        $region39: #{nin_forward.8} parent=35 // pred_region
          %s247 = sand.u32 %s37, 1
          %s248 = sand.u32 %s37, 1
          %s249 = smul.addr %s248, 128
          %s250 = scalar_lea.vmem [#allocation2], %s249
          %s251 = smul.u32 32, %s20
          %s252 = smul.addr %s251, 3
          %s253 = sadd.s32 %s21, %s252
          %s254 = smul.addr %s253, 4
          %s255 = scalar_lea.vmem %s0, %s254
          // Predicated region
          $region41: #{nin_forward.8} parent=39 // pred_check
            _
          $region42: #{nin_forward.8} parent=39 // pred_check_branch
            %257 = sbr.rel (0) target = $region44
          $region43: #{nin_forward.8} parent=39 // pred_region
            // Predicated region
            $region45: #{nin_forward.8} parent=43 // pred_check
              _
            $region46: #{nin_forward.8} parent=43 // pred_check_branch
              %259 = sbr.rel target = $region48
            $region47: #{nin_forward.8} parent=43 // pred_region
              // Predicated region
              $region60: #{nin_forward.8} parent=47 // pred_check
                _
              $region61: #{nin_forward.8} parent=47 // pred_check_branch
                %337 = sbr.rel (0) target = $region63
              $region62: #{nin_forward.8} parent=47 // pred_region
                loop: start=0, step=1, limit=1
                $region64: #{nin_forward.8} parent=62 // loop_pre_header
                  _
                $region65: #{nin_forward.8} parent=62 // loop_header
                  %s339 = sphi 0, %s343
                  %p340 = scmp.ge.s32.totalorder %s339, 1
                  %s344 = sphi %s255, %s255
                  %s345 = sphi %s250, %s250
                $region66: #{nin_forward.8} parent=62 // loop_header_branch
                  %342 = sbr.rel (%p340) target = $region70
                $region67: #{nin_forward.8} parent=62 // loop_body
                  _
                $region68: #{nin_forward.8} parent=62 // loop_footer
                  %s343 = sadd.s32 1, %s339
                $region69: #{nin_forward.8} parent=62 // loop_footer_branch
                  %338 = sbr.rel target = $region65
                $region70: #{nin_forward.8} parent=62 // loop_exit
                  _
                %s347 = ssub.s32 16, 1
                loop: start=0, step=1, limit=1
                $region71: #{nin_forward.8} parent=62 // loop_pre_header
                  _
                $region72: #{nin_forward.8} parent=62 // loop_header
                  %s349 = sphi 0, %s353
                  %p350 = scmp.ge.s32.totalorder %s349, 1
                  %s354 = sphi %s255, %s255
                  %s355 = sphi %s250, %s250
                $region73: #{nin_forward.8} parent=62 // loop_header_branch
                  %352 = sbr.rel (%p350) target = $region77
                $region74: #{nin_forward.8} parent=62 // loop_body
                  %v356 = vld [vmem:[%s354] sm:%s347]
                  %357 = vst [vmem:[%s355] sm:%s347] %v356
                  %v358 = vld [vmem:[%s354 + $0xc] sm:%s347]
                  %359 = vst [vmem:[%s355 + $0x4] sm:%s347] %v358
                  %v360 = vld [vmem:[%s354 + $0x18] sm:%s347]
                  %361 = vst [vmem:[%s355 + $0x8] sm:%s347] %v360
                  %v362 = vld [vmem:[%s354 + $0x24] sm:%s347]
                  %363 = vst [vmem:[%s355 + $0xc] sm:%s347] %v362
                  %v364 = vld [vmem:[%s354 + $0x30] sm:%s347]
                  %365 = vst [vmem:[%s355 + $0x10] sm:%s347] %v364
                  %v366 = vld [vmem:[%s354 + $0x3c] sm:%s347]
                  %367 = vst [vmem:[%s355 + $0x14] sm:%s347] %v366
                  %v368 = vld [vmem:[%s354 + $0x48] sm:%s347]
                  %369 = vst [vmem:[%s355 + $0x18] sm:%s347] %v368
                  %v370 = vld [vmem:[%s354 + $0x54] sm:%s347]
                  %371 = vst [vmem:[%s355 + $0x1c] sm:%s347] %v370
                  %v372 = vld [vmem:[%s354 + $0x60] sm:%s347]
                  %373 = vst [vmem:[%s355 + $0x20] sm:%s347] %v372
                  %v374 = vld [vmem:[%s354 + $0x6c] sm:%s347]
                  %375 = vst [vmem:[%s355 + $0x24] sm:%s347] %v374
                  %v376 = vld [vmem:[%s354 + $0x78] sm:%s347]
                  %377 = vst [vmem:[%s355 + $0x28] sm:%s347] %v376
                  %v378 = vld [vmem:[%s354 + $0x84] sm:%s347]
                  %379 = vst [vmem:[%s355 + $0x2c] sm:%s347] %v378
                  %v380 = vld [vmem:[%s354 + $0x90] sm:%s347]
                  %381 = vst [vmem:[%s355 + $0x30] sm:%s347] %v380
                  %v382 = vld [vmem:[%s354 + $0x9c] sm:%s347]
                  %383 = vst [vmem:[%s355 + $0x34] sm:%s347] %v382
                  %v384 = vld [vmem:[%s354 + $0xa8] sm:%s347]
                  %385 = vst [vmem:[%s355 + $0x38] sm:%s347] %v384
                  %v386 = vld [vmem:[%s354 + $0xb4] sm:%s347]
                  %387 = vst [vmem:[%s355 + $0x3c] sm:%s347] %v386
                  %v388 = vld [vmem:[%s354 + $0xc0] sm:%s347]
                  %389 = vst [vmem:[%s355 + $0x40] sm:%s347] %v388
                  %v390 = vld [vmem:[%s354 + $0xcc] sm:%s347]
                  %391 = vst [vmem:[%s355 + $0x44] sm:%s347] %v390
                  %v392 = vld [vmem:[%s354 + $0xd8] sm:%s347]
                  %393 = vst [vmem:[%s355 + $0x48] sm:%s347] %v392
                  %v394 = vld [vmem:[%s354 + $0xe4] sm:%s347]
                  %395 = vst [vmem:[%s355 + $0x4c] sm:%s347] %v394
                  %v396 = vld [vmem:[%s354 + $0xf0] sm:%s347]
                  %397 = vst [vmem:[%s355 + $0x50] sm:%s347] %v396
                  %v398 = vld [vmem:[%s354 + $0xfc] sm:%s347]
                  %399 = vst [vmem:[%s355 + $0x54] sm:%s347] %v398
                  %v400 = vld [vmem:[%s354 + $0x108] sm:%s347]
                  %401 = vst [vmem:[%s355 + $0x58] sm:%s347] %v400
                  %v402 = vld [vmem:[%s354 + $0x114] sm:%s347]
                  %403 = vst [vmem:[%s355 + $0x5c] sm:%s347] %v402
                  %v404 = vld [vmem:[%s354 + $0x120] sm:%s347]
                  %405 = vst [vmem:[%s355 + $0x60] sm:%s347] %v404
                  %v406 = vld [vmem:[%s354 + $0x12c] sm:%s347]
                  %407 = vst [vmem:[%s355 + $0x64] sm:%s347] %v406
                  %v408 = vld [vmem:[%s354 + $0x138] sm:%s347]
                  %409 = vst [vmem:[%s355 + $0x68] sm:%s347] %v408
                  %v410 = vld [vmem:[%s354 + $0x144] sm:%s347]
                  %411 = vst [vmem:[%s355 + $0x6c] sm:%s347] %v410
                  %v412 = vld [vmem:[%s354 + $0x150] sm:%s347]
                  %413 = vst [vmem:[%s355 + $0x70] sm:%s347] %v412
                  %v414 = vld [vmem:[%s354 + $0x15c] sm:%s347]
                  %415 = vst [vmem:[%s355 + $0x74] sm:%s347] %v414
                  %v416 = vld [vmem:[%s354 + $0x168] sm:%s347]
                  %417 = vst [vmem:[%s355 + $0x78] sm:%s347] %v416
                  %v418 = vld [vmem:[%s354 + $0x174] sm:%s347]
                  %419 = vst [vmem:[%s355 + $0x7c] sm:%s347] %v418
                $region75: #{nin_forward.8} parent=62 // loop_footer
                  %s353 = sadd.s32 1, %s349
                $region76: #{nin_forward.8} parent=62 // loop_footer_branch
                  %348 = sbr.rel target = $region72
                $region77: #{nin_forward.8} parent=62 // loop_exit
                  _
              $region63: #{nin_forward.8} parent=47 // pred_fallthru
                _
            $region48: #{nin_forward.8} parent=43 // pred_fallthru
              _
            // Predicated region
            $region49: #{nin_forward.8} parent=43 // pred_check
              _
            $region50: #{nin_forward.8} parent=43 // pred_check_branch
              %261 = sbr.rel (0) target = $region52
            $region51: #{nin_forward.8} parent=43 // pred_region
              %s263 = ssub.s32 16, 1
              loop: start=0, step=1, limit=1
              $region53: #{nin_forward.8} parent=51 // loop_pre_header
                _
              $region54: #{nin_forward.8} parent=51 // loop_header
                %s265 = sphi 0, %s269
                %p266 = scmp.ge.s32.totalorder %s265, 1
                %s270 = sphi %s255, %s255
                %s271 = sphi %s250, %s250
              $region55: #{nin_forward.8} parent=51 // loop_header_branch
                %268 = sbr.rel (%p266) target = $region59
              $region56: #{nin_forward.8} parent=51 // loop_body
                %v272 = vld [vmem:[%s270] sm:%s263]
                %273 = vst [vmem:[%s271] sm:%s263] %v272
                %v274 = vld [vmem:[%s270 + $0xc] sm:%s263]
                %275 = vst [vmem:[%s271 + $0x4] sm:%s263] %v274
                %v276 = vld [vmem:[%s270 + $0x18] sm:%s263]
                %277 = vst [vmem:[%s271 + $0x8] sm:%s263] %v276
                %v278 = vld [vmem:[%s270 + $0x24] sm:%s263]
                %279 = vst [vmem:[%s271 + $0xc] sm:%s263] %v278
                %v280 = vld [vmem:[%s270 + $0x30] sm:%s263]
                %281 = vst [vmem:[%s271 + $0x10] sm:%s263] %v280
                %v282 = vld [vmem:[%s270 + $0x3c] sm:%s263]
                %283 = vst [vmem:[%s271 + $0x14] sm:%s263] %v282
                %v284 = vld [vmem:[%s270 + $0x48] sm:%s263]
                %285 = vst [vmem:[%s271 + $0x18] sm:%s263] %v284
                %v286 = vld [vmem:[%s270 + $0x54] sm:%s263]
                %287 = vst [vmem:[%s271 + $0x1c] sm:%s263] %v286
                %v288 = vld [vmem:[%s270 + $0x60] sm:%s263]
                %289 = vst [vmem:[%s271 + $0x20] sm:%s263] %v288
                %v290 = vld [vmem:[%s270 + $0x6c] sm:%s263]
                %291 = vst [vmem:[%s271 + $0x24] sm:%s263] %v290
                %v292 = vld [vmem:[%s270 + $0x78] sm:%s263]
                %293 = vst [vmem:[%s271 + $0x28] sm:%s263] %v292
                %v294 = vld [vmem:[%s270 + $0x84] sm:%s263]
                %295 = vst [vmem:[%s271 + $0x2c] sm:%s263] %v294
                %v296 = vld [vmem:[%s270 + $0x90] sm:%s263]
                %297 = vst [vmem:[%s271 + $0x30] sm:%s263] %v296
                %v298 = vld [vmem:[%s270 + $0x9c] sm:%s263]
                %299 = vst [vmem:[%s271 + $0x34] sm:%s263] %v298
                %v300 = vld [vmem:[%s270 + $0xa8] sm:%s263]
                %301 = vst [vmem:[%s271 + $0x38] sm:%s263] %v300
                %v302 = vld [vmem:[%s270 + $0xb4] sm:%s263]
                %303 = vst [vmem:[%s271 + $0x3c] sm:%s263] %v302
                %v304 = vld [vmem:[%s270 + $0xc0] sm:%s263]
                %305 = vst [vmem:[%s271 + $0x40] sm:%s263] %v304
                %v306 = vld [vmem:[%s270 + $0xcc] sm:%s263]
                %307 = vst [vmem:[%s271 + $0x44] sm:%s263] %v306
                %v308 = vld [vmem:[%s270 + $0xd8] sm:%s263]
                %309 = vst [vmem:[%s271 + $0x48] sm:%s263] %v308
                %v310 = vld [vmem:[%s270 + $0xe4] sm:%s263]
                %311 = vst [vmem:[%s271 + $0x4c] sm:%s263] %v310
                %v312 = vld [vmem:[%s270 + $0xf0] sm:%s263]
                %313 = vst [vmem:[%s271 + $0x50] sm:%s263] %v312
                %v314 = vld [vmem:[%s270 + $0xfc] sm:%s263]
                %315 = vst [vmem:[%s271 + $0x54] sm:%s263] %v314
                %v316 = vld [vmem:[%s270 + $0x108] sm:%s263]
                %317 = vst [vmem:[%s271 + $0x58] sm:%s263] %v316
                %v318 = vld [vmem:[%s270 + $0x114] sm:%s263]
                %319 = vst [vmem:[%s271 + $0x5c] sm:%s263] %v318
                %v320 = vld [vmem:[%s270 + $0x120] sm:%s263]
                %321 = vst [vmem:[%s271 + $0x60] sm:%s263] %v320
                %v322 = vld [vmem:[%s270 + $0x12c] sm:%s263]
                %323 = vst [vmem:[%s271 + $0x64] sm:%s263] %v322
                %v324 = vld [vmem:[%s270 + $0x138] sm:%s263]
                %325 = vst [vmem:[%s271 + $0x68] sm:%s263] %v324
                %v326 = vld [vmem:[%s270 + $0x144] sm:%s263]
                %327 = vst [vmem:[%s271 + $0x6c] sm:%s263] %v326
                %v328 = vld [vmem:[%s270 + $0x150] sm:%s263]
                %329 = vst [vmem:[%s271 + $0x70] sm:%s263] %v328
                %v330 = vld [vmem:[%s270 + $0x15c] sm:%s263]
                %331 = vst [vmem:[%s271 + $0x74] sm:%s263] %v330
                %v332 = vld [vmem:[%s270 + $0x168] sm:%s263]
                %333 = vst [vmem:[%s271 + $0x78] sm:%s263] %v332
                %v334 = vld [vmem:[%s270 + $0x174] sm:%s263]
                %335 = vst [vmem:[%s271 + $0x7c] sm:%s263] %v334
              $region57: #{nin_forward.8} parent=51 // loop_footer
                %s269 = sadd.s32 1, %s265
              $region58: #{nin_forward.8} parent=51 // loop_footer_branch
                %264 = sbr.rel target = $region54
              $region59: #{nin_forward.8} parent=51 // loop_exit
                _
            $region52: #{nin_forward.8} parent=43 // pred_fallthru
              _
          $region44: #{nin_forward.8} parent=39 // pred_fallthru
            _
          %420 = vnop
        $region40: #{nin_forward.8} parent=35 // pred_fallthru
          _
        // Predicated region
        $region78: #{nin_forward.8} parent=35 // pred_check
          %p421 = pneg %p73
        $region79: #{nin_forward.8} parent=35 // pred_check_branch
          %423 = sbr.rel (%p421) target = $region81
        $region80: #{nin_forward.8} parent=35 // pred_region
          %s424 = smul.u32 16, %s21
          %p425 = scmp.lt.s32.totalorder %s424, 47
          %s426 = scalar_select %p425, %s424, 47
          %s427 = smul.addr %s426, 4
          %s428 = scalar_lea.vmem %s1, %s427
          %s429 = smul.u32 16, %s21
        $region81: #{nin_forward.8} parent=35 // pred_fallthru
          _
      $region36: #{nin_forward.8} parent=5 // pred_fallthru
        _
      %p430 = scmp.le.s32.totalorder 1, %s13
      %p431 = scmp.lt.s32.totalorder %s13, 7
      %p432 = pnand %p430, %p431
      %p433 = pneg %p432
      // Predicated region
      $region82: #{nin_forward.8} parent=5 // pred_check
        _
      $region83: #{nin_forward.8} parent=5 // pred_check_branch
        %435 = sbr.rel (%p432) target = $region85
      $region84: #{nin_forward.8} parent=5 // pred_region
        %s436 = ssub.s32 %s13, 1
        %s437 = sand.u32 %s40, 1
        %s438 = sand.u32 %s40, 1
        %s439 = smul.addr %s438, 128
        %s440 = scalar_lea.vmem [#allocation2], %s439
        // Predicated region
        $region86: #{nin_forward.8} parent=84 // pred_check
          %p441 = pneg %p53
        $region87: #{nin_forward.8} parent=84 // pred_check_branch
          %443 = sbr.rel (%p441) target = $region89
        $region88: #{nin_forward.8} parent=84 // pred_region
          _
        $region89: #{nin_forward.8} parent=84 // pred_fallthru
          _
        %s444 = sand.u32 %s40, 1
        %s445 = sand.u32 %s40, 1
        %s446 = smul.addr %s445, 128
        %s447 = scalar_lea.vmem [#allocation2], %s446
        %p448 = pneg %p53
        %p449 = pneg %p50
        %s450 = smul.u32 16, %s23
        %p451 = scmp.lt.s32.totalorder %s450, 47
        %s452 = scalar_select %p451, %s450, 47
        %s453 = smul.addr %s452, 4
        %s454 = scalar_lea.vmem %s1, %s453
        %p455 = pneg %p79
        %p456 = pneg %p76
        %p457 = pneg %p100
        %p458 = pneg %p97
        %p459 = pneg %p121
        %p460 = pneg %p118
        %p461 = pneg %p142
        %p462 = pneg %p139
        %p463 = pneg %p163
        %p464 = pneg %p160
        %p465 = pneg %p184
        %p466 = pneg %p181
        %p467 = pneg %p210
        %p468 = pneg %p207
        %s469 = smul.u32 32, %s22
        %p470 = scmp.lt.s32.totalorder %s469, 63
        %s471 = scalar_select %p470, %s469, 63
        %s472 = smul.addr %s471, 8
        %s473 = scalar_lea.vmem %s7, %s472
        %s474 = smul.u32 32, %s22
        %s475 = smul.u32 16, %s23
        %p476 = scmp.lt.s32.totalorder %s475, 47
        %s477 = scalar_select %p476, %s475, 47
        %s478 = smul.addr %s477, 4
        %s479 = scalar_lea.vmem %s1, %s478
        %s480 = smul.u32 16, %s23
        %s481 = smul.u32 32, %s22
        %p482 = scmp.lt.s32.totalorder %s481, 63
        %s483 = scalar_select %p482, %s481, 63
        %s484 = smul.addr %s483, 8
        %s485 = scalar_lea.vmem %s7, %s484
        %s486 = smul.u32 32, %s22
        %p488 = scmp.eq.s32.totalorder %s23, 0
        // Predicated region
        $region90: #{nin_forward.8} parent=84 // pred_check
          %p489 = pneg %p488
        $region91: #{nin_forward.8} parent=84 // pred_check_branch
          %491 = sbr.rel (%p489) target = $region93
        $region92: #{nin_forward.8} parent=84 // pred_region
          %492 = vst [vmem:[%s485] sm:$0xff] 0.0
          %493 = vst [vmem:[%s485 + $0x8] sm:$0xff] 0.0
          %494 = vst [vmem:[%s485 + $0x10] sm:$0xff] 0.0
          %495 = vst [vmem:[%s485 + $0x18] sm:$0xff] 0.0
          %496 = vst [vmem:[%s485 + $0x20] sm:$0xff] 0.0
          %497 = vst [vmem:[%s485 + $0x28] sm:$0xff] 0.0
          %498 = vst [vmem:[%s485 + $0x30] sm:$0xff] 0.0
          %499 = vst [vmem:[%s485 + $0x38] sm:$0xff] 0.0
          %500 = vst [vmem:[%s485 + $0x40] sm:$0xff] 0.0
          %501 = vst [vmem:[%s485 + $0x48] sm:$0xff] 0.0
          %502 = vst [vmem:[%s485 + $0x50] sm:$0xff] 0.0
          %503 = vst [vmem:[%s485 + $0x58] sm:$0xff] 0.0
          %504 = vst [vmem:[%s485 + $0x60] sm:$0xff] 0.0
          %505 = vst [vmem:[%s485 + $0x68] sm:$0xff] 0.0
          %506 = vst [vmem:[%s485 + $0x70] sm:$0xff] 0.0
          %507 = vst [vmem:[%s485 + $0x78] sm:$0xff] 0.0
          %508 = vst [vmem:[%s485 + $0x80] sm:$0xff] 0.0
          %509 = vst [vmem:[%s485 + $0x88] sm:$0xff] 0.0
          %510 = vst [vmem:[%s485 + $0x90] sm:$0xff] 0.0
          %511 = vst [vmem:[%s485 + $0x98] sm:$0xff] 0.0
          %512 = vst [vmem:[%s485 + $0xa0] sm:$0xff] 0.0
          %513 = vst [vmem:[%s485 + $0xa8] sm:$0xff] 0.0
          %514 = vst [vmem:[%s485 + $0xb0] sm:$0xff] 0.0
          %515 = vst [vmem:[%s485 + $0xb8] sm:$0xff] 0.0
          %516 = vst [vmem:[%s485 + $0xc0] sm:$0xff] 0.0
          %517 = vst [vmem:[%s485 + $0xc8] sm:$0xff] 0.0
          %518 = vst [vmem:[%s485 + $0xd0] sm:$0xff] 0.0
          %519 = vst [vmem:[%s485 + $0xd8] sm:$0xff] 0.0
          %520 = vst [vmem:[%s485 + $0xe0] sm:$0xff] 0.0
          %521 = vst [vmem:[%s485 + $0xe8] sm:$0xff] 0.0
          %522 = vst [vmem:[%s485 + $0xf0] sm:$0xff] 0.0
          %523 = vst [vmem:[%s485 + $0xf8] sm:$0xff] 0.0
        $region93: #{nin_forward.8} parent=84 // pred_fallthru
          _
        %v524 = vld [vmem:[%s485] sm:$0xff]
        %v525 = vld [vmem:[%s485 + $0x8] sm:$0xff]
        %v526 = vld [vmem:[%s485 + $0x10] sm:$0xff]
        %v527 = vld [vmem:[%s485 + $0x18] sm:$0xff]
        %v528 = vld [vmem:[%s485 + $0x20] sm:$0xff]
        %v529 = vld [vmem:[%s485 + $0x28] sm:$0xff]
        %v530 = vld [vmem:[%s485 + $0x30] sm:$0xff]
        %v531 = vld [vmem:[%s485 + $0x38] sm:$0xff]
        %v532 = vld [vmem:[%s485 + $0x40] sm:$0xff]
        %v533 = vld [vmem:[%s485 + $0x48] sm:$0xff]
        %v534 = vld [vmem:[%s485 + $0x50] sm:$0xff]
        %v535 = vld [vmem:[%s485 + $0x58] sm:$0xff]
        %v536 = vld [vmem:[%s485 + $0x60] sm:$0xff]
        %v537 = vld [vmem:[%s485 + $0x68] sm:$0xff]
        %v538 = vld [vmem:[%s485 + $0x70] sm:$0xff]
        %v539 = vld [vmem:[%s485 + $0x78] sm:$0xff]
        %v540 = vld [vmem:[%s485 + $0x80] sm:$0xff]
        %v541 = vld [vmem:[%s485 + $0x88] sm:$0xff]
        %v542 = vld [vmem:[%s485 + $0x90] sm:$0xff]
        %v543 = vld [vmem:[%s485 + $0x98] sm:$0xff]
        %v544 = vld [vmem:[%s485 + $0xa0] sm:$0xff]
        %v545 = vld [vmem:[%s485 + $0xa8] sm:$0xff]
        %v546 = vld [vmem:[%s485 + $0xb0] sm:$0xff]
        %v547 = vld [vmem:[%s485 + $0xb8] sm:$0xff]
        %v548 = vld [vmem:[%s485 + $0xc0] sm:$0xff]
        %v549 = vld [vmem:[%s485 + $0xc8] sm:$0xff]
        %v550 = vld [vmem:[%s485 + $0xd0] sm:$0xff]
        %v551 = vld [vmem:[%s485 + $0xd8] sm:$0xff]
        %v552 = vld [vmem:[%s485 + $0xe0] sm:$0xff]
        %v553 = vld [vmem:[%s485 + $0xe8] sm:$0xff]
        %v554 = vld [vmem:[%s485 + $0xf0] sm:$0xff]
        %v555 = vld [vmem:[%s485 + $0xf8] sm:$0xff]
        %v556 = vld [vmem:[%s440] sm:$0xf]
        %v557 = vld [vmem:[%s440 + $0x4] sm:$0xf]
        %v558 = vld [vmem:[%s440 + $0x8] sm:$0xf]
        %v559 = vld [vmem:[%s440 + $0xc] sm:$0xf]
        %v560 = vld [vmem:[%s440 + $0x10] sm:$0xf]
        %v561 = vld [vmem:[%s440 + $0x14] sm:$0xf]
        %v562 = vld [vmem:[%s440 + $0x18] sm:$0xf]
        %v563 = vld [vmem:[%s440 + $0x1c] sm:$0xf]
        %v564 = vld [vmem:[%s440 + $0x20] sm:$0xf]
        %v565 = vld [vmem:[%s440 + $0x24] sm:$0xf]
        %v566 = vld [vmem:[%s440 + $0x28] sm:$0xf]
        %v567 = vld [vmem:[%s440 + $0x2c] sm:$0xf]
        %v568 = vld [vmem:[%s440 + $0x30] sm:$0xf]
        %v569 = vld [vmem:[%s440 + $0x34] sm:$0xf]
        %v570 = vld [vmem:[%s440 + $0x38] sm:$0xf]
        %v571 = vld [vmem:[%s440 + $0x3c] sm:$0xf]
        %v572 = vld [vmem:[%s440 + $0x40] sm:$0xf]
        %v573 = vld [vmem:[%s440 + $0x44] sm:$0xf]
        %v574 = vld [vmem:[%s440 + $0x48] sm:$0xf]
        %v575 = vld [vmem:[%s440 + $0x4c] sm:$0xf]
        %v576 = vld [vmem:[%s440 + $0x50] sm:$0xf]
        %v577 = vld [vmem:[%s440 + $0x54] sm:$0xf]
        %v578 = vld [vmem:[%s440 + $0x58] sm:$0xf]
        %v579 = vld [vmem:[%s440 + $0x5c] sm:$0xf]
        %v580 = vld [vmem:[%s440 + $0x60] sm:$0xf]
        %v581 = vld [vmem:[%s440 + $0x64] sm:$0xf]
        %v582 = vld [vmem:[%s440 + $0x68] sm:$0xf]
        %v583 = vld [vmem:[%s440 + $0x6c] sm:$0xf]
        %v584 = vld [vmem:[%s440 + $0x70] sm:$0xf]
        %v585 = vld [vmem:[%s440 + $0x74] sm:$0xf]
        %v586 = vld [vmem:[%s440 + $0x78] sm:$0xf]
        %v587 = vld [vmem:[%s440 + $0x7c] sm:$0xf]
        %v588 = vld [vmem:[%s479] sm:$0xf]
        %v589 = vld [vmem:[%s479 + $0x4] sm:$0xf]
        %v590 = vld [vmem:[%s479 + $0x8] sm:$0xf]
        %v591 = vld [vmem:[%s479 + $0xc] sm:$0xf]
        %v592 = vld [vmem:[%s479 + $0x10] sm:$0xf]
        %v593 = vld [vmem:[%s479 + $0x14] sm:$0xf]
        %v594 = vld [vmem:[%s479 + $0x18] sm:$0xf]
        %v595 = vld [vmem:[%s479 + $0x1c] sm:$0xf]
        %v596 = vld [vmem:[%s479 + $0x20] sm:$0xf]
        %v597 = vld [vmem:[%s479 + $0x24] sm:$0xf]
        %v598 = vld [vmem:[%s479 + $0x28] sm:$0xf]
        %v599 = vld [vmem:[%s479 + $0x2c] sm:$0xf]
        %v600 = vld [vmem:[%s479 + $0x30] sm:$0xf]
        %v601 = vld [vmem:[%s479 + $0x34] sm:$0xf]
        %v602 = vld [vmem:[%s479 + $0x38] sm:$0xf]
        %v603 = vld [vmem:[%s479 + $0x3c] sm:$0xf]
        %v636 = vunpack.c.l.b16 %v556
        %v637 = vunpack.c.l.b16 %v557
        %v638 = vunpack.c.l.b16 %v558
        %v639 = vunpack.c.l.b16 %v559
        %v640 = vunpack.c.l.b16 %v560
        %v641 = vunpack.c.l.b16 %v561
        %v642 = vunpack.c.l.b16 %v562
        %v643 = vunpack.c.l.b16 %v563
        %v644 = vunpack.c.l.b16 %v564
        %v645 = vunpack.c.l.b16 %v565
        %v646 = vunpack.c.l.b16 %v566
        %v647 = vunpack.c.l.b16 %v567
        %v648 = vunpack.c.l.b16 %v568
        %v649 = vunpack.c.l.b16 %v569
        %v650 = vunpack.c.l.b16 %v570
        %v651 = vunpack.c.l.b16 %v571
        %v652 = vunpack.c.l.b16 %v572
        %v653 = vunpack.c.l.b16 %v573
        %v654 = vunpack.c.l.b16 %v574
        %v655 = vunpack.c.l.b16 %v575
        %v656 = vunpack.c.l.b16 %v576
        %v657 = vunpack.c.l.b16 %v577
        %v658 = vunpack.c.l.b16 %v578
        %v659 = vunpack.c.l.b16 %v579
        %v660 = vunpack.c.l.b16 %v580
        %v661 = vunpack.c.l.b16 %v581
        %v662 = vunpack.c.l.b16 %v582
        %v663 = vunpack.c.l.b16 %v583
        %v664 = vunpack.c.l.b16 %v584
        %v665 = vunpack.c.l.b16 %v585
        %v666 = vunpack.c.l.b16 %v586
        %v667 = vunpack.c.l.b16 %v587
        %v668 = vpack.c.b16 %v637, %v636
        %v669 = vpack.c.b16 %v639, %v638
        %v670 = vpack.c.b16 %v641, %v640
        %v671 = vpack.c.b16 %v643, %v642
        %v672 = vpack.c.b16 %v645, %v644
        %v673 = vpack.c.b16 %v647, %v646
        %v674 = vpack.c.b16 %v649, %v648
        %v675 = vpack.c.b16 %v651, %v650
        %v676 = vpack.c.b16 %v653, %v652
        %v677 = vpack.c.b16 %v655, %v654
        %v678 = vpack.c.b16 %v657, %v656
        %v679 = vpack.c.b16 %v659, %v658
        %v680 = vpack.c.b16 %v661, %v660
        %v681 = vpack.c.b16 %v663, %v662
        %v682 = vpack.c.b16 %v665, %v664
        %v683 = vpack.c.b16 %v667, %v666
        %v716 = vunpack.c.l.b16 %v588
        %v717 = vunpack.c.l.b16 %v589
        %v718 = vunpack.c.l.b16 %v590
        %v719 = vunpack.c.l.b16 %v591
        %v720 = vunpack.c.l.b16 %v592
        %v721 = vunpack.c.l.b16 %v593
        %v722 = vunpack.c.l.b16 %v594
        %v723 = vunpack.c.l.b16 %v595
        %v724 = vunpack.c.l.b16 %v596
        %v725 = vunpack.c.l.b16 %v597
        %v726 = vunpack.c.l.b16 %v598
        %v727 = vunpack.c.l.b16 %v599
        %v728 = vunpack.c.l.b16 %v600
        %v729 = vunpack.c.l.b16 %v601
        %v730 = vunpack.c.l.b16 %v602
        %v731 = vunpack.c.l.b16 %v603
        %v732 = vpack.c.b16 %v717, %v716
        %v733 = vpack.c.b16 %v719, %v718
        %v734 = vpack.c.b16 %v721, %v720
        %v735 = vpack.c.b16 %v723, %v722
        %v736 = vpack.c.b16 %v725, %v724
        %v737 = vpack.c.b16 %v727, %v726
        %v738 = vpack.c.b16 %v729, %v728
        %v739 = vpack.c.b16 %v731, %v730
        %748 = vmatprep.subr.bf16.mxu0 0
        %749 = vmatpush1.bf16.msra.mxu0 %v739
        %750 = vmatprep.subr.bf16.mxu0 0
        %751 = vmatpush1.bf16.msra.mxu0 %v738
        %752 = vmatprep.subr.bf16.mxu0 0
        %753 = vmatpush1.bf16.msra.mxu0 %v737
        %754 = vmatprep.subr.bf16.mxu0 0
        %755 = vmatpush1.bf16.msra.mxu0 %v736
        %756 = vmatprep.subr.bf16.mxu0 0
        %757 = vmatpush1.bf16.msra.mxu0 %v735
        %758 = vmatprep.subr.bf16.mxu0 0
        %759 = vmatpush1.bf16.msra.mxu0 %v734
        %760 = vmatprep.subr.bf16.mxu0 0
        %761 = vmatpush1.bf16.msra.mxu0 %v733
        %762 = vmatprep.subr.bf16.mxu0 0
        %763 = vmatpush1.bf16.msra.mxu0 %v732
        %764 = vmatprep.subr.bf16.mxu0 0
        %765 = vmatpush2.bf16.msra.mxu0 0
        %766 = vmatprep.subr.bf16.mxu0 0
        %767 = vmatpush2.bf16.msra.mxu0 0
        %768 = vmatprep.subr.bf16.mxu0 0
        %769 = vmatpush2.bf16.msra.mxu0 0
        %770 = vmatprep.subr.bf16.mxu0 0
        %771 = vmatpush2.bf16.msra.mxu0 0
        %772 = vmatprep.subr.bf16.mxu0 0
        %773 = vmatpush2.bf16.msra.mxu0 0
        %774 = vmatprep.subr.bf16.mxu0 0
        %775 = vmatpush2.bf16.msra.mxu0 0
        %776 = vmatprep.subr.bf16.mxu0 0
        %777 = vmatpush2.bf16.msra.mxu0 0
        %778 = vmatprep.subr.bf16.mxu0 0
        %779 = vmatpush2.bf16.msra.mxu0 0
        %780 = vmatprep.mubr.bf16.mxu0 0
        %781 = vmatmul.mubr.bf16.gmra.mxu0 %v668
        %v782 = vpop.f32.mrf.mxu0
        %v783 = vadd.f32 0.0, %v782
        %v784 = vpop.f32.mrf.mxu0
        %v785 = vpop.f32.mrf.mxu0
        %v786 = vadd.f32 0.0, %v785
        %v787 = vpop.f32.mrf.mxu0
        %788 = vmatprep.mubr.bf16.mxu0 0
        %789 = vmatmul.mubr.bf16.gmra.mxu0 %v669
        %v790 = vpop.f32.mrf.mxu0
        %v791 = vadd.f32 0.0, %v790
        %v792 = vpop.f32.mrf.mxu0
        %v793 = vpop.f32.mrf.mxu0
        %v794 = vadd.f32 0.0, %v793
        %v795 = vpop.f32.mrf.mxu0
        %796 = vmatprep.mubr.bf16.mxu0 0
        %797 = vmatmul.mubr.bf16.gmra.mxu0 %v670
        %v798 = vpop.f32.mrf.mxu0
        %v799 = vadd.f32 0.0, %v798
        %v800 = vpop.f32.mrf.mxu0
        %v801 = vpop.f32.mrf.mxu0
        %v802 = vadd.f32 0.0, %v801
        %v803 = vpop.f32.mrf.mxu0
        %804 = vmatprep.mubr.bf16.mxu0 0
        %805 = vmatmul.mubr.bf16.gmra.mxu0 %v671
        %v806 = vpop.f32.mrf.mxu0
        %v807 = vadd.f32 0.0, %v806
        %v808 = vpop.f32.mrf.mxu0
        %v809 = vpop.f32.mrf.mxu0
        %v810 = vadd.f32 0.0, %v809
        %v811 = vpop.f32.mrf.mxu0
        %812 = vmatprep.mubr.bf16.mxu0 0
        %813 = vmatmul.mubr.bf16.gmra.mxu0 %v672
        %v814 = vpop.f32.mrf.mxu0
        %v815 = vadd.f32 0.0, %v814
        %v816 = vpop.f32.mrf.mxu0
        %v817 = vpop.f32.mrf.mxu0
        %v818 = vadd.f32 0.0, %v817
        %v819 = vpop.f32.mrf.mxu0
        %820 = vmatprep.mubr.bf16.mxu0 0
        %821 = vmatmul.mubr.bf16.gmra.mxu0 %v673
        %v822 = vpop.f32.mrf.mxu0
        %v823 = vadd.f32 0.0, %v822
        %v824 = vpop.f32.mrf.mxu0
        %v825 = vpop.f32.mrf.mxu0
        %v826 = vadd.f32 0.0, %v825
        %v827 = vpop.f32.mrf.mxu0
        %828 = vmatprep.mubr.bf16.mxu0 0
        %829 = vmatmul.mubr.bf16.gmra.mxu0 %v674
        %v830 = vpop.f32.mrf.mxu0
        %v831 = vadd.f32 0.0, %v830
        %v832 = vpop.f32.mrf.mxu0
        %v833 = vpop.f32.mrf.mxu0
        %v834 = vadd.f32 0.0, %v833
        %v835 = vpop.f32.mrf.mxu0
        %836 = vmatprep.mubr.bf16.mxu0 0
        %837 = vmatmul.mubr.bf16.gmra.mxu0 %v675
        %v838 = vpop.f32.mrf.mxu0
        %v839 = vadd.f32 0.0, %v838
        %v840 = vpop.f32.mrf.mxu0
        %v841 = vpop.f32.mrf.mxu0
        %v842 = vadd.f32 0.0, %v841
        %v843 = vpop.f32.mrf.mxu0
        %844 = vmatprep.mubr.bf16.mxu0 0
        %845 = vmatmul.mubr.bf16.gmra.mxu0 %v676
        %v846 = vpop.f32.mrf.mxu0
        %v847 = vadd.f32 0.0, %v846
        %v848 = vpop.f32.mrf.mxu0
        %v849 = vpop.f32.mrf.mxu0
        %v850 = vadd.f32 0.0, %v849
        %v851 = vpop.f32.mrf.mxu0
        %852 = vmatprep.mubr.bf16.mxu0 0
        %853 = vmatmul.mubr.bf16.gmra.mxu0 %v677
        %v854 = vpop.f32.mrf.mxu0
        %v855 = vadd.f32 0.0, %v854
        %v856 = vpop.f32.mrf.mxu0
        %v857 = vpop.f32.mrf.mxu0
        %v858 = vadd.f32 0.0, %v857
        %v859 = vpop.f32.mrf.mxu0
        %860 = vmatprep.mubr.bf16.mxu0 0
        %861 = vmatmul.mubr.bf16.gmra.mxu0 %v678
        %v862 = vpop.f32.mrf.mxu0
        %v863 = vadd.f32 0.0, %v862
        %v864 = vpop.f32.mrf.mxu0
        %v865 = vpop.f32.mrf.mxu0
        %v866 = vadd.f32 0.0, %v865
        %v867 = vpop.f32.mrf.mxu0
        %868 = vmatprep.mubr.bf16.mxu0 0
        %869 = vmatmul.mubr.bf16.gmra.mxu0 %v679
        %v870 = vpop.f32.mrf.mxu0
        %v871 = vadd.f32 0.0, %v870
        %v872 = vpop.f32.mrf.mxu0
        %v873 = vpop.f32.mrf.mxu0
        %v874 = vadd.f32 0.0, %v873
        %v875 = vpop.f32.mrf.mxu0
        %876 = vmatprep.mubr.bf16.mxu0 0
        %877 = vmatmul.mubr.bf16.gmra.mxu0 %v680
        %v878 = vpop.f32.mrf.mxu0
        %v879 = vadd.f32 0.0, %v878
        %v880 = vpop.f32.mrf.mxu0
        %v881 = vpop.f32.mrf.mxu0
        %v882 = vadd.f32 0.0, %v881
        %v883 = vpop.f32.mrf.mxu0
        %884 = vmatprep.mubr.bf16.mxu0 0
        %885 = vmatmul.mubr.bf16.gmra.mxu0 %v681
        %v886 = vpop.f32.mrf.mxu0
        %v887 = vadd.f32 0.0, %v886
        %v888 = vpop.f32.mrf.mxu0
        %v889 = vpop.f32.mrf.mxu0
        %v890 = vadd.f32 0.0, %v889
        %v891 = vpop.f32.mrf.mxu0
        %892 = vmatprep.mubr.bf16.mxu0 0
        %893 = vmatmul.mubr.bf16.gmra.mxu0 %v682
        %v894 = vpop.f32.mrf.mxu0
        %v895 = vadd.f32 0.0, %v894
        %v896 = vpop.f32.mrf.mxu0
        %v897 = vpop.f32.mrf.mxu0
        %v898 = vadd.f32 0.0, %v897
        %v899 = vpop.f32.mrf.mxu0
        %900 = vmatprep.mubr.bf16.mxu0 0
        %901 = vmatmul.mubr.bf16.gmra.mxu0 %v683
        %v902 = vpop.f32.mrf.mxu0
        %v903 = vadd.f32 0.0, %v902
        %v904 = vpop.f32.mrf.mxu0
        %v905 = vpop.f32.mrf.mxu0
        %v906 = vadd.f32 0.0, %v905
        %v907 = vpop.f32.mrf.mxu0
        %908 = vdwg.mxu0
        %v909 = vadd.f32 %v524, %v783
        %v910 = vadd.f32 %v525, %v786
        %v911 = vadd.f32 %v526, %v791
        %v912 = vadd.f32 %v527, %v794
        %v913 = vadd.f32 %v528, %v799
        %v914 = vadd.f32 %v529, %v802
        %v915 = vadd.f32 %v530, %v807
        %v916 = vadd.f32 %v531, %v810
        %v917 = vadd.f32 %v532, %v815
        %v918 = vadd.f32 %v533, %v818
        %v919 = vadd.f32 %v534, %v823
        %v920 = vadd.f32 %v535, %v826
        %v921 = vadd.f32 %v536, %v831
        %v922 = vadd.f32 %v537, %v834
        %v923 = vadd.f32 %v538, %v839
        %v924 = vadd.f32 %v539, %v842
        %v925 = vadd.f32 %v540, %v847
        %v926 = vadd.f32 %v541, %v850
        %v927 = vadd.f32 %v542, %v855
        %v928 = vadd.f32 %v543, %v858
        %v929 = vadd.f32 %v544, %v863
        %v930 = vadd.f32 %v545, %v866
        %v931 = vadd.f32 %v546, %v871
        %v932 = vadd.f32 %v547, %v874
        %v933 = vadd.f32 %v548, %v879
        %v934 = vadd.f32 %v549, %v882
        %v935 = vadd.f32 %v550, %v887
        %v936 = vadd.f32 %v551, %v890
        %v937 = vadd.f32 %v552, %v895
        %v938 = vadd.f32 %v553, %v898
        %v939 = vadd.f32 %v554, %v903
        %v940 = vadd.f32 %v555, %v906
        %941 = vst [vmem:[%s485] sm:$0xff] %v909
        %942 = vst [vmem:[%s485 + $0x8] sm:$0xff] %v910
        %943 = vst [vmem:[%s485 + $0x10] sm:$0xff] %v911
        %944 = vst [vmem:[%s485 + $0x18] sm:$0xff] %v912
        %945 = vst [vmem:[%s485 + $0x20] sm:$0xff] %v913
        %946 = vst [vmem:[%s485 + $0x28] sm:$0xff] %v914
        %947 = vst [vmem:[%s485 + $0x30] sm:$0xff] %v915
        %948 = vst [vmem:[%s485 + $0x38] sm:$0xff] %v916
        %949 = vst [vmem:[%s485 + $0x40] sm:$0xff] %v917
        %950 = vst [vmem:[%s485 + $0x48] sm:$0xff] %v918
        %951 = vst [vmem:[%s485 + $0x50] sm:$0xff] %v919
        %952 = vst [vmem:[%s485 + $0x58] sm:$0xff] %v920
        %953 = vst [vmem:[%s485 + $0x60] sm:$0xff] %v921
        %954 = vst [vmem:[%s485 + $0x68] sm:$0xff] %v922
        %955 = vst [vmem:[%s485 + $0x70] sm:$0xff] %v923
        %956 = vst [vmem:[%s485 + $0x78] sm:$0xff] %v924
        %957 = vst [vmem:[%s485 + $0x80] sm:$0xff] %v925
        %958 = vst [vmem:[%s485 + $0x88] sm:$0xff] %v926
        %959 = vst [vmem:[%s485 + $0x90] sm:$0xff] %v927
        %960 = vst [vmem:[%s485 + $0x98] sm:$0xff] %v928
        %961 = vst [vmem:[%s485 + $0xa0] sm:$0xff] %v929
        %962 = vst [vmem:[%s485 + $0xa8] sm:$0xff] %v930
        %963 = vst [vmem:[%s485 + $0xb0] sm:$0xff] %v931
        %964 = vst [vmem:[%s485 + $0xb8] sm:$0xff] %v932
        %965 = vst [vmem:[%s485 + $0xc0] sm:$0xff] %v933
        %966 = vst [vmem:[%s485 + $0xc8] sm:$0xff] %v934
        %967 = vst [vmem:[%s485 + $0xd0] sm:$0xff] %v935
        %968 = vst [vmem:[%s485 + $0xd8] sm:$0xff] %v936
        %969 = vst [vmem:[%s485 + $0xe0] sm:$0xff] %v937
        %970 = vst [vmem:[%s485 + $0xe8] sm:$0xff] %v938
        %971 = vst [vmem:[%s485 + $0xf0] sm:$0xff] %v939
        %972 = vst [vmem:[%s485 + $0xf8] sm:$0xff] %v940
        %p973 = scmp.eq.s32.totalorder %s23, 2
        // Predicated region
        $region94: #{nin_forward.8} parent=84 // pred_check
          %p974 = pneg %p973
        $region95: #{nin_forward.8} parent=84 // pred_check_branch
          %976 = sbr.rel (%p974) target = $region97
        $region96: #{nin_forward.8} parent=84 // pred_region
          %v977 = vld [vmem:[%s485] sm:$0xff]
          %v978 = vld [vmem:[%s485 + $0x8] sm:$0xff]
          %v979 = vld [vmem:[%s485 + $0x10] sm:$0xff]
          %v980 = vld [vmem:[%s485 + $0x18] sm:$0xff]
          %v981 = vld [vmem:[%s485 + $0x20] sm:$0xff]
          %v982 = vld [vmem:[%s485 + $0x28] sm:$0xff]
          %v983 = vld [vmem:[%s485 + $0x30] sm:$0xff]
          %v984 = vld [vmem:[%s485 + $0x38] sm:$0xff]
          %v985 = vld [vmem:[%s485 + $0x40] sm:$0xff]
          %v986 = vld [vmem:[%s485 + $0x48] sm:$0xff]
          %v987 = vld [vmem:[%s485 + $0x50] sm:$0xff]
          %v988 = vld [vmem:[%s485 + $0x58] sm:$0xff]
          %v989 = vld [vmem:[%s485 + $0x60] sm:$0xff]
          %v990 = vld [vmem:[%s485 + $0x68] sm:$0xff]
          %v991 = vld [vmem:[%s485 + $0x70] sm:$0xff]
          %v992 = vld [vmem:[%s485 + $0x78] sm:$0xff]
          %v993 = vld [vmem:[%s485 + $0x80] sm:$0xff]
          %v994 = vld [vmem:[%s485 + $0x88] sm:$0xff]
          %v995 = vld [vmem:[%s485 + $0x90] sm:$0xff]
          %v996 = vld [vmem:[%s485 + $0x98] sm:$0xff]
          %v997 = vld [vmem:[%s485 + $0xa0] sm:$0xff]
          %v998 = vld [vmem:[%s485 + $0xa8] sm:$0xff]
          %v999 = vld [vmem:[%s485 + $0xb0] sm:$0xff]
          %v1000 = vld [vmem:[%s485 + $0xb8] sm:$0xff]
          %v1001 = vld [vmem:[%s485 + $0xc0] sm:$0xff]
          %v1002 = vld [vmem:[%s485 + $0xc8] sm:$0xff]
          %v1003 = vld [vmem:[%s485 + $0xd0] sm:$0xff]
          %v1004 = vld [vmem:[%s485 + $0xd8] sm:$0xff]
          %v1005 = vld [vmem:[%s485 + $0xe0] sm:$0xff]
          %v1006 = vld [vmem:[%s485 + $0xe8] sm:$0xff]
          %v1007 = vld [vmem:[%s485 + $0xf0] sm:$0xff]
          %v1008 = vld [vmem:[%s485 + $0xf8] sm:$0xff]
          %v1009 = vld [vmem:[%s2] sm:$0x1]
          %v1011 = vlaneseq
          %v1012 = vshrl.u32 %v1011, 7
          %v1013 = vsub.s32 0, %v1012
          %v1014 = vrot.slane %v1009, %v1013
          %v1016 = vadd.f32 %v977, %v1014
          %v1017 = vadd.f32 %v978, %v1014
          %v1018 = vadd.f32 %v979, %v1014
          %v1019 = vadd.f32 %v980, %v1014
          %v1020 = vadd.f32 %v981, %v1014
          %v1021 = vadd.f32 %v982, %v1014
          %v1022 = vadd.f32 %v983, %v1014
          %v1023 = vadd.f32 %v984, %v1014
          %v1024 = vadd.f32 %v985, %v1014
          %v1025 = vadd.f32 %v986, %v1014
          %v1026 = vadd.f32 %v987, %v1014
          %v1027 = vadd.f32 %v988, %v1014
          %v1028 = vadd.f32 %v989, %v1014
          %v1029 = vadd.f32 %v990, %v1014
          %v1030 = vadd.f32 %v991, %v1014
          %v1031 = vadd.f32 %v992, %v1014
          %v1032 = vadd.f32 %v993, %v1014
          %v1033 = vadd.f32 %v994, %v1014
          %v1034 = vadd.f32 %v995, %v1014
          %v1035 = vadd.f32 %v996, %v1014
          %v1036 = vadd.f32 %v997, %v1014
          %v1037 = vadd.f32 %v998, %v1014
          %v1038 = vadd.f32 %v999, %v1014
          %v1039 = vadd.f32 %v1000, %v1014
          %v1040 = vadd.f32 %v1001, %v1014
          %v1041 = vadd.f32 %v1002, %v1014
          %v1042 = vadd.f32 %v1003, %v1014
          %v1043 = vadd.f32 %v1004, %v1014
          %v1044 = vadd.f32 %v1005, %v1014
          %v1045 = vadd.f32 %v1006, %v1014
          %v1046 = vadd.f32 %v1007, %v1014
          %v1047 = vadd.f32 %v1008, %v1014
          %v1048 = vmax.f32 %v1016, 0.0
          %v1049 = vmax.f32 %v1017, 0.0
          %v1050 = vmax.f32 %v1018, 0.0
          %v1051 = vmax.f32 %v1019, 0.0
          %v1052 = vmax.f32 %v1020, 0.0
          %v1053 = vmax.f32 %v1021, 0.0
          %v1054 = vmax.f32 %v1022, 0.0
          %v1055 = vmax.f32 %v1023, 0.0
          %v1056 = vmax.f32 %v1024, 0.0
          %v1057 = vmax.f32 %v1025, 0.0
          %v1058 = vmax.f32 %v1026, 0.0
          %v1059 = vmax.f32 %v1027, 0.0
          %v1060 = vmax.f32 %v1028, 0.0
          %v1061 = vmax.f32 %v1029, 0.0
          %v1062 = vmax.f32 %v1030, 0.0
          %v1063 = vmax.f32 %v1031, 0.0
          %v1064 = vmax.f32 %v1032, 0.0
          %v1065 = vmax.f32 %v1033, 0.0
          %v1066 = vmax.f32 %v1034, 0.0
          %v1067 = vmax.f32 %v1035, 0.0
          %v1068 = vmax.f32 %v1036, 0.0
          %v1069 = vmax.f32 %v1037, 0.0
          %v1070 = vmax.f32 %v1038, 0.0
          %v1071 = vmax.f32 %v1039, 0.0
          %v1072 = vmax.f32 %v1040, 0.0
          %v1073 = vmax.f32 %v1041, 0.0
          %v1074 = vmax.f32 %v1042, 0.0
          %v1075 = vmax.f32 %v1043, 0.0
          %v1076 = vmax.f32 %v1044, 0.0
          %v1077 = vmax.f32 %v1045, 0.0
          %v1078 = vmax.f32 %v1046, 0.0
          %v1079 = vmax.f32 %v1047, 0.0
          %v1080 = vpack.c.bf16 %v1049, %v1048
          %v1081 = vpack.c.bf16 %v1051, %v1050
          %v1082 = vpack.c.bf16 %v1053, %v1052
          %v1083 = vpack.c.bf16 %v1055, %v1054
          %v1084 = vpack.c.bf16 %v1057, %v1056
          %v1085 = vpack.c.bf16 %v1059, %v1058
          %v1086 = vpack.c.bf16 %v1061, %v1060
          %v1087 = vpack.c.bf16 %v1063, %v1062
          %v1088 = vpack.c.bf16 %v1065, %v1064
          %v1089 = vpack.c.bf16 %v1067, %v1066
          %v1090 = vpack.c.bf16 %v1069, %v1068
          %v1091 = vpack.c.bf16 %v1071, %v1070
          %v1092 = vpack.c.bf16 %v1073, %v1072
          %v1093 = vpack.c.bf16 %v1075, %v1074
          %v1094 = vpack.c.bf16 %v1077, %v1076
          %v1095 = vpack.c.bf16 %v1079, %v1078
          %v1096 = vld [vmem:[%s3] sm:$0xf]
          %v1097 = vld [vmem:[%s3 + $0x4] sm:$0xf]
          %v1098 = vld [vmem:[%s3 + $0x8] sm:$0xf]
          %v1099 = vld [vmem:[%s3 + $0xc] sm:$0xf]
          %v1100 = vld [vmem:[%s3 + $0x10] sm:$0xf]
          %v1101 = vld [vmem:[%s3 + $0x14] sm:$0xf]
          %v1102 = vld [vmem:[%s3 + $0x18] sm:$0xf]
          %v1103 = vld [vmem:[%s3 + $0x1c] sm:$0xf]
          %v1104 = vld [vmem:[%s3 + $0x20] sm:$0xf]
          %v1105 = vld [vmem:[%s3 + $0x24] sm:$0xf]
          %v1106 = vld [vmem:[%s3 + $0x28] sm:$0xf]
          %v1107 = vld [vmem:[%s3 + $0x2c] sm:$0xf]
          %v1108 = vld [vmem:[%s3 + $0x30] sm:$0xf]
          %v1109 = vld [vmem:[%s3 + $0x34] sm:$0xf]
          %v1110 = vld [vmem:[%s3 + $0x38] sm:$0xf]
          %v1111 = vld [vmem:[%s3 + $0x3c] sm:$0xf]
          %v1112 = vld [vmem:[%s4] sm:$0x1]
          %v1114 = vlaneseq
          %v1115 = vshrl.u32 %v1114, 7
          %v1116 = vsub.s32 0, %v1115
          %v1117 = vrot.slane %v1112, %v1116
          %v1135 = vunpack.c.l.b16 %v1096
          %v1136 = vunpack.c.l.b16 %v1097
          %v1137 = vunpack.c.l.b16 %v1098
          %v1138 = vunpack.c.l.b16 %v1099
          %v1139 = vunpack.c.l.b16 %v1100
          %v1140 = vunpack.c.l.b16 %v1101
          %v1141 = vunpack.c.l.b16 %v1102
          %v1142 = vunpack.c.l.b16 %v1103
          %v1143 = vunpack.c.l.b16 %v1104
          %v1144 = vunpack.c.l.b16 %v1105
          %v1145 = vunpack.c.l.b16 %v1106
          %v1146 = vunpack.c.l.b16 %v1107
          %v1147 = vunpack.c.l.b16 %v1108
          %v1148 = vunpack.c.l.b16 %v1109
          %v1149 = vunpack.c.l.b16 %v1110
          %v1150 = vunpack.c.l.b16 %v1111
          %v1151 = vpack.c.b16 %v1136, %v1135
          %v1152 = vpack.c.b16 %v1138, %v1137
          %v1153 = vpack.c.b16 %v1140, %v1139
          %v1154 = vpack.c.b16 %v1142, %v1141
          %v1155 = vpack.c.b16 %v1144, %v1143
          %v1156 = vpack.c.b16 %v1146, %v1145
          %v1157 = vpack.c.b16 %v1148, %v1147
          %v1158 = vpack.c.b16 %v1150, %v1149
          %1167 = vmatprep.subr.bf16.mxu0 0
          %1168 = vmatpush1.bf16.msra.mxu0 %v1158
          %1169 = vmatprep.subr.bf16.mxu0 0
          %1170 = vmatpush1.bf16.msra.mxu0 %v1157
          %1171 = vmatprep.subr.bf16.mxu0 0
          %1172 = vmatpush1.bf16.msra.mxu0 %v1156
          %1173 = vmatprep.subr.bf16.mxu0 0
          %1174 = vmatpush1.bf16.msra.mxu0 %v1155
          %1175 = vmatprep.subr.bf16.mxu0 0
          %1176 = vmatpush1.bf16.msra.mxu0 %v1154
          %1177 = vmatprep.subr.bf16.mxu0 0
          %1178 = vmatpush1.bf16.msra.mxu0 %v1153
          %1179 = vmatprep.subr.bf16.mxu0 0
          %1180 = vmatpush1.bf16.msra.mxu0 %v1152
          %1181 = vmatprep.subr.bf16.mxu0 0
          %1182 = vmatpush1.bf16.msra.mxu0 %v1151
          %1183 = vmatprep.subr.bf16.mxu0 0
          %1184 = vmatpush2.bf16.msra.mxu0 0
          %1185 = vmatprep.subr.bf16.mxu0 0
          %1186 = vmatpush2.bf16.msra.mxu0 0
          %1187 = vmatprep.subr.bf16.mxu0 0
          %1188 = vmatpush2.bf16.msra.mxu0 0
          %1189 = vmatprep.subr.bf16.mxu0 0
          %1190 = vmatpush2.bf16.msra.mxu0 0
          %1191 = vmatprep.subr.bf16.mxu0 0
          %1192 = vmatpush2.bf16.msra.mxu0 0
          %1193 = vmatprep.subr.bf16.mxu0 0
          %1194 = vmatpush2.bf16.msra.mxu0 0
          %1195 = vmatprep.subr.bf16.mxu0 0
          %1196 = vmatpush2.bf16.msra.mxu0 0
          %1197 = vmatprep.subr.bf16.mxu0 0
          %1198 = vmatpush2.bf16.msra.mxu0 0
          %1199 = vmatprep.mubr.bf16.mxu0 0
          %1200 = vmatmul.mubr.bf16.gmra.mxu0 %v1080
          %v1201 = vpop.f32.mrf.mxu0
          %v1202 = vadd.f32 %v1117, %v1201
          %v1203 = vpop.f32.mrf.mxu0
          %v1204 = vpop.f32.mrf.mxu0
          %v1205 = vadd.f32 %v1117, %v1204
          %v1206 = vpop.f32.mrf.mxu0
          %1207 = vmatprep.mubr.bf16.mxu0 0
          %1208 = vmatmul.mubr.bf16.gmra.mxu0 %v1081
          %v1209 = vpop.f32.mrf.mxu0
          %v1210 = vadd.f32 %v1117, %v1209
          %v1211 = vpop.f32.mrf.mxu0
          %v1212 = vpop.f32.mrf.mxu0
          %v1213 = vadd.f32 %v1117, %v1212
          %v1214 = vpop.f32.mrf.mxu0
          %1215 = vmatprep.mubr.bf16.mxu0 0
          %1216 = vmatmul.mubr.bf16.gmra.mxu0 %v1082
          %v1217 = vpop.f32.mrf.mxu0
          %v1218 = vadd.f32 %v1117, %v1217
          %v1219 = vpop.f32.mrf.mxu0
          %v1220 = vpop.f32.mrf.mxu0
          %v1221 = vadd.f32 %v1117, %v1220
          %v1222 = vpop.f32.mrf.mxu0
          %1223 = vmatprep.mubr.bf16.mxu0 0
          %1224 = vmatmul.mubr.bf16.gmra.mxu0 %v1083
          %v1225 = vpop.f32.mrf.mxu0
          %v1226 = vadd.f32 %v1117, %v1225
          %v1227 = vpop.f32.mrf.mxu0
          %v1228 = vpop.f32.mrf.mxu0
          %v1229 = vadd.f32 %v1117, %v1228
          %v1230 = vpop.f32.mrf.mxu0
          %1231 = vmatprep.mubr.bf16.mxu0 0
          %1232 = vmatmul.mubr.bf16.gmra.mxu0 %v1084
          %v1233 = vpop.f32.mrf.mxu0
          %v1234 = vadd.f32 %v1117, %v1233
          %v1235 = vpop.f32.mrf.mxu0
          %v1236 = vpop.f32.mrf.mxu0
          %v1237 = vadd.f32 %v1117, %v1236
          %v1238 = vpop.f32.mrf.mxu0
          %1239 = vmatprep.mubr.bf16.mxu0 0
          %1240 = vmatmul.mubr.bf16.gmra.mxu0 %v1085
          %v1241 = vpop.f32.mrf.mxu0
          %v1242 = vadd.f32 %v1117, %v1241
          %v1243 = vpop.f32.mrf.mxu0
          %v1244 = vpop.f32.mrf.mxu0
          %v1245 = vadd.f32 %v1117, %v1244
          %v1246 = vpop.f32.mrf.mxu0
          %1247 = vmatprep.mubr.bf16.mxu0 0
          %1248 = vmatmul.mubr.bf16.gmra.mxu0 %v1086
          %v1249 = vpop.f32.mrf.mxu0
          %v1250 = vadd.f32 %v1117, %v1249
          %v1251 = vpop.f32.mrf.mxu0
          %v1252 = vpop.f32.mrf.mxu0
          %v1253 = vadd.f32 %v1117, %v1252
          %v1254 = vpop.f32.mrf.mxu0
          %1255 = vmatprep.mubr.bf16.mxu0 0
          %1256 = vmatmul.mubr.bf16.gmra.mxu0 %v1087
          %v1257 = vpop.f32.mrf.mxu0
          %v1258 = vadd.f32 %v1117, %v1257
          %v1259 = vpop.f32.mrf.mxu0
          %v1260 = vpop.f32.mrf.mxu0
          %v1261 = vadd.f32 %v1117, %v1260
          %v1262 = vpop.f32.mrf.mxu0
          %1263 = vmatprep.mubr.bf16.mxu0 0
          %1264 = vmatmul.mubr.bf16.gmra.mxu0 %v1088
          %v1265 = vpop.f32.mrf.mxu0
          %v1266 = vadd.f32 %v1117, %v1265
          %v1267 = vpop.f32.mrf.mxu0
          %v1268 = vpop.f32.mrf.mxu0
          %v1269 = vadd.f32 %v1117, %v1268
          %v1270 = vpop.f32.mrf.mxu0
          %1271 = vmatprep.mubr.bf16.mxu0 0
          %1272 = vmatmul.mubr.bf16.gmra.mxu0 %v1089
          %v1273 = vpop.f32.mrf.mxu0
          %v1274 = vadd.f32 %v1117, %v1273
          %v1275 = vpop.f32.mrf.mxu0
          %v1276 = vpop.f32.mrf.mxu0
          %v1277 = vadd.f32 %v1117, %v1276
          %v1278 = vpop.f32.mrf.mxu0
          %1279 = vmatprep.mubr.bf16.mxu0 0
          %1280 = vmatmul.mubr.bf16.gmra.mxu0 %v1090
          %v1281 = vpop.f32.mrf.mxu0
          %v1282 = vadd.f32 %v1117, %v1281
          %v1283 = vpop.f32.mrf.mxu0
          %v1284 = vpop.f32.mrf.mxu0
          %v1285 = vadd.f32 %v1117, %v1284
          %v1286 = vpop.f32.mrf.mxu0
          %1287 = vmatprep.mubr.bf16.mxu0 0
          %1288 = vmatmul.mubr.bf16.gmra.mxu0 %v1091
          %v1289 = vpop.f32.mrf.mxu0
          %v1290 = vadd.f32 %v1117, %v1289
          %v1291 = vpop.f32.mrf.mxu0
          %v1292 = vpop.f32.mrf.mxu0
          %v1293 = vadd.f32 %v1117, %v1292
          %v1294 = vpop.f32.mrf.mxu0
          %1295 = vmatprep.mubr.bf16.mxu0 0
          %1296 = vmatmul.mubr.bf16.gmra.mxu0 %v1092
          %v1297 = vpop.f32.mrf.mxu0
          %v1298 = vadd.f32 %v1117, %v1297
          %v1299 = vpop.f32.mrf.mxu0
          %v1300 = vpop.f32.mrf.mxu0
          %v1301 = vadd.f32 %v1117, %v1300
          %v1302 = vpop.f32.mrf.mxu0
          %1303 = vmatprep.mubr.bf16.mxu0 0
          %1304 = vmatmul.mubr.bf16.gmra.mxu0 %v1093
          %v1305 = vpop.f32.mrf.mxu0
          %v1306 = vadd.f32 %v1117, %v1305
          %v1307 = vpop.f32.mrf.mxu0
          %v1308 = vpop.f32.mrf.mxu0
          %v1309 = vadd.f32 %v1117, %v1308
          %v1310 = vpop.f32.mrf.mxu0
          %1311 = vmatprep.mubr.bf16.mxu0 0
          %1312 = vmatmul.mubr.bf16.gmra.mxu0 %v1094
          %v1313 = vpop.f32.mrf.mxu0
          %v1314 = vadd.f32 %v1117, %v1313
          %v1315 = vpop.f32.mrf.mxu0
          %v1316 = vpop.f32.mrf.mxu0
          %v1317 = vadd.f32 %v1117, %v1316
          %v1318 = vpop.f32.mrf.mxu0
          %1319 = vmatprep.mubr.bf16.mxu0 0
          %1320 = vmatmul.mubr.bf16.gmra.mxu0 %v1095
          %v1321 = vpop.f32.mrf.mxu0
          %v1322 = vadd.f32 %v1117, %v1321
          %v1323 = vpop.f32.mrf.mxu0
          %v1324 = vpop.f32.mrf.mxu0
          %v1325 = vadd.f32 %v1117, %v1324
          %v1326 = vpop.f32.mrf.mxu0
          %1327 = vdwg.mxu0
          %v1328 = vmax.f32 %v1202, 0.0
          %v1329 = vmax.f32 %v1205, 0.0
          %v1330 = vmax.f32 %v1210, 0.0
          %v1331 = vmax.f32 %v1213, 0.0
          %v1332 = vmax.f32 %v1218, 0.0
          %v1333 = vmax.f32 %v1221, 0.0
          %v1334 = vmax.f32 %v1226, 0.0
          %v1335 = vmax.f32 %v1229, 0.0
          %v1336 = vmax.f32 %v1234, 0.0
          %v1337 = vmax.f32 %v1237, 0.0
          %v1338 = vmax.f32 %v1242, 0.0
          %v1339 = vmax.f32 %v1245, 0.0
          %v1340 = vmax.f32 %v1250, 0.0
          %v1341 = vmax.f32 %v1253, 0.0
          %v1342 = vmax.f32 %v1258, 0.0
          %v1343 = vmax.f32 %v1261, 0.0
          %v1344 = vmax.f32 %v1266, 0.0
          %v1345 = vmax.f32 %v1269, 0.0
          %v1346 = vmax.f32 %v1274, 0.0
          %v1347 = vmax.f32 %v1277, 0.0
          %v1348 = vmax.f32 %v1282, 0.0
          %v1349 = vmax.f32 %v1285, 0.0
          %v1350 = vmax.f32 %v1290, 0.0
          %v1351 = vmax.f32 %v1293, 0.0
          %v1352 = vmax.f32 %v1298, 0.0
          %v1353 = vmax.f32 %v1301, 0.0
          %v1354 = vmax.f32 %v1306, 0.0
          %v1355 = vmax.f32 %v1309, 0.0
          %v1356 = vmax.f32 %v1314, 0.0
          %v1357 = vmax.f32 %v1317, 0.0
          %v1358 = vmax.f32 %v1322, 0.0
          %v1359 = vmax.f32 %v1325, 0.0
          %v1360 = vpack.c.bf16 %v1329, %v1328
          %v1361 = vpack.c.bf16 %v1331, %v1330
          %v1362 = vpack.c.bf16 %v1333, %v1332
          %v1363 = vpack.c.bf16 %v1335, %v1334
          %v1364 = vpack.c.bf16 %v1337, %v1336
          %v1365 = vpack.c.bf16 %v1339, %v1338
          %v1366 = vpack.c.bf16 %v1341, %v1340
          %v1367 = vpack.c.bf16 %v1343, %v1342
          %v1368 = vpack.c.bf16 %v1345, %v1344
          %v1369 = vpack.c.bf16 %v1347, %v1346
          %v1370 = vpack.c.bf16 %v1349, %v1348
          %v1371 = vpack.c.bf16 %v1351, %v1350
          %v1372 = vpack.c.bf16 %v1353, %v1352
          %v1373 = vpack.c.bf16 %v1355, %v1354
          %v1374 = vpack.c.bf16 %v1357, %v1356
          %v1375 = vpack.c.bf16 %v1359, %v1358
          %v1376 = vld [vmem:[%s5] sm:$0xf]
          %v1377 = vld [vmem:[%s5 + $0x4] sm:$0xf]
          %v1378 = vld [vmem:[%s5 + $0x8] sm:$0xf]
          %v1379 = vld [vmem:[%s5 + $0xc] sm:$0xf]
          %v1380 = vld [vmem:[%s5 + $0x10] sm:$0xf]
          %v1381 = vld [vmem:[%s5 + $0x14] sm:$0xf]
          %v1382 = vld [vmem:[%s5 + $0x18] sm:$0xf]
          %v1383 = vld [vmem:[%s5 + $0x1c] sm:$0xf]
          %v1384 = vld [vmem:[%s5 + $0x20] sm:$0xf]
          %v1385 = vld [vmem:[%s5 + $0x24] sm:$0xf]
          %v1386 = vld [vmem:[%s5 + $0x28] sm:$0xf]
          %v1387 = vld [vmem:[%s5 + $0x2c] sm:$0xf]
          %v1388 = vld [vmem:[%s5 + $0x30] sm:$0xf]
          %v1389 = vld [vmem:[%s5 + $0x34] sm:$0xf]
          %v1390 = vld [vmem:[%s5 + $0x38] sm:$0xf]
          %v1391 = vld [vmem:[%s5 + $0x3c] sm:$0xf]
          %v1392 = vld [vmem:[%s6] sm:$0x1]
          %v1394 = vlaneseq
          %v1395 = vshrl.u32 %v1394, 7
          %v1396 = vsub.s32 0, %v1395
          %v1397 = vrot.slane %v1392, %v1396
          %v1415 = vunpack.c.l.b16 %v1376
          %v1416 = vunpack.c.l.b16 %v1377
          %v1417 = vunpack.c.l.b16 %v1378
          %v1418 = vunpack.c.l.b16 %v1379
          %v1419 = vunpack.c.l.b16 %v1380
          %v1420 = vunpack.c.l.b16 %v1381
          %v1421 = vunpack.c.l.b16 %v1382
          %v1422 = vunpack.c.l.b16 %v1383
          %v1423 = vunpack.c.l.b16 %v1384
          %v1424 = vunpack.c.l.b16 %v1385
          %v1425 = vunpack.c.l.b16 %v1386
          %v1426 = vunpack.c.l.b16 %v1387
          %v1427 = vunpack.c.l.b16 %v1388
          %v1428 = vunpack.c.l.b16 %v1389
          %v1429 = vunpack.c.l.b16 %v1390
          %v1430 = vunpack.c.l.b16 %v1391
          %v1431 = vpack.c.b16 %v1416, %v1415
          %v1432 = vpack.c.b16 %v1418, %v1417
          %v1433 = vpack.c.b16 %v1420, %v1419
          %v1434 = vpack.c.b16 %v1422, %v1421
          %v1435 = vpack.c.b16 %v1424, %v1423
          %v1436 = vpack.c.b16 %v1426, %v1425
          %v1437 = vpack.c.b16 %v1428, %v1427
          %v1438 = vpack.c.b16 %v1430, %v1429
          %1447 = vmatprep.subr.bf16.mxu0 0
          %1448 = vmatpush1.bf16.msra.mxu0 %v1438
          %1449 = vmatprep.subr.bf16.mxu0 0
          %1450 = vmatpush1.bf16.msra.mxu0 %v1437
          %1451 = vmatprep.subr.bf16.mxu0 0
          %1452 = vmatpush1.bf16.msra.mxu0 %v1436
          %1453 = vmatprep.subr.bf16.mxu0 0
          %1454 = vmatpush1.bf16.msra.mxu0 %v1435
          %1455 = vmatprep.subr.bf16.mxu0 0
          %1456 = vmatpush1.bf16.msra.mxu0 %v1434
          %1457 = vmatprep.subr.bf16.mxu0 0
          %1458 = vmatpush1.bf16.msra.mxu0 %v1433
          %1459 = vmatprep.subr.bf16.mxu0 0
          %1460 = vmatpush1.bf16.msra.mxu0 %v1432
          %1461 = vmatprep.subr.bf16.mxu0 0
          %1462 = vmatpush1.bf16.msra.mxu0 %v1431
          %1463 = vmatprep.subr.bf16.mxu0 0
          %1464 = vmatpush2.bf16.msra.mxu0 0
          %1465 = vmatprep.subr.bf16.mxu0 0
          %1466 = vmatpush2.bf16.msra.mxu0 0
          %1467 = vmatprep.subr.bf16.mxu0 0
          %1468 = vmatpush2.bf16.msra.mxu0 0
          %1469 = vmatprep.subr.bf16.mxu0 0
          %1470 = vmatpush2.bf16.msra.mxu0 0
          %1471 = vmatprep.subr.bf16.mxu0 0
          %1472 = vmatpush2.bf16.msra.mxu0 0
          %1473 = vmatprep.subr.bf16.mxu0 0
          %1474 = vmatpush2.bf16.msra.mxu0 0
          %1475 = vmatprep.subr.bf16.mxu0 0
          %1476 = vmatpush2.bf16.msra.mxu0 0
          %1477 = vmatprep.subr.bf16.mxu0 0
          %1478 = vmatpush2.bf16.msra.mxu0 0
          %1479 = vmatprep.mubr.bf16.mxu0 0
          %1480 = vmatmul.mubr.bf16.gmra.mxu0 %v1360
          %v1481 = vpop.f32.mrf.mxu0
          %v1482 = vadd.f32 %v1397, %v1481
          %v1483 = vpop.f32.mrf.mxu0
          %v1484 = vpop.f32.mrf.mxu0
          %v1485 = vadd.f32 %v1397, %v1484
          %v1486 = vpop.f32.mrf.mxu0
          %1487 = vmatprep.mubr.bf16.mxu0 0
          %1488 = vmatmul.mubr.bf16.gmra.mxu0 %v1361
          %v1489 = vpop.f32.mrf.mxu0
          %v1490 = vadd.f32 %v1397, %v1489
          %v1491 = vpop.f32.mrf.mxu0
          %v1492 = vpop.f32.mrf.mxu0
          %v1493 = vadd.f32 %v1397, %v1492
          %v1494 = vpop.f32.mrf.mxu0
          %1495 = vmatprep.mubr.bf16.mxu0 0
          %1496 = vmatmul.mubr.bf16.gmra.mxu0 %v1362
          %v1497 = vpop.f32.mrf.mxu0
          %v1498 = vadd.f32 %v1397, %v1497
          %v1499 = vpop.f32.mrf.mxu0
          %v1500 = vpop.f32.mrf.mxu0
          %v1501 = vadd.f32 %v1397, %v1500
          %v1502 = vpop.f32.mrf.mxu0
          %1503 = vmatprep.mubr.bf16.mxu0 0
          %1504 = vmatmul.mubr.bf16.gmra.mxu0 %v1363
          %v1505 = vpop.f32.mrf.mxu0
          %v1506 = vadd.f32 %v1397, %v1505
          %v1507 = vpop.f32.mrf.mxu0
          %v1508 = vpop.f32.mrf.mxu0
          %v1509 = vadd.f32 %v1397, %v1508
          %v1510 = vpop.f32.mrf.mxu0
          %1511 = vmatprep.mubr.bf16.mxu0 0
          %1512 = vmatmul.mubr.bf16.gmra.mxu0 %v1364
          %v1513 = vpop.f32.mrf.mxu0
          %v1514 = vadd.f32 %v1397, %v1513
          %v1515 = vpop.f32.mrf.mxu0
          %v1516 = vpop.f32.mrf.mxu0
          %v1517 = vadd.f32 %v1397, %v1516
          %v1518 = vpop.f32.mrf.mxu0
          %1519 = vmatprep.mubr.bf16.mxu0 0
          %1520 = vmatmul.mubr.bf16.gmra.mxu0 %v1365
          %v1521 = vpop.f32.mrf.mxu0
          %v1522 = vadd.f32 %v1397, %v1521
          %v1523 = vpop.f32.mrf.mxu0
          %v1524 = vpop.f32.mrf.mxu0
          %v1525 = vadd.f32 %v1397, %v1524
          %v1526 = vpop.f32.mrf.mxu0
          %1527 = vmatprep.mubr.bf16.mxu0 0
          %1528 = vmatmul.mubr.bf16.gmra.mxu0 %v1366
          %v1529 = vpop.f32.mrf.mxu0
          %v1530 = vadd.f32 %v1397, %v1529
          %v1531 = vpop.f32.mrf.mxu0
          %v1532 = vpop.f32.mrf.mxu0
          %v1533 = vadd.f32 %v1397, %v1532
          %v1534 = vpop.f32.mrf.mxu0
          %1535 = vmatprep.mubr.bf16.mxu0 0
          %1536 = vmatmul.mubr.bf16.gmra.mxu0 %v1367
          %v1537 = vpop.f32.mrf.mxu0
          %v1538 = vadd.f32 %v1397, %v1537
          %v1539 = vpop.f32.mrf.mxu0
          %v1540 = vpop.f32.mrf.mxu0
          %v1541 = vadd.f32 %v1397, %v1540
          %v1542 = vpop.f32.mrf.mxu0
          %1543 = vmatprep.mubr.bf16.mxu0 0
          %1544 = vmatmul.mubr.bf16.gmra.mxu0 %v1368
          %v1545 = vpop.f32.mrf.mxu0
          %v1546 = vadd.f32 %v1397, %v1545
          %v1547 = vpop.f32.mrf.mxu0
          %v1548 = vpop.f32.mrf.mxu0
          %v1549 = vadd.f32 %v1397, %v1548
          %v1550 = vpop.f32.mrf.mxu0
          %1551 = vmatprep.mubr.bf16.mxu0 0
          %1552 = vmatmul.mubr.bf16.gmra.mxu0 %v1369
          %v1553 = vpop.f32.mrf.mxu0
          %v1554 = vadd.f32 %v1397, %v1553
          %v1555 = vpop.f32.mrf.mxu0
          %v1556 = vpop.f32.mrf.mxu0
          %v1557 = vadd.f32 %v1397, %v1556
          %v1558 = vpop.f32.mrf.mxu0
          %1559 = vmatprep.mubr.bf16.mxu0 0
          %1560 = vmatmul.mubr.bf16.gmra.mxu0 %v1370
          %v1561 = vpop.f32.mrf.mxu0
          %v1562 = vadd.f32 %v1397, %v1561
          %v1563 = vpop.f32.mrf.mxu0
          %v1564 = vpop.f32.mrf.mxu0
          %v1565 = vadd.f32 %v1397, %v1564
          %v1566 = vpop.f32.mrf.mxu0
          %1567 = vmatprep.mubr.bf16.mxu0 0
          %1568 = vmatmul.mubr.bf16.gmra.mxu0 %v1371
          %v1569 = vpop.f32.mrf.mxu0
          %v1570 = vadd.f32 %v1397, %v1569
          %v1571 = vpop.f32.mrf.mxu0
          %v1572 = vpop.f32.mrf.mxu0
          %v1573 = vadd.f32 %v1397, %v1572
          %v1574 = vpop.f32.mrf.mxu0
          %1575 = vmatprep.mubr.bf16.mxu0 0
          %1576 = vmatmul.mubr.bf16.gmra.mxu0 %v1372
          %v1577 = vpop.f32.mrf.mxu0
          %v1578 = vadd.f32 %v1397, %v1577
          %v1579 = vpop.f32.mrf.mxu0
          %v1580 = vpop.f32.mrf.mxu0
          %v1581 = vadd.f32 %v1397, %v1580
          %v1582 = vpop.f32.mrf.mxu0
          %1583 = vmatprep.mubr.bf16.mxu0 0
          %1584 = vmatmul.mubr.bf16.gmra.mxu0 %v1373
          %v1585 = vpop.f32.mrf.mxu0
          %v1586 = vadd.f32 %v1397, %v1585
          %v1587 = vpop.f32.mrf.mxu0
          %v1588 = vpop.f32.mrf.mxu0
          %v1589 = vadd.f32 %v1397, %v1588
          %v1590 = vpop.f32.mrf.mxu0
          %1591 = vmatprep.mubr.bf16.mxu0 0
          %1592 = vmatmul.mubr.bf16.gmra.mxu0 %v1374
          %v1593 = vpop.f32.mrf.mxu0
          %v1594 = vadd.f32 %v1397, %v1593
          %v1595 = vpop.f32.mrf.mxu0
          %v1596 = vpop.f32.mrf.mxu0
          %v1597 = vadd.f32 %v1397, %v1596
          %v1598 = vpop.f32.mrf.mxu0
          %1599 = vmatprep.mubr.bf16.mxu0 0
          %1600 = vmatmul.mubr.bf16.gmra.mxu0 %v1375
          %v1601 = vpop.f32.mrf.mxu0
          %v1602 = vadd.f32 %v1397, %v1601
          %v1603 = vpop.f32.mrf.mxu0
          %v1604 = vpop.f32.mrf.mxu0
          %v1605 = vadd.f32 %v1397, %v1604
          %v1606 = vpop.f32.mrf.mxu0
          %1607 = vdwg.mxu0
          %v1608 = vmax.f32 %v1482, 0.0
          %v1609 = vmax.f32 %v1485, 0.0
          %v1610 = vmax.f32 %v1490, 0.0
          %v1611 = vmax.f32 %v1493, 0.0
          %v1612 = vmax.f32 %v1498, 0.0
          %v1613 = vmax.f32 %v1501, 0.0
          %v1614 = vmax.f32 %v1506, 0.0
          %v1615 = vmax.f32 %v1509, 0.0
          %v1616 = vmax.f32 %v1514, 0.0
          %v1617 = vmax.f32 %v1517, 0.0
          %v1618 = vmax.f32 %v1522, 0.0
          %v1619 = vmax.f32 %v1525, 0.0
          %v1620 = vmax.f32 %v1530, 0.0
          %v1621 = vmax.f32 %v1533, 0.0
          %v1622 = vmax.f32 %v1538, 0.0
          %v1623 = vmax.f32 %v1541, 0.0
          %v1624 = vmax.f32 %v1546, 0.0
          %v1625 = vmax.f32 %v1549, 0.0
          %v1626 = vmax.f32 %v1554, 0.0
          %v1627 = vmax.f32 %v1557, 0.0
          %v1628 = vmax.f32 %v1562, 0.0
          %v1629 = vmax.f32 %v1565, 0.0
          %v1630 = vmax.f32 %v1570, 0.0
          %v1631 = vmax.f32 %v1573, 0.0
          %v1632 = vmax.f32 %v1578, 0.0
          %v1633 = vmax.f32 %v1581, 0.0
          %v1634 = vmax.f32 %v1586, 0.0
          %v1635 = vmax.f32 %v1589, 0.0
          %v1636 = vmax.f32 %v1594, 0.0
          %v1637 = vmax.f32 %v1597, 0.0
          %v1638 = vmax.f32 %v1602, 0.0
          %v1639 = vmax.f32 %v1605, 0.0
          %1640 = vst [vmem:[%s485] sm:$0xff] %v1608
          %1641 = vst [vmem:[%s485 + $0x8] sm:$0xff] %v1609
          %1642 = vst [vmem:[%s485 + $0x10] sm:$0xff] %v1610
          %1643 = vst [vmem:[%s485 + $0x18] sm:$0xff] %v1611
          %1644 = vst [vmem:[%s485 + $0x20] sm:$0xff] %v1612
          %1645 = vst [vmem:[%s485 + $0x28] sm:$0xff] %v1613
          %1646 = vst [vmem:[%s485 + $0x30] sm:$0xff] %v1614
          %1647 = vst [vmem:[%s485 + $0x38] sm:$0xff] %v1615
          %1648 = vst [vmem:[%s485 + $0x40] sm:$0xff] %v1616
          %1649 = vst [vmem:[%s485 + $0x48] sm:$0xff] %v1617
          %1650 = vst [vmem:[%s485 + $0x50] sm:$0xff] %v1618
          %1651 = vst [vmem:[%s485 + $0x58] sm:$0xff] %v1619
          %1652 = vst [vmem:[%s485 + $0x60] sm:$0xff] %v1620
          %1653 = vst [vmem:[%s485 + $0x68] sm:$0xff] %v1621
          %1654 = vst [vmem:[%s485 + $0x70] sm:$0xff] %v1622
          %1655 = vst [vmem:[%s485 + $0x78] sm:$0xff] %v1623
          %1656 = vst [vmem:[%s485 + $0x80] sm:$0xff] %v1624
          %1657 = vst [vmem:[%s485 + $0x88] sm:$0xff] %v1625
          %1658 = vst [vmem:[%s485 + $0x90] sm:$0xff] %v1626
          %1659 = vst [vmem:[%s485 + $0x98] sm:$0xff] %v1627
          %1660 = vst [vmem:[%s485 + $0xa0] sm:$0xff] %v1628
          %1661 = vst [vmem:[%s485 + $0xa8] sm:$0xff] %v1629
          %1662 = vst [vmem:[%s485 + $0xb0] sm:$0xff] %v1630
          %1663 = vst [vmem:[%s485 + $0xb8] sm:$0xff] %v1631
          %1664 = vst [vmem:[%s485 + $0xc0] sm:$0xff] %v1632
          %1665 = vst [vmem:[%s485 + $0xc8] sm:$0xff] %v1633
          %1666 = vst [vmem:[%s485 + $0xd0] sm:$0xff] %v1634
          %1667 = vst [vmem:[%s485 + $0xd8] sm:$0xff] %v1635
          %1668 = vst [vmem:[%s485 + $0xe0] sm:$0xff] %v1636
          %1669 = vst [vmem:[%s485 + $0xe8] sm:$0xff] %v1637
          %1670 = vst [vmem:[%s485 + $0xf0] sm:$0xff] %v1638
          %1671 = vst [vmem:[%s485 + $0xf8] sm:$0xff] %v1639
        $region97: #{nin_forward.8} parent=84 // pred_fallthru
          _
        %s1672 = smul.u32 32, %s22
        %p1673 = scmp.lt.s32.totalorder %s1672, 63
        %s1674 = scalar_select %p1673, %s1672, 63
        %s1675 = smul.addr %s1674, 8
        %s1676 = scalar_lea.vmem %s7, %s1675
        // Predicated region
        $region98: #{nin_forward.8} parent=84 // pred_check
          %p1677 = pneg %p207
        $region99: #{nin_forward.8} parent=84 // pred_check_branch
          %1679 = sbr.rel (%p1677) target = $region101
        $region100: #{nin_forward.8} parent=84 // pred_region
          %s1680 = smul.u32 32, %s22
        $region101: #{nin_forward.8} parent=84 // pred_fallthru
          _
      $region85: #{nin_forward.8} parent=5 // pred_fallthru
        _
      %p1681 = scmp.le.s32.totalorder 2, %s13
      // Predicated region
      $region102: #{nin_forward.8} parent=5 // pred_check
        %p1682 = pneg %p1681
      $region103: #{nin_forward.8} parent=5 // pred_check_branch
        %1684 = sbr.rel (%p1682) target = $region105
      $region104: #{nin_forward.8} parent=5 // pred_region
        %s1685 = ssub.s32 %s13, 2
        // Predicated region
        $region106: #{nin_forward.8} parent=104 // pred_check
          %p1686 = pneg %p213
        $region107: #{nin_forward.8} parent=104 // pred_check_branch
          %1688 = sbr.rel (%p1686) target = $region109
        $region108: #{nin_forward.8} parent=104 // pred_region
          %s1689 = smul.u32 32, %s24
          %p1690 = scmp.lt.s32.totalorder %s1689, 63
          %s1691 = scalar_select %p1690, %s1689, 63
          %s1692 = smul.addr %s1691, 8
          %s1693 = scalar_lea.vmem %s7, %s1692
        $region109: #{nin_forward.8} parent=104 // pred_fallthru
          _
      $region105: #{nin_forward.8} parent=5 // pred_fallthru
        _
    $region6: #{nin_forward.8} parent=1 // loop_footer
      %s17 = sadd.s32 1, %s13
    $region7: #{nin_forward.8} parent=1 // loop_footer_branch
      %12 = sbr.rel target = $region3
    $region8: #{nin_forward.8} parent=1 // loop_exit
      _

// kernel: nin_forward.10
$region0: #{nin_forward.10}
  #allocation0 [shape = 'u32[]', space=smem, size = 0x4, offset = 0x4, fixed_abs, tag = 'smem constant byte address 0x4 - core index']
  #allocation1 [shape = 'u32[144,128]{1,0:T(1,128)}', space=vmem, size = 0x12000, scoped, tag = 'internal scratch']
  %s0 = inlined_call_operand.vmem [shape: bf16[104,3200], index: 0, kind: input, shape index: {}]
  %s1 = inlined_call_operand.vmem [shape: bf16[3200,256], index: 1, kind: input, shape index: {}]
  %s2 = inlined_call_operand.vmem [shape: f32[1,256], index: 2, kind: input, shape index: {}]
  %s3 = inlined_call_operand.vmem [shape: bf16[256,256], index: 3, kind: input, shape index: {}]
  %s4 = inlined_call_operand.vmem [shape: f32[1,256], index: 4, kind: input, shape index: {}]
  %s5 = inlined_call_operand.vmem [shape: bf16[256,256], index: 5, kind: input, shape index: {}]
  %s6 = inlined_call_operand.vmem [shape: f32[1,256], index: 6, kind: input, shape index: {}]
  %s7 = inlined_call_operand.vmem [shape: f32[104,256], index: 7, kind: output, shape index: {}]
  %s8 = sld [smem:[#allocation0]]
  $region110: #{nin_forward.10} parent=0
    _
  %s10 = ssub.s32 1, %s8
  %s11 = scalar_select 0, %s10, %s8
  $region1: #{nin_forward.10} parent=0
    #allocation2 [shape = 'u8[53248]{0}', space=vmem, size = 0xd000, scoped, tag = 'input window, operand 0']
    loop: start=0, step=1, limit=27
    $region2: #{nin_forward.10} parent=1 // loop_pre_header
      _
    $region3: #{nin_forward.10} parent=1 // loop_header
      %s13 = sphi 0, %s17
      %p14 = scmp.ge.s32.totalorder %s13, 27
      %s20 = sphi 0, %s32
      %s21 = sphi 0, %s28
      %s22 = sphi 0, %s20
      %s23 = sphi 0, %s21
      %s24 = sphi 0, %s22
      %s25 = sphi 0, %s23
      %s37 = sphi 0, %s39
      %s40 = sphi 0, %s37
      %s41 = sphi 0, %s40
      %s57 = sphi 0, %s41
      %s63 = sphi 0, %s65
      %s66 = sphi 0, %s63
      %s67 = sphi 0, %s66
      %s83 = sphi 0, %s67
      %s87 = sphi 0, %s87
      %s89 = sphi 0, %s87
      %s90 = sphi 0, %s89
      %s104 = sphi 0, %s90
      %s108 = sphi 0, %s108
      %s110 = sphi 0, %s108
      %s111 = sphi 0, %s110
      %s125 = sphi 0, %s111
      %s129 = sphi 0, %s129
      %s131 = sphi 0, %s129
      %s132 = sphi 0, %s131
      %s146 = sphi 0, %s132
      %s150 = sphi 0, %s150
      %s152 = sphi 0, %s150
      %s153 = sphi 0, %s152
      %s167 = sphi 0, %s153
      %s171 = sphi 0, %s171
      %s173 = sphi 0, %s171
      %s174 = sphi 0, %s173
      %s188 = sphi 0, %s174
      %s194 = sphi 0, %s196
      %s197 = sphi 0, %s194
      %s198 = sphi 0, %s197
      %s214 = sphi 0, %s198
    $region4: #{nin_forward.10} parent=1 // loop_header_branch
      %16 = sbr.rel (%p14) target = $region8
    $region5: #{nin_forward.10} parent=1 // loop_body
      %s18 = ssub.s32 %s13, 1
      %s19 = ssub.s32 %s13, 2
      %s26 = sadd.s32 1, %s21
      %p27 = scmp.ge.s32.totalorder %s26, 25
      %s28 = scalar_select %p27, 0, %s26
      %s29 = sadd.s32 1, %s20
      %s30 = scalar_select %p27, %s29, %s20
      %p31 = scmp.ge.s32.totalorder %s30, 1
      %s32 = scalar_select %p31, 0, %s30
      %s33 = ssub.s32 %s20, %s32
      %s34 = ssub.s32 %s21, %s28
      %s35 = sor.u32 %s33, %s34
      %p36 = scmp.eq.s32.totalorder %s35, 0
      %s38 = sadd.s32 %s37, 1
      %s39 = scalar_select %p36, %s37, %s38
      %p42 = pneg %p36
      %p43 = scmp.eq.s32.totalorder %s13, 24
      %p44 = por %p42, %p43
      %p45 = scmp.ne.s32.totalorder %s37, %s40
      %p46 = scmp.eq.s32.totalorder %s13, 0
      %p47 = por %p45, %p46
      %p48 = scmp.ne.s32.totalorder %s37, %s40
      %p49 = scmp.eq.s32.totalorder %s18, 24
      %p50 = por %p48, %p49
      %p51 = scmp.ne.s32.totalorder %s40, %s41
      %p52 = scmp.eq.s32.totalorder %s18, 0
      %p53 = por %p51, %p52
      %p54 = scmp.ne.s32.totalorder %s40, %s41
      %p55 = scmp.eq.s32.totalorder %s19, 24
      %p56 = por %p54, %p55
      %p58 = scmp.ne.s32.totalorder %s41, %s57
      %p59 = scmp.eq.s32.totalorder %s19, 0
      %p60 = por %p58, %p59
      %s61 = ssub.s32 %s21, %s28
      %p62 = scmp.eq.s32.totalorder %s61, 0
      %s64 = sadd.s32 %s63, 1
      %s65 = scalar_select %p62, %s63, %s64
      %p68 = pneg %p62
      %p69 = scmp.eq.s32.totalorder %s13, 24
      %p70 = por %p68, %p69
      %p71 = scmp.ne.s32.totalorder %s63, %s66
      %p72 = scmp.eq.s32.totalorder %s13, 0
      %p73 = por %p71, %p72
      %p74 = scmp.ne.s32.totalorder %s63, %s66
      %p75 = scmp.eq.s32.totalorder %s18, 24
      %p76 = por %p74, %p75
      %p77 = scmp.ne.s32.totalorder %s66, %s67
      %p78 = scmp.eq.s32.totalorder %s18, 0
      %p79 = por %p77, %p78
      %p80 = scmp.ne.s32.totalorder %s66, %s67
      %p81 = scmp.eq.s32.totalorder %s19, 24
      %p82 = por %p80, %p81
      %p84 = scmp.ne.s32.totalorder %s67, %s83
      %p85 = scmp.eq.s32.totalorder %s19, 0
      %p86 = por %p84, %p85
      %s88 = sadd.s32 %s87, 1
      %p91 = scmp.eq.s32.totalorder %s13, 24
      %p92 = scmp.ne.s32.totalorder %s87, %s89
      %p93 = scmp.eq.s32.totalorder %s13, 0
      %p94 = por %p92, %p93
      %p95 = scmp.ne.s32.totalorder %s87, %s89
      %p96 = scmp.eq.s32.totalorder %s18, 24
      %p97 = por %p95, %p96
      %p98 = scmp.ne.s32.totalorder %s89, %s90
      %p99 = scmp.eq.s32.totalorder %s18, 0
      %p100 = por %p98, %p99
      %p101 = scmp.ne.s32.totalorder %s89, %s90
      %p102 = scmp.eq.s32.totalorder %s19, 24
      %p103 = por %p101, %p102
      %p105 = scmp.ne.s32.totalorder %s90, %s104
      %p106 = scmp.eq.s32.totalorder %s19, 0
      %p107 = por %p105, %p106
      %s109 = sadd.s32 %s108, 1
      %p112 = scmp.eq.s32.totalorder %s13, 24
      %p113 = scmp.ne.s32.totalorder %s108, %s110
      %p114 = scmp.eq.s32.totalorder %s13, 0
      %p115 = por %p113, %p114
      %p116 = scmp.ne.s32.totalorder %s108, %s110
      %p117 = scmp.eq.s32.totalorder %s18, 24
      %p118 = por %p116, %p117
      %p119 = scmp.ne.s32.totalorder %s110, %s111
      %p120 = scmp.eq.s32.totalorder %s18, 0
      %p121 = por %p119, %p120
      %p122 = scmp.ne.s32.totalorder %s110, %s111
      %p123 = scmp.eq.s32.totalorder %s19, 24
      %p124 = por %p122, %p123
      %p126 = scmp.ne.s32.totalorder %s111, %s125
      %p127 = scmp.eq.s32.totalorder %s19, 0
      %p128 = por %p126, %p127
      %s130 = sadd.s32 %s129, 1
      %p133 = scmp.eq.s32.totalorder %s13, 24
      %p134 = scmp.ne.s32.totalorder %s129, %s131
      %p135 = scmp.eq.s32.totalorder %s13, 0
      %p136 = por %p134, %p135
      %p137 = scmp.ne.s32.totalorder %s129, %s131
      %p138 = scmp.eq.s32.totalorder %s18, 24
      %p139 = por %p137, %p138
      %p140 = scmp.ne.s32.totalorder %s131, %s132
      %p141 = scmp.eq.s32.totalorder %s18, 0
      %p142 = por %p140, %p141
      %p143 = scmp.ne.s32.totalorder %s131, %s132
      %p144 = scmp.eq.s32.totalorder %s19, 24
      %p145 = por %p143, %p144
      %p147 = scmp.ne.s32.totalorder %s132, %s146
      %p148 = scmp.eq.s32.totalorder %s19, 0
      %p149 = por %p147, %p148
      %s151 = sadd.s32 %s150, 1
      %p154 = scmp.eq.s32.totalorder %s13, 24
      %p155 = scmp.ne.s32.totalorder %s150, %s152
      %p156 = scmp.eq.s32.totalorder %s13, 0
      %p157 = por %p155, %p156
      %p158 = scmp.ne.s32.totalorder %s150, %s152
      %p159 = scmp.eq.s32.totalorder %s18, 24
      %p160 = por %p158, %p159
      %p161 = scmp.ne.s32.totalorder %s152, %s153
      %p162 = scmp.eq.s32.totalorder %s18, 0
      %p163 = por %p161, %p162
      %p164 = scmp.ne.s32.totalorder %s152, %s153
      %p165 = scmp.eq.s32.totalorder %s19, 24
      %p166 = por %p164, %p165
      %p168 = scmp.ne.s32.totalorder %s153, %s167
      %p169 = scmp.eq.s32.totalorder %s19, 0
      %p170 = por %p168, %p169
      %s172 = sadd.s32 %s171, 1
      %p175 = scmp.eq.s32.totalorder %s13, 24
      %p176 = scmp.ne.s32.totalorder %s171, %s173
      %p177 = scmp.eq.s32.totalorder %s13, 0
      %p178 = por %p176, %p177
      %p179 = scmp.ne.s32.totalorder %s171, %s173
      %p180 = scmp.eq.s32.totalorder %s18, 24
      %p181 = por %p179, %p180
      %p182 = scmp.ne.s32.totalorder %s173, %s174
      %p183 = scmp.eq.s32.totalorder %s18, 0
      %p184 = por %p182, %p183
      %p185 = scmp.ne.s32.totalorder %s173, %s174
      %p186 = scmp.eq.s32.totalorder %s19, 24
      %p187 = por %p185, %p186
      %p189 = scmp.ne.s32.totalorder %s174, %s188
      %p190 = scmp.eq.s32.totalorder %s19, 0
      %p191 = por %p189, %p190
      %s192 = ssub.s32 %s20, %s32
      %p193 = scmp.eq.s32.totalorder %s192, 0
      %s195 = sadd.s32 %s194, 1
      %s196 = scalar_select %p193, %s194, %s195
      %p199 = pneg %p193
      %p200 = scmp.eq.s32.totalorder %s13, 24
      %p201 = por %p199, %p200
      %p202 = scmp.ne.s32.totalorder %s194, %s197
      %p203 = scmp.eq.s32.totalorder %s13, 0
      %p204 = por %p202, %p203
      %p205 = scmp.ne.s32.totalorder %s194, %s197
      %p206 = scmp.eq.s32.totalorder %s18, 24
      %p207 = por %p205, %p206
      %p208 = scmp.ne.s32.totalorder %s197, %s198
      %p209 = scmp.eq.s32.totalorder %s18, 0
      %p210 = por %p208, %p209
      %p211 = scmp.ne.s32.totalorder %s197, %s198
      %p212 = scmp.eq.s32.totalorder %s19, 24
      %p213 = por %p211, %p212
      %p215 = scmp.ne.s32.totalorder %s198, %s214
      %p216 = scmp.eq.s32.totalorder %s19, 0
      %p217 = por %p215, %p216
      %p218 = scmp.le.s32.totalorder 1, %s13
      %p219 = scmp.lt.s32.totalorder %s13, 26
      %p220 = pnand %p218, %p219
      %p221 = pneg %p220
      // Predicated region
      $region9: #{nin_forward.10} parent=5 // pred_check
        _
      $region10: #{nin_forward.10} parent=5 // pred_check_branch
        %223 = sbr.rel (%p220) target = $region12
      $region11: #{nin_forward.10} parent=5 // pred_region
        %s224 = ssub.s32 %s13, 1
        // Predicated region
        $region13: #{nin_forward.10} parent=11 // pred_check
          %p225 = pneg %p100
        $region14: #{nin_forward.10} parent=11 // pred_check_branch
          %227 = sbr.rel (%p225) target = $region16
        $region15: #{nin_forward.10} parent=11 // pred_region
          _
        $region16: #{nin_forward.10} parent=11 // pred_fallthru
          _
        // Predicated region
        $region17: #{nin_forward.10} parent=11 // pred_check
          %p228 = pneg %p121
        $region18: #{nin_forward.10} parent=11 // pred_check_branch
          %230 = sbr.rel (%p228) target = $region20
        $region19: #{nin_forward.10} parent=11 // pred_region
          _
        $region20: #{nin_forward.10} parent=11 // pred_fallthru
          _
        // Predicated region
        $region21: #{nin_forward.10} parent=11 // pred_check
          %p231 = pneg %p142
        $region22: #{nin_forward.10} parent=11 // pred_check_branch
          %233 = sbr.rel (%p231) target = $region24
        $region23: #{nin_forward.10} parent=11 // pred_region
          _
        $region24: #{nin_forward.10} parent=11 // pred_fallthru
          _
        // Predicated region
        $region25: #{nin_forward.10} parent=11 // pred_check
          %p234 = pneg %p163
        $region26: #{nin_forward.10} parent=11 // pred_check_branch
          %236 = sbr.rel (%p234) target = $region28
        $region27: #{nin_forward.10} parent=11 // pred_region
          _
        $region28: #{nin_forward.10} parent=11 // pred_fallthru
          _
        // Predicated region
        $region29: #{nin_forward.10} parent=11 // pred_check
          %p237 = pneg %p184
        $region30: #{nin_forward.10} parent=11 // pred_check_branch
          %239 = sbr.rel (%p237) target = $region32
        $region31: #{nin_forward.10} parent=11 // pred_region
          _
        $region32: #{nin_forward.10} parent=11 // pred_fallthru
          _
      $region12: #{nin_forward.10} parent=5 // pred_fallthru
        _
      %p240 = scmp.lt.s32.totalorder %s13, 25
      // Predicated region
      $region33: #{nin_forward.10} parent=5 // pred_check
        %p241 = pneg %p240
      $region34: #{nin_forward.10} parent=5 // pred_check_branch
        %243 = sbr.rel (%p241) target = $region36
      $region35: #{nin_forward.10} parent=5 // pred_region
        // Predicated region
        $region37: #{nin_forward.10} parent=35 // pred_check
          %p244 = pneg %p47
        $region38: #{nin_forward.10} parent=35 // pred_check_branch
          %246 = sbr.rel (%p244) target = $region40
        $region39: #{nin_forward.10} parent=35 // pred_region
          %s247 = sand.u32 %s37, 1
          %s248 = sand.u32 %s37, 1
          %s249 = smul.addr %s248, 52
          %s250 = scalar_lea.vmem [#allocation2], %s249
          %s251 = smul.u32 13, %s20
          %s252 = smul.addr %s251, 25
          %s253 = sadd.s32 %s21, %s252
          %s254 = smul.addr %s253, 4
          %s255 = scalar_lea.vmem %s0, %s254
          // Predicated region
          $region41: #{nin_forward.10} parent=39 // pred_check
            _
          $region42: #{nin_forward.10} parent=39 // pred_check_branch
            %257 = sbr.rel (0) target = $region44
          $region43: #{nin_forward.10} parent=39 // pred_region
            // Predicated region
            $region45: #{nin_forward.10} parent=43 // pred_check
              _
            $region46: #{nin_forward.10} parent=43 // pred_check_branch
              %259 = sbr.rel target = $region48
            $region47: #{nin_forward.10} parent=43 // pred_region
              // Predicated region
              $region60: #{nin_forward.10} parent=47 // pred_check
                _
              $region61: #{nin_forward.10} parent=47 // pred_check_branch
                %299 = sbr.rel (0) target = $region63
              $region62: #{nin_forward.10} parent=47 // pred_region
                loop: start=0, step=1, limit=1
                $region64: #{nin_forward.10} parent=62 // loop_pre_header
                  _
                $region65: #{nin_forward.10} parent=62 // loop_header
                  %s301 = sphi 0, %s305
                  %p302 = scmp.ge.s32.totalorder %s301, 1
                  %s306 = sphi %s255, %s255
                  %s307 = sphi %s250, %s250
                $region66: #{nin_forward.10} parent=62 // loop_header_branch
                  %304 = sbr.rel (%p302) target = $region70
                $region67: #{nin_forward.10} parent=62 // loop_body
                  _
                $region68: #{nin_forward.10} parent=62 // loop_footer
                  %s305 = sadd.s32 1, %s301
                $region69: #{nin_forward.10} parent=62 // loop_footer_branch
                  %300 = sbr.rel target = $region65
                $region70: #{nin_forward.10} parent=62 // loop_exit
                  _
                %s309 = ssub.s32 16, 1
                loop: start=0, step=1, limit=1
                $region71: #{nin_forward.10} parent=62 // loop_pre_header
                  _
                $region72: #{nin_forward.10} parent=62 // loop_header
                  %s311 = sphi 0, %s315
                  %p312 = scmp.ge.s32.totalorder %s311, 1
                  %s316 = sphi %s255, %s255
                  %s317 = sphi %s250, %s250
                $region73: #{nin_forward.10} parent=62 // loop_header_branch
                  %314 = sbr.rel (%p312) target = $region77
                $region74: #{nin_forward.10} parent=62 // loop_body
                  %v318 = vld [vmem:[%s316] sm:%s309]
                  %319 = vst [vmem:[%s317] sm:%s309] %v318
                  %v320 = vld [vmem:[%s316 + $0x64] sm:%s309]
                  %321 = vst [vmem:[%s317 + $0x4] sm:%s309] %v320
                  %v322 = vld [vmem:[%s316 + $0xc8] sm:%s309]
                  %323 = vst [vmem:[%s317 + $0x8] sm:%s309] %v322
                  %v324 = vld [vmem:[%s316 + $0x12c] sm:%s309]
                  %325 = vst [vmem:[%s317 + $0xc] sm:%s309] %v324
                  %v326 = vld [vmem:[%s316 + $0x190] sm:%s309]
                  %327 = vst [vmem:[%s317 + $0x10] sm:%s309] %v326
                  %v328 = vld [vmem:[%s316 + $0x1f4] sm:%s309]
                  %329 = vst [vmem:[%s317 + $0x14] sm:%s309] %v328
                  %v330 = vld [vmem:[%s316 + $0x258] sm:%s309]
                  %331 = vst [vmem:[%s317 + $0x18] sm:%s309] %v330
                  %v332 = vld [vmem:[%s316 + $0x2bc] sm:%s309]
                  %333 = vst [vmem:[%s317 + $0x1c] sm:%s309] %v332
                  %v334 = vld [vmem:[%s316 + $0x320] sm:%s309]
                  %335 = vst [vmem:[%s317 + $0x20] sm:%s309] %v334
                  %v336 = vld [vmem:[%s316 + $0x384] sm:%s309]
                  %337 = vst [vmem:[%s317 + $0x24] sm:%s309] %v336
                  %v338 = vld [vmem:[%s316 + $0x3e8] sm:%s309]
                  %339 = vst [vmem:[%s317 + $0x28] sm:%s309] %v338
                  %v340 = vld [vmem:[%s316 + $0x44c] sm:%s309]
                  %341 = vst [vmem:[%s317 + $0x2c] sm:%s309] %v340
                  %v342 = vld [vmem:[%s316 + $0x4b0] sm:%s309]
                  %343 = vst [vmem:[%s317 + $0x30] sm:%s309] %v342
                $region75: #{nin_forward.10} parent=62 // loop_footer
                  %s315 = sadd.s32 1, %s311
                $region76: #{nin_forward.10} parent=62 // loop_footer_branch
                  %310 = sbr.rel target = $region72
                $region77: #{nin_forward.10} parent=62 // loop_exit
                  _
              $region63: #{nin_forward.10} parent=47 // pred_fallthru
                _
            $region48: #{nin_forward.10} parent=43 // pred_fallthru
              _
            // Predicated region
            $region49: #{nin_forward.10} parent=43 // pred_check
              _
            $region50: #{nin_forward.10} parent=43 // pred_check_branch
              %261 = sbr.rel (0) target = $region52
            $region51: #{nin_forward.10} parent=43 // pred_region
              %s263 = ssub.s32 16, 1
              loop: start=0, step=1, limit=1
              $region53: #{nin_forward.10} parent=51 // loop_pre_header
                _
              $region54: #{nin_forward.10} parent=51 // loop_header
                %s265 = sphi 0, %s269
                %p266 = scmp.ge.s32.totalorder %s265, 1
                %s270 = sphi %s255, %s255
                %s271 = sphi %s250, %s250
              $region55: #{nin_forward.10} parent=51 // loop_header_branch
                %268 = sbr.rel (%p266) target = $region59
              $region56: #{nin_forward.10} parent=51 // loop_body
                %v272 = vld [vmem:[%s270] sm:%s263]
                %273 = vst [vmem:[%s271] sm:%s263] %v272
                %v274 = vld [vmem:[%s270 + $0x64] sm:%s263]
                %275 = vst [vmem:[%s271 + $0x4] sm:%s263] %v274
                %v276 = vld [vmem:[%s270 + $0xc8] sm:%s263]
                %277 = vst [vmem:[%s271 + $0x8] sm:%s263] %v276
                %v278 = vld [vmem:[%s270 + $0x12c] sm:%s263]
                %279 = vst [vmem:[%s271 + $0xc] sm:%s263] %v278
                %v280 = vld [vmem:[%s270 + $0x190] sm:%s263]
                %281 = vst [vmem:[%s271 + $0x10] sm:%s263] %v280
                %v282 = vld [vmem:[%s270 + $0x1f4] sm:%s263]
                %283 = vst [vmem:[%s271 + $0x14] sm:%s263] %v282
                %v284 = vld [vmem:[%s270 + $0x258] sm:%s263]
                %285 = vst [vmem:[%s271 + $0x18] sm:%s263] %v284
                %v286 = vld [vmem:[%s270 + $0x2bc] sm:%s263]
                %287 = vst [vmem:[%s271 + $0x1c] sm:%s263] %v286
                %v288 = vld [vmem:[%s270 + $0x320] sm:%s263]
                %289 = vst [vmem:[%s271 + $0x20] sm:%s263] %v288
                %v290 = vld [vmem:[%s270 + $0x384] sm:%s263]
                %291 = vst [vmem:[%s271 + $0x24] sm:%s263] %v290
                %v292 = vld [vmem:[%s270 + $0x3e8] sm:%s263]
                %293 = vst [vmem:[%s271 + $0x28] sm:%s263] %v292
                %v294 = vld [vmem:[%s270 + $0x44c] sm:%s263]
                %295 = vst [vmem:[%s271 + $0x2c] sm:%s263] %v294
                %v296 = vld [vmem:[%s270 + $0x4b0] sm:%s263]
                %297 = vst [vmem:[%s271 + $0x30] sm:%s263] %v296
              $region57: #{nin_forward.10} parent=51 // loop_footer
                %s269 = sadd.s32 1, %s265
              $region58: #{nin_forward.10} parent=51 // loop_footer_branch
                %264 = sbr.rel target = $region54
              $region59: #{nin_forward.10} parent=51 // loop_exit
                _
            $region52: #{nin_forward.10} parent=43 // pred_fallthru
              _
          $region44: #{nin_forward.10} parent=39 // pred_fallthru
            _
          %344 = vnop
        $region40: #{nin_forward.10} parent=35 // pred_fallthru
          _
        // Predicated region
        $region78: #{nin_forward.10} parent=35 // pred_check
          %p345 = pneg %p73
        $region79: #{nin_forward.10} parent=35 // pred_check_branch
          %347 = sbr.rel (%p345) target = $region81
        $region80: #{nin_forward.10} parent=35 // pred_region
          %s348 = smul.u32 16, %s21
          %p349 = scmp.lt.s32.totalorder %s348, 399
          %s350 = scalar_select %p349, %s348, 399
          %s351 = smul.addr %s350, 2
          %s352 = smul.addr %s351, 4
          %s353 = scalar_lea.vmem %s1, %s352
          %s354 = smul.u32 16, %s21
        $region81: #{nin_forward.10} parent=35 // pred_fallthru
          _
      $region36: #{nin_forward.10} parent=5 // pred_fallthru
        _
      %p355 = scmp.le.s32.totalorder 1, %s13
      %p356 = scmp.lt.s32.totalorder %s13, 26
      %p357 = pnand %p355, %p356
      %p358 = pneg %p357
      // Predicated region
      $region82: #{nin_forward.10} parent=5 // pred_check
        _
      $region83: #{nin_forward.10} parent=5 // pred_check_branch
        %360 = sbr.rel (%p357) target = $region85
      $region84: #{nin_forward.10} parent=5 // pred_region
        %s361 = ssub.s32 %s13, 1
        %s362 = sand.u32 %s40, 1
        %s363 = sand.u32 %s40, 1
        %s364 = smul.addr %s363, 52
        %s365 = scalar_lea.vmem [#allocation2], %s364
        // Predicated region
        $region86: #{nin_forward.10} parent=84 // pred_check
          %p366 = pneg %p53
        $region87: #{nin_forward.10} parent=84 // pred_check_branch
          %368 = sbr.rel (%p366) target = $region89
        $region88: #{nin_forward.10} parent=84 // pred_region
          _
        $region89: #{nin_forward.10} parent=84 // pred_fallthru
          _
        %s369 = sand.u32 %s40, 1
        %s370 = sand.u32 %s40, 1
        %s371 = smul.addr %s370, 52
        %s372 = scalar_lea.vmem [#allocation2], %s371
        %p373 = pneg %p53
        %p374 = pneg %p50
        %s375 = smul.u32 16, %s23
        %p376 = scmp.lt.s32.totalorder %s375, 399
        %s377 = scalar_select %p376, %s375, 399
        %s378 = smul.addr %s377, 2
        %s379 = smul.addr %s378, 4
        %s380 = scalar_lea.vmem %s1, %s379
        %p381 = pneg %p79
        %p382 = pneg %p76
        %p383 = pneg %p100
        %p384 = pneg %p97
        %p385 = pneg %p121
        %p386 = pneg %p118
        %p387 = pneg %p142
        %p388 = pneg %p139
        %p389 = pneg %p163
        %p390 = pneg %p160
        %p391 = pneg %p184
        %p392 = pneg %p181
        %p393 = pneg %p210
        %p394 = pneg %p207
        %s395 = smul.u32 13, %s22
        %p396 = scmp.lt.s32.totalorder %s395, 12
        %s397 = scalar_select %p396, %s395, 12
        %s398 = smul.addr %s397, 2
        %s399 = smul.addr %s398, 8
        %s400 = scalar_lea.vmem %s7, %s399
        %s401 = smul.u32 13, %s22
        %s402 = smul.u32 16, %s23
        %p403 = scmp.lt.s32.totalorder %s402, 399
        %s404 = scalar_select %p403, %s402, 399
        %s405 = smul.addr %s404, 2
        %s406 = smul.addr %s405, 4
        %s407 = scalar_lea.vmem %s1, %s406
        %s408 = smul.u32 16, %s23
        %s409 = smul.u32 13, %s22
        %p410 = scmp.lt.s32.totalorder %s409, 12
        %s411 = scalar_select %p410, %s409, 12
        %s412 = smul.addr %s411, 2
        %s413 = smul.addr %s412, 8
        %s414 = scalar_lea.vmem %s7, %s413
        %s415 = smul.u32 13, %s22
        %p417 = scmp.eq.s32.totalorder %s23, 0
        // Predicated region
        $region90: #{nin_forward.10} parent=84 // pred_check
          %p418 = pneg %p417
        $region91: #{nin_forward.10} parent=84 // pred_check_branch
          %420 = sbr.rel (%p418) target = $region93
        $region92: #{nin_forward.10} parent=84 // pred_region
          %421 = vst [vmem:[%s414] sm:$0xff] 0.0
          %422 = vst [vmem:[%s414 + $0x8] sm:$0xff] 0.0
          %423 = vst [vmem:[%s414 + $0x10] sm:$0xff] 0.0
          %424 = vst [vmem:[%s414 + $0x18] sm:$0xff] 0.0
          %425 = vst [vmem:[%s414 + $0x20] sm:$0xff] 0.0
          %426 = vst [vmem:[%s414 + $0x28] sm:$0xff] 0.0
          %427 = vst [vmem:[%s414 + $0x30] sm:$0xff] 0.0
          %428 = vst [vmem:[%s414 + $0x38] sm:$0xff] 0.0
          %429 = vst [vmem:[%s414 + $0x40] sm:$0xff] 0.0
          %430 = vst [vmem:[%s414 + $0x48] sm:$0xff] 0.0
          %431 = vst [vmem:[%s414 + $0x50] sm:$0xff] 0.0
          %432 = vst [vmem:[%s414 + $0x58] sm:$0xff] 0.0
          %433 = vst [vmem:[%s414 + $0x60] sm:$0xff] 0.0
          %434 = vst [vmem:[%s414 + $0x68] sm:$0xff] 0.0
          %435 = vst [vmem:[%s414 + $0x70] sm:$0xff] 0.0
          %436 = vst [vmem:[%s414 + $0x78] sm:$0xff] 0.0
          %437 = vst [vmem:[%s414 + $0x80] sm:$0xff] 0.0
          %438 = vst [vmem:[%s414 + $0x88] sm:$0xff] 0.0
          %439 = vst [vmem:[%s414 + $0x90] sm:$0xff] 0.0
          %440 = vst [vmem:[%s414 + $0x98] sm:$0xff] 0.0
          %441 = vst [vmem:[%s414 + $0xa0] sm:$0xff] 0.0
          %442 = vst [vmem:[%s414 + $0xa8] sm:$0xff] 0.0
          %443 = vst [vmem:[%s414 + $0xb0] sm:$0xff] 0.0
          %444 = vst [vmem:[%s414 + $0xb8] sm:$0xff] 0.0
          %445 = vst [vmem:[%s414 + $0xc0] sm:$0xff] 0.0
          %446 = vst [vmem:[%s414 + $0xc8] sm:$0xff] 0.0
        $region93: #{nin_forward.10} parent=84 // pred_fallthru
          _
        %v447 = vld [vmem:[%s414] sm:$0xff]
        %v448 = vld [vmem:[%s414 + $0x8] sm:$0xff]
        %v449 = vld [vmem:[%s414 + $0x10] sm:$0xff]
        %v450 = vld [vmem:[%s414 + $0x18] sm:$0xff]
        %v451 = vld [vmem:[%s414 + $0x20] sm:$0xff]
        %v452 = vld [vmem:[%s414 + $0x28] sm:$0xff]
        %v453 = vld [vmem:[%s414 + $0x30] sm:$0xff]
        %v454 = vld [vmem:[%s414 + $0x38] sm:$0xff]
        %v455 = vld [vmem:[%s414 + $0x40] sm:$0xff]
        %v456 = vld [vmem:[%s414 + $0x48] sm:$0xff]
        %v457 = vld [vmem:[%s414 + $0x50] sm:$0xff]
        %v458 = vld [vmem:[%s414 + $0x58] sm:$0xff]
        %v459 = vld [vmem:[%s414 + $0x60] sm:$0xff]
        %v460 = vld [vmem:[%s414 + $0x68] sm:$0xff]
        %v461 = vld [vmem:[%s414 + $0x70] sm:$0xff]
        %v462 = vld [vmem:[%s414 + $0x78] sm:$0xff]
        %v463 = vld [vmem:[%s414 + $0x80] sm:$0xff]
        %v464 = vld [vmem:[%s414 + $0x88] sm:$0xff]
        %v465 = vld [vmem:[%s414 + $0x90] sm:$0xff]
        %v466 = vld [vmem:[%s414 + $0x98] sm:$0xff]
        %v467 = vld [vmem:[%s414 + $0xa0] sm:$0xff]
        %v468 = vld [vmem:[%s414 + $0xa8] sm:$0xff]
        %v469 = vld [vmem:[%s414 + $0xb0] sm:$0xff]
        %v470 = vld [vmem:[%s414 + $0xb8] sm:$0xff]
        %v471 = vld [vmem:[%s414 + $0xc0] sm:$0xff]
        %v472 = vld [vmem:[%s414 + $0xc8] sm:$0xff]
        %v473 = vld [vmem:[%s365] sm:$0xf]
        %v474 = vld [vmem:[%s365 + $0x4] sm:$0xf]
        %v475 = vld [vmem:[%s365 + $0x8] sm:$0xf]
        %v476 = vld [vmem:[%s365 + $0xc] sm:$0xf]
        %v477 = vld [vmem:[%s365 + $0x10] sm:$0xf]
        %v478 = vld [vmem:[%s365 + $0x14] sm:$0xf]
        %v479 = vld [vmem:[%s365 + $0x18] sm:$0xf]
        %v480 = vld [vmem:[%s365 + $0x1c] sm:$0xf]
        %v481 = vld [vmem:[%s365 + $0x20] sm:$0xf]
        %v482 = vld [vmem:[%s365 + $0x24] sm:$0xf]
        %v483 = vld [vmem:[%s365 + $0x28] sm:$0xf]
        %v484 = vld [vmem:[%s365 + $0x2c] sm:$0xf]
        %v485 = vld [vmem:[%s365 + $0x30] sm:$0xf]
        %v486 = vld [vmem:[%s407] sm:$0xff]
        %v487 = vld [vmem:[%s407 + $0x8] sm:$0xff]
        %v488 = vld [vmem:[%s407 + $0x10] sm:$0xff]
        %v489 = vld [vmem:[%s407 + $0x18] sm:$0xff]
        %v490 = vld [vmem:[%s407 + $0x20] sm:$0xff]
        %v491 = vld [vmem:[%s407 + $0x28] sm:$0xff]
        %v492 = vld [vmem:[%s407 + $0x30] sm:$0xff]
        %v493 = vld [vmem:[%s407 + $0x38] sm:$0xff]
        %v494 = vld [vmem:[%s407 + $0x40] sm:$0xff]
        %v495 = vld [vmem:[%s407 + $0x48] sm:$0xff]
        %v496 = vld [vmem:[%s407 + $0x50] sm:$0xff]
        %v497 = vld [vmem:[%s407 + $0x58] sm:$0xff]
        %v498 = vld [vmem:[%s407 + $0x60] sm:$0xff]
        %v499 = vld [vmem:[%s407 + $0x68] sm:$0xff]
        %v500 = vld [vmem:[%s407 + $0x70] sm:$0xff]
        %v501 = vld [vmem:[%s407 + $0x78] sm:$0xff]
        %v515 = vunpack.c.l.b16 %v473
        %v516 = vunpack.c.l.b16 %v474
        %v517 = vunpack.c.l.b16 %v475
        %v518 = vunpack.c.l.b16 %v476
        %v519 = vunpack.c.l.b16 %v477
        %v520 = vunpack.c.l.b16 %v478
        %v521 = vunpack.c.l.b16 %v479
        %v522 = vunpack.c.l.b16 %v480
        %v523 = vunpack.c.l.b16 %v481
        %v524 = vunpack.c.l.b16 %v482
        %v525 = vunpack.c.l.b16 %v483
        %v526 = vunpack.c.l.b16 %v484
        %v527 = vunpack.c.l.b16 %v485
        %v528 = vpack.c.b16 %v516, %v515
        %v529 = vpack.c.b16 %v518, %v517
        %v530 = vpack.c.b16 %v520, %v519
        %v531 = vpack.c.b16 %v522, %v521
        %v532 = vpack.c.b16 %v524, %v523
        %v533 = vpack.c.b16 %v526, %v525
        %v534 = vpack.c.b16 %v527, %v527
        %v558 = vunpack.c.l.b16 %v486
        %v559 = vunpack.c.h.b16 %v486
        %v560 = vunpack.c.l.b16 %v487
        %v561 = vunpack.c.h.b16 %v487
        %v562 = vunpack.c.l.b16 %v488
        %v563 = vunpack.c.h.b16 %v488
        %v564 = vunpack.c.l.b16 %v489
        %v565 = vunpack.c.h.b16 %v489
        %v566 = vunpack.c.l.b16 %v490
        %v567 = vunpack.c.h.b16 %v490
        %v568 = vunpack.c.l.b16 %v491
        %v569 = vunpack.c.h.b16 %v491
        %v570 = vunpack.c.l.b16 %v492
        %v571 = vunpack.c.h.b16 %v492
        %v572 = vunpack.c.l.b16 %v493
        %v573 = vunpack.c.h.b16 %v493
        %v574 = vunpack.c.l.b16 %v494
        %v575 = vunpack.c.h.b16 %v494
        %v576 = vunpack.c.l.b16 %v495
        %v577 = vunpack.c.h.b16 %v495
        %v578 = vunpack.c.l.b16 %v496
        %v579 = vunpack.c.h.b16 %v496
        %v580 = vunpack.c.l.b16 %v497
        %v581 = vunpack.c.h.b16 %v497
        %v582 = vunpack.c.l.b16 %v498
        %v583 = vunpack.c.h.b16 %v498
        %v584 = vunpack.c.l.b16 %v499
        %v585 = vunpack.c.h.b16 %v499
        %v586 = vunpack.c.l.b16 %v500
        %v587 = vunpack.c.h.b16 %v500
        %v588 = vunpack.c.l.b16 %v501
        %v589 = vunpack.c.h.b16 %v501
        %v590 = vpack.c.b16 %v560, %v558
        %v591 = vpack.c.b16 %v561, %v559
        %v592 = vpack.c.b16 %v564, %v562
        %v593 = vpack.c.b16 %v565, %v563
        %v594 = vpack.c.b16 %v568, %v566
        %v595 = vpack.c.b16 %v569, %v567
        %v596 = vpack.c.b16 %v572, %v570
        %v597 = vpack.c.b16 %v573, %v571
        %v598 = vpack.c.b16 %v576, %v574
        %v599 = vpack.c.b16 %v577, %v575
        %v600 = vpack.c.b16 %v580, %v578
        %v601 = vpack.c.b16 %v581, %v579
        %v602 = vpack.c.b16 %v584, %v582
        %v603 = vpack.c.b16 %v585, %v583
        %v604 = vpack.c.b16 %v588, %v586
        %v605 = vpack.c.b16 %v589, %v587
        %622 = vmatprep.subr.bf16.mxu0 %v605
        %623 = vmatpush1.bf16.msra.mxu0 %v604
        %624 = vmatprep.subr.bf16.mxu0 %v603
        %625 = vmatpush1.bf16.msra.mxu0 %v602
        %626 = vmatprep.subr.bf16.mxu0 %v601
        %627 = vmatpush1.bf16.msra.mxu0 %v600
        %628 = vmatprep.subr.bf16.mxu0 %v599
        %629 = vmatpush1.bf16.msra.mxu0 %v598
        %630 = vmatprep.subr.bf16.mxu0 %v597
        %631 = vmatpush1.bf16.msra.mxu0 %v596
        %632 = vmatprep.subr.bf16.mxu0 %v595
        %633 = vmatpush1.bf16.msra.mxu0 %v594
        %634 = vmatprep.subr.bf16.mxu0 %v593
        %635 = vmatpush1.bf16.msra.mxu0 %v592
        %636 = vmatprep.subr.bf16.mxu0 %v591
        %637 = vmatpush1.bf16.msra.mxu0 %v590
        %638 = vmatprep.subr.bf16.mxu0 0
        %639 = vmatpush2.bf16.msra.mxu0 0
        %640 = vmatprep.subr.bf16.mxu0 0
        %641 = vmatpush2.bf16.msra.mxu0 0
        %642 = vmatprep.subr.bf16.mxu0 0
        %643 = vmatpush2.bf16.msra.mxu0 0
        %644 = vmatprep.subr.bf16.mxu0 0
        %645 = vmatpush2.bf16.msra.mxu0 0
        %646 = vmatprep.subr.bf16.mxu0 0
        %647 = vmatpush2.bf16.msra.mxu0 0
        %648 = vmatprep.subr.bf16.mxu0 0
        %649 = vmatpush2.bf16.msra.mxu0 0
        %650 = vmatprep.subr.bf16.mxu0 0
        %651 = vmatpush2.bf16.msra.mxu0 0
        %652 = vmatprep.subr.bf16.mxu0 0
        %653 = vmatpush2.bf16.msra.mxu0 0
        %654 = vmatprep.mubr.bf16.mxu0 0
        %655 = vmatmul.mubr.bf16.gmra.mxu0 %v528
        %v656 = vpop.f32.mrf.mxu0
        %v657 = vadd.f32 0.0, %v656
        %v658 = vpop.f32.mrf.mxu0
        %v659 = vadd.f32 0.0, %v658
        %v660 = vpop.f32.mrf.mxu0
        %v661 = vadd.f32 0.0, %v660
        %v662 = vpop.f32.mrf.mxu0
        %v663 = vadd.f32 0.0, %v662
        %664 = vmatprep.mubr.bf16.mxu0 0
        %665 = vmatmul.mubr.bf16.gmra.mxu0 %v529
        %v666 = vpop.f32.mrf.mxu0
        %v667 = vadd.f32 0.0, %v666
        %v668 = vpop.f32.mrf.mxu0
        %v669 = vadd.f32 0.0, %v668
        %v670 = vpop.f32.mrf.mxu0
        %v671 = vadd.f32 0.0, %v670
        %v672 = vpop.f32.mrf.mxu0
        %v673 = vadd.f32 0.0, %v672
        %674 = vmatprep.mubr.bf16.mxu0 0
        %675 = vmatmul.mubr.bf16.gmra.mxu0 %v530
        %v676 = vpop.f32.mrf.mxu0
        %v677 = vadd.f32 0.0, %v676
        %v678 = vpop.f32.mrf.mxu0
        %v679 = vadd.f32 0.0, %v678
        %v680 = vpop.f32.mrf.mxu0
        %v681 = vadd.f32 0.0, %v680
        %v682 = vpop.f32.mrf.mxu0
        %v683 = vadd.f32 0.0, %v682
        %684 = vmatprep.mubr.bf16.mxu0 0
        %685 = vmatmul.mubr.bf16.gmra.mxu0 %v531
        %v686 = vpop.f32.mrf.mxu0
        %v687 = vadd.f32 0.0, %v686
        %v688 = vpop.f32.mrf.mxu0
        %v689 = vadd.f32 0.0, %v688
        %v690 = vpop.f32.mrf.mxu0
        %v691 = vadd.f32 0.0, %v690
        %v692 = vpop.f32.mrf.mxu0
        %v693 = vadd.f32 0.0, %v692
        %694 = vmatprep.mubr.bf16.mxu0 0
        %695 = vmatmul.mubr.bf16.gmra.mxu0 %v532
        %v696 = vpop.f32.mrf.mxu0
        %v697 = vadd.f32 0.0, %v696
        %v698 = vpop.f32.mrf.mxu0
        %v699 = vadd.f32 0.0, %v698
        %v700 = vpop.f32.mrf.mxu0
        %v701 = vadd.f32 0.0, %v700
        %v702 = vpop.f32.mrf.mxu0
        %v703 = vadd.f32 0.0, %v702
        %704 = vmatprep.mubr.bf16.mxu0 0
        %705 = vmatmul.mubr.bf16.gmra.mxu0 %v533
        %v706 = vpop.f32.mrf.mxu0
        %v707 = vadd.f32 0.0, %v706
        %v708 = vpop.f32.mrf.mxu0
        %v709 = vadd.f32 0.0, %v708
        %v710 = vpop.f32.mrf.mxu0
        %v711 = vadd.f32 0.0, %v710
        %v712 = vpop.f32.mrf.mxu0
        %v713 = vadd.f32 0.0, %v712
        %714 = vmatprep.mubr.bf16.mxu0 0
        %715 = vmatmul.mubr.bf16.gmra.mxu0 %v534
        %v716 = vpop.f32.mrf.mxu0
        %v717 = vadd.f32 0.0, %v716
        %v718 = vpop.f32.mrf.mxu0
        %v719 = vadd.f32 0.0, %v718
        %v720 = vpop.f32.mrf.mxu0
        %v721 = vpop.f32.mrf.mxu0
        %722 = vdwg.mxu0
        %v723 = vadd.f32 %v447, %v657
        %v724 = vadd.f32 %v448, %v659
        %v725 = vadd.f32 %v449, %v661
        %v726 = vadd.f32 %v450, %v663
        %v727 = vadd.f32 %v451, %v667
        %v728 = vadd.f32 %v452, %v669
        %v729 = vadd.f32 %v453, %v671
        %v730 = vadd.f32 %v454, %v673
        %v731 = vadd.f32 %v455, %v677
        %v732 = vadd.f32 %v456, %v679
        %v733 = vadd.f32 %v457, %v681
        %v734 = vadd.f32 %v458, %v683
        %v735 = vadd.f32 %v459, %v687
        %v736 = vadd.f32 %v460, %v689
        %v737 = vadd.f32 %v461, %v691
        %v738 = vadd.f32 %v462, %v693
        %v739 = vadd.f32 %v463, %v697
        %v740 = vadd.f32 %v464, %v699
        %v741 = vadd.f32 %v465, %v701
        %v742 = vadd.f32 %v466, %v703
        %v743 = vadd.f32 %v467, %v707
        %v744 = vadd.f32 %v468, %v709
        %v745 = vadd.f32 %v469, %v711
        %v746 = vadd.f32 %v470, %v713
        %v747 = vadd.f32 %v471, %v717
        %v748 = vadd.f32 %v472, %v719
        %749 = vst [vmem:[%s414] sm:$0xff] %v723
        %750 = vst [vmem:[%s414 + $0x8] sm:$0xff] %v724
        %751 = vst [vmem:[%s414 + $0x10] sm:$0xff] %v725
        %752 = vst [vmem:[%s414 + $0x18] sm:$0xff] %v726
        %753 = vst [vmem:[%s414 + $0x20] sm:$0xff] %v727
        %754 = vst [vmem:[%s414 + $0x28] sm:$0xff] %v728
        %755 = vst [vmem:[%s414 + $0x30] sm:$0xff] %v729
        %756 = vst [vmem:[%s414 + $0x38] sm:$0xff] %v730
        %757 = vst [vmem:[%s414 + $0x40] sm:$0xff] %v731
        %758 = vst [vmem:[%s414 + $0x48] sm:$0xff] %v732
        %759 = vst [vmem:[%s414 + $0x50] sm:$0xff] %v733
        %760 = vst [vmem:[%s414 + $0x58] sm:$0xff] %v734
        %761 = vst [vmem:[%s414 + $0x60] sm:$0xff] %v735
        %762 = vst [vmem:[%s414 + $0x68] sm:$0xff] %v736
        %763 = vst [vmem:[%s414 + $0x70] sm:$0xff] %v737
        %764 = vst [vmem:[%s414 + $0x78] sm:$0xff] %v738
        %765 = vst [vmem:[%s414 + $0x80] sm:$0xff] %v739
        %766 = vst [vmem:[%s414 + $0x88] sm:$0xff] %v740
        %767 = vst [vmem:[%s414 + $0x90] sm:$0xff] %v741
        %768 = vst [vmem:[%s414 + $0x98] sm:$0xff] %v742
        %769 = vst [vmem:[%s414 + $0xa0] sm:$0xff] %v743
        %770 = vst [vmem:[%s414 + $0xa8] sm:$0xff] %v744
        %771 = vst [vmem:[%s414 + $0xb0] sm:$0xff] %v745
        %772 = vst [vmem:[%s414 + $0xb8] sm:$0xff] %v746
        %773 = vst [vmem:[%s414 + $0xc0] sm:$0xff] %v747
        %774 = vst [vmem:[%s414 + $0xc8] sm:$0xff] %v748
        %p775 = scmp.eq.s32.totalorder %s23, 24
        // Predicated region
        $region94: #{nin_forward.10} parent=84 // pred_check
          %p776 = pneg %p775
        $region95: #{nin_forward.10} parent=84 // pred_check_branch
          %778 = sbr.rel (%p776) target = $region97
        $region96: #{nin_forward.10} parent=84 // pred_region
          %v779 = vld [vmem:[%s414] sm:$0xff]
          %v780 = vld [vmem:[%s414 + $0x8] sm:$0xff]
          %v781 = vld [vmem:[%s414 + $0x10] sm:$0xff]
          %v782 = vld [vmem:[%s414 + $0x18] sm:$0xff]
          %v783 = vld [vmem:[%s414 + $0x20] sm:$0xff]
          %v784 = vld [vmem:[%s414 + $0x28] sm:$0xff]
          %v785 = vld [vmem:[%s414 + $0x30] sm:$0xff]
          %v786 = vld [vmem:[%s414 + $0x38] sm:$0xff]
          %v787 = vld [vmem:[%s414 + $0x40] sm:$0xff]
          %v788 = vld [vmem:[%s414 + $0x48] sm:$0xff]
          %v789 = vld [vmem:[%s414 + $0x50] sm:$0xff]
          %v790 = vld [vmem:[%s414 + $0x58] sm:$0xff]
          %v791 = vld [vmem:[%s414 + $0x60] sm:$0xff]
          %v792 = vld [vmem:[%s414 + $0x68] sm:$0xff]
          %v793 = vld [vmem:[%s414 + $0x70] sm:$0xff]
          %v794 = vld [vmem:[%s414 + $0x78] sm:$0xff]
          %v795 = vld [vmem:[%s414 + $0x80] sm:$0xff]
          %v796 = vld [vmem:[%s414 + $0x88] sm:$0xff]
          %v797 = vld [vmem:[%s414 + $0x90] sm:$0xff]
          %v798 = vld [vmem:[%s414 + $0x98] sm:$0xff]
          %v799 = vld [vmem:[%s414 + $0xa0] sm:$0xff]
          %v800 = vld [vmem:[%s414 + $0xa8] sm:$0xff]
          %v801 = vld [vmem:[%s414 + $0xb0] sm:$0xff]
          %v802 = vld [vmem:[%s414 + $0xb8] sm:$0xff]
          %v803 = vld [vmem:[%s414 + $0xc0] sm:$0xff]
          %v804 = vld [vmem:[%s414 + $0xc8] sm:$0xff]
          %v805 = vld [vmem:[%s2] sm:$0x3]
          %v807 = vlaneseq
          %v808 = vshrl.u32 %v807, 7
          %v809 = vsub.s32 0, %v808
          %v810 = vrot.slane %v805, %v809
          %v811 = vlaneseq
          %v812 = vshrl.u32 %v811, 7
          %v813 = vsub.s32 1, %v812
          %v814 = vrot.slane %v805, %v813
          %v817 = vadd.f32 %v779, %v810
          %v818 = vadd.f32 %v780, %v814
          %v819 = vadd.f32 %v781, %v810
          %v820 = vadd.f32 %v782, %v814
          %v821 = vadd.f32 %v783, %v810
          %v822 = vadd.f32 %v784, %v814
          %v823 = vadd.f32 %v785, %v810
          %v824 = vadd.f32 %v786, %v814
          %v825 = vadd.f32 %v787, %v810
          %v826 = vadd.f32 %v788, %v814
          %v827 = vadd.f32 %v789, %v810
          %v828 = vadd.f32 %v790, %v814
          %v829 = vadd.f32 %v791, %v810
          %v830 = vadd.f32 %v792, %v814
          %v831 = vadd.f32 %v793, %v810
          %v832 = vadd.f32 %v794, %v814
          %v833 = vadd.f32 %v795, %v810
          %v834 = vadd.f32 %v796, %v814
          %v835 = vadd.f32 %v797, %v810
          %v836 = vadd.f32 %v798, %v814
          %v837 = vadd.f32 %v799, %v810
          %v838 = vadd.f32 %v800, %v814
          %v839 = vadd.f32 %v801, %v810
          %v840 = vadd.f32 %v802, %v814
          %v841 = vadd.f32 %v803, %v810
          %v842 = vadd.f32 %v804, %v814
          %v843 = vmax.f32 %v817, 0.0
          %v844 = vmax.f32 %v818, 0.0
          %v845 = vmax.f32 %v819, 0.0
          %v846 = vmax.f32 %v820, 0.0
          %v847 = vmax.f32 %v821, 0.0
          %v848 = vmax.f32 %v822, 0.0
          %v849 = vmax.f32 %v823, 0.0
          %v850 = vmax.f32 %v824, 0.0
          %v851 = vmax.f32 %v825, 0.0
          %v852 = vmax.f32 %v826, 0.0
          %v853 = vmax.f32 %v827, 0.0
          %v854 = vmax.f32 %v828, 0.0
          %v855 = vmax.f32 %v829, 0.0
          %v856 = vmax.f32 %v830, 0.0
          %v857 = vmax.f32 %v831, 0.0
          %v858 = vmax.f32 %v832, 0.0
          %v859 = vmax.f32 %v833, 0.0
          %v860 = vmax.f32 %v834, 0.0
          %v861 = vmax.f32 %v835, 0.0
          %v862 = vmax.f32 %v836, 0.0
          %v863 = vmax.f32 %v837, 0.0
          %v864 = vmax.f32 %v838, 0.0
          %v865 = vmax.f32 %v839, 0.0
          %v866 = vmax.f32 %v840, 0.0
          %v867 = vmax.f32 %v841, 0.0
          %v868 = vmax.f32 %v842, 0.0
          %v869 = vpack.c.bf16 %v845, %v843
          %v870 = vpack.c.bf16 %v846, %v844
          %v871 = vpack.c.bf16 %v849, %v847
          %v872 = vpack.c.bf16 %v850, %v848
          %v873 = vpack.c.bf16 %v853, %v851
          %v874 = vpack.c.bf16 %v854, %v852
          %v875 = vpack.c.bf16 %v857, %v855
          %v876 = vpack.c.bf16 %v858, %v856
          %v877 = vpack.c.bf16 %v861, %v859
          %v878 = vpack.c.bf16 %v862, %v860
          %v879 = vpack.c.bf16 %v865, %v863
          %v880 = vpack.c.bf16 %v866, %v864
          %v881 = vpack.c.bf16 %v867, %v867
          %v882 = vpack.c.bf16 %v868, %v868
          %v883 = vld [vmem:[%s3] sm:$0xff]
          %v884 = vld [vmem:[%s3 + $0x8] sm:$0xff]
          %v885 = vld [vmem:[%s3 + $0x10] sm:$0xff]
          %v886 = vld [vmem:[%s3 + $0x18] sm:$0xff]
          %v887 = vld [vmem:[%s3 + $0x20] sm:$0xff]
          %v888 = vld [vmem:[%s3 + $0x28] sm:$0xff]
          %v889 = vld [vmem:[%s3 + $0x30] sm:$0xff]
          %v890 = vld [vmem:[%s3 + $0x38] sm:$0xff]
          %v891 = vld [vmem:[%s3 + $0x40] sm:$0xff]
          %v892 = vld [vmem:[%s3 + $0x48] sm:$0xff]
          %v893 = vld [vmem:[%s3 + $0x50] sm:$0xff]
          %v894 = vld [vmem:[%s3 + $0x58] sm:$0xff]
          %v895 = vld [vmem:[%s3 + $0x60] sm:$0xff]
          %v896 = vld [vmem:[%s3 + $0x68] sm:$0xff]
          %v897 = vld [vmem:[%s3 + $0x70] sm:$0xff]
          %v898 = vld [vmem:[%s3 + $0x78] sm:$0xff]
          %v899 = vld [vmem:[%s3 + $0x80] sm:$0xff]
          %v900 = vld [vmem:[%s3 + $0x88] sm:$0xff]
          %v901 = vld [vmem:[%s3 + $0x90] sm:$0xff]
          %v902 = vld [vmem:[%s3 + $0x98] sm:$0xff]
          %v903 = vld [vmem:[%s3 + $0xa0] sm:$0xff]
          %v904 = vld [vmem:[%s3 + $0xa8] sm:$0xff]
          %v905 = vld [vmem:[%s3 + $0xb0] sm:$0xff]
          %v906 = vld [vmem:[%s3 + $0xb8] sm:$0xff]
          %v907 = vld [vmem:[%s3 + $0xc0] sm:$0xff]
          %v908 = vld [vmem:[%s3 + $0xc8] sm:$0xff]
          %v909 = vld [vmem:[%s3 + $0xd0] sm:$0xff]
          %v910 = vld [vmem:[%s3 + $0xd8] sm:$0xff]
          %v911 = vld [vmem:[%s3 + $0xe0] sm:$0xff]
          %v912 = vld [vmem:[%s3 + $0xe8] sm:$0xff]
          %v913 = vld [vmem:[%s3 + $0xf0] sm:$0xff]
          %v914 = vld [vmem:[%s3 + $0xf8] sm:$0xff]
          %v915 = vld [vmem:[%s4] sm:$0x3]
          %v917 = vlaneseq
          %v918 = vshrl.u32 %v917, 7
          %v919 = vsub.s32 0, %v918
          %v920 = vrot.slane %v915, %v919
          %v921 = vlaneseq
          %v922 = vshrl.u32 %v921, 7
          %v923 = vsub.s32 1, %v922
          %v924 = vrot.slane %v915, %v923
          %v959 = vunpack.c.l.b16 %v883
          %v960 = vunpack.c.h.b16 %v883
          %v961 = vunpack.c.l.b16 %v884
          %v962 = vunpack.c.h.b16 %v884
          %v963 = vunpack.c.l.b16 %v885
          %v964 = vunpack.c.h.b16 %v885
          %v965 = vunpack.c.l.b16 %v886
          %v966 = vunpack.c.h.b16 %v886
          %v967 = vunpack.c.l.b16 %v887
          %v968 = vunpack.c.h.b16 %v887
          %v969 = vunpack.c.l.b16 %v888
          %v970 = vunpack.c.h.b16 %v888
          %v971 = vunpack.c.l.b16 %v889
          %v972 = vunpack.c.h.b16 %v889
          %v973 = vunpack.c.l.b16 %v890
          %v974 = vunpack.c.h.b16 %v890
          %v975 = vunpack.c.l.b16 %v891
          %v976 = vunpack.c.h.b16 %v891
          %v977 = vunpack.c.l.b16 %v892
          %v978 = vunpack.c.h.b16 %v892
          %v979 = vunpack.c.l.b16 %v893
          %v980 = vunpack.c.h.b16 %v893
          %v981 = vunpack.c.l.b16 %v894
          %v982 = vunpack.c.h.b16 %v894
          %v983 = vunpack.c.l.b16 %v895
          %v984 = vunpack.c.h.b16 %v895
          %v985 = vunpack.c.l.b16 %v896
          %v986 = vunpack.c.h.b16 %v896
          %v987 = vunpack.c.l.b16 %v897
          %v988 = vunpack.c.h.b16 %v897
          %v989 = vunpack.c.l.b16 %v898
          %v990 = vunpack.c.h.b16 %v898
          %v991 = vunpack.c.l.b16 %v899
          %v992 = vunpack.c.h.b16 %v899
          %v993 = vunpack.c.l.b16 %v900
          %v994 = vunpack.c.h.b16 %v900
          %v995 = vunpack.c.l.b16 %v901
          %v996 = vunpack.c.h.b16 %v901
          %v997 = vunpack.c.l.b16 %v902
          %v998 = vunpack.c.h.b16 %v902
          %v999 = vunpack.c.l.b16 %v903
          %v1000 = vunpack.c.h.b16 %v903
          %v1001 = vunpack.c.l.b16 %v904
          %v1002 = vunpack.c.h.b16 %v904
          %v1003 = vunpack.c.l.b16 %v905
          %v1004 = vunpack.c.h.b16 %v905
          %v1005 = vunpack.c.l.b16 %v906
          %v1006 = vunpack.c.h.b16 %v906
          %v1007 = vunpack.c.l.b16 %v907
          %v1008 = vunpack.c.h.b16 %v907
          %v1009 = vunpack.c.l.b16 %v908
          %v1010 = vunpack.c.h.b16 %v908
          %v1011 = vunpack.c.l.b16 %v909
          %v1012 = vunpack.c.h.b16 %v909
          %v1013 = vunpack.c.l.b16 %v910
          %v1014 = vunpack.c.h.b16 %v910
          %v1015 = vunpack.c.l.b16 %v911
          %v1016 = vunpack.c.h.b16 %v911
          %v1017 = vunpack.c.l.b16 %v912
          %v1018 = vunpack.c.h.b16 %v912
          %v1019 = vunpack.c.l.b16 %v913
          %v1020 = vunpack.c.h.b16 %v913
          %v1021 = vunpack.c.l.b16 %v914
          %v1022 = vunpack.c.h.b16 %v914
          %v1023 = vpack.c.b16 %v961, %v959
          %v1024 = vpack.c.b16 %v962, %v960
          %v1025 = vpack.c.b16 %v965, %v963
          %v1026 = vpack.c.b16 %v966, %v964
          %v1027 = vpack.c.b16 %v969, %v967
          %v1028 = vpack.c.b16 %v970, %v968
          %v1029 = vpack.c.b16 %v973, %v971
          %v1030 = vpack.c.b16 %v974, %v972
          %v1031 = vpack.c.b16 %v977, %v975
          %v1032 = vpack.c.b16 %v978, %v976
          %v1033 = vpack.c.b16 %v981, %v979
          %v1034 = vpack.c.b16 %v982, %v980
          %v1035 = vpack.c.b16 %v985, %v983
          %v1036 = vpack.c.b16 %v986, %v984
          %v1037 = vpack.c.b16 %v989, %v987
          %v1038 = vpack.c.b16 %v990, %v988
          %v1039 = vpack.c.b16 %v993, %v991
          %v1040 = vpack.c.b16 %v994, %v992
          %v1041 = vpack.c.b16 %v997, %v995
          %v1042 = vpack.c.b16 %v998, %v996
          %v1043 = vpack.c.b16 %v1001, %v999
          %v1044 = vpack.c.b16 %v1002, %v1000
          %v1045 = vpack.c.b16 %v1005, %v1003
          %v1046 = vpack.c.b16 %v1006, %v1004
          %v1047 = vpack.c.b16 %v1009, %v1007
          %v1048 = vpack.c.b16 %v1010, %v1008
          %v1049 = vpack.c.b16 %v1013, %v1011
          %v1050 = vpack.c.b16 %v1014, %v1012
          %v1051 = vpack.c.b16 %v1017, %v1015
          %v1052 = vpack.c.b16 %v1018, %v1016
          %v1053 = vpack.c.b16 %v1021, %v1019
          %v1054 = vpack.c.b16 %v1022, %v1020
          %1087 = vmatprep.subr.bf16.mxu0 %v1038
          %1088 = vmatpush1.bf16.msra.mxu0 %v1037
          %1089 = vmatprep.subr.bf16.mxu0 %v1036
          %1090 = vmatpush1.bf16.msra.mxu0 %v1035
          %1091 = vmatprep.subr.bf16.mxu0 %v1034
          %1092 = vmatpush1.bf16.msra.mxu0 %v1033
          %1093 = vmatprep.subr.bf16.mxu0 %v1032
          %1094 = vmatpush1.bf16.msra.mxu0 %v1031
          %1095 = vmatprep.subr.bf16.mxu0 %v1030
          %1096 = vmatpush1.bf16.msra.mxu0 %v1029
          %1097 = vmatprep.subr.bf16.mxu0 %v1028
          %1098 = vmatpush1.bf16.msra.mxu0 %v1027
          %1099 = vmatprep.subr.bf16.mxu0 %v1026
          %1100 = vmatpush1.bf16.msra.mxu0 %v1025
          %1101 = vmatprep.subr.bf16.mxu0 %v1024
          %1102 = vmatpush1.bf16.msra.mxu0 %v1023
          %1103 = vmatprep.subr.bf16.mxu0 %v1054
          %1104 = vmatpush2.bf16.msra.mxu0 %v1053
          %1105 = vmatprep.subr.bf16.mxu0 %v1052
          %1106 = vmatpush2.bf16.msra.mxu0 %v1051
          %1107 = vmatprep.subr.bf16.mxu0 %v1050
          %1108 = vmatpush2.bf16.msra.mxu0 %v1049
          %1109 = vmatprep.subr.bf16.mxu0 %v1048
          %1110 = vmatpush2.bf16.msra.mxu0 %v1047
          %1111 = vmatprep.subr.bf16.mxu0 %v1046
          %1112 = vmatpush2.bf16.msra.mxu0 %v1045
          %1113 = vmatprep.subr.bf16.mxu0 %v1044
          %1114 = vmatpush2.bf16.msra.mxu0 %v1043
          %1115 = vmatprep.subr.bf16.mxu0 %v1042
          %1116 = vmatpush2.bf16.msra.mxu0 %v1041
          %1117 = vmatprep.subr.bf16.mxu0 %v1040
          %1118 = vmatpush2.bf16.msra.mxu0 %v1039
          %1119 = vmatprep.mubr.bf16.mxu0 %v870
          %1120 = vmatmul.mubr.bf16.gmra.mxu0 %v869
          %v1121 = vpop.f32.mrf.mxu0
          %v1122 = vadd.f32 %v920, %v1121
          %v1123 = vpop.f32.mrf.mxu0
          %v1124 = vadd.f32 %v924, %v1123
          %v1125 = vpop.f32.mrf.mxu0
          %v1126 = vadd.f32 %v920, %v1125
          %v1127 = vpop.f32.mrf.mxu0
          %v1128 = vadd.f32 %v924, %v1127
          %1129 = vmatprep.mubr.bf16.mxu0 %v872
          %1130 = vmatmul.mubr.bf16.gmra.mxu0 %v871
          %v1131 = vpop.f32.mrf.mxu0
          %v1132 = vadd.f32 %v920, %v1131
          %v1133 = vpop.f32.mrf.mxu0
          %v1134 = vadd.f32 %v924, %v1133
          %v1135 = vpop.f32.mrf.mxu0
          %v1136 = vadd.f32 %v920, %v1135
          %v1137 = vpop.f32.mrf.mxu0
          %v1138 = vadd.f32 %v924, %v1137
          %1139 = vmatprep.mubr.bf16.mxu0 %v874
          %1140 = vmatmul.mubr.bf16.gmra.mxu0 %v873
          %v1141 = vpop.f32.mrf.mxu0
          %v1142 = vadd.f32 %v920, %v1141
          %v1143 = vpop.f32.mrf.mxu0
          %v1144 = vadd.f32 %v924, %v1143
          %v1145 = vpop.f32.mrf.mxu0
          %v1146 = vadd.f32 %v920, %v1145
          %v1147 = vpop.f32.mrf.mxu0
          %v1148 = vadd.f32 %v924, %v1147
          %1149 = vmatprep.mubr.bf16.mxu0 %v876
          %1150 = vmatmul.mubr.bf16.gmra.mxu0 %v875
          %v1151 = vpop.f32.mrf.mxu0
          %v1152 = vadd.f32 %v920, %v1151
          %v1153 = vpop.f32.mrf.mxu0
          %v1154 = vadd.f32 %v924, %v1153
          %v1155 = vpop.f32.mrf.mxu0
          %v1156 = vadd.f32 %v920, %v1155
          %v1157 = vpop.f32.mrf.mxu0
          %v1158 = vadd.f32 %v924, %v1157
          %1159 = vmatprep.mubr.bf16.mxu0 %v878
          %1160 = vmatmul.mubr.bf16.gmra.mxu0 %v877
          %v1161 = vpop.f32.mrf.mxu0
          %v1162 = vadd.f32 %v920, %v1161
          %v1163 = vpop.f32.mrf.mxu0
          %v1164 = vadd.f32 %v924, %v1163
          %v1165 = vpop.f32.mrf.mxu0
          %v1166 = vadd.f32 %v920, %v1165
          %v1167 = vpop.f32.mrf.mxu0
          %v1168 = vadd.f32 %v924, %v1167
          %1169 = vmatprep.mubr.bf16.mxu0 %v880
          %1170 = vmatmul.mubr.bf16.gmra.mxu0 %v879
          %v1171 = vpop.f32.mrf.mxu0
          %v1172 = vadd.f32 %v920, %v1171
          %v1173 = vpop.f32.mrf.mxu0
          %v1174 = vadd.f32 %v924, %v1173
          %v1175 = vpop.f32.mrf.mxu0
          %v1176 = vadd.f32 %v920, %v1175
          %v1177 = vpop.f32.mrf.mxu0
          %v1178 = vadd.f32 %v924, %v1177
          %1179 = vmatprep.mubr.bf16.mxu0 %v882
          %1180 = vmatmul.mubr.bf16.gmra.mxu0 %v881
          %v1181 = vpop.f32.mrf.mxu0
          %v1182 = vadd.f32 %v920, %v1181
          %v1183 = vpop.f32.mrf.mxu0
          %v1184 = vadd.f32 %v924, %v1183
          %v1185 = vpop.f32.mrf.mxu0
          %v1186 = vpop.f32.mrf.mxu0
          %1187 = vdwg.mxu0
          %v1188 = vmax.f32 %v1122, 0.0
          %v1189 = vmax.f32 %v1124, 0.0
          %v1190 = vmax.f32 %v1126, 0.0
          %v1191 = vmax.f32 %v1128, 0.0
          %v1192 = vmax.f32 %v1132, 0.0
          %v1193 = vmax.f32 %v1134, 0.0
          %v1194 = vmax.f32 %v1136, 0.0
          %v1195 = vmax.f32 %v1138, 0.0
          %v1196 = vmax.f32 %v1142, 0.0
          %v1197 = vmax.f32 %v1144, 0.0
          %v1198 = vmax.f32 %v1146, 0.0
          %v1199 = vmax.f32 %v1148, 0.0
          %v1200 = vmax.f32 %v1152, 0.0
          %v1201 = vmax.f32 %v1154, 0.0
          %v1202 = vmax.f32 %v1156, 0.0
          %v1203 = vmax.f32 %v1158, 0.0
          %v1204 = vmax.f32 %v1162, 0.0
          %v1205 = vmax.f32 %v1164, 0.0
          %v1206 = vmax.f32 %v1166, 0.0
          %v1207 = vmax.f32 %v1168, 0.0
          %v1208 = vmax.f32 %v1172, 0.0
          %v1209 = vmax.f32 %v1174, 0.0
          %v1210 = vmax.f32 %v1176, 0.0
          %v1211 = vmax.f32 %v1178, 0.0
          %v1212 = vmax.f32 %v1182, 0.0
          %v1213 = vmax.f32 %v1184, 0.0
          %v1214 = vpack.c.bf16 %v1190, %v1188
          %v1215 = vpack.c.bf16 %v1191, %v1189
          %v1216 = vpack.c.bf16 %v1194, %v1192
          %v1217 = vpack.c.bf16 %v1195, %v1193
          %v1218 = vpack.c.bf16 %v1198, %v1196
          %v1219 = vpack.c.bf16 %v1199, %v1197
          %v1220 = vpack.c.bf16 %v1202, %v1200
          %v1221 = vpack.c.bf16 %v1203, %v1201
          %v1222 = vpack.c.bf16 %v1206, %v1204
          %v1223 = vpack.c.bf16 %v1207, %v1205
          %v1224 = vpack.c.bf16 %v1210, %v1208
          %v1225 = vpack.c.bf16 %v1211, %v1209
          %v1226 = vpack.c.bf16 %v1212, %v1212
          %v1227 = vpack.c.bf16 %v1213, %v1213
          %v1228 = vld [vmem:[%s5] sm:$0xff]
          %v1229 = vld [vmem:[%s5 + $0x8] sm:$0xff]
          %v1230 = vld [vmem:[%s5 + $0x10] sm:$0xff]
          %v1231 = vld [vmem:[%s5 + $0x18] sm:$0xff]
          %v1232 = vld [vmem:[%s5 + $0x20] sm:$0xff]
          %v1233 = vld [vmem:[%s5 + $0x28] sm:$0xff]
          %v1234 = vld [vmem:[%s5 + $0x30] sm:$0xff]
          %v1235 = vld [vmem:[%s5 + $0x38] sm:$0xff]
          %v1236 = vld [vmem:[%s5 + $0x40] sm:$0xff]
          %v1237 = vld [vmem:[%s5 + $0x48] sm:$0xff]
          %v1238 = vld [vmem:[%s5 + $0x50] sm:$0xff]
          %v1239 = vld [vmem:[%s5 + $0x58] sm:$0xff]
          %v1240 = vld [vmem:[%s5 + $0x60] sm:$0xff]
          %v1241 = vld [vmem:[%s5 + $0x68] sm:$0xff]
          %v1242 = vld [vmem:[%s5 + $0x70] sm:$0xff]
          %v1243 = vld [vmem:[%s5 + $0x78] sm:$0xff]
          %v1244 = vld [vmem:[%s5 + $0x80] sm:$0xff]
          %v1245 = vld [vmem:[%s5 + $0x88] sm:$0xff]
          %v1246 = vld [vmem:[%s5 + $0x90] sm:$0xff]
          %v1247 = vld [vmem:[%s5 + $0x98] sm:$0xff]
          %v1248 = vld [vmem:[%s5 + $0xa0] sm:$0xff]
          %v1249 = vld [vmem:[%s5 + $0xa8] sm:$0xff]
          %v1250 = vld [vmem:[%s5 + $0xb0] sm:$0xff]
          %v1251 = vld [vmem:[%s5 + $0xb8] sm:$0xff]
          %v1252 = vld [vmem:[%s5 + $0xc0] sm:$0xff]
          %v1253 = vld [vmem:[%s5 + $0xc8] sm:$0xff]
          %v1254 = vld [vmem:[%s5 + $0xd0] sm:$0xff]
          %v1255 = vld [vmem:[%s5 + $0xd8] sm:$0xff]
          %v1256 = vld [vmem:[%s5 + $0xe0] sm:$0xff]
          %v1257 = vld [vmem:[%s5 + $0xe8] sm:$0xff]
          %v1258 = vld [vmem:[%s5 + $0xf0] sm:$0xff]
          %v1259 = vld [vmem:[%s5 + $0xf8] sm:$0xff]
          %v1260 = vld [vmem:[%s6] sm:$0x3]
          %v1262 = vlaneseq
          %v1263 = vshrl.u32 %v1262, 7
          %v1264 = vsub.s32 0, %v1263
          %v1265 = vrot.slane %v1260, %v1264
          %v1266 = vlaneseq
          %v1267 = vshrl.u32 %v1266, 7
          %v1268 = vsub.s32 1, %v1267
          %v1269 = vrot.slane %v1260, %v1268
          %v1304 = vunpack.c.l.b16 %v1228
          %v1305 = vunpack.c.h.b16 %v1228
          %v1306 = vunpack.c.l.b16 %v1229
          %v1307 = vunpack.c.h.b16 %v1229
          %v1308 = vunpack.c.l.b16 %v1230
          %v1309 = vunpack.c.h.b16 %v1230
          %v1310 = vunpack.c.l.b16 %v1231
          %v1311 = vunpack.c.h.b16 %v1231
          %v1312 = vunpack.c.l.b16 %v1232
          %v1313 = vunpack.c.h.b16 %v1232
          %v1314 = vunpack.c.l.b16 %v1233
          %v1315 = vunpack.c.h.b16 %v1233
          %v1316 = vunpack.c.l.b16 %v1234
          %v1317 = vunpack.c.h.b16 %v1234
          %v1318 = vunpack.c.l.b16 %v1235
          %v1319 = vunpack.c.h.b16 %v1235
          %v1320 = vunpack.c.l.b16 %v1236
          %v1321 = vunpack.c.h.b16 %v1236
          %v1322 = vunpack.c.l.b16 %v1237
          %v1323 = vunpack.c.h.b16 %v1237
          %v1324 = vunpack.c.l.b16 %v1238
          %v1325 = vunpack.c.h.b16 %v1238
          %v1326 = vunpack.c.l.b16 %v1239
          %v1327 = vunpack.c.h.b16 %v1239
          %v1328 = vunpack.c.l.b16 %v1240
          %v1329 = vunpack.c.h.b16 %v1240
          %v1330 = vunpack.c.l.b16 %v1241
          %v1331 = vunpack.c.h.b16 %v1241
          %v1332 = vunpack.c.l.b16 %v1242
          %v1333 = vunpack.c.h.b16 %v1242
          %v1334 = vunpack.c.l.b16 %v1243
          %v1335 = vunpack.c.h.b16 %v1243
          %v1336 = vunpack.c.l.b16 %v1244
          %v1337 = vunpack.c.h.b16 %v1244
          %v1338 = vunpack.c.l.b16 %v1245
          %v1339 = vunpack.c.h.b16 %v1245
          %v1340 = vunpack.c.l.b16 %v1246
          %v1341 = vunpack.c.h.b16 %v1246
          %v1342 = vunpack.c.l.b16 %v1247
          %v1343 = vunpack.c.h.b16 %v1247
          %v1344 = vunpack.c.l.b16 %v1248
          %v1345 = vunpack.c.h.b16 %v1248
          %v1346 = vunpack.c.l.b16 %v1249
          %v1347 = vunpack.c.h.b16 %v1249
          %v1348 = vunpack.c.l.b16 %v1250
          %v1349 = vunpack.c.h.b16 %v1250
          %v1350 = vunpack.c.l.b16 %v1251
          %v1351 = vunpack.c.h.b16 %v1251
          %v1352 = vunpack.c.l.b16 %v1252
          %v1353 = vunpack.c.h.b16 %v1252
          %v1354 = vunpack.c.l.b16 %v1253
          %v1355 = vunpack.c.h.b16 %v1253
          %v1356 = vunpack.c.l.b16 %v1254
          %v1357 = vunpack.c.h.b16 %v1254
          %v1358 = vunpack.c.l.b16 %v1255
          %v1359 = vunpack.c.h.b16 %v1255
          %v1360 = vunpack.c.l.b16 %v1256
          %v1361 = vunpack.c.h.b16 %v1256
          %v1362 = vunpack.c.l.b16 %v1257
          %v1363 = vunpack.c.h.b16 %v1257
          %v1364 = vunpack.c.l.b16 %v1258
          %v1365 = vunpack.c.h.b16 %v1258
          %v1366 = vunpack.c.l.b16 %v1259
          %v1367 = vunpack.c.h.b16 %v1259
          %v1368 = vpack.c.b16 %v1306, %v1304
          %v1369 = vpack.c.b16 %v1307, %v1305
          %v1370 = vpack.c.b16 %v1310, %v1308
          %v1371 = vpack.c.b16 %v1311, %v1309
          %v1372 = vpack.c.b16 %v1314, %v1312
          %v1373 = vpack.c.b16 %v1315, %v1313
          %v1374 = vpack.c.b16 %v1318, %v1316
          %v1375 = vpack.c.b16 %v1319, %v1317
          %v1376 = vpack.c.b16 %v1322, %v1320
          %v1377 = vpack.c.b16 %v1323, %v1321
          %v1378 = vpack.c.b16 %v1326, %v1324
          %v1379 = vpack.c.b16 %v1327, %v1325
          %v1380 = vpack.c.b16 %v1330, %v1328
          %v1381 = vpack.c.b16 %v1331, %v1329
          %v1382 = vpack.c.b16 %v1334, %v1332
          %v1383 = vpack.c.b16 %v1335, %v1333
          %v1384 = vpack.c.b16 %v1338, %v1336
          %v1385 = vpack.c.b16 %v1339, %v1337
          %v1386 = vpack.c.b16 %v1342, %v1340
          %v1387 = vpack.c.b16 %v1343, %v1341
          %v1388 = vpack.c.b16 %v1346, %v1344
          %v1389 = vpack.c.b16 %v1347, %v1345
          %v1390 = vpack.c.b16 %v1350, %v1348
          %v1391 = vpack.c.b16 %v1351, %v1349
          %v1392 = vpack.c.b16 %v1354, %v1352
          %v1393 = vpack.c.b16 %v1355, %v1353
          %v1394 = vpack.c.b16 %v1358, %v1356
          %v1395 = vpack.c.b16 %v1359, %v1357
          %v1396 = vpack.c.b16 %v1362, %v1360
          %v1397 = vpack.c.b16 %v1363, %v1361
          %v1398 = vpack.c.b16 %v1366, %v1364
          %v1399 = vpack.c.b16 %v1367, %v1365
          %1432 = vmatprep.subr.bf16.mxu0 %v1383
          %1433 = vmatpush1.bf16.msra.mxu0 %v1382
          %1434 = vmatprep.subr.bf16.mxu0 %v1381
          %1435 = vmatpush1.bf16.msra.mxu0 %v1380
          %1436 = vmatprep.subr.bf16.mxu0 %v1379
          %1437 = vmatpush1.bf16.msra.mxu0 %v1378
          %1438 = vmatprep.subr.bf16.mxu0 %v1377
          %1439 = vmatpush1.bf16.msra.mxu0 %v1376
          %1440 = vmatprep.subr.bf16.mxu0 %v1375
          %1441 = vmatpush1.bf16.msra.mxu0 %v1374
          %1442 = vmatprep.subr.bf16.mxu0 %v1373
          %1443 = vmatpush1.bf16.msra.mxu0 %v1372
          %1444 = vmatprep.subr.bf16.mxu0 %v1371
          %1445 = vmatpush1.bf16.msra.mxu0 %v1370
          %1446 = vmatprep.subr.bf16.mxu0 %v1369
          %1447 = vmatpush1.bf16.msra.mxu0 %v1368
          %1448 = vmatprep.subr.bf16.mxu0 %v1399
          %1449 = vmatpush2.bf16.msra.mxu0 %v1398
          %1450 = vmatprep.subr.bf16.mxu0 %v1397
          %1451 = vmatpush2.bf16.msra.mxu0 %v1396
          %1452 = vmatprep.subr.bf16.mxu0 %v1395
          %1453 = vmatpush2.bf16.msra.mxu0 %v1394
          %1454 = vmatprep.subr.bf16.mxu0 %v1393
          %1455 = vmatpush2.bf16.msra.mxu0 %v1392
          %1456 = vmatprep.subr.bf16.mxu0 %v1391
          %1457 = vmatpush2.bf16.msra.mxu0 %v1390
          %1458 = vmatprep.subr.bf16.mxu0 %v1389
          %1459 = vmatpush2.bf16.msra.mxu0 %v1388
          %1460 = vmatprep.subr.bf16.mxu0 %v1387
          %1461 = vmatpush2.bf16.msra.mxu0 %v1386
          %1462 = vmatprep.subr.bf16.mxu0 %v1385
          %1463 = vmatpush2.bf16.msra.mxu0 %v1384
          %1464 = vmatprep.mubr.bf16.mxu0 %v1215
          %1465 = vmatmul.mubr.bf16.gmra.mxu0 %v1214
          %v1466 = vpop.f32.mrf.mxu0
          %v1467 = vadd.f32 %v1265, %v1466
          %v1468 = vpop.f32.mrf.mxu0
          %v1469 = vadd.f32 %v1269, %v1468
          %v1470 = vpop.f32.mrf.mxu0
          %v1471 = vadd.f32 %v1265, %v1470
          %v1472 = vpop.f32.mrf.mxu0
          %v1473 = vadd.f32 %v1269, %v1472
          %1474 = vmatprep.mubr.bf16.mxu0 %v1217
          %1475 = vmatmul.mubr.bf16.gmra.mxu0 %v1216
          %v1476 = vpop.f32.mrf.mxu0
          %v1477 = vadd.f32 %v1265, %v1476
          %v1478 = vpop.f32.mrf.mxu0
          %v1479 = vadd.f32 %v1269, %v1478
          %v1480 = vpop.f32.mrf.mxu0
          %v1481 = vadd.f32 %v1265, %v1480
          %v1482 = vpop.f32.mrf.mxu0
          %v1483 = vadd.f32 %v1269, %v1482
          %1484 = vmatprep.mubr.bf16.mxu0 %v1219
          %1485 = vmatmul.mubr.bf16.gmra.mxu0 %v1218
          %v1486 = vpop.f32.mrf.mxu0
          %v1487 = vadd.f32 %v1265, %v1486
          %v1488 = vpop.f32.mrf.mxu0
          %v1489 = vadd.f32 %v1269, %v1488
          %v1490 = vpop.f32.mrf.mxu0
          %v1491 = vadd.f32 %v1265, %v1490
          %v1492 = vpop.f32.mrf.mxu0
          %v1493 = vadd.f32 %v1269, %v1492
          %1494 = vmatprep.mubr.bf16.mxu0 %v1221
          %1495 = vmatmul.mubr.bf16.gmra.mxu0 %v1220
          %v1496 = vpop.f32.mrf.mxu0
          %v1497 = vadd.f32 %v1265, %v1496
          %v1498 = vpop.f32.mrf.mxu0
          %v1499 = vadd.f32 %v1269, %v1498
          %v1500 = vpop.f32.mrf.mxu0
          %v1501 = vadd.f32 %v1265, %v1500
          %v1502 = vpop.f32.mrf.mxu0
          %v1503 = vadd.f32 %v1269, %v1502
          %1504 = vmatprep.mubr.bf16.mxu0 %v1223
          %1505 = vmatmul.mubr.bf16.gmra.mxu0 %v1222
          %v1506 = vpop.f32.mrf.mxu0
          %v1507 = vadd.f32 %v1265, %v1506
          %v1508 = vpop.f32.mrf.mxu0
          %v1509 = vadd.f32 %v1269, %v1508
          %v1510 = vpop.f32.mrf.mxu0
          %v1511 = vadd.f32 %v1265, %v1510
          %v1512 = vpop.f32.mrf.mxu0
          %v1513 = vadd.f32 %v1269, %v1512
          %1514 = vmatprep.mubr.bf16.mxu0 %v1225
          %1515 = vmatmul.mubr.bf16.gmra.mxu0 %v1224
          %v1516 = vpop.f32.mrf.mxu0
          %v1517 = vadd.f32 %v1265, %v1516
          %v1518 = vpop.f32.mrf.mxu0
          %v1519 = vadd.f32 %v1269, %v1518
          %v1520 = vpop.f32.mrf.mxu0
          %v1521 = vadd.f32 %v1265, %v1520
          %v1522 = vpop.f32.mrf.mxu0
          %v1523 = vadd.f32 %v1269, %v1522
          %1524 = vmatprep.mubr.bf16.mxu0 %v1227
          %1525 = vmatmul.mubr.bf16.gmra.mxu0 %v1226
          %v1526 = vpop.f32.mrf.mxu0
          %v1527 = vadd.f32 %v1265, %v1526
          %v1528 = vpop.f32.mrf.mxu0
          %v1529 = vadd.f32 %v1269, %v1528
          %v1530 = vpop.f32.mrf.mxu0
          %v1531 = vpop.f32.mrf.mxu0
          %1532 = vdwg.mxu0
          %v1533 = vmax.f32 %v1467, 0.0
          %v1534 = vmax.f32 %v1469, 0.0
          %v1535 = vmax.f32 %v1471, 0.0
          %v1536 = vmax.f32 %v1473, 0.0
          %v1537 = vmax.f32 %v1477, 0.0
          %v1538 = vmax.f32 %v1479, 0.0
          %v1539 = vmax.f32 %v1481, 0.0
          %v1540 = vmax.f32 %v1483, 0.0
          %v1541 = vmax.f32 %v1487, 0.0
          %v1542 = vmax.f32 %v1489, 0.0
          %v1543 = vmax.f32 %v1491, 0.0
          %v1544 = vmax.f32 %v1493, 0.0
          %v1545 = vmax.f32 %v1497, 0.0
          %v1546 = vmax.f32 %v1499, 0.0
          %v1547 = vmax.f32 %v1501, 0.0
          %v1548 = vmax.f32 %v1503, 0.0
          %v1549 = vmax.f32 %v1507, 0.0
          %v1550 = vmax.f32 %v1509, 0.0
          %v1551 = vmax.f32 %v1511, 0.0
          %v1552 = vmax.f32 %v1513, 0.0
          %v1553 = vmax.f32 %v1517, 0.0
          %v1554 = vmax.f32 %v1519, 0.0
          %v1555 = vmax.f32 %v1521, 0.0
          %v1556 = vmax.f32 %v1523, 0.0
          %v1557 = vmax.f32 %v1527, 0.0
          %v1558 = vmax.f32 %v1529, 0.0
          %1559 = vst [vmem:[%s414] sm:$0xff] %v1533
          %1560 = vst [vmem:[%s414 + $0x8] sm:$0xff] %v1534
          %1561 = vst [vmem:[%s414 + $0x10] sm:$0xff] %v1535
          %1562 = vst [vmem:[%s414 + $0x18] sm:$0xff] %v1536
          %1563 = vst [vmem:[%s414 + $0x20] sm:$0xff] %v1537
          %1564 = vst [vmem:[%s414 + $0x28] sm:$0xff] %v1538
          %1565 = vst [vmem:[%s414 + $0x30] sm:$0xff] %v1539
          %1566 = vst [vmem:[%s414 + $0x38] sm:$0xff] %v1540
          %1567 = vst [vmem:[%s414 + $0x40] sm:$0xff] %v1541
          %1568 = vst [vmem:[%s414 + $0x48] sm:$0xff] %v1542
          %1569 = vst [vmem:[%s414 + $0x50] sm:$0xff] %v1543
          %1570 = vst [vmem:[%s414 + $0x58] sm:$0xff] %v1544
          %1571 = vst [vmem:[%s414 + $0x60] sm:$0xff] %v1545
          %1572 = vst [vmem:[%s414 + $0x68] sm:$0xff] %v1546
          %1573 = vst [vmem:[%s414 + $0x70] sm:$0xff] %v1547
          %1574 = vst [vmem:[%s414 + $0x78] sm:$0xff] %v1548
          %1575 = vst [vmem:[%s414 + $0x80] sm:$0xff] %v1549
          %1576 = vst [vmem:[%s414 + $0x88] sm:$0xff] %v1550
          %1577 = vst [vmem:[%s414 + $0x90] sm:$0xff] %v1551
          %1578 = vst [vmem:[%s414 + $0x98] sm:$0xff] %v1552
          %1579 = vst [vmem:[%s414 + $0xa0] sm:$0xff] %v1553
          %1580 = vst [vmem:[%s414 + $0xa8] sm:$0xff] %v1554
          %1581 = vst [vmem:[%s414 + $0xb0] sm:$0xff] %v1555
          %1582 = vst [vmem:[%s414 + $0xb8] sm:$0xff] %v1556
          %1583 = vst [vmem:[%s414 + $0xc0] sm:$0xff] %v1557
          %1584 = vst [vmem:[%s414 + $0xc8] sm:$0xff] %v1558
        $region97: #{nin_forward.10} parent=84 // pred_fallthru
          _
        %s1585 = smul.u32 13, %s22
        %p1586 = scmp.lt.s32.totalorder %s1585, 12
        %s1587 = scalar_select %p1586, %s1585, 12
        %s1588 = smul.addr %s1587, 2
        %s1589 = smul.addr %s1588, 8
        %s1590 = scalar_lea.vmem %s7, %s1589
        // Predicated region
        $region98: #{nin_forward.10} parent=84 // pred_check
          %p1591 = pneg %p207
        $region99: #{nin_forward.10} parent=84 // pred_check_branch
          %1593 = sbr.rel (%p1591) target = $region101
        $region100: #{nin_forward.10} parent=84 // pred_region
          %s1594 = smul.u32 13, %s22
        $region101: #{nin_forward.10} parent=84 // pred_fallthru
          _
        // Predicated region
        $region102: #{nin_forward.10} parent=84 // pred_check
          %p1595 = pneg %p207
        $region103: #{nin_forward.10} parent=84 // pred_check_branch
          %1597 = sbr.rel (%p1595) target = $region105
        $region104: #{nin_forward.10} parent=84 // pred_region
          %s1598 = smul.u32 13, %s22
          %p1599 = scmp.lt.s32.totalorder %s1598, 12
          %s1600 = scalar_select %p1599, %s1598, 12
          %s1601 = smul.addr %s1600, 2
          %s1602 = smul.addr %s1601, 8
          %s1603 = scalar_lea.vmem %s7, %s1602
        $region105: #{nin_forward.10} parent=84 // pred_fallthru
          _
      $region85: #{nin_forward.10} parent=5 // pred_fallthru
        _
      %p1604 = scmp.le.s32.totalorder 2, %s13
      // Predicated region
      $region106: #{nin_forward.10} parent=5 // pred_check
        %p1605 = pneg %p1604
      $region107: #{nin_forward.10} parent=5 // pred_check_branch
        %1607 = sbr.rel (%p1605) target = $region109
      $region108: #{nin_forward.10} parent=5 // pred_region
        %s1608 = ssub.s32 %s13, 2
      $region109: #{nin_forward.10} parent=5 // pred_fallthru
        _
    $region6: #{nin_forward.10} parent=1 // loop_footer
      %s17 = sadd.s32 1, %s13
    $region7: #{nin_forward.10} parent=1 // loop_footer_branch
      %12 = sbr.rel target = $region3
    $region8: #{nin_forward.10} parent=1 // loop_exit
      _

// kernel: nin_forward.11
$region0: #{nin_forward.11}
  #allocation0 [shape = 'u32[]', space=smem, size = 0x4, offset = 0x4, fixed_abs, tag = 'smem constant byte address 0x4 - core index']
  #allocation1 [shape = 'u32[144,128]{1,0:T(1,128)}', space=vmem, size = 0x12000, scoped, tag = 'internal scratch']
  %s0 = inlined_call_operand.vmem [shape: f32[18,256], index: 0, kind: input, shape index: {}]
  %s1 = inlined_call_operand.vmem [shape: f32[18,256], index: 1, kind: input, shape index: {}]
  %s2 = inlined_call_operand.vmem [shape: f32[18,256], index: 2, kind: input, shape index: {}]
  %s3 = inlined_call_operand.vmem [shape: f32[18,256], index: 3, kind: input, shape index: {}]
  %s4 = inlined_call_operand.vmem [shape: f32[18,256], index: 4, kind: input, shape index: {}]
  %s5 = inlined_call_operand.vmem [shape: f32[18,256], index: 5, kind: input, shape index: {}]
  %s6 = inlined_call_operand.vmem [shape: f32[18,256], index: 6, kind: input, shape index: {}]
  %s7 = inlined_call_operand.vmem [shape: f32[18,256], index: 7, kind: input, shape index: {}]
  %s8 = inlined_call_operand.vmem [shape: f32[18,256], index: 8, kind: input, shape index: {}]
  %s9 = inlined_call_operand.vmem [shape: f32[18,256], index: 9, kind: output, shape index: {}]
  %s10 = sld [smem:[#allocation0]]
  $region46: #{nin_forward.11} parent=0
    _
  %s12 = ssub.s32 1, %s10
  %s13 = scalar_select 0, %s12, %s10
  // Predicated region
  $region2: #{nin_forward.11} parent=0 // pred_check
    _
  $region3: #{nin_forward.11} parent=0 // pred_check_branch
    %15 = sbr.rel (0) target = $region5
  $region4: #{nin_forward.11} parent=0 // pred_region
    _
  $region5: #{nin_forward.11} parent=0 // pred_fallthru
    _
  // Predicated region
  $region6: #{nin_forward.11} parent=0 // pred_check
    _
  $region7: #{nin_forward.11} parent=0 // pred_check_branch
    %17 = sbr.rel (0) target = $region9
  $region8: #{nin_forward.11} parent=0 // pred_region
    _
  $region9: #{nin_forward.11} parent=0 // pred_fallthru
    _
  // Predicated region
  $region10: #{nin_forward.11} parent=0 // pred_check
    _
  $region11: #{nin_forward.11} parent=0 // pred_check_branch
    %19 = sbr.rel (0) target = $region13
  $region12: #{nin_forward.11} parent=0 // pred_region
    _
  $region13: #{nin_forward.11} parent=0 // pred_fallthru
    _
  // Predicated region
  $region14: #{nin_forward.11} parent=0 // pred_check
    _
  $region15: #{nin_forward.11} parent=0 // pred_check_branch
    %21 = sbr.rel (0) target = $region17
  $region16: #{nin_forward.11} parent=0 // pred_region
    _
  $region17: #{nin_forward.11} parent=0 // pred_fallthru
    _
  // Predicated region
  $region18: #{nin_forward.11} parent=0 // pred_check
    _
  $region19: #{nin_forward.11} parent=0 // pred_check_branch
    %23 = sbr.rel (0) target = $region21
  $region20: #{nin_forward.11} parent=0 // pred_region
    _
  $region21: #{nin_forward.11} parent=0 // pred_fallthru
    _
  // Predicated region
  $region22: #{nin_forward.11} parent=0 // pred_check
    _
  $region23: #{nin_forward.11} parent=0 // pred_check_branch
    %25 = sbr.rel (0) target = $region25
  $region24: #{nin_forward.11} parent=0 // pred_region
    _
  $region25: #{nin_forward.11} parent=0 // pred_fallthru
    _
  // Predicated region
  $region26: #{nin_forward.11} parent=0 // pred_check
    _
  $region27: #{nin_forward.11} parent=0 // pred_check_branch
    %27 = sbr.rel (0) target = $region29
  $region28: #{nin_forward.11} parent=0 // pred_region
    _
  $region29: #{nin_forward.11} parent=0 // pred_fallthru
    _
  // Predicated region
  $region30: #{nin_forward.11} parent=0 // pred_check
    _
  $region31: #{nin_forward.11} parent=0 // pred_check_branch
    %29 = sbr.rel (0) target = $region33
  $region32: #{nin_forward.11} parent=0 // pred_region
    _
  $region33: #{nin_forward.11} parent=0 // pred_fallthru
    _
  // Predicated region
  $region34: #{nin_forward.11} parent=0 // pred_check
    _
  $region35: #{nin_forward.11} parent=0 // pred_check_branch
    %31 = sbr.rel (0) target = $region37
  $region36: #{nin_forward.11} parent=0 // pred_region
    _
  $region37: #{nin_forward.11} parent=0 // pred_fallthru
    _
  %v32 = vld [vmem:[%s0] sm:$0xff]
  %v33 = vld [vmem:[%s0 + $0x8] sm:$0xff]
  %v34 = vld [vmem:[%s0 + $0x10] sm:$0xff]
  %v35 = vld [vmem:[%s0 + $0x18] sm:$0xff]
  %v36 = vld [vmem:[%s0 + $0x20] sm:$0x3]
  %v37 = vld [vmem:[%s0 + $0x28] sm:$0x3]
  %v38 = vld [vmem:[%s1] sm:$0xff]
  %v39 = vld [vmem:[%s1 + $0x8] sm:$0xff]
  %v40 = vld [vmem:[%s1 + $0x10] sm:$0xff]
  %v41 = vld [vmem:[%s1 + $0x18] sm:$0xff]
  %v42 = vld [vmem:[%s1 + $0x20] sm:$0x3]
  %v43 = vld [vmem:[%s1 + $0x28] sm:$0x3]
  %v44 = vmax.f32 %v32, %v38
  %v45 = vmax.f32 %v33, %v39
  %v46 = vmax.f32 %v34, %v40
  %v47 = vmax.f32 %v35, %v41
  %v48 = vmax.f32 %v36, %v42
  %v49 = vmax.f32 %v37, %v43
  %v50 = vld [vmem:[%s2] sm:$0xff]
  %v51 = vld [vmem:[%s2 + $0x8] sm:$0xff]
  %v52 = vld [vmem:[%s2 + $0x10] sm:$0xff]
  %v53 = vld [vmem:[%s2 + $0x18] sm:$0xff]
  %v54 = vld [vmem:[%s2 + $0x20] sm:$0x3]
  %v55 = vld [vmem:[%s2 + $0x28] sm:$0x3]
  %v56 = vmax.f32 %v44, %v50
  %v57 = vmax.f32 %v45, %v51
  %v58 = vmax.f32 %v46, %v52
  %v59 = vmax.f32 %v47, %v53
  %v60 = vmax.f32 %v48, %v54
  %v61 = vmax.f32 %v49, %v55
  %v62 = vld [vmem:[%s3] sm:$0xff]
  %v63 = vld [vmem:[%s3 + $0x8] sm:$0xff]
  %v64 = vld [vmem:[%s3 + $0x10] sm:$0xff]
  %v65 = vld [vmem:[%s3 + $0x18] sm:$0xff]
  %v66 = vld [vmem:[%s3 + $0x20] sm:$0x3]
  %v67 = vld [vmem:[%s3 + $0x28] sm:$0x3]
  %v68 = vmax.f32 %v56, %v62
  %v69 = vmax.f32 %v57, %v63
  %v70 = vmax.f32 %v58, %v64
  %v71 = vmax.f32 %v59, %v65
  %v72 = vmax.f32 %v60, %v66
  %v73 = vmax.f32 %v61, %v67
  %v74 = vld [vmem:[%s4] sm:$0xff]
  %v75 = vld [vmem:[%s4 + $0x8] sm:$0xff]
  %v76 = vld [vmem:[%s4 + $0x10] sm:$0xff]
  %v77 = vld [vmem:[%s4 + $0x18] sm:$0xff]
  %v78 = vld [vmem:[%s4 + $0x20] sm:$0x3]
  %v79 = vld [vmem:[%s4 + $0x28] sm:$0x3]
  %v80 = vmax.f32 %v68, %v74
  %v81 = vmax.f32 %v69, %v75
  %v82 = vmax.f32 %v70, %v76
  %v83 = vmax.f32 %v71, %v77
  %v84 = vmax.f32 %v72, %v78
  %v85 = vmax.f32 %v73, %v79
  %v86 = vld [vmem:[%s5] sm:$0xff]
  %v87 = vld [vmem:[%s5 + $0x8] sm:$0xff]
  %v88 = vld [vmem:[%s5 + $0x10] sm:$0xff]
  %v89 = vld [vmem:[%s5 + $0x18] sm:$0xff]
  %v90 = vld [vmem:[%s5 + $0x20] sm:$0x3]
  %v91 = vld [vmem:[%s5 + $0x28] sm:$0x3]
  %v92 = vmax.f32 %v80, %v86
  %v93 = vmax.f32 %v81, %v87
  %v94 = vmax.f32 %v82, %v88
  %v95 = vmax.f32 %v83, %v89
  %v96 = vmax.f32 %v84, %v90
  %v97 = vmax.f32 %v85, %v91
  %v98 = vld [vmem:[%s6] sm:$0xff]
  %v99 = vld [vmem:[%s6 + $0x8] sm:$0xff]
  %v100 = vld [vmem:[%s6 + $0x10] sm:$0xff]
  %v101 = vld [vmem:[%s6 + $0x18] sm:$0xff]
  %v102 = vld [vmem:[%s6 + $0x20] sm:$0x3]
  %v103 = vld [vmem:[%s6 + $0x28] sm:$0x3]
  %v104 = vmax.f32 %v92, %v98
  %v105 = vmax.f32 %v93, %v99
  %v106 = vmax.f32 %v94, %v100
  %v107 = vmax.f32 %v95, %v101
  %v108 = vmax.f32 %v96, %v102
  %v109 = vmax.f32 %v97, %v103
  %v110 = vld [vmem:[%s7] sm:$0xff]
  %v111 = vld [vmem:[%s7 + $0x8] sm:$0xff]
  %v112 = vld [vmem:[%s7 + $0x10] sm:$0xff]
  %v113 = vld [vmem:[%s7 + $0x18] sm:$0xff]
  %v114 = vld [vmem:[%s7 + $0x20] sm:$0x3]
  %v115 = vld [vmem:[%s7 + $0x28] sm:$0x3]
  %v116 = vmax.f32 %v104, %v110
  %v117 = vmax.f32 %v105, %v111
  %v118 = vmax.f32 %v106, %v112
  %v119 = vmax.f32 %v107, %v113
  %v120 = vmax.f32 %v108, %v114
  %v121 = vmax.f32 %v109, %v115
  %v122 = vld [vmem:[%s8] sm:$0xff]
  %v123 = vld [vmem:[%s8 + $0x8] sm:$0xff]
  %v124 = vld [vmem:[%s8 + $0x10] sm:$0xff]
  %v125 = vld [vmem:[%s8 + $0x18] sm:$0xff]
  %v126 = vld [vmem:[%s8 + $0x20] sm:$0x3]
  %v127 = vld [vmem:[%s8 + $0x28] sm:$0x3]
  %v128 = vmax.f32 %v116, %v122
  %v129 = vmax.f32 %v117, %v123
  %v130 = vmax.f32 %v118, %v124
  %v131 = vmax.f32 %v119, %v125
  %v132 = vmax.f32 %v120, %v126
  %v133 = vmax.f32 %v121, %v127
  %134 = vst [vmem:[%s9] sm:$0xff] %v128
  %135 = vst [vmem:[%s9 + $0x8] sm:$0xff] %v129
  %136 = vst [vmem:[%s9 + $0x10] sm:$0xff] %v130
  %137 = vst [vmem:[%s9 + $0x18] sm:$0xff] %v131
  %138 = vst [vmem:[%s9 + $0x20] sm:$0x3] %v132
  %139 = vst [vmem:[%s9 + $0x28] sm:$0x3] %v133
  // Predicated region
  $region38: #{nin_forward.11} parent=0 // pred_check
    _
  $region39: #{nin_forward.11} parent=0 // pred_check_branch
    %141 = sbr.rel (0) target = $region41
  $region40: #{nin_forward.11} parent=0 // pred_region
    _
  $region41: #{nin_forward.11} parent=0 // pred_fallthru
    _
  // Predicated region
  $region42: #{nin_forward.11} parent=0 // pred_check
    _
  $region43: #{nin_forward.11} parent=0 // pred_check_branch
    %143 = sbr.rel (0) target = $region45
  $region44: #{nin_forward.11} parent=0 // pred_region
    _
  $region45: #{nin_forward.11} parent=0 // pred_fallthru
    _

// kernel: nin_forward.13
$region0: #{nin_forward.13}
  #allocation0 [shape = 'u32[]', space=smem, size = 0x4, offset = 0x4, fixed_abs, tag = 'smem constant byte address 0x4 - core index']
  #allocation1 [shape = 'u32[144,128]{1,0:T(1,128)}', space=vmem, size = 0x12000, scoped, tag = 'internal scratch']
  %s0 = inlined_call_operand.vmem [shape: f32[2,384], index: 0, kind: input, shape index: {}]
  %s1 = inlined_call_operand.vmem [shape: f32[2,384], index: 1, kind: input, shape index: {}]
  %s2 = inlined_call_operand.vmem [shape: f32[2,384], index: 2, kind: input, shape index: {}]
  %s3 = inlined_call_operand.vmem [shape: f32[2,384], index: 3, kind: input, shape index: {}]
  %s4 = inlined_call_operand.vmem [shape: f32[2,384], index: 4, kind: input, shape index: {}]
  %s5 = inlined_call_operand.vmem [shape: f32[2,384], index: 5, kind: input, shape index: {}]
  %s6 = inlined_call_operand.vmem [shape: f32[2,384], index: 6, kind: input, shape index: {}]
  %s7 = inlined_call_operand.vmem [shape: f32[2,384], index: 7, kind: input, shape index: {}]
  %s8 = inlined_call_operand.vmem [shape: f32[2,384], index: 8, kind: input, shape index: {}]
  %s9 = inlined_call_operand.vmem [shape: f32[2,384], index: 9, kind: output, shape index: {}]
  %s10 = sld [smem:[#allocation0]]
  $region46: #{nin_forward.13} parent=0
    _
  %s12 = ssub.s32 1, %s10
  %s13 = scalar_select 0, %s12, %s10
  // Predicated region
  $region2: #{nin_forward.13} parent=0 // pred_check
    _
  $region3: #{nin_forward.13} parent=0 // pred_check_branch
    %15 = sbr.rel (0) target = $region5
  $region4: #{nin_forward.13} parent=0 // pred_region
    _
  $region5: #{nin_forward.13} parent=0 // pred_fallthru
    _
  // Predicated region
  $region6: #{nin_forward.13} parent=0 // pred_check
    _
  $region7: #{nin_forward.13} parent=0 // pred_check_branch
    %17 = sbr.rel (0) target = $region9
  $region8: #{nin_forward.13} parent=0 // pred_region
    _
  $region9: #{nin_forward.13} parent=0 // pred_fallthru
    _
  // Predicated region
  $region10: #{nin_forward.13} parent=0 // pred_check
    _
  $region11: #{nin_forward.13} parent=0 // pred_check_branch
    %19 = sbr.rel (0) target = $region13
  $region12: #{nin_forward.13} parent=0 // pred_region
    _
  $region13: #{nin_forward.13} parent=0 // pred_fallthru
    _
  // Predicated region
  $region14: #{nin_forward.13} parent=0 // pred_check
    _
  $region15: #{nin_forward.13} parent=0 // pred_check_branch
    %21 = sbr.rel (0) target = $region17
  $region16: #{nin_forward.13} parent=0 // pred_region
    _
  $region17: #{nin_forward.13} parent=0 // pred_fallthru
    _
  // Predicated region
  $region18: #{nin_forward.13} parent=0 // pred_check
    _
  $region19: #{nin_forward.13} parent=0 // pred_check_branch
    %23 = sbr.rel (0) target = $region21
  $region20: #{nin_forward.13} parent=0 // pred_region
    _
  $region21: #{nin_forward.13} parent=0 // pred_fallthru
    _
  // Predicated region
  $region22: #{nin_forward.13} parent=0 // pred_check
    _
  $region23: #{nin_forward.13} parent=0 // pred_check_branch
    %25 = sbr.rel (0) target = $region25
  $region24: #{nin_forward.13} parent=0 // pred_region
    _
  $region25: #{nin_forward.13} parent=0 // pred_fallthru
    _
  // Predicated region
  $region26: #{nin_forward.13} parent=0 // pred_check
    _
  $region27: #{nin_forward.13} parent=0 // pred_check_branch
    %27 = sbr.rel (0) target = $region29
  $region28: #{nin_forward.13} parent=0 // pred_region
    _
  $region29: #{nin_forward.13} parent=0 // pred_fallthru
    _
  // Predicated region
  $region30: #{nin_forward.13} parent=0 // pred_check
    _
  $region31: #{nin_forward.13} parent=0 // pred_check_branch
    %29 = sbr.rel (0) target = $region33
  $region32: #{nin_forward.13} parent=0 // pred_region
    _
  $region33: #{nin_forward.13} parent=0 // pred_fallthru
    _
  // Predicated region
  $region34: #{nin_forward.13} parent=0 // pred_check
    _
  $region35: #{nin_forward.13} parent=0 // pred_check_branch
    %31 = sbr.rel (0) target = $region37
  $region36: #{nin_forward.13} parent=0 // pred_region
    _
  $region37: #{nin_forward.13} parent=0 // pred_fallthru
    _
  %v32 = vld [vmem:[%s0] sm:$0x3f]
  %v33 = vld [vmem:[%s1] sm:$0x3f]
  %v34 = vmax.f32 %v32, %v33
  %v35 = vld [vmem:[%s2] sm:$0x3f]
  %v36 = vmax.f32 %v34, %v35
  %v37 = vld [vmem:[%s3] sm:$0x3f]
  %v38 = vmax.f32 %v36, %v37
  %v39 = vld [vmem:[%s4] sm:$0x3f]
  %v40 = vmax.f32 %v38, %v39
  %v41 = vld [vmem:[%s5] sm:$0x3f]
  %v42 = vmax.f32 %v40, %v41
  %v43 = vld [vmem:[%s6] sm:$0x3f]
  %v44 = vmax.f32 %v42, %v43
  %v45 = vld [vmem:[%s7] sm:$0x3f]
  %v46 = vmax.f32 %v44, %v45
  %v47 = vld [vmem:[%s8] sm:$0x3f]
  %v48 = vmax.f32 %v46, %v47
  %49 = vst [vmem:[%s9] sm:$0x3f] %v48
  // Predicated region
  $region38: #{nin_forward.13} parent=0 // pred_check
    _
  $region39: #{nin_forward.13} parent=0 // pred_check_branch
    %51 = sbr.rel (0) target = $region41
  $region40: #{nin_forward.13} parent=0 // pred_region
    _
  $region41: #{nin_forward.13} parent=0 // pred_fallthru
    _
  // Predicated region
  $region42: #{nin_forward.13} parent=0 // pred_check
    _
  $region43: #{nin_forward.13} parent=0 // pred_check_branch
    %53 = sbr.rel (0) target = $region45
  $region44: #{nin_forward.13} parent=0 // pred_region
    _
  $region45: #{nin_forward.13} parent=0 // pred_fallthru
    _

// kernel: nin_forward.12
$region0: #{nin_forward.12}
  #allocation0 [shape = 'u32[]', space=smem, size = 0x4, offset = 0x4, fixed_abs, tag = 'smem constant byte address 0x4 - core index']
  #allocation1 [shape = 'u32[144,128]{1,0:T(1,128)}', space=vmem, size = 0x12000, scoped, tag = 'internal scratch']
  %s0 = inlined_call_operand.vmem [shape: bf16[24,2304], index: 0, kind: input, shape index: {}]
  %s1 = inlined_call_operand.vmem [shape: bf16[2304,384], index: 1, kind: input, shape index: {}]
  %s2 = inlined_call_operand.vmem [shape: f32[1,384], index: 2, kind: input, shape index: {}]
  %s3 = inlined_call_operand.vmem [shape: bf16[384,384], index: 3, kind: input, shape index: {}]
  %s4 = inlined_call_operand.vmem [shape: f32[1,384], index: 4, kind: input, shape index: {}]
  %s5 = inlined_call_operand.vmem [shape: bf16[384,384], index: 5, kind: input, shape index: {}]
  %s6 = inlined_call_operand.vmem [shape: f32[1,384], index: 6, kind: input, shape index: {}]
  %s7 = inlined_call_operand.vmem [shape: f32[24,384], index: 7, kind: output, shape index: {}]
  %s8 = sld [smem:[#allocation0]]
  $region107: #{nin_forward.12} parent=0
    _
  %s10 = ssub.s32 1, %s8
  %s11 = scalar_select 0, %s10, %s8
  $region1: #{nin_forward.12} parent=0
    #allocation2 [shape = 'u8[24576]{0}', space=vmem, size = 0x6000, scoped, tag = 'input window, operand 0']
    loop: start=0, step=1, limit=11
    $region2: #{nin_forward.12} parent=1 // loop_pre_header
      _
    $region3: #{nin_forward.12} parent=1 // loop_header
      %s13 = sphi 0, %s17
      %p14 = scmp.ge.s32.totalorder %s13, 11
      %s20 = sphi 0, %s32
      %s21 = sphi 0, %s28
      %s22 = sphi 0, %s20
      %s23 = sphi 0, %s21
      %s24 = sphi 0, %s22
      %s25 = sphi 0, %s23
      %s37 = sphi 0, %s39
      %s40 = sphi 0, %s37
      %s41 = sphi 0, %s40
      %s57 = sphi 0, %s41
      %s63 = sphi 0, %s65
      %s66 = sphi 0, %s63
      %s67 = sphi 0, %s66
      %s83 = sphi 0, %s67
      %s87 = sphi 0, %s87
      %s89 = sphi 0, %s87
      %s90 = sphi 0, %s89
      %s104 = sphi 0, %s90
      %s108 = sphi 0, %s108
      %s110 = sphi 0, %s108
      %s111 = sphi 0, %s110
      %s125 = sphi 0, %s111
      %s129 = sphi 0, %s129
      %s131 = sphi 0, %s129
      %s132 = sphi 0, %s131
      %s146 = sphi 0, %s132
      %s150 = sphi 0, %s150
      %s152 = sphi 0, %s150
      %s153 = sphi 0, %s152
      %s167 = sphi 0, %s153
      %s171 = sphi 0, %s171
      %s173 = sphi 0, %s171
      %s174 = sphi 0, %s173
      %s188 = sphi 0, %s174
      %s194 = sphi 0, %s196
      %s197 = sphi 0, %s194
      %s198 = sphi 0, %s197
      %s214 = sphi 0, %s198
    $region4: #{nin_forward.12} parent=1 // loop_header_branch
      %16 = sbr.rel (%p14) target = $region8
    $region5: #{nin_forward.12} parent=1 // loop_body
      %s18 = ssub.s32 %s13, 1
      %s19 = ssub.s32 %s13, 2
      %s26 = sadd.s32 1, %s21
      %p27 = scmp.ge.s32.totalorder %s26, 9
      %s28 = scalar_select %p27, 0, %s26
      %s29 = sadd.s32 1, %s20
      %s30 = scalar_select %p27, %s29, %s20
      %p31 = scmp.ge.s32.totalorder %s30, 1
      %s32 = scalar_select %p31, 0, %s30
      %s33 = ssub.s32 %s20, %s32
      %s34 = ssub.s32 %s21, %s28
      %s35 = sor.u32 %s33, %s34
      %p36 = scmp.eq.s32.totalorder %s35, 0
      %s38 = sadd.s32 %s37, 1
      %s39 = scalar_select %p36, %s37, %s38
      %p42 = pneg %p36
      %p43 = scmp.eq.s32.totalorder %s13, 8
      %p44 = por %p42, %p43
      %p45 = scmp.ne.s32.totalorder %s37, %s40
      %p46 = scmp.eq.s32.totalorder %s13, 0
      %p47 = por %p45, %p46
      %p48 = scmp.ne.s32.totalorder %s37, %s40
      %p49 = scmp.eq.s32.totalorder %s18, 8
      %p50 = por %p48, %p49
      %p51 = scmp.ne.s32.totalorder %s40, %s41
      %p52 = scmp.eq.s32.totalorder %s18, 0
      %p53 = por %p51, %p52
      %p54 = scmp.ne.s32.totalorder %s40, %s41
      %p55 = scmp.eq.s32.totalorder %s19, 8
      %p56 = por %p54, %p55
      %p58 = scmp.ne.s32.totalorder %s41, %s57
      %p59 = scmp.eq.s32.totalorder %s19, 0
      %p60 = por %p58, %p59
      %s61 = ssub.s32 %s21, %s28
      %p62 = scmp.eq.s32.totalorder %s61, 0
      %s64 = sadd.s32 %s63, 1
      %s65 = scalar_select %p62, %s63, %s64
      %p68 = pneg %p62
      %p69 = scmp.eq.s32.totalorder %s13, 8
      %p70 = por %p68, %p69
      %p71 = scmp.ne.s32.totalorder %s63, %s66
      %p72 = scmp.eq.s32.totalorder %s13, 0
      %p73 = por %p71, %p72
      %p74 = scmp.ne.s32.totalorder %s63, %s66
      %p75 = scmp.eq.s32.totalorder %s18, 8
      %p76 = por %p74, %p75
      %p77 = scmp.ne.s32.totalorder %s66, %s67
      %p78 = scmp.eq.s32.totalorder %s18, 0
      %p79 = por %p77, %p78
      %p80 = scmp.ne.s32.totalorder %s66, %s67
      %p81 = scmp.eq.s32.totalorder %s19, 8
      %p82 = por %p80, %p81
      %p84 = scmp.ne.s32.totalorder %s67, %s83
      %p85 = scmp.eq.s32.totalorder %s19, 0
      %p86 = por %p84, %p85
      %s88 = sadd.s32 %s87, 1
      %p91 = scmp.eq.s32.totalorder %s13, 8
      %p92 = scmp.ne.s32.totalorder %s87, %s89
      %p93 = scmp.eq.s32.totalorder %s13, 0
      %p94 = por %p92, %p93
      %p95 = scmp.ne.s32.totalorder %s87, %s89
      %p96 = scmp.eq.s32.totalorder %s18, 8
      %p97 = por %p95, %p96
      %p98 = scmp.ne.s32.totalorder %s89, %s90
      %p99 = scmp.eq.s32.totalorder %s18, 0
      %p100 = por %p98, %p99
      %p101 = scmp.ne.s32.totalorder %s89, %s90
      %p102 = scmp.eq.s32.totalorder %s19, 8
      %p103 = por %p101, %p102
      %p105 = scmp.ne.s32.totalorder %s90, %s104
      %p106 = scmp.eq.s32.totalorder %s19, 0
      %p107 = por %p105, %p106
      %s109 = sadd.s32 %s108, 1
      %p112 = scmp.eq.s32.totalorder %s13, 8
      %p113 = scmp.ne.s32.totalorder %s108, %s110
      %p114 = scmp.eq.s32.totalorder %s13, 0
      %p115 = por %p113, %p114
      %p116 = scmp.ne.s32.totalorder %s108, %s110
      %p117 = scmp.eq.s32.totalorder %s18, 8
      %p118 = por %p116, %p117
      %p119 = scmp.ne.s32.totalorder %s110, %s111
      %p120 = scmp.eq.s32.totalorder %s18, 0
      %p121 = por %p119, %p120
      %p122 = scmp.ne.s32.totalorder %s110, %s111
      %p123 = scmp.eq.s32.totalorder %s19, 8
      %p124 = por %p122, %p123
      %p126 = scmp.ne.s32.totalorder %s111, %s125
      %p127 = scmp.eq.s32.totalorder %s19, 0
      %p128 = por %p126, %p127
      %s130 = sadd.s32 %s129, 1
      %p133 = scmp.eq.s32.totalorder %s13, 8
      %p134 = scmp.ne.s32.totalorder %s129, %s131
      %p135 = scmp.eq.s32.totalorder %s13, 0
      %p136 = por %p134, %p135
      %p137 = scmp.ne.s32.totalorder %s129, %s131
      %p138 = scmp.eq.s32.totalorder %s18, 8
      %p139 = por %p137, %p138
      %p140 = scmp.ne.s32.totalorder %s131, %s132
      %p141 = scmp.eq.s32.totalorder %s18, 0
      %p142 = por %p140, %p141
      %p143 = scmp.ne.s32.totalorder %s131, %s132
      %p144 = scmp.eq.s32.totalorder %s19, 8
      %p145 = por %p143, %p144
      %p147 = scmp.ne.s32.totalorder %s132, %s146
      %p148 = scmp.eq.s32.totalorder %s19, 0
      %p149 = por %p147, %p148
      %s151 = sadd.s32 %s150, 1
      %p154 = scmp.eq.s32.totalorder %s13, 8
      %p155 = scmp.ne.s32.totalorder %s150, %s152
      %p156 = scmp.eq.s32.totalorder %s13, 0
      %p157 = por %p155, %p156
      %p158 = scmp.ne.s32.totalorder %s150, %s152
      %p159 = scmp.eq.s32.totalorder %s18, 8
      %p160 = por %p158, %p159
      %p161 = scmp.ne.s32.totalorder %s152, %s153
      %p162 = scmp.eq.s32.totalorder %s18, 0
      %p163 = por %p161, %p162
      %p164 = scmp.ne.s32.totalorder %s152, %s153
      %p165 = scmp.eq.s32.totalorder %s19, 8
      %p166 = por %p164, %p165
      %p168 = scmp.ne.s32.totalorder %s153, %s167
      %p169 = scmp.eq.s32.totalorder %s19, 0
      %p170 = por %p168, %p169
      %s172 = sadd.s32 %s171, 1
      %p175 = scmp.eq.s32.totalorder %s13, 8
      %p176 = scmp.ne.s32.totalorder %s171, %s173
      %p177 = scmp.eq.s32.totalorder %s13, 0
      %p178 = por %p176, %p177
      %p179 = scmp.ne.s32.totalorder %s171, %s173
      %p180 = scmp.eq.s32.totalorder %s18, 8
      %p181 = por %p179, %p180
      %p182 = scmp.ne.s32.totalorder %s173, %s174
      %p183 = scmp.eq.s32.totalorder %s18, 0
      %p184 = por %p182, %p183
      %p185 = scmp.ne.s32.totalorder %s173, %s174
      %p186 = scmp.eq.s32.totalorder %s19, 8
      %p187 = por %p185, %p186
      %p189 = scmp.ne.s32.totalorder %s174, %s188
      %p190 = scmp.eq.s32.totalorder %s19, 0
      %p191 = por %p189, %p190
      %s192 = ssub.s32 %s20, %s32
      %p193 = scmp.eq.s32.totalorder %s192, 0
      %s195 = sadd.s32 %s194, 1
      %s196 = scalar_select %p193, %s194, %s195
      %p199 = pneg %p193
      %p200 = scmp.eq.s32.totalorder %s13, 8
      %p201 = por %p199, %p200
      %p202 = scmp.ne.s32.totalorder %s194, %s197
      %p203 = scmp.eq.s32.totalorder %s13, 0
      %p204 = por %p202, %p203
      %p205 = scmp.ne.s32.totalorder %s194, %s197
      %p206 = scmp.eq.s32.totalorder %s18, 8
      %p207 = por %p205, %p206
      %p208 = scmp.ne.s32.totalorder %s197, %s198
      %p209 = scmp.eq.s32.totalorder %s18, 0
      %p210 = por %p208, %p209
      %p211 = scmp.ne.s32.totalorder %s197, %s198
      %p212 = scmp.eq.s32.totalorder %s19, 8
      %p213 = por %p211, %p212
      %p215 = scmp.ne.s32.totalorder %s198, %s214
      %p216 = scmp.eq.s32.totalorder %s19, 0
      %p217 = por %p215, %p216
      %p218 = scmp.le.s32.totalorder 1, %s13
      %p219 = scmp.lt.s32.totalorder %s13, 10
      %p220 = pnand %p218, %p219
      %p221 = pneg %p220
      // Predicated region
      $region9: #{nin_forward.12} parent=5 // pred_check
        _
      $region10: #{nin_forward.12} parent=5 // pred_check_branch
        %223 = sbr.rel (%p220) target = $region12
      $region11: #{nin_forward.12} parent=5 // pred_region
        %s224 = ssub.s32 %s13, 1
        // Predicated region
        $region13: #{nin_forward.12} parent=11 // pred_check
          %p225 = pneg %p100
        $region14: #{nin_forward.12} parent=11 // pred_check_branch
          %227 = sbr.rel (%p225) target = $region16
        $region15: #{nin_forward.12} parent=11 // pred_region
          _
        $region16: #{nin_forward.12} parent=11 // pred_fallthru
          _
        // Predicated region
        $region17: #{nin_forward.12} parent=11 // pred_check
          %p228 = pneg %p121
        $region18: #{nin_forward.12} parent=11 // pred_check_branch
          %230 = sbr.rel (%p228) target = $region20
        $region19: #{nin_forward.12} parent=11 // pred_region
          _
        $region20: #{nin_forward.12} parent=11 // pred_fallthru
          _
        // Predicated region
        $region21: #{nin_forward.12} parent=11 // pred_check
          %p231 = pneg %p142
        $region22: #{nin_forward.12} parent=11 // pred_check_branch
          %233 = sbr.rel (%p231) target = $region24
        $region23: #{nin_forward.12} parent=11 // pred_region
          _
        $region24: #{nin_forward.12} parent=11 // pred_fallthru
          _
        // Predicated region
        $region25: #{nin_forward.12} parent=11 // pred_check
          %p234 = pneg %p163
        $region26: #{nin_forward.12} parent=11 // pred_check_branch
          %236 = sbr.rel (%p234) target = $region28
        $region27: #{nin_forward.12} parent=11 // pred_region
          _
        $region28: #{nin_forward.12} parent=11 // pred_fallthru
          _
        // Predicated region
        $region29: #{nin_forward.12} parent=11 // pred_check
          %p237 = pneg %p184
        $region30: #{nin_forward.12} parent=11 // pred_check_branch
          %239 = sbr.rel (%p237) target = $region32
        $region31: #{nin_forward.12} parent=11 // pred_region
          _
        $region32: #{nin_forward.12} parent=11 // pred_fallthru
          _
      $region12: #{nin_forward.12} parent=5 // pred_fallthru
        _
      %p240 = scmp.lt.s32.totalorder %s13, 9
      // Predicated region
      $region33: #{nin_forward.12} parent=5 // pred_check
        %p241 = pneg %p240
      $region34: #{nin_forward.12} parent=5 // pred_check_branch
        %243 = sbr.rel (%p241) target = $region36
      $region35: #{nin_forward.12} parent=5 // pred_region
        // Predicated region
        $region37: #{nin_forward.12} parent=35 // pred_check
          %p244 = pneg %p47
        $region38: #{nin_forward.12} parent=35 // pred_check_branch
          %246 = sbr.rel (%p244) target = $region40
        $region39: #{nin_forward.12} parent=35 // pred_region
          %s247 = sand.u32 %s37, 1
          %s248 = sand.u32 %s37, 1
          %s249 = smul.addr %s248, 24
          %s250 = scalar_lea.vmem [#allocation2], %s249
          %s251 = smul.u32 3, %s20
          %s252 = smul.u32 2, %s21
          %s253 = smul.addr %s251, 18
          %s254 = sadd.s32 %s252, %s253
          %s255 = smul.addr %s254, 4
          %s256 = scalar_lea.vmem %s0, %s255
          // Predicated region
          $region41: #{nin_forward.12} parent=39 // pred_check
            _
          $region42: #{nin_forward.12} parent=39 // pred_check_branch
            %258 = sbr.rel (0) target = $region44
          $region43: #{nin_forward.12} parent=39 // pred_region
            // Predicated region
            $region45: #{nin_forward.12} parent=43 // pred_check
              _
            $region46: #{nin_forward.12} parent=43 // pred_check_branch
              %260 = sbr.rel (0) target = $region48
            $region47: #{nin_forward.12} parent=43 // pred_region
              // Predicated region
              $region60: #{nin_forward.12} parent=47 // pred_check
                _
              $region61: #{nin_forward.12} parent=47 // pred_check_branch
                %280 = sbr.rel (0) target = $region63
              $region62: #{nin_forward.12} parent=47 // pred_region
                loop: start=0, step=1, limit=1
                $region64: #{nin_forward.12} parent=62 // loop_pre_header
                  _
                $region65: #{nin_forward.12} parent=62 // loop_header
                  %s282 = sphi 0, %s286
                  %p283 = scmp.ge.s32.totalorder %s282, 1
                  %s287 = sphi %s256, %s256
                  %s288 = sphi %s250, %s250
                $region66: #{nin_forward.12} parent=62 // loop_header_branch
                  %285 = sbr.rel (%p283) target = $region70
                $region67: #{nin_forward.12} parent=62 // loop_body
                  %v289 = vld [vmem:[%s287] sm:$0xff]
                  %290 = vst [vmem:[%s288] sm:$0xff] %v289
                  %v291 = vld [vmem:[%s287 + $0x48] sm:$0xff]
                  %292 = vst [vmem:[%s288 + $0x8] sm:$0xff] %v291
                  %v293 = vld [vmem:[%s287 + $0x90] sm:$0xff]
                  %294 = vst [vmem:[%s288 + $0x10] sm:$0xff] %v293
                $region68: #{nin_forward.12} parent=62 // loop_footer
                  %s286 = sadd.s32 1, %s282
                $region69: #{nin_forward.12} parent=62 // loop_footer_branch
                  %281 = sbr.rel target = $region65
                $region70: #{nin_forward.12} parent=62 // loop_exit
                  _
              $region63: #{nin_forward.12} parent=47 // pred_fallthru
                _
              // Predicated region
              $region71: #{nin_forward.12} parent=47 // pred_check
                _
              $region72: #{nin_forward.12} parent=47 // pred_check_branch
                %296 = sbr.rel target = $region74
              $region73: #{nin_forward.12} parent=47 // pred_region
                _
              $region74: #{nin_forward.12} parent=47 // pred_fallthru
                _
            $region48: #{nin_forward.12} parent=43 // pred_fallthru
              _
            // Predicated region
            $region49: #{nin_forward.12} parent=43 // pred_check
              _
            $region50: #{nin_forward.12} parent=43 // pred_check_branch
              %262 = sbr.rel target = $region52
            $region51: #{nin_forward.12} parent=43 // pred_region
              %s264 = ssub.s32 256, 1
              loop: start=0, step=1, limit=1
              $region53: #{nin_forward.12} parent=51 // loop_pre_header
                _
              $region54: #{nin_forward.12} parent=51 // loop_header
                %s266 = sphi 0, %s270
                %p267 = scmp.ge.s32.totalorder %s266, 1
                %s271 = sphi %s256, %s256
                %s272 = sphi %s250, %s250
              $region55: #{nin_forward.12} parent=51 // loop_header_branch
                %269 = sbr.rel (%p267) target = $region59
              $region56: #{nin_forward.12} parent=51 // loop_body
                %v273 = vld [vmem:[%s271] sm:%s264]
                %274 = vst [vmem:[%s272] sm:%s264] %v273
                %v275 = vld [vmem:[%s271 + $0x48] sm:%s264]
                %276 = vst [vmem:[%s272 + $0x8] sm:%s264] %v275
                %v277 = vld [vmem:[%s271 + $0x90] sm:%s264]
                %278 = vst [vmem:[%s272 + $0x10] sm:%s264] %v277
              $region57: #{nin_forward.12} parent=51 // loop_footer
                %s270 = sadd.s32 1, %s266
              $region58: #{nin_forward.12} parent=51 // loop_footer_branch
                %265 = sbr.rel target = $region54
              $region59: #{nin_forward.12} parent=51 // loop_exit
                _
            $region52: #{nin_forward.12} parent=43 // pred_fallthru
              _
          $region44: #{nin_forward.12} parent=39 // pred_fallthru
            _
          %297 = vnop
        $region40: #{nin_forward.12} parent=35 // pred_fallthru
          _
        // Predicated region
        $region75: #{nin_forward.12} parent=35 // pred_check
          %p298 = pneg %p73
        $region76: #{nin_forward.12} parent=35 // pred_check_branch
          %300 = sbr.rel (%p298) target = $region78
        $region77: #{nin_forward.12} parent=35 // pred_region
          %s301 = smul.u32 32, %s21
          %p302 = scmp.lt.s32.totalorder %s301, 287
          %s303 = scalar_select %p302, %s301, 287
          %s304 = smul.addr %s303, 3
          %s305 = smul.addr %s304, 4
          %s306 = scalar_lea.vmem %s1, %s305
          %s307 = smul.u32 32, %s21
        $region78: #{nin_forward.12} parent=35 // pred_fallthru
          _
      $region36: #{nin_forward.12} parent=5 // pred_fallthru
        _
      %p308 = scmp.le.s32.totalorder 1, %s13
      %p309 = scmp.lt.s32.totalorder %s13, 10
      %p310 = pnand %p308, %p309
      %p311 = pneg %p310
      // Predicated region
      $region79: #{nin_forward.12} parent=5 // pred_check
        _
      $region80: #{nin_forward.12} parent=5 // pred_check_branch
        %313 = sbr.rel (%p310) target = $region82
      $region81: #{nin_forward.12} parent=5 // pred_region
        %s314 = ssub.s32 %s13, 1
        %s315 = sand.u32 %s40, 1
        %s316 = sand.u32 %s40, 1
        %s317 = smul.addr %s316, 24
        %s318 = scalar_lea.vmem [#allocation2], %s317
        // Predicated region
        $region83: #{nin_forward.12} parent=81 // pred_check
          %p319 = pneg %p53
        $region84: #{nin_forward.12} parent=81 // pred_check_branch
          %321 = sbr.rel (%p319) target = $region86
        $region85: #{nin_forward.12} parent=81 // pred_region
          _
        $region86: #{nin_forward.12} parent=81 // pred_fallthru
          _
        %s322 = sand.u32 %s40, 1
        %s323 = sand.u32 %s40, 1
        %s324 = smul.addr %s323, 24
        %s325 = scalar_lea.vmem [#allocation2], %s324
        %p326 = pneg %p53
        %p327 = pneg %p50
        %s328 = smul.u32 32, %s23
        %p329 = scmp.lt.s32.totalorder %s328, 287
        %s330 = scalar_select %p329, %s328, 287
        %s331 = smul.addr %s330, 3
        %s332 = smul.addr %s331, 4
        %s333 = scalar_lea.vmem %s1, %s332
        %p334 = pneg %p79
        %p335 = pneg %p76
        %p336 = pneg %p100
        %p337 = pneg %p97
        %p338 = pneg %p121
        %p339 = pneg %p118
        %p340 = pneg %p142
        %p341 = pneg %p139
        %p342 = pneg %p163
        %p343 = pneg %p160
        %p344 = pneg %p184
        %p345 = pneg %p181
        %p346 = pneg %p210
        %p347 = pneg %p207
        %s348 = smul.u32 3, %s22
        %p349 = scmp.lt.s32.totalorder %s348, 2
        %s350 = scalar_select %p349, %s348, 2
        %s351 = smul.addr %s350, 3
        %s352 = smul.addr %s351, 8
        %s353 = scalar_lea.vmem %s7, %s352
        %s354 = smul.u32 3, %s22
        %s355 = smul.u32 2, %s23
        %s356 = smul.u32 32, %s23
        %p357 = scmp.lt.s32.totalorder %s356, 287
        %s358 = scalar_select %p357, %s356, 287
        %s359 = smul.addr %s358, 3
        %s360 = smul.addr %s359, 4
        %s361 = scalar_lea.vmem %s1, %s360
        %s362 = smul.u32 32, %s23
        %s363 = smul.u32 3, %s22
        %p364 = scmp.lt.s32.totalorder %s363, 2
        %s365 = scalar_select %p364, %s363, 2
        %s366 = smul.addr %s365, 3
        %s367 = smul.addr %s366, 8
        %s368 = scalar_lea.vmem %s7, %s367
        %s369 = smul.u32 3, %s22
        %p371 = scmp.eq.s32.totalorder %s23, 0
        // Predicated region
        $region87: #{nin_forward.12} parent=81 // pred_check
          %p372 = pneg %p371
        $region88: #{nin_forward.12} parent=81 // pred_check_branch
          %374 = sbr.rel (%p372) target = $region90
        $region89: #{nin_forward.12} parent=81 // pred_region
          %375 = vst [vmem:[%s368] sm:$0xff] 0.0
          %376 = vst [vmem:[%s368 + $0x8] sm:$0xff] 0.0
          %377 = vst [vmem:[%s368 + $0x10] sm:$0xff] 0.0
          %378 = vst [vmem:[%s368 + $0x18] sm:$0xff] 0.0
          %379 = vst [vmem:[%s368 + $0x20] sm:$0xff] 0.0
          %380 = vst [vmem:[%s368 + $0x28] sm:$0xff] 0.0
          %381 = vst [vmem:[%s368 + $0x30] sm:$0xff] 0.0
          %382 = vst [vmem:[%s368 + $0x38] sm:$0xff] 0.0
          %383 = vst [vmem:[%s368 + $0x40] sm:$0xff] 0.0
        $region90: #{nin_forward.12} parent=81 // pred_fallthru
          _
        %v384 = vld [vmem:[%s368] sm:$0xff]
        %v385 = vld [vmem:[%s368 + $0x8] sm:$0xff]
        %v386 = vld [vmem:[%s368 + $0x10] sm:$0xff]
        %v387 = vld [vmem:[%s368 + $0x18] sm:$0xff]
        %v388 = vld [vmem:[%s368 + $0x20] sm:$0xff]
        %v389 = vld [vmem:[%s368 + $0x28] sm:$0xff]
        %v390 = vld [vmem:[%s368 + $0x30] sm:$0xff]
        %v391 = vld [vmem:[%s368 + $0x38] sm:$0xff]
        %v392 = vld [vmem:[%s368 + $0x40] sm:$0xff]
        %v393 = vld [vmem:[%s318] sm:$0xff]
        %v394 = vld [vmem:[%s318 + $0x8] sm:$0xff]
        %v395 = vld [vmem:[%s318 + $0x10] sm:$0xff]
        %v396 = vld [vmem:[%s361] sm:$0xff]
        %v397 = vld [vmem:[%s361 + $0x8] sm:$0xf]
        %v398 = vld [vmem:[%s361 + $0xc] sm:$0xff]
        %v399 = vld [vmem:[%s361 + $0x14] sm:$0xf]
        %v400 = vld [vmem:[%s361 + $0x18] sm:$0xff]
        %v401 = vld [vmem:[%s361 + $0x20] sm:$0xf]
        %v402 = vld [vmem:[%s361 + $0x24] sm:$0xff]
        %v403 = vld [vmem:[%s361 + $0x2c] sm:$0xf]
        %v404 = vld [vmem:[%s361 + $0x30] sm:$0xff]
        %v405 = vld [vmem:[%s361 + $0x38] sm:$0xf]
        %v406 = vld [vmem:[%s361 + $0x3c] sm:$0xff]
        %v407 = vld [vmem:[%s361 + $0x44] sm:$0xf]
        %v408 = vld [vmem:[%s361 + $0x48] sm:$0xff]
        %v409 = vld [vmem:[%s361 + $0x50] sm:$0xf]
        %v410 = vld [vmem:[%s361 + $0x54] sm:$0xff]
        %v411 = vld [vmem:[%s361 + $0x5c] sm:$0xf]
        %v412 = vld [vmem:[%s361 + $0x60] sm:$0xff]
        %v413 = vld [vmem:[%s361 + $0x68] sm:$0xf]
        %v414 = vld [vmem:[%s361 + $0x6c] sm:$0xff]
        %v415 = vld [vmem:[%s361 + $0x74] sm:$0xf]
        %v416 = vld [vmem:[%s361 + $0x78] sm:$0xff]
        %v417 = vld [vmem:[%s361 + $0x80] sm:$0xf]
        %v418 = vld [vmem:[%s361 + $0x84] sm:$0xff]
        %v419 = vld [vmem:[%s361 + $0x8c] sm:$0xf]
        %v420 = vld [vmem:[%s361 + $0x90] sm:$0xff]
        %v421 = vld [vmem:[%s361 + $0x98] sm:$0xf]
        %v422 = vld [vmem:[%s361 + $0x9c] sm:$0xff]
        %v423 = vld [vmem:[%s361 + $0xa4] sm:$0xf]
        %v424 = vld [vmem:[%s361 + $0xa8] sm:$0xff]
        %v425 = vld [vmem:[%s361 + $0xb0] sm:$0xf]
        %v426 = vld [vmem:[%s361 + $0xb4] sm:$0xff]
        %v427 = vld [vmem:[%s361 + $0xbc] sm:$0xf]
        %v428 = vld [vmem:[%s361 + $0xc0] sm:$0xff]
        %v429 = vld [vmem:[%s361 + $0xc8] sm:$0xf]
        %v430 = vld [vmem:[%s361 + $0xcc] sm:$0xff]
        %v431 = vld [vmem:[%s361 + $0xd4] sm:$0xf]
        %v432 = vld [vmem:[%s361 + $0xd8] sm:$0xff]
        %v433 = vld [vmem:[%s361 + $0xe0] sm:$0xf]
        %v434 = vld [vmem:[%s361 + $0xe4] sm:$0xff]
        %v435 = vld [vmem:[%s361 + $0xec] sm:$0xf]
        %v436 = vld [vmem:[%s361 + $0xf0] sm:$0xff]
        %v437 = vld [vmem:[%s361 + $0xf8] sm:$0xf]
        %v438 = vld [vmem:[%s361 + $0xfc] sm:$0xff]
        %v439 = vld [vmem:[%s361 + $0x104] sm:$0xf]
        %v440 = vld [vmem:[%s361 + $0x108] sm:$0xff]
        %v441 = vld [vmem:[%s361 + $0x110] sm:$0xf]
        %v442 = vld [vmem:[%s361 + $0x114] sm:$0xff]
        %v443 = vld [vmem:[%s361 + $0x11c] sm:$0xf]
        %v444 = vld [vmem:[%s361 + $0x120] sm:$0xff]
        %v445 = vld [vmem:[%s361 + $0x128] sm:$0xf]
        %v446 = vld [vmem:[%s361 + $0x12c] sm:$0xff]
        %v447 = vld [vmem:[%s361 + $0x134] sm:$0xf]
        %v448 = vld [vmem:[%s361 + $0x138] sm:$0xff]
        %v449 = vld [vmem:[%s361 + $0x140] sm:$0xf]
        %v450 = vld [vmem:[%s361 + $0x144] sm:$0xff]
        %v451 = vld [vmem:[%s361 + $0x14c] sm:$0xf]
        %v452 = vld [vmem:[%s361 + $0x150] sm:$0xff]
        %v453 = vld [vmem:[%s361 + $0x158] sm:$0xf]
        %v454 = vld [vmem:[%s361 + $0x15c] sm:$0xff]
        %v455 = vld [vmem:[%s361 + $0x164] sm:$0xf]
        %v456 = vld [vmem:[%s361 + $0x168] sm:$0xff]
        %v457 = vld [vmem:[%s361 + $0x170] sm:$0xf]
        %v458 = vld [vmem:[%s361 + $0x174] sm:$0xff]
        %v459 = vld [vmem:[%s361 + $0x17c] sm:$0xf]
        %v463 = vunpack.c.l.b16 %v393
        %v464 = vunpack.c.h.b16 %v393
        %v465 = vunpack.c.l.b16 %v394
        %v466 = vunpack.c.h.b16 %v394
        %v467 = vunpack.c.l.b16 %v395
        %v468 = vunpack.c.h.b16 %v395
        %v469 = vpack.c.b16 %v465, %v463
        %v470 = vpack.c.b16 %v466, %v464
        %v471 = vpack.c.b16 %v467, %v467
        %v472 = vpack.c.b16 %v468, %v468
        %v541 = vunpack.c.l.b16 %v396
        %v542 = vunpack.c.h.b16 %v396
        %v543 = vunpack.c.l.b16 %v397
        %v544 = vunpack.c.l.b16 %v398
        %v545 = vunpack.c.h.b16 %v398
        %v546 = vunpack.c.l.b16 %v399
        %v547 = vunpack.c.l.b16 %v400
        %v548 = vunpack.c.h.b16 %v400
        %v549 = vunpack.c.l.b16 %v401
        %v550 = vunpack.c.l.b16 %v402
        %v551 = vunpack.c.h.b16 %v402
        %v552 = vunpack.c.l.b16 %v403
        %v553 = vunpack.c.l.b16 %v404
        %v554 = vunpack.c.h.b16 %v404
        %v555 = vunpack.c.l.b16 %v405
        %v556 = vunpack.c.l.b16 %v406
        %v557 = vunpack.c.h.b16 %v406
        %v558 = vunpack.c.l.b16 %v407
        %v559 = vunpack.c.l.b16 %v408
        %v560 = vunpack.c.h.b16 %v408
        %v561 = vunpack.c.l.b16 %v409
        %v562 = vunpack.c.l.b16 %v410
        %v563 = vunpack.c.h.b16 %v410
        %v564 = vunpack.c.l.b16 %v411
        %v565 = vunpack.c.l.b16 %v412
        %v566 = vunpack.c.h.b16 %v412
        %v567 = vunpack.c.l.b16 %v413
        %v568 = vunpack.c.l.b16 %v414
        %v569 = vunpack.c.h.b16 %v414
        %v570 = vunpack.c.l.b16 %v415
        %v571 = vunpack.c.l.b16 %v416
        %v572 = vunpack.c.h.b16 %v416
        %v573 = vunpack.c.l.b16 %v417
        %v574 = vunpack.c.l.b16 %v418
        %v575 = vunpack.c.h.b16 %v418
        %v576 = vunpack.c.l.b16 %v419
        %v577 = vunpack.c.l.b16 %v420
        %v578 = vunpack.c.h.b16 %v420
        %v579 = vunpack.c.l.b16 %v421
        %v580 = vunpack.c.l.b16 %v422
        %v581 = vunpack.c.h.b16 %v422
        %v582 = vunpack.c.l.b16 %v423
        %v583 = vunpack.c.l.b16 %v424
        %v584 = vunpack.c.h.b16 %v424
        %v585 = vunpack.c.l.b16 %v425
        %v586 = vunpack.c.l.b16 %v426
        %v587 = vunpack.c.h.b16 %v426
        %v588 = vunpack.c.l.b16 %v427
        %v589 = vunpack.c.l.b16 %v428
        %v590 = vunpack.c.h.b16 %v428
        %v591 = vunpack.c.l.b16 %v429
        %v592 = vunpack.c.l.b16 %v430
        %v593 = vunpack.c.h.b16 %v430
        %v594 = vunpack.c.l.b16 %v431
        %v595 = vunpack.c.l.b16 %v432
        %v596 = vunpack.c.h.b16 %v432
        %v597 = vunpack.c.l.b16 %v433
        %v598 = vunpack.c.l.b16 %v434
        %v599 = vunpack.c.h.b16 %v434
        %v600 = vunpack.c.l.b16 %v435
        %v601 = vunpack.c.l.b16 %v436
        %v602 = vunpack.c.h.b16 %v436
        %v603 = vunpack.c.l.b16 %v437
        %v604 = vunpack.c.l.b16 %v438
        %v605 = vunpack.c.h.b16 %v438
        %v606 = vunpack.c.l.b16 %v439
        %v607 = vunpack.c.l.b16 %v440
        %v608 = vunpack.c.h.b16 %v440
        %v609 = vunpack.c.l.b16 %v441
        %v610 = vunpack.c.l.b16 %v442
        %v611 = vunpack.c.h.b16 %v442
        %v612 = vunpack.c.l.b16 %v443
        %v613 = vunpack.c.l.b16 %v444
        %v614 = vunpack.c.h.b16 %v444
        %v615 = vunpack.c.l.b16 %v445
        %v616 = vunpack.c.l.b16 %v446
        %v617 = vunpack.c.h.b16 %v446
        %v618 = vunpack.c.l.b16 %v447
        %v619 = vunpack.c.l.b16 %v448
        %v620 = vunpack.c.h.b16 %v448
        %v621 = vunpack.c.l.b16 %v449
        %v622 = vunpack.c.l.b16 %v450
        %v623 = vunpack.c.h.b16 %v450
        %v624 = vunpack.c.l.b16 %v451
        %v625 = vunpack.c.l.b16 %v452
        %v626 = vunpack.c.h.b16 %v452
        %v627 = vunpack.c.l.b16 %v453
        %v628 = vunpack.c.l.b16 %v454
        %v629 = vunpack.c.h.b16 %v454
        %v630 = vunpack.c.l.b16 %v455
        %v631 = vunpack.c.l.b16 %v456
        %v632 = vunpack.c.h.b16 %v456
        %v633 = vunpack.c.l.b16 %v457
        %v634 = vunpack.c.l.b16 %v458
        %v635 = vunpack.c.h.b16 %v458
        %v636 = vunpack.c.l.b16 %v459
        %v637 = vpack.c.b16 %v544, %v541
        %v638 = vpack.c.b16 %v545, %v542
        %v639 = vpack.c.b16 %v546, %v543
        %v640 = vpack.c.b16 %v550, %v547
        %v641 = vpack.c.b16 %v551, %v548
        %v642 = vpack.c.b16 %v552, %v549
        %v643 = vpack.c.b16 %v556, %v553
        %v644 = vpack.c.b16 %v557, %v554
        %v645 = vpack.c.b16 %v558, %v555
        %v646 = vpack.c.b16 %v562, %v559
        %v647 = vpack.c.b16 %v563, %v560
        %v648 = vpack.c.b16 %v564, %v561
        %v649 = vpack.c.b16 %v568, %v565
        %v650 = vpack.c.b16 %v569, %v566
        %v651 = vpack.c.b16 %v570, %v567
        %v652 = vpack.c.b16 %v574, %v571
        %v653 = vpack.c.b16 %v575, %v572
        %v654 = vpack.c.b16 %v576, %v573
        %v655 = vpack.c.b16 %v580, %v577
        %v656 = vpack.c.b16 %v581, %v578
        %v657 = vpack.c.b16 %v582, %v579
        %v658 = vpack.c.b16 %v586, %v583
        %v659 = vpack.c.b16 %v587, %v584
        %v660 = vpack.c.b16 %v588, %v585
        %v661 = vpack.c.b16 %v592, %v589
        %v662 = vpack.c.b16 %v593, %v590
        %v663 = vpack.c.b16 %v594, %v591
        %v664 = vpack.c.b16 %v598, %v595
        %v665 = vpack.c.b16 %v599, %v596
        %v666 = vpack.c.b16 %v600, %v597
        %v667 = vpack.c.b16 %v604, %v601
        %v668 = vpack.c.b16 %v605, %v602
        %v669 = vpack.c.b16 %v606, %v603
        %v670 = vpack.c.b16 %v610, %v607
        %v671 = vpack.c.b16 %v611, %v608
        %v672 = vpack.c.b16 %v612, %v609
        %v673 = vpack.c.b16 %v616, %v613
        %v674 = vpack.c.b16 %v617, %v614
        %v675 = vpack.c.b16 %v618, %v615
        %v676 = vpack.c.b16 %v622, %v619
        %v677 = vpack.c.b16 %v623, %v620
        %v678 = vpack.c.b16 %v624, %v621
        %v679 = vpack.c.b16 %v628, %v625
        %v680 = vpack.c.b16 %v629, %v626
        %v681 = vpack.c.b16 %v630, %v627
        %v682 = vpack.c.b16 %v634, %v631
        %v683 = vpack.c.b16 %v635, %v632
        %v684 = vpack.c.b16 %v636, %v633
        %733 = vmatprep.subr.bf16.mxu0 %v659
        %734 = vmatpush1.bf16.msra.mxu0 %v658
        %735 = vmatprep.subr.bf16.mxu0 %v656
        %736 = vmatpush1.bf16.msra.mxu0 %v655
        %737 = vmatprep.subr.bf16.mxu0 %v653
        %738 = vmatpush1.bf16.msra.mxu0 %v652
        %739 = vmatprep.subr.bf16.mxu0 %v650
        %740 = vmatpush1.bf16.msra.mxu0 %v649
        %741 = vmatprep.subr.bf16.mxu0 %v647
        %742 = vmatpush1.bf16.msra.mxu0 %v646
        %743 = vmatprep.subr.bf16.mxu0 %v644
        %744 = vmatpush1.bf16.msra.mxu0 %v643
        %745 = vmatprep.subr.bf16.mxu0 %v641
        %746 = vmatpush1.bf16.msra.mxu0 %v640
        %747 = vmatprep.subr.bf16.mxu0 %v638
        %748 = vmatpush1.bf16.msra.mxu0 %v637
        %749 = vmatprep.subr.bf16.mxu0 %v683
        %750 = vmatpush2.bf16.msra.mxu0 %v682
        %751 = vmatprep.subr.bf16.mxu0 %v680
        %752 = vmatpush2.bf16.msra.mxu0 %v679
        %753 = vmatprep.subr.bf16.mxu0 %v677
        %754 = vmatpush2.bf16.msra.mxu0 %v676
        %755 = vmatprep.subr.bf16.mxu0 %v674
        %756 = vmatpush2.bf16.msra.mxu0 %v673
        %757 = vmatprep.subr.bf16.mxu0 %v671
        %758 = vmatpush2.bf16.msra.mxu0 %v670
        %759 = vmatprep.subr.bf16.mxu0 %v668
        %760 = vmatpush2.bf16.msra.mxu0 %v667
        %761 = vmatprep.subr.bf16.mxu0 %v665
        %762 = vmatpush2.bf16.msra.mxu0 %v664
        %763 = vmatprep.subr.bf16.mxu0 %v662
        %764 = vmatpush2.bf16.msra.mxu0 %v661
        %765 = vmatprep.mubr.bf16.mxu0 %v470
        %766 = vmatmul.mubr.bf16.gmra.mxu0 %v469
        %v767 = vpop.f32.mrf.mxu0
        %v768 = vadd.f32 0.0, %v767
        %v769 = vpop.f32.mrf.mxu0
        %v770 = vadd.f32 0.0, %v769
        %v771 = vpop.f32.mrf.mxu0
        %v772 = vadd.f32 0.0, %v771
        %v773 = vpop.f32.mrf.mxu0
        %v774 = vadd.f32 0.0, %v773
        %775 = vmatprep.mubr.bf16.mxu0 %v472
        %776 = vmatmul.mubr.bf16.gmra.mxu0 %v471
        %v777 = vpop.f32.mrf.mxu0
        %v778 = vadd.f32 0.0, %v777
        %v779 = vpop.f32.mrf.mxu0
        %v780 = vadd.f32 0.0, %v779
        %v781 = vpop.f32.mrf.mxu0
        %v782 = vpop.f32.mrf.mxu0
        %783 = vdwg.mxu0
        %784 = vmatprep.subr.bf16.mxu0 0
        %785 = vmatpush1.bf16.msra.mxu0 %v660
        %786 = vmatprep.subr.bf16.mxu0 0
        %787 = vmatpush1.bf16.msra.mxu0 %v657
        %788 = vmatprep.subr.bf16.mxu0 0
        %789 = vmatpush1.bf16.msra.mxu0 %v654
        %790 = vmatprep.subr.bf16.mxu0 0
        %791 = vmatpush1.bf16.msra.mxu0 %v651
        %792 = vmatprep.subr.bf16.mxu0 0
        %793 = vmatpush1.bf16.msra.mxu0 %v648
        %794 = vmatprep.subr.bf16.mxu0 0
        %795 = vmatpush1.bf16.msra.mxu0 %v645
        %796 = vmatprep.subr.bf16.mxu0 0
        %797 = vmatpush1.bf16.msra.mxu0 %v642
        %798 = vmatprep.subr.bf16.mxu0 0
        %799 = vmatpush1.bf16.msra.mxu0 %v639
        %800 = vmatprep.subr.bf16.mxu0 0
        %801 = vmatpush2.bf16.msra.mxu0 %v684
        %802 = vmatprep.subr.bf16.mxu0 0
        %803 = vmatpush2.bf16.msra.mxu0 %v681
        %804 = vmatprep.subr.bf16.mxu0 0
        %805 = vmatpush2.bf16.msra.mxu0 %v678
        %806 = vmatprep.subr.bf16.mxu0 0
        %807 = vmatpush2.bf16.msra.mxu0 %v675
        %808 = vmatprep.subr.bf16.mxu0 0
        %809 = vmatpush2.bf16.msra.mxu0 %v672
        %810 = vmatprep.subr.bf16.mxu0 0
        %811 = vmatpush2.bf16.msra.mxu0 %v669
        %812 = vmatprep.subr.bf16.mxu0 0
        %813 = vmatpush2.bf16.msra.mxu0 %v666
        %814 = vmatprep.subr.bf16.mxu0 0
        %815 = vmatpush2.bf16.msra.mxu0 %v663
        %816 = vmatprep.mubr.bf16.mxu0 %v470
        %817 = vmatmul.mubr.bf16.gmra.mxu0 %v469
        %v818 = vpop.f32.mrf.mxu0
        %v819 = vadd.f32 0.0, %v818
        %v820 = vpop.f32.mrf.mxu0
        %v821 = vpop.f32.mrf.mxu0
        %v822 = vadd.f32 0.0, %v821
        %v823 = vpop.f32.mrf.mxu0
        %824 = vmatprep.mubr.bf16.mxu0 %v472
        %825 = vmatmul.mubr.bf16.gmra.mxu0 %v471
        %v826 = vpop.f32.mrf.mxu0
        %v827 = vadd.f32 0.0, %v826
        %v828 = vpop.f32.mrf.mxu0
        %v829 = vpop.f32.mrf.mxu0
        %v830 = vpop.f32.mrf.mxu0
        %831 = vdwg.mxu0
        %v832 = vadd.f32 %v384, %v768
        %v833 = vadd.f32 %v385, %v770
        %v834 = vadd.f32 %v386, %v819
        %v835 = vadd.f32 %v387, %v772
        %v836 = vadd.f32 %v388, %v774
        %v837 = vadd.f32 %v389, %v822
        %v838 = vadd.f32 %v390, %v778
        %v839 = vadd.f32 %v391, %v780
        %v840 = vadd.f32 %v392, %v827
        %841 = vst [vmem:[%s368] sm:$0xff] %v832
        %842 = vst [vmem:[%s368 + $0x8] sm:$0xff] %v833
        %843 = vst [vmem:[%s368 + $0x10] sm:$0xff] %v834
        %844 = vst [vmem:[%s368 + $0x18] sm:$0xff] %v835
        %845 = vst [vmem:[%s368 + $0x20] sm:$0xff] %v836
        %846 = vst [vmem:[%s368 + $0x28] sm:$0xff] %v837
        %847 = vst [vmem:[%s368 + $0x30] sm:$0xff] %v838
        %848 = vst [vmem:[%s368 + $0x38] sm:$0xff] %v839
        %849 = vst [vmem:[%s368 + $0x40] sm:$0xff] %v840
        %p850 = scmp.eq.s32.totalorder %s23, 8
        // Predicated region
        $region91: #{nin_forward.12} parent=81 // pred_check
          %p851 = pneg %p850
        $region92: #{nin_forward.12} parent=81 // pred_check_branch
          %853 = sbr.rel (%p851) target = $region94
        $region93: #{nin_forward.12} parent=81 // pred_region
          %v854 = vld [vmem:[%s368] sm:$0xff]
          %v855 = vld [vmem:[%s368 + $0x8] sm:$0xff]
          %v856 = vld [vmem:[%s368 + $0x10] sm:$0xff]
          %v857 = vld [vmem:[%s368 + $0x18] sm:$0xff]
          %v858 = vld [vmem:[%s368 + $0x20] sm:$0xff]
          %v859 = vld [vmem:[%s368 + $0x28] sm:$0xff]
          %v860 = vld [vmem:[%s368 + $0x30] sm:$0xff]
          %v861 = vld [vmem:[%s368 + $0x38] sm:$0xff]
          %v862 = vld [vmem:[%s368 + $0x40] sm:$0xff]
          %v863 = vld [vmem:[%s2] sm:$0x7]
          %v865 = vlaneseq
          %v866 = vshrl.u32 %v865, 7
          %v867 = vsub.s32 0, %v866
          %v868 = vrot.slane %v863, %v867
          %v869 = vlaneseq
          %v870 = vshrl.u32 %v869, 7
          %v871 = vsub.s32 1, %v870
          %v872 = vrot.slane %v863, %v871
          %v873 = vlaneseq
          %v874 = vshrl.u32 %v873, 7
          %v875 = vsub.s32 2, %v874
          %v876 = vrot.slane %v863, %v875
          %v880 = vadd.f32 %v854, %v868
          %v881 = vadd.f32 %v855, %v872
          %v882 = vadd.f32 %v856, %v876
          %v883 = vadd.f32 %v857, %v868
          %v884 = vadd.f32 %v858, %v872
          %v885 = vadd.f32 %v859, %v876
          %v886 = vadd.f32 %v860, %v868
          %v887 = vadd.f32 %v861, %v872
          %v888 = vadd.f32 %v862, %v876
          %v889 = vmax.f32 %v880, 0.0
          %v890 = vmax.f32 %v881, 0.0
          %v891 = vmax.f32 %v882, 0.0
          %v892 = vmax.f32 %v883, 0.0
          %v893 = vmax.f32 %v884, 0.0
          %v894 = vmax.f32 %v885, 0.0
          %v895 = vmax.f32 %v886, 0.0
          %v896 = vmax.f32 %v887, 0.0
          %v897 = vmax.f32 %v888, 0.0
          %v898 = vpack.c.bf16 %v892, %v889
          %v899 = vpack.c.bf16 %v893, %v890
          %v900 = vpack.c.bf16 %v894, %v891
          %v901 = vpack.c.bf16 %v895, %v895
          %v902 = vpack.c.bf16 %v896, %v896
          %v903 = vpack.c.bf16 %v897, %v897
          %v904 = vld [vmem:[%s3] sm:$0xff]
          %v905 = vld [vmem:[%s3 + $0x8] sm:$0xf]
          %v906 = vld [vmem:[%s3 + $0xc] sm:$0xff]
          %v907 = vld [vmem:[%s3 + $0x14] sm:$0xf]
          %v908 = vld [vmem:[%s3 + $0x18] sm:$0xff]
          %v909 = vld [vmem:[%s3 + $0x20] sm:$0xf]
          %v910 = vld [vmem:[%s3 + $0x24] sm:$0xff]
          %v911 = vld [vmem:[%s3 + $0x2c] sm:$0xf]
          %v912 = vld [vmem:[%s3 + $0x30] sm:$0xff]
          %v913 = vld [vmem:[%s3 + $0x38] sm:$0xf]
          %v914 = vld [vmem:[%s3 + $0x3c] sm:$0xff]
          %v915 = vld [vmem:[%s3 + $0x44] sm:$0xf]
          %v916 = vld [vmem:[%s3 + $0x48] sm:$0xff]
          %v917 = vld [vmem:[%s3 + $0x50] sm:$0xf]
          %v918 = vld [vmem:[%s3 + $0x54] sm:$0xff]
          %v919 = vld [vmem:[%s3 + $0x5c] sm:$0xf]
          %v920 = vld [vmem:[%s3 + $0x60] sm:$0xff]
          %v921 = vld [vmem:[%s3 + $0x68] sm:$0xf]
          %v922 = vld [vmem:[%s3 + $0x6c] sm:$0xff]
          %v923 = vld [vmem:[%s3 + $0x74] sm:$0xf]
          %v924 = vld [vmem:[%s3 + $0x78] sm:$0xff]
          %v925 = vld [vmem:[%s3 + $0x80] sm:$0xf]
          %v926 = vld [vmem:[%s3 + $0x84] sm:$0xff]
          %v927 = vld [vmem:[%s3 + $0x8c] sm:$0xf]
          %v928 = vld [vmem:[%s3 + $0x90] sm:$0xff]
          %v929 = vld [vmem:[%s3 + $0x98] sm:$0xf]
          %v930 = vld [vmem:[%s3 + $0x9c] sm:$0xff]
          %v931 = vld [vmem:[%s3 + $0xa4] sm:$0xf]
          %v932 = vld [vmem:[%s3 + $0xa8] sm:$0xff]
          %v933 = vld [vmem:[%s3 + $0xb0] sm:$0xf]
          %v934 = vld [vmem:[%s3 + $0xb4] sm:$0xff]
          %v935 = vld [vmem:[%s3 + $0xbc] sm:$0xf]
          %v936 = vld [vmem:[%s3 + $0xc0] sm:$0xff]
          %v937 = vld [vmem:[%s3 + $0xc8] sm:$0xf]
          %v938 = vld [vmem:[%s3 + $0xcc] sm:$0xff]
          %v939 = vld [vmem:[%s3 + $0xd4] sm:$0xf]
          %v940 = vld [vmem:[%s3 + $0xd8] sm:$0xff]
          %v941 = vld [vmem:[%s3 + $0xe0] sm:$0xf]
          %v942 = vld [vmem:[%s3 + $0xe4] sm:$0xff]
          %v943 = vld [vmem:[%s3 + $0xec] sm:$0xf]
          %v944 = vld [vmem:[%s3 + $0xf0] sm:$0xff]
          %v945 = vld [vmem:[%s3 + $0xf8] sm:$0xf]
          %v946 = vld [vmem:[%s3 + $0xfc] sm:$0xff]
          %v947 = vld [vmem:[%s3 + $0x104] sm:$0xf]
          %v948 = vld [vmem:[%s3 + $0x108] sm:$0xff]
          %v949 = vld [vmem:[%s3 + $0x110] sm:$0xf]
          %v950 = vld [vmem:[%s3 + $0x114] sm:$0xff]
          %v951 = vld [vmem:[%s3 + $0x11c] sm:$0xf]
          %v952 = vld [vmem:[%s3 + $0x120] sm:$0xff]
          %v953 = vld [vmem:[%s3 + $0x128] sm:$0xf]
          %v954 = vld [vmem:[%s3 + $0x12c] sm:$0xff]
          %v955 = vld [vmem:[%s3 + $0x134] sm:$0xf]
          %v956 = vld [vmem:[%s3 + $0x138] sm:$0xff]
          %v957 = vld [vmem:[%s3 + $0x140] sm:$0xf]
          %v958 = vld [vmem:[%s3 + $0x144] sm:$0xff]
          %v959 = vld [vmem:[%s3 + $0x14c] sm:$0xf]
          %v960 = vld [vmem:[%s3 + $0x150] sm:$0xff]
          %v961 = vld [vmem:[%s3 + $0x158] sm:$0xf]
          %v962 = vld [vmem:[%s3 + $0x15c] sm:$0xff]
          %v963 = vld [vmem:[%s3 + $0x164] sm:$0xf]
          %v964 = vld [vmem:[%s3 + $0x168] sm:$0xff]
          %v965 = vld [vmem:[%s3 + $0x170] sm:$0xf]
          %v966 = vld [vmem:[%s3 + $0x174] sm:$0xff]
          %v967 = vld [vmem:[%s3 + $0x17c] sm:$0xf]
          %v968 = vld [vmem:[%s3 + $0x180] sm:$0xff]
          %v969 = vld [vmem:[%s3 + $0x188] sm:$0xf]
          %v970 = vld [vmem:[%s3 + $0x18c] sm:$0xff]
          %v971 = vld [vmem:[%s3 + $0x194] sm:$0xf]
          %v972 = vld [vmem:[%s3 + $0x198] sm:$0xff]
          %v973 = vld [vmem:[%s3 + $0x1a0] sm:$0xf]
          %v974 = vld [vmem:[%s3 + $0x1a4] sm:$0xff]
          %v975 = vld [vmem:[%s3 + $0x1ac] sm:$0xf]
          %v976 = vld [vmem:[%s3 + $0x1b0] sm:$0xff]
          %v977 = vld [vmem:[%s3 + $0x1b8] sm:$0xf]
          %v978 = vld [vmem:[%s3 + $0x1bc] sm:$0xff]
          %v979 = vld [vmem:[%s3 + $0x1c4] sm:$0xf]
          %v980 = vld [vmem:[%s3 + $0x1c8] sm:$0xff]
          %v981 = vld [vmem:[%s3 + $0x1d0] sm:$0xf]
          %v982 = vld [vmem:[%s3 + $0x1d4] sm:$0xff]
          %v983 = vld [vmem:[%s3 + $0x1dc] sm:$0xf]
          %v984 = vld [vmem:[%s3 + $0x1e0] sm:$0xff]
          %v985 = vld [vmem:[%s3 + $0x1e8] sm:$0xf]
          %v986 = vld [vmem:[%s3 + $0x1ec] sm:$0xff]
          %v987 = vld [vmem:[%s3 + $0x1f4] sm:$0xf]
          %v988 = vld [vmem:[%s3 + $0x1f8] sm:$0xff]
          %v989 = vld [vmem:[%s3 + $0x200] sm:$0xf]
          %v990 = vld [vmem:[%s3 + $0x204] sm:$0xff]
          %v991 = vld [vmem:[%s3 + $0x20c] sm:$0xf]
          %v992 = vld [vmem:[%s3 + $0x210] sm:$0xff]
          %v993 = vld [vmem:[%s3 + $0x218] sm:$0xf]
          %v994 = vld [vmem:[%s3 + $0x21c] sm:$0xff]
          %v995 = vld [vmem:[%s3 + $0x224] sm:$0xf]
          %v996 = vld [vmem:[%s3 + $0x228] sm:$0xff]
          %v997 = vld [vmem:[%s3 + $0x230] sm:$0xf]
          %v998 = vld [vmem:[%s3 + $0x234] sm:$0xff]
          %v999 = vld [vmem:[%s3 + $0x23c] sm:$0xf]
          %v1000 = vld [vmem:[%s4] sm:$0x7]
          %v1002 = vlaneseq
          %v1003 = vshrl.u32 %v1002, 7
          %v1004 = vsub.s32 0, %v1003
          %v1005 = vrot.slane %v1000, %v1004
          %v1006 = vlaneseq
          %v1007 = vshrl.u32 %v1006, 7
          %v1008 = vsub.s32 1, %v1007
          %v1009 = vrot.slane %v1000, %v1008
          %v1010 = vlaneseq
          %v1011 = vshrl.u32 %v1010, 7
          %v1012 = vsub.s32 2, %v1011
          %v1013 = vrot.slane %v1000, %v1012
          %v1113 = vunpack.c.l.b16 %v904
          %v1114 = vunpack.c.h.b16 %v904
          %v1115 = vunpack.c.l.b16 %v905
          %v1116 = vunpack.c.l.b16 %v906
          %v1117 = vunpack.c.h.b16 %v906
          %v1118 = vunpack.c.l.b16 %v907
          %v1119 = vunpack.c.l.b16 %v908
          %v1120 = vunpack.c.h.b16 %v908
          %v1121 = vunpack.c.l.b16 %v909
          %v1122 = vunpack.c.l.b16 %v910
          %v1123 = vunpack.c.h.b16 %v910
          %v1124 = vunpack.c.l.b16 %v911
          %v1125 = vunpack.c.l.b16 %v912
          %v1126 = vunpack.c.h.b16 %v912
          %v1127 = vunpack.c.l.b16 %v913
          %v1128 = vunpack.c.l.b16 %v914
          %v1129 = vunpack.c.h.b16 %v914
          %v1130 = vunpack.c.l.b16 %v915
          %v1131 = vunpack.c.l.b16 %v916
          %v1132 = vunpack.c.h.b16 %v916
          %v1133 = vunpack.c.l.b16 %v917
          %v1134 = vunpack.c.l.b16 %v918
          %v1135 = vunpack.c.h.b16 %v918
          %v1136 = vunpack.c.l.b16 %v919
          %v1137 = vunpack.c.l.b16 %v920
          %v1138 = vunpack.c.h.b16 %v920
          %v1139 = vunpack.c.l.b16 %v921
          %v1140 = vunpack.c.l.b16 %v922
          %v1141 = vunpack.c.h.b16 %v922
          %v1142 = vunpack.c.l.b16 %v923
          %v1143 = vunpack.c.l.b16 %v924
          %v1144 = vunpack.c.h.b16 %v924
          %v1145 = vunpack.c.l.b16 %v925
          %v1146 = vunpack.c.l.b16 %v926
          %v1147 = vunpack.c.h.b16 %v926
          %v1148 = vunpack.c.l.b16 %v927
          %v1149 = vunpack.c.l.b16 %v928
          %v1150 = vunpack.c.h.b16 %v928
          %v1151 = vunpack.c.l.b16 %v929
          %v1152 = vunpack.c.l.b16 %v930
          %v1153 = vunpack.c.h.b16 %v930
          %v1154 = vunpack.c.l.b16 %v931
          %v1155 = vunpack.c.l.b16 %v932
          %v1156 = vunpack.c.h.b16 %v932
          %v1157 = vunpack.c.l.b16 %v933
          %v1158 = vunpack.c.l.b16 %v934
          %v1159 = vunpack.c.h.b16 %v934
          %v1160 = vunpack.c.l.b16 %v935
          %v1161 = vunpack.c.l.b16 %v936
          %v1162 = vunpack.c.h.b16 %v936
          %v1163 = vunpack.c.l.b16 %v937
          %v1164 = vunpack.c.l.b16 %v938
          %v1165 = vunpack.c.h.b16 %v938
          %v1166 = vunpack.c.l.b16 %v939
          %v1167 = vunpack.c.l.b16 %v940
          %v1168 = vunpack.c.h.b16 %v940
          %v1169 = vunpack.c.l.b16 %v941
          %v1170 = vunpack.c.l.b16 %v942
          %v1171 = vunpack.c.h.b16 %v942
          %v1172 = vunpack.c.l.b16 %v943
          %v1173 = vunpack.c.l.b16 %v944
          %v1174 = vunpack.c.h.b16 %v944
          %v1175 = vunpack.c.l.b16 %v945
          %v1176 = vunpack.c.l.b16 %v946
          %v1177 = vunpack.c.h.b16 %v946
          %v1178 = vunpack.c.l.b16 %v947
          %v1179 = vunpack.c.l.b16 %v948
          %v1180 = vunpack.c.h.b16 %v948
          %v1181 = vunpack.c.l.b16 %v949
          %v1182 = vunpack.c.l.b16 %v950
          %v1183 = vunpack.c.h.b16 %v950
          %v1184 = vunpack.c.l.b16 %v951
          %v1185 = vunpack.c.l.b16 %v952
          %v1186 = vunpack.c.h.b16 %v952
          %v1187 = vunpack.c.l.b16 %v953
          %v1188 = vunpack.c.l.b16 %v954
          %v1189 = vunpack.c.h.b16 %v954
          %v1190 = vunpack.c.l.b16 %v955
          %v1191 = vunpack.c.l.b16 %v956
          %v1192 = vunpack.c.h.b16 %v956
          %v1193 = vunpack.c.l.b16 %v957
          %v1194 = vunpack.c.l.b16 %v958
          %v1195 = vunpack.c.h.b16 %v958
          %v1196 = vunpack.c.l.b16 %v959
          %v1197 = vunpack.c.l.b16 %v960
          %v1198 = vunpack.c.h.b16 %v960
          %v1199 = vunpack.c.l.b16 %v961
          %v1200 = vunpack.c.l.b16 %v962
          %v1201 = vunpack.c.h.b16 %v962
          %v1202 = vunpack.c.l.b16 %v963
          %v1203 = vunpack.c.l.b16 %v964
          %v1204 = vunpack.c.h.b16 %v964
          %v1205 = vunpack.c.l.b16 %v965
          %v1206 = vunpack.c.l.b16 %v966
          %v1207 = vunpack.c.h.b16 %v966
          %v1208 = vunpack.c.l.b16 %v967
          %v1209 = vunpack.c.l.b16 %v968
          %v1210 = vunpack.c.h.b16 %v968
          %v1211 = vunpack.c.l.b16 %v969
          %v1212 = vunpack.c.l.b16 %v970
          %v1213 = vunpack.c.h.b16 %v970
          %v1214 = vunpack.c.l.b16 %v971
          %v1215 = vunpack.c.l.b16 %v972
          %v1216 = vunpack.c.h.b16 %v972
          %v1217 = vunpack.c.l.b16 %v973
          %v1218 = vunpack.c.l.b16 %v974
          %v1219 = vunpack.c.h.b16 %v974
          %v1220 = vunpack.c.l.b16 %v975
          %v1221 = vunpack.c.l.b16 %v976
          %v1222 = vunpack.c.h.b16 %v976
          %v1223 = vunpack.c.l.b16 %v977
          %v1224 = vunpack.c.l.b16 %v978
          %v1225 = vunpack.c.h.b16 %v978
          %v1226 = vunpack.c.l.b16 %v979
          %v1227 = vunpack.c.l.b16 %v980
          %v1228 = vunpack.c.h.b16 %v980
          %v1229 = vunpack.c.l.b16 %v981
          %v1230 = vunpack.c.l.b16 %v982
          %v1231 = vunpack.c.h.b16 %v982
          %v1232 = vunpack.c.l.b16 %v983
          %v1233 = vunpack.c.l.b16 %v984
          %v1234 = vunpack.c.h.b16 %v984
          %v1235 = vunpack.c.l.b16 %v985
          %v1236 = vunpack.c.l.b16 %v986
          %v1237 = vunpack.c.h.b16 %v986
          %v1238 = vunpack.c.l.b16 %v987
          %v1239 = vunpack.c.l.b16 %v988
          %v1240 = vunpack.c.h.b16 %v988
          %v1241 = vunpack.c.l.b16 %v989
          %v1242 = vunpack.c.l.b16 %v990
          %v1243 = vunpack.c.h.b16 %v990
          %v1244 = vunpack.c.l.b16 %v991
          %v1245 = vunpack.c.l.b16 %v992
          %v1246 = vunpack.c.h.b16 %v992
          %v1247 = vunpack.c.l.b16 %v993
          %v1248 = vunpack.c.l.b16 %v994
          %v1249 = vunpack.c.h.b16 %v994
          %v1250 = vunpack.c.l.b16 %v995
          %v1251 = vunpack.c.l.b16 %v996
          %v1252 = vunpack.c.h.b16 %v996
          %v1253 = vunpack.c.l.b16 %v997
          %v1254 = vunpack.c.l.b16 %v998
          %v1255 = vunpack.c.h.b16 %v998
          %v1256 = vunpack.c.l.b16 %v999
          %v1257 = vpack.c.b16 %v1116, %v1113
          %v1258 = vpack.c.b16 %v1117, %v1114
          %v1259 = vpack.c.b16 %v1118, %v1115
          %v1260 = vpack.c.b16 %v1122, %v1119
          %v1261 = vpack.c.b16 %v1123, %v1120
          %v1262 = vpack.c.b16 %v1124, %v1121
          %v1263 = vpack.c.b16 %v1128, %v1125
          %v1264 = vpack.c.b16 %v1129, %v1126
          %v1265 = vpack.c.b16 %v1130, %v1127
          %v1266 = vpack.c.b16 %v1134, %v1131
          %v1267 = vpack.c.b16 %v1135, %v1132
          %v1268 = vpack.c.b16 %v1136, %v1133
          %v1269 = vpack.c.b16 %v1140, %v1137
          %v1270 = vpack.c.b16 %v1141, %v1138
          %v1271 = vpack.c.b16 %v1142, %v1139
          %v1272 = vpack.c.b16 %v1146, %v1143
          %v1273 = vpack.c.b16 %v1147, %v1144
          %v1274 = vpack.c.b16 %v1148, %v1145
          %v1275 = vpack.c.b16 %v1152, %v1149
          %v1276 = vpack.c.b16 %v1153, %v1150
          %v1277 = vpack.c.b16 %v1154, %v1151
          %v1278 = vpack.c.b16 %v1158, %v1155
          %v1279 = vpack.c.b16 %v1159, %v1156
          %v1280 = vpack.c.b16 %v1160, %v1157
          %v1281 = vpack.c.b16 %v1164, %v1161
          %v1282 = vpack.c.b16 %v1165, %v1162
          %v1283 = vpack.c.b16 %v1166, %v1163
          %v1284 = vpack.c.b16 %v1170, %v1167
          %v1285 = vpack.c.b16 %v1171, %v1168
          %v1286 = vpack.c.b16 %v1172, %v1169
          %v1287 = vpack.c.b16 %v1176, %v1173
          %v1288 = vpack.c.b16 %v1177, %v1174
          %v1289 = vpack.c.b16 %v1178, %v1175
          %v1290 = vpack.c.b16 %v1182, %v1179
          %v1291 = vpack.c.b16 %v1183, %v1180
          %v1292 = vpack.c.b16 %v1184, %v1181
          %v1293 = vpack.c.b16 %v1188, %v1185
          %v1294 = vpack.c.b16 %v1189, %v1186
          %v1295 = vpack.c.b16 %v1190, %v1187
          %v1296 = vpack.c.b16 %v1194, %v1191
          %v1297 = vpack.c.b16 %v1195, %v1192
          %v1298 = vpack.c.b16 %v1196, %v1193
          %v1299 = vpack.c.b16 %v1200, %v1197
          %v1300 = vpack.c.b16 %v1201, %v1198
          %v1301 = vpack.c.b16 %v1202, %v1199
          %v1302 = vpack.c.b16 %v1206, %v1203
          %v1303 = vpack.c.b16 %v1207, %v1204
          %v1304 = vpack.c.b16 %v1208, %v1205
          %v1305 = vpack.c.b16 %v1212, %v1209
          %v1306 = vpack.c.b16 %v1213, %v1210
          %v1307 = vpack.c.b16 %v1214, %v1211
          %v1308 = vpack.c.b16 %v1218, %v1215
          %v1309 = vpack.c.b16 %v1219, %v1216
          %v1310 = vpack.c.b16 %v1220, %v1217
          %v1311 = vpack.c.b16 %v1224, %v1221
          %v1312 = vpack.c.b16 %v1225, %v1222
          %v1313 = vpack.c.b16 %v1226, %v1223
          %v1314 = vpack.c.b16 %v1230, %v1227
          %v1315 = vpack.c.b16 %v1231, %v1228
          %v1316 = vpack.c.b16 %v1232, %v1229
          %v1317 = vpack.c.b16 %v1236, %v1233
          %v1318 = vpack.c.b16 %v1237, %v1234
          %v1319 = vpack.c.b16 %v1238, %v1235
          %v1320 = vpack.c.b16 %v1242, %v1239
          %v1321 = vpack.c.b16 %v1243, %v1240
          %v1322 = vpack.c.b16 %v1244, %v1241
          %v1323 = vpack.c.b16 %v1248, %v1245
          %v1324 = vpack.c.b16 %v1249, %v1246
          %v1325 = vpack.c.b16 %v1250, %v1247
          %v1326 = vpack.c.b16 %v1254, %v1251
          %v1327 = vpack.c.b16 %v1255, %v1252
          %v1328 = vpack.c.b16 %v1256, %v1253
          %1401 = vmatprep.subr.bf16.mxu0 %v1279
          %1402 = vmatpush1.bf16.msra.mxu0 %v1278
          %1403 = vmatprep.subr.bf16.mxu0 %v1276
          %1404 = vmatpush1.bf16.msra.mxu0 %v1275
          %1405 = vmatprep.subr.bf16.mxu0 %v1273
          %1406 = vmatpush1.bf16.msra.mxu0 %v1272
          %1407 = vmatprep.subr.bf16.mxu0 %v1270
          %1408 = vmatpush1.bf16.msra.mxu0 %v1269
          %1409 = vmatprep.subr.bf16.mxu0 %v1267
          %1410 = vmatpush1.bf16.msra.mxu0 %v1266
          %1411 = vmatprep.subr.bf16.mxu0 %v1264
          %1412 = vmatpush1.bf16.msra.mxu0 %v1263
          %1413 = vmatprep.subr.bf16.mxu0 %v1261
          %1414 = vmatpush1.bf16.msra.mxu0 %v1260
          %1415 = vmatprep.subr.bf16.mxu0 %v1258
          %1416 = vmatpush1.bf16.msra.mxu0 %v1257
          %1417 = vmatprep.subr.bf16.mxu0 %v1303
          %1418 = vmatpush2.bf16.msra.mxu0 %v1302
          %1419 = vmatprep.subr.bf16.mxu0 %v1300
          %1420 = vmatpush2.bf16.msra.mxu0 %v1299
          %1421 = vmatprep.subr.bf16.mxu0 %v1297
          %1422 = vmatpush2.bf16.msra.mxu0 %v1296
          %1423 = vmatprep.subr.bf16.mxu0 %v1294
          %1424 = vmatpush2.bf16.msra.mxu0 %v1293
          %1425 = vmatprep.subr.bf16.mxu0 %v1291
          %1426 = vmatpush2.bf16.msra.mxu0 %v1290
          %1427 = vmatprep.subr.bf16.mxu0 %v1288
          %1428 = vmatpush2.bf16.msra.mxu0 %v1287
          %1429 = vmatprep.subr.bf16.mxu0 %v1285
          %1430 = vmatpush2.bf16.msra.mxu0 %v1284
          %1431 = vmatprep.subr.bf16.mxu0 %v1282
          %1432 = vmatpush2.bf16.msra.mxu0 %v1281
          %1433 = vmatprep.mubr.bf16.mxu0 %v899
          %1434 = vmatmul.mubr.bf16.gmra.mxu0 %v898
          %v1435 = vpop.f32.mrf.mxu0
          %v1436 = vadd.f32 %v1005, %v1435
          %v1437 = vpop.f32.mrf.mxu0
          %v1438 = vadd.f32 %v1009, %v1437
          %v1439 = vpop.f32.mrf.mxu0
          %v1440 = vadd.f32 %v1005, %v1439
          %v1441 = vpop.f32.mrf.mxu0
          %v1442 = vadd.f32 %v1009, %v1441
          %1443 = vmatprep.mubr.bf16.mxu0 %v902
          %1444 = vmatmul.mubr.bf16.gmra.mxu0 %v901
          %v1445 = vpop.f32.mrf.mxu0
          %v1446 = vadd.f32 %v1005, %v1445
          %v1447 = vpop.f32.mrf.mxu0
          %v1448 = vadd.f32 %v1009, %v1447
          %v1449 = vpop.f32.mrf.mxu0
          %v1450 = vpop.f32.mrf.mxu0
          %1451 = vdwg.mxu0
          %1452 = vmatprep.subr.bf16.mxu0 %v1327
          %1453 = vmatpush1.bf16.msra.mxu0 %v1326
          %1454 = vmatprep.subr.bf16.mxu0 %v1324
          %1455 = vmatpush1.bf16.msra.mxu0 %v1323
          %1456 = vmatprep.subr.bf16.mxu0 %v1321
          %1457 = vmatpush1.bf16.msra.mxu0 %v1320
          %1458 = vmatprep.subr.bf16.mxu0 %v1318
          %1459 = vmatpush1.bf16.msra.mxu0 %v1317
          %1460 = vmatprep.subr.bf16.mxu0 %v1315
          %1461 = vmatpush1.bf16.msra.mxu0 %v1314
          %1462 = vmatprep.subr.bf16.mxu0 %v1312
          %1463 = vmatpush1.bf16.msra.mxu0 %v1311
          %1464 = vmatprep.subr.bf16.mxu0 %v1309
          %1465 = vmatpush1.bf16.msra.mxu0 %v1308
          %1466 = vmatprep.subr.bf16.mxu0 %v1306
          %1467 = vmatpush1.bf16.msra.mxu0 %v1305
          %1468 = vmatprep.subr.bf16.mxu0 0
          %1469 = vmatpush2.bf16.msra.mxu0 0
          %1470 = vmatprep.subr.bf16.mxu0 0
          %1471 = vmatpush2.bf16.msra.mxu0 0
          %1472 = vmatprep.subr.bf16.mxu0 0
          %1473 = vmatpush2.bf16.msra.mxu0 0
          %1474 = vmatprep.subr.bf16.mxu0 0
          %1475 = vmatpush2.bf16.msra.mxu0 0
          %1476 = vmatprep.subr.bf16.mxu0 0
          %1477 = vmatpush2.bf16.msra.mxu0 0
          %1478 = vmatprep.subr.bf16.mxu0 0
          %1479 = vmatpush2.bf16.msra.mxu0 0
          %1480 = vmatprep.subr.bf16.mxu0 0
          %1481 = vmatpush2.bf16.msra.mxu0 0
          %1482 = vmatprep.subr.bf16.mxu0 0
          %1483 = vmatpush2.bf16.msra.mxu0 0
          %1484 = vmatprep.mubr.bf16.mxu0 0
          %1485 = vmatmul.mubr.bf16.gmra.mxu0 %v900
          %v1486 = vpop.f32.mrf.mxu0
          %v1487 = vadd.f32 %v1436, %v1486
          %v1488 = vpop.f32.mrf.mxu0
          %v1489 = vadd.f32 %v1438, %v1488
          %v1490 = vpop.f32.mrf.mxu0
          %v1491 = vadd.f32 %v1440, %v1490
          %v1492 = vpop.f32.mrf.mxu0
          %v1493 = vadd.f32 %v1442, %v1492
          %1494 = vmatprep.mubr.bf16.mxu0 0
          %1495 = vmatmul.mubr.bf16.gmra.mxu0 %v903
          %v1496 = vpop.f32.mrf.mxu0
          %v1497 = vadd.f32 %v1446, %v1496
          %v1498 = vpop.f32.mrf.mxu0
          %v1499 = vadd.f32 %v1448, %v1498
          %v1500 = vpop.f32.mrf.mxu0
          %v1501 = vpop.f32.mrf.mxu0
          %1502 = vdwg.mxu0
          %1503 = vmatprep.subr.bf16.mxu0 0
          %1504 = vmatpush1.bf16.msra.mxu0 %v1280
          %1505 = vmatprep.subr.bf16.mxu0 0
          %1506 = vmatpush1.bf16.msra.mxu0 %v1277
          %1507 = vmatprep.subr.bf16.mxu0 0
          %1508 = vmatpush1.bf16.msra.mxu0 %v1274
          %1509 = vmatprep.subr.bf16.mxu0 0
          %1510 = vmatpush1.bf16.msra.mxu0 %v1271
          %1511 = vmatprep.subr.bf16.mxu0 0
          %1512 = vmatpush1.bf16.msra.mxu0 %v1268
          %1513 = vmatprep.subr.bf16.mxu0 0
          %1514 = vmatpush1.bf16.msra.mxu0 %v1265
          %1515 = vmatprep.subr.bf16.mxu0 0
          %1516 = vmatpush1.bf16.msra.mxu0 %v1262
          %1517 = vmatprep.subr.bf16.mxu0 0
          %1518 = vmatpush1.bf16.msra.mxu0 %v1259
          %1519 = vmatprep.subr.bf16.mxu0 0
          %1520 = vmatpush2.bf16.msra.mxu0 %v1304
          %1521 = vmatprep.subr.bf16.mxu0 0
          %1522 = vmatpush2.bf16.msra.mxu0 %v1301
          %1523 = vmatprep.subr.bf16.mxu0 0
          %1524 = vmatpush2.bf16.msra.mxu0 %v1298
          %1525 = vmatprep.subr.bf16.mxu0 0
          %1526 = vmatpush2.bf16.msra.mxu0 %v1295
          %1527 = vmatprep.subr.bf16.mxu0 0
          %1528 = vmatpush2.bf16.msra.mxu0 %v1292
          %1529 = vmatprep.subr.bf16.mxu0 0
          %1530 = vmatpush2.bf16.msra.mxu0 %v1289
          %1531 = vmatprep.subr.bf16.mxu0 0
          %1532 = vmatpush2.bf16.msra.mxu0 %v1286
          %1533 = vmatprep.subr.bf16.mxu0 0
          %1534 = vmatpush2.bf16.msra.mxu0 %v1283
          %1535 = vmatprep.mubr.bf16.mxu0 %v899
          %1536 = vmatmul.mubr.bf16.gmra.mxu0 %v898
          %v1537 = vpop.f32.mrf.mxu0
          %v1538 = vadd.f32 %v1013, %v1537
          %v1539 = vpop.f32.mrf.mxu0
          %v1540 = vpop.f32.mrf.mxu0
          %v1541 = vadd.f32 %v1013, %v1540
          %v1542 = vpop.f32.mrf.mxu0
          %1543 = vmatprep.mubr.bf16.mxu0 %v902
          %1544 = vmatmul.mubr.bf16.gmra.mxu0 %v901
          %v1545 = vpop.f32.mrf.mxu0
          %v1546 = vadd.f32 %v1013, %v1545
          %v1547 = vpop.f32.mrf.mxu0
          %v1548 = vpop.f32.mrf.mxu0
          %v1549 = vpop.f32.mrf.mxu0
          %1550 = vdwg.mxu0
          %1551 = vmatprep.subr.bf16.mxu0 0
          %1552 = vmatpush1.bf16.msra.mxu0 %v1328
          %1553 = vmatprep.subr.bf16.mxu0 0
          %1554 = vmatpush1.bf16.msra.mxu0 %v1325
          %1555 = vmatprep.subr.bf16.mxu0 0
          %1556 = vmatpush1.bf16.msra.mxu0 %v1322
          %1557 = vmatprep.subr.bf16.mxu0 0
          %1558 = vmatpush1.bf16.msra.mxu0 %v1319
          %1559 = vmatprep.subr.bf16.mxu0 0
          %1560 = vmatpush1.bf16.msra.mxu0 %v1316
          %1561 = vmatprep.subr.bf16.mxu0 0
          %1562 = vmatpush1.bf16.msra.mxu0 %v1313
          %1563 = vmatprep.subr.bf16.mxu0 0
          %1564 = vmatpush1.bf16.msra.mxu0 %v1310
          %1565 = vmatprep.subr.bf16.mxu0 0
          %1566 = vmatpush1.bf16.msra.mxu0 %v1307
          %1567 = vmatprep.subr.bf16.mxu0 0
          %1568 = vmatpush2.bf16.msra.mxu0 0
          %1569 = vmatprep.subr.bf16.mxu0 0
          %1570 = vmatpush2.bf16.msra.mxu0 0
          %1571 = vmatprep.subr.bf16.mxu0 0
          %1572 = vmatpush2.bf16.msra.mxu0 0
          %1573 = vmatprep.subr.bf16.mxu0 0
          %1574 = vmatpush2.bf16.msra.mxu0 0
          %1575 = vmatprep.subr.bf16.mxu0 0
          %1576 = vmatpush2.bf16.msra.mxu0 0
          %1577 = vmatprep.subr.bf16.mxu0 0
          %1578 = vmatpush2.bf16.msra.mxu0 0
          %1579 = vmatprep.subr.bf16.mxu0 0
          %1580 = vmatpush2.bf16.msra.mxu0 0
          %1581 = vmatprep.subr.bf16.mxu0 0
          %1582 = vmatpush2.bf16.msra.mxu0 0
          %1583 = vmatprep.mubr.bf16.mxu0 0
          %1584 = vmatmul.mubr.bf16.gmra.mxu0 %v900
          %v1585 = vpop.f32.mrf.mxu0
          %v1586 = vadd.f32 %v1538, %v1585
          %v1587 = vpop.f32.mrf.mxu0
          %v1588 = vpop.f32.mrf.mxu0
          %v1589 = vadd.f32 %v1541, %v1588
          %v1590 = vpop.f32.mrf.mxu0
          %1591 = vmatprep.mubr.bf16.mxu0 0
          %1592 = vmatmul.mubr.bf16.gmra.mxu0 %v903
          %v1593 = vpop.f32.mrf.mxu0
          %v1594 = vadd.f32 %v1546, %v1593
          %v1595 = vpop.f32.mrf.mxu0
          %v1596 = vpop.f32.mrf.mxu0
          %v1597 = vpop.f32.mrf.mxu0
          %1598 = vdwg.mxu0
          %v1599 = vmax.f32 %v1487, 0.0
          %v1600 = vmax.f32 %v1489, 0.0
          %v1601 = vmax.f32 %v1586, 0.0
          %v1602 = vmax.f32 %v1491, 0.0
          %v1603 = vmax.f32 %v1493, 0.0
          %v1604 = vmax.f32 %v1589, 0.0
          %v1605 = vmax.f32 %v1497, 0.0
          %v1606 = vmax.f32 %v1499, 0.0
          %v1607 = vmax.f32 %v1594, 0.0
          %v1608 = vpack.c.bf16 %v1602, %v1599
          %v1609 = vpack.c.bf16 %v1603, %v1600
          %v1610 = vpack.c.bf16 %v1604, %v1601
          %v1611 = vpack.c.bf16 %v1605, %v1605
          %v1612 = vpack.c.bf16 %v1606, %v1606
          %v1613 = vpack.c.bf16 %v1607, %v1607
          %v1614 = vld [vmem:[%s5] sm:$0xff]
          %v1615 = vld [vmem:[%s5 + $0x8] sm:$0xf]
          %v1616 = vld [vmem:[%s5 + $0xc] sm:$0xff]
          %v1617 = vld [vmem:[%s5 + $0x14] sm:$0xf]
          %v1618 = vld [vmem:[%s5 + $0x18] sm:$0xff]
          %v1619 = vld [vmem:[%s5 + $0x20] sm:$0xf]
          %v1620 = vld [vmem:[%s5 + $0x24] sm:$0xff]
          %v1621 = vld [vmem:[%s5 + $0x2c] sm:$0xf]
          %v1622 = vld [vmem:[%s5 + $0x30] sm:$0xff]
          %v1623 = vld [vmem:[%s5 + $0x38] sm:$0xf]
          %v1624 = vld [vmem:[%s5 + $0x3c] sm:$0xff]
          %v1625 = vld [vmem:[%s5 + $0x44] sm:$0xf]
          %v1626 = vld [vmem:[%s5 + $0x48] sm:$0xff]
          %v1627 = vld [vmem:[%s5 + $0x50] sm:$0xf]
          %v1628 = vld [vmem:[%s5 + $0x54] sm:$0xff]
          %v1629 = vld [vmem:[%s5 + $0x5c] sm:$0xf]
          %v1630 = vld [vmem:[%s5 + $0x60] sm:$0xff]
          %v1631 = vld [vmem:[%s5 + $0x68] sm:$0xf]
          %v1632 = vld [vmem:[%s5 + $0x6c] sm:$0xff]
          %v1633 = vld [vmem:[%s5 + $0x74] sm:$0xf]
          %v1634 = vld [vmem:[%s5 + $0x78] sm:$0xff]
          %v1635 = vld [vmem:[%s5 + $0x80] sm:$0xf]
          %v1636 = vld [vmem:[%s5 + $0x84] sm:$0xff]
          %v1637 = vld [vmem:[%s5 + $0x8c] sm:$0xf]
          %v1638 = vld [vmem:[%s5 + $0x90] sm:$0xff]
          %v1639 = vld [vmem:[%s5 + $0x98] sm:$0xf]
          %v1640 = vld [vmem:[%s5 + $0x9c] sm:$0xff]
          %v1641 = vld [vmem:[%s5 + $0xa4] sm:$0xf]
          %v1642 = vld [vmem:[%s5 + $0xa8] sm:$0xff]
          %v1643 = vld [vmem:[%s5 + $0xb0] sm:$0xf]
          %v1644 = vld [vmem:[%s5 + $0xb4] sm:$0xff]
          %v1645 = vld [vmem:[%s5 + $0xbc] sm:$0xf]
          %v1646 = vld [vmem:[%s5 + $0xc0] sm:$0xff]
          %v1647 = vld [vmem:[%s5 + $0xc8] sm:$0xf]
          %v1648 = vld [vmem:[%s5 + $0xcc] sm:$0xff]
          %v1649 = vld [vmem:[%s5 + $0xd4] sm:$0xf]
          %v1650 = vld [vmem:[%s5 + $0xd8] sm:$0xff]
          %v1651 = vld [vmem:[%s5 + $0xe0] sm:$0xf]
          %v1652 = vld [vmem:[%s5 + $0xe4] sm:$0xff]
          %v1653 = vld [vmem:[%s5 + $0xec] sm:$0xf]
          %v1654 = vld [vmem:[%s5 + $0xf0] sm:$0xff]
          %v1655 = vld [vmem:[%s5 + $0xf8] sm:$0xf]
          %v1656 = vld [vmem:[%s5 + $0xfc] sm:$0xff]
          %v1657 = vld [vmem:[%s5 + $0x104] sm:$0xf]
          %v1658 = vld [vmem:[%s5 + $0x108] sm:$0xff]
          %v1659 = vld [vmem:[%s5 + $0x110] sm:$0xf]
          %v1660 = vld [vmem:[%s5 + $0x114] sm:$0xff]
          %v1661 = vld [vmem:[%s5 + $0x11c] sm:$0xf]
          %v1662 = vld [vmem:[%s5 + $0x120] sm:$0xff]
          %v1663 = vld [vmem:[%s5 + $0x128] sm:$0xf]
          %v1664 = vld [vmem:[%s5 + $0x12c] sm:$0xff]
          %v1665 = vld [vmem:[%s5 + $0x134] sm:$0xf]
          %v1666 = vld [vmem:[%s5 + $0x138] sm:$0xff]
          %v1667 = vld [vmem:[%s5 + $0x140] sm:$0xf]
          %v1668 = vld [vmem:[%s5 + $0x144] sm:$0xff]
          %v1669 = vld [vmem:[%s5 + $0x14c] sm:$0xf]
          %v1670 = vld [vmem:[%s5 + $0x150] sm:$0xff]
          %v1671 = vld [vmem:[%s5 + $0x158] sm:$0xf]
          %v1672 = vld [vmem:[%s5 + $0x15c] sm:$0xff]
          %v1673 = vld [vmem:[%s5 + $0x164] sm:$0xf]
          %v1674 = vld [vmem:[%s5 + $0x168] sm:$0xff]
          %v1675 = vld [vmem:[%s5 + $0x170] sm:$0xf]
          %v1676 = vld [vmem:[%s5 + $0x174] sm:$0xff]
          %v1677 = vld [vmem:[%s5 + $0x17c] sm:$0xf]
          %v1678 = vld [vmem:[%s5 + $0x180] sm:$0xff]
          %v1679 = vld [vmem:[%s5 + $0x188] sm:$0xf]
          %v1680 = vld [vmem:[%s5 + $0x18c] sm:$0xff]
          %v1681 = vld [vmem:[%s5 + $0x194] sm:$0xf]
          %v1682 = vld [vmem:[%s5 + $0x198] sm:$0xff]
          %v1683 = vld [vmem:[%s5 + $0x1a0] sm:$0xf]
          %v1684 = vld [vmem:[%s5 + $0x1a4] sm:$0xff]
          %v1685 = vld [vmem:[%s5 + $0x1ac] sm:$0xf]
          %v1686 = vld [vmem:[%s5 + $0x1b0] sm:$0xff]
          %v1687 = vld [vmem:[%s5 + $0x1b8] sm:$0xf]
          %v1688 = vld [vmem:[%s5 + $0x1bc] sm:$0xff]
          %v1689 = vld [vmem:[%s5 + $0x1c4] sm:$0xf]
          %v1690 = vld [vmem:[%s5 + $0x1c8] sm:$0xff]
          %v1691 = vld [vmem:[%s5 + $0x1d0] sm:$0xf]
          %v1692 = vld [vmem:[%s5 + $0x1d4] sm:$0xff]
          %v1693 = vld [vmem:[%s5 + $0x1dc] sm:$0xf]
          %v1694 = vld [vmem:[%s5 + $0x1e0] sm:$0xff]
          %v1695 = vld [vmem:[%s5 + $0x1e8] sm:$0xf]
          %v1696 = vld [vmem:[%s5 + $0x1ec] sm:$0xff]
          %v1697 = vld [vmem:[%s5 + $0x1f4] sm:$0xf]
          %v1698 = vld [vmem:[%s5 + $0x1f8] sm:$0xff]
          %v1699 = vld [vmem:[%s5 + $0x200] sm:$0xf]
          %v1700 = vld [vmem:[%s5 + $0x204] sm:$0xff]
          %v1701 = vld [vmem:[%s5 + $0x20c] sm:$0xf]
          %v1702 = vld [vmem:[%s5 + $0x210] sm:$0xff]
          %v1703 = vld [vmem:[%s5 + $0x218] sm:$0xf]
          %v1704 = vld [vmem:[%s5 + $0x21c] sm:$0xff]
          %v1705 = vld [vmem:[%s5 + $0x224] sm:$0xf]
          %v1706 = vld [vmem:[%s5 + $0x228] sm:$0xff]
          %v1707 = vld [vmem:[%s5 + $0x230] sm:$0xf]
          %v1708 = vld [vmem:[%s5 + $0x234] sm:$0xff]
          %v1709 = vld [vmem:[%s5 + $0x23c] sm:$0xf]
          %v1710 = vld [vmem:[%s6] sm:$0x7]
          %v1712 = vlaneseq
          %v1713 = vshrl.u32 %v1712, 7
          %v1714 = vsub.s32 0, %v1713
          %v1715 = vrot.slane %v1710, %v1714
          %v1716 = vlaneseq
          %v1717 = vshrl.u32 %v1716, 7
          %v1718 = vsub.s32 1, %v1717
          %v1719 = vrot.slane %v1710, %v1718
          %v1720 = vlaneseq
          %v1721 = vshrl.u32 %v1720, 7
          %v1722 = vsub.s32 2, %v1721
          %v1723 = vrot.slane %v1710, %v1722
          %v1823 = vunpack.c.l.b16 %v1614
          %v1824 = vunpack.c.h.b16 %v1614
          %v1825 = vunpack.c.l.b16 %v1615
          %v1826 = vunpack.c.l.b16 %v1616
          %v1827 = vunpack.c.h.b16 %v1616
          %v1828 = vunpack.c.l.b16 %v1617
          %v1829 = vunpack.c.l.b16 %v1618
          %v1830 = vunpack.c.h.b16 %v1618
          %v1831 = vunpack.c.l.b16 %v1619
          %v1832 = vunpack.c.l.b16 %v1620
          %v1833 = vunpack.c.h.b16 %v1620
          %v1834 = vunpack.c.l.b16 %v1621
          %v1835 = vunpack.c.l.b16 %v1622
          %v1836 = vunpack.c.h.b16 %v1622
          %v1837 = vunpack.c.l.b16 %v1623
          %v1838 = vunpack.c.l.b16 %v1624
          %v1839 = vunpack.c.h.b16 %v1624
          %v1840 = vunpack.c.l.b16 %v1625
          %v1841 = vunpack.c.l.b16 %v1626
          %v1842 = vunpack.c.h.b16 %v1626
          %v1843 = vunpack.c.l.b16 %v1627
          %v1844 = vunpack.c.l.b16 %v1628
          %v1845 = vunpack.c.h.b16 %v1628
          %v1846 = vunpack.c.l.b16 %v1629
          %v1847 = vunpack.c.l.b16 %v1630
          %v1848 = vunpack.c.h.b16 %v1630
          %v1849 = vunpack.c.l.b16 %v1631
          %v1850 = vunpack.c.l.b16 %v1632
          %v1851 = vunpack.c.h.b16 %v1632
          %v1852 = vunpack.c.l.b16 %v1633
          %v1853 = vunpack.c.l.b16 %v1634
          %v1854 = vunpack.c.h.b16 %v1634
          %v1855 = vunpack.c.l.b16 %v1635
          %v1856 = vunpack.c.l.b16 %v1636
          %v1857 = vunpack.c.h.b16 %v1636
          %v1858 = vunpack.c.l.b16 %v1637
          %v1859 = vunpack.c.l.b16 %v1638
          %v1860 = vunpack.c.h.b16 %v1638
          %v1861 = vunpack.c.l.b16 %v1639
          %v1862 = vunpack.c.l.b16 %v1640
          %v1863 = vunpack.c.h.b16 %v1640
          %v1864 = vunpack.c.l.b16 %v1641
          %v1865 = vunpack.c.l.b16 %v1642
          %v1866 = vunpack.c.h.b16 %v1642
          %v1867 = vunpack.c.l.b16 %v1643
          %v1868 = vunpack.c.l.b16 %v1644
          %v1869 = vunpack.c.h.b16 %v1644
          %v1870 = vunpack.c.l.b16 %v1645
          %v1871 = vunpack.c.l.b16 %v1646
          %v1872 = vunpack.c.h.b16 %v1646
          %v1873 = vunpack.c.l.b16 %v1647
          %v1874 = vunpack.c.l.b16 %v1648
          %v1875 = vunpack.c.h.b16 %v1648
          %v1876 = vunpack.c.l.b16 %v1649
          %v1877 = vunpack.c.l.b16 %v1650
          %v1878 = vunpack.c.h.b16 %v1650
          %v1879 = vunpack.c.l.b16 %v1651
          %v1880 = vunpack.c.l.b16 %v1652
          %v1881 = vunpack.c.h.b16 %v1652
          %v1882 = vunpack.c.l.b16 %v1653
          %v1883 = vunpack.c.l.b16 %v1654
          %v1884 = vunpack.c.h.b16 %v1654
          %v1885 = vunpack.c.l.b16 %v1655
          %v1886 = vunpack.c.l.b16 %v1656
          %v1887 = vunpack.c.h.b16 %v1656
          %v1888 = vunpack.c.l.b16 %v1657
          %v1889 = vunpack.c.l.b16 %v1658
          %v1890 = vunpack.c.h.b16 %v1658
          %v1891 = vunpack.c.l.b16 %v1659
          %v1892 = vunpack.c.l.b16 %v1660
          %v1893 = vunpack.c.h.b16 %v1660
          %v1894 = vunpack.c.l.b16 %v1661
          %v1895 = vunpack.c.l.b16 %v1662
          %v1896 = vunpack.c.h.b16 %v1662
          %v1897 = vunpack.c.l.b16 %v1663
          %v1898 = vunpack.c.l.b16 %v1664
          %v1899 = vunpack.c.h.b16 %v1664
          %v1900 = vunpack.c.l.b16 %v1665
          %v1901 = vunpack.c.l.b16 %v1666
          %v1902 = vunpack.c.h.b16 %v1666
          %v1903 = vunpack.c.l.b16 %v1667
          %v1904 = vunpack.c.l.b16 %v1668
          %v1905 = vunpack.c.h.b16 %v1668
          %v1906 = vunpack.c.l.b16 %v1669
          %v1907 = vunpack.c.l.b16 %v1670
          %v1908 = vunpack.c.h.b16 %v1670
          %v1909 = vunpack.c.l.b16 %v1671
          %v1910 = vunpack.c.l.b16 %v1672
          %v1911 = vunpack.c.h.b16 %v1672
          %v1912 = vunpack.c.l.b16 %v1673
          %v1913 = vunpack.c.l.b16 %v1674
          %v1914 = vunpack.c.h.b16 %v1674
          %v1915 = vunpack.c.l.b16 %v1675
          %v1916 = vunpack.c.l.b16 %v1676
          %v1917 = vunpack.c.h.b16 %v1676
          %v1918 = vunpack.c.l.b16 %v1677
          %v1919 = vunpack.c.l.b16 %v1678
          %v1920 = vunpack.c.h.b16 %v1678
          %v1921 = vunpack.c.l.b16 %v1679
          %v1922 = vunpack.c.l.b16 %v1680
          %v1923 = vunpack.c.h.b16 %v1680
          %v1924 = vunpack.c.l.b16 %v1681
          %v1925 = vunpack.c.l.b16 %v1682
          %v1926 = vunpack.c.h.b16 %v1682
          %v1927 = vunpack.c.l.b16 %v1683
          %v1928 = vunpack.c.l.b16 %v1684
          %v1929 = vunpack.c.h.b16 %v1684
          %v1930 = vunpack.c.l.b16 %v1685
          %v1931 = vunpack.c.l.b16 %v1686
          %v1932 = vunpack.c.h.b16 %v1686
          %v1933 = vunpack.c.l.b16 %v1687
          %v1934 = vunpack.c.l.b16 %v1688
          %v1935 = vunpack.c.h.b16 %v1688
          %v1936 = vunpack.c.l.b16 %v1689
          %v1937 = vunpack.c.l.b16 %v1690
          %v1938 = vunpack.c.h.b16 %v1690
          %v1939 = vunpack.c.l.b16 %v1691
          %v1940 = vunpack.c.l.b16 %v1692
          %v1941 = vunpack.c.h.b16 %v1692
          %v1942 = vunpack.c.l.b16 %v1693
          %v1943 = vunpack.c.l.b16 %v1694
          %v1944 = vunpack.c.h.b16 %v1694
          %v1945 = vunpack.c.l.b16 %v1695
          %v1946 = vunpack.c.l.b16 %v1696
          %v1947 = vunpack.c.h.b16 %v1696
          %v1948 = vunpack.c.l.b16 %v1697
          %v1949 = vunpack.c.l.b16 %v1698
          %v1950 = vunpack.c.h.b16 %v1698
          %v1951 = vunpack.c.l.b16 %v1699
          %v1952 = vunpack.c.l.b16 %v1700
          %v1953 = vunpack.c.h.b16 %v1700
          %v1954 = vunpack.c.l.b16 %v1701
          %v1955 = vunpack.c.l.b16 %v1702
          %v1956 = vunpack.c.h.b16 %v1702
          %v1957 = vunpack.c.l.b16 %v1703
          %v1958 = vunpack.c.l.b16 %v1704
          %v1959 = vunpack.c.h.b16 %v1704
          %v1960 = vunpack.c.l.b16 %v1705
          %v1961 = vunpack.c.l.b16 %v1706
          %v1962 = vunpack.c.h.b16 %v1706
          %v1963 = vunpack.c.l.b16 %v1707
          %v1964 = vunpack.c.l.b16 %v1708
          %v1965 = vunpack.c.h.b16 %v1708
          %v1966 = vunpack.c.l.b16 %v1709
          %v1967 = vpack.c.b16 %v1826, %v1823
          %v1968 = vpack.c.b16 %v1827, %v1824
          %v1969 = vpack.c.b16 %v1828, %v1825
          %v1970 = vpack.c.b16 %v1832, %v1829
          %v1971 = vpack.c.b16 %v1833, %v1830
          %v1972 = vpack.c.b16 %v1834, %v1831
          %v1973 = vpack.c.b16 %v1838, %v1835
          %v1974 = vpack.c.b16 %v1839, %v1836
          %v1975 = vpack.c.b16 %v1840, %v1837
          %v1976 = vpack.c.b16 %v1844, %v1841
          %v1977 = vpack.c.b16 %v1845, %v1842
          %v1978 = vpack.c.b16 %v1846, %v1843
          %v1979 = vpack.c.b16 %v1850, %v1847
          %v1980 = vpack.c.b16 %v1851, %v1848
          %v1981 = vpack.c.b16 %v1852, %v1849
          %v1982 = vpack.c.b16 %v1856, %v1853
          %v1983 = vpack.c.b16 %v1857, %v1854
          %v1984 = vpack.c.b16 %v1858, %v1855
          %v1985 = vpack.c.b16 %v1862, %v1859
          %v1986 = vpack.c.b16 %v1863, %v1860
          %v1987 = vpack.c.b16 %v1864, %v1861
          %v1988 = vpack.c.b16 %v1868, %v1865
          %v1989 = vpack.c.b16 %v1869, %v1866
          %v1990 = vpack.c.b16 %v1870, %v1867
          %v1991 = vpack.c.b16 %v1874, %v1871
          %v1992 = vpack.c.b16 %v1875, %v1872
          %v1993 = vpack.c.b16 %v1876, %v1873
          %v1994 = vpack.c.b16 %v1880, %v1877
          %v1995 = vpack.c.b16 %v1881, %v1878
          %v1996 = vpack.c.b16 %v1882, %v1879
          %v1997 = vpack.c.b16 %v1886, %v1883
          %v1998 = vpack.c.b16 %v1887, %v1884
          %v1999 = vpack.c.b16 %v1888, %v1885
          %v2000 = vpack.c.b16 %v1892, %v1889
          %v2001 = vpack.c.b16 %v1893, %v1890
          %v2002 = vpack.c.b16 %v1894, %v1891
          %v2003 = vpack.c.b16 %v1898, %v1895
          %v2004 = vpack.c.b16 %v1899, %v1896
          %v2005 = vpack.c.b16 %v1900, %v1897
          %v2006 = vpack.c.b16 %v1904, %v1901
          %v2007 = vpack.c.b16 %v1905, %v1902
          %v2008 = vpack.c.b16 %v1906, %v1903
          %v2009 = vpack.c.b16 %v1910, %v1907
          %v2010 = vpack.c.b16 %v1911, %v1908
          %v2011 = vpack.c.b16 %v1912, %v1909
          %v2012 = vpack.c.b16 %v1916, %v1913
          %v2013 = vpack.c.b16 %v1917, %v1914
          %v2014 = vpack.c.b16 %v1918, %v1915
          %v2015 = vpack.c.b16 %v1922, %v1919
          %v2016 = vpack.c.b16 %v1923, %v1920
          %v2017 = vpack.c.b16 %v1924, %v1921
          %v2018 = vpack.c.b16 %v1928, %v1925
          %v2019 = vpack.c.b16 %v1929, %v1926
          %v2020 = vpack.c.b16 %v1930, %v1927
          %v2021 = vpack.c.b16 %v1934, %v1931
          %v2022 = vpack.c.b16 %v1935, %v1932
          %v2023 = vpack.c.b16 %v1936, %v1933
          %v2024 = vpack.c.b16 %v1940, %v1937
          %v2025 = vpack.c.b16 %v1941, %v1938
          %v2026 = vpack.c.b16 %v1942, %v1939
          %v2027 = vpack.c.b16 %v1946, %v1943
          %v2028 = vpack.c.b16 %v1947, %v1944
          %v2029 = vpack.c.b16 %v1948, %v1945
          %v2030 = vpack.c.b16 %v1952, %v1949
          %v2031 = vpack.c.b16 %v1953, %v1950
          %v2032 = vpack.c.b16 %v1954, %v1951
          %v2033 = vpack.c.b16 %v1958, %v1955
          %v2034 = vpack.c.b16 %v1959, %v1956
          %v2035 = vpack.c.b16 %v1960, %v1957
          %v2036 = vpack.c.b16 %v1964, %v1961
          %v2037 = vpack.c.b16 %v1965, %v1962
          %v2038 = vpack.c.b16 %v1966, %v1963
          %2111 = vmatprep.subr.bf16.mxu0 %v1989
          %2112 = vmatpush1.bf16.msra.mxu0 %v1988
          %2113 = vmatprep.subr.bf16.mxu0 %v1986
          %2114 = vmatpush1.bf16.msra.mxu0 %v1985
          %2115 = vmatprep.subr.bf16.mxu0 %v1983
          %2116 = vmatpush1.bf16.msra.mxu0 %v1982
          %2117 = vmatprep.subr.bf16.mxu0 %v1980
          %2118 = vmatpush1.bf16.msra.mxu0 %v1979
          %2119 = vmatprep.subr.bf16.mxu0 %v1977
          %2120 = vmatpush1.bf16.msra.mxu0 %v1976
          %2121 = vmatprep.subr.bf16.mxu0 %v1974
          %2122 = vmatpush1.bf16.msra.mxu0 %v1973
          %2123 = vmatprep.subr.bf16.mxu0 %v1971
          %2124 = vmatpush1.bf16.msra.mxu0 %v1970
          %2125 = vmatprep.subr.bf16.mxu0 %v1968
          %2126 = vmatpush1.bf16.msra.mxu0 %v1967
          %2127 = vmatprep.subr.bf16.mxu0 %v2013
          %2128 = vmatpush2.bf16.msra.mxu0 %v2012
          %2129 = vmatprep.subr.bf16.mxu0 %v2010
          %2130 = vmatpush2.bf16.msra.mxu0 %v2009
          %2131 = vmatprep.subr.bf16.mxu0 %v2007
          %2132 = vmatpush2.bf16.msra.mxu0 %v2006
          %2133 = vmatprep.subr.bf16.mxu0 %v2004
          %2134 = vmatpush2.bf16.msra.mxu0 %v2003
          %2135 = vmatprep.subr.bf16.mxu0 %v2001
          %2136 = vmatpush2.bf16.msra.mxu0 %v2000
          %2137 = vmatprep.subr.bf16.mxu0 %v1998
          %2138 = vmatpush2.bf16.msra.mxu0 %v1997
          %2139 = vmatprep.subr.bf16.mxu0 %v1995
          %2140 = vmatpush2.bf16.msra.mxu0 %v1994
          %2141 = vmatprep.subr.bf16.mxu0 %v1992
          %2142 = vmatpush2.bf16.msra.mxu0 %v1991
          %2143 = vmatprep.mubr.bf16.mxu0 %v1609
          %2144 = vmatmul.mubr.bf16.gmra.mxu0 %v1608
          %v2145 = vpop.f32.mrf.mxu0
          %v2146 = vadd.f32 %v1715, %v2145
          %v2147 = vpop.f32.mrf.mxu0
          %v2148 = vadd.f32 %v1719, %v2147
          %v2149 = vpop.f32.mrf.mxu0
          %v2150 = vadd.f32 %v1715, %v2149
          %v2151 = vpop.f32.mrf.mxu0
          %v2152 = vadd.f32 %v1719, %v2151
          %2153 = vmatprep.mubr.bf16.mxu0 %v1612
          %2154 = vmatmul.mubr.bf16.gmra.mxu0 %v1611
          %v2155 = vpop.f32.mrf.mxu0
          %v2156 = vadd.f32 %v1715, %v2155
          %v2157 = vpop.f32.mrf.mxu0
          %v2158 = vadd.f32 %v1719, %v2157
          %v2159 = vpop.f32.mrf.mxu0
          %v2160 = vpop.f32.mrf.mxu0
          %2161 = vdwg.mxu0
          %2162 = vmatprep.subr.bf16.mxu0 %v2037
          %2163 = vmatpush1.bf16.msra.mxu0 %v2036
          %2164 = vmatprep.subr.bf16.mxu0 %v2034
          %2165 = vmatpush1.bf16.msra.mxu0 %v2033
          %2166 = vmatprep.subr.bf16.mxu0 %v2031
          %2167 = vmatpush1.bf16.msra.mxu0 %v2030
          %2168 = vmatprep.subr.bf16.mxu0 %v2028
          %2169 = vmatpush1.bf16.msra.mxu0 %v2027
          %2170 = vmatprep.subr.bf16.mxu0 %v2025
          %2171 = vmatpush1.bf16.msra.mxu0 %v2024
          %2172 = vmatprep.subr.bf16.mxu0 %v2022
          %2173 = vmatpush1.bf16.msra.mxu0 %v2021
          %2174 = vmatprep.subr.bf16.mxu0 %v2019
          %2175 = vmatpush1.bf16.msra.mxu0 %v2018
          %2176 = vmatprep.subr.bf16.mxu0 %v2016
          %2177 = vmatpush1.bf16.msra.mxu0 %v2015
          %2178 = vmatprep.subr.bf16.mxu0 0
          %2179 = vmatpush2.bf16.msra.mxu0 0
          %2180 = vmatprep.subr.bf16.mxu0 0
          %2181 = vmatpush2.bf16.msra.mxu0 0
          %2182 = vmatprep.subr.bf16.mxu0 0
          %2183 = vmatpush2.bf16.msra.mxu0 0
          %2184 = vmatprep.subr.bf16.mxu0 0
          %2185 = vmatpush2.bf16.msra.mxu0 0
          %2186 = vmatprep.subr.bf16.mxu0 0
          %2187 = vmatpush2.bf16.msra.mxu0 0
          %2188 = vmatprep.subr.bf16.mxu0 0
          %2189 = vmatpush2.bf16.msra.mxu0 0
          %2190 = vmatprep.subr.bf16.mxu0 0
          %2191 = vmatpush2.bf16.msra.mxu0 0
          %2192 = vmatprep.subr.bf16.mxu0 0
          %2193 = vmatpush2.bf16.msra.mxu0 0
          %2194 = vmatprep.mubr.bf16.mxu0 0
          %2195 = vmatmul.mubr.bf16.gmra.mxu0 %v1610
          %v2196 = vpop.f32.mrf.mxu0
          %v2197 = vadd.f32 %v2146, %v2196
          %v2198 = vpop.f32.mrf.mxu0
          %v2199 = vadd.f32 %v2148, %v2198
          %v2200 = vpop.f32.mrf.mxu0
          %v2201 = vadd.f32 %v2150, %v2200
          %v2202 = vpop.f32.mrf.mxu0
          %v2203 = vadd.f32 %v2152, %v2202
          %2204 = vmatprep.mubr.bf16.mxu0 0
          %2205 = vmatmul.mubr.bf16.gmra.mxu0 %v1613
          %v2206 = vpop.f32.mrf.mxu0
          %v2207 = vadd.f32 %v2156, %v2206
          %v2208 = vpop.f32.mrf.mxu0
          %v2209 = vadd.f32 %v2158, %v2208
          %v2210 = vpop.f32.mrf.mxu0
          %v2211 = vpop.f32.mrf.mxu0
          %2212 = vdwg.mxu0
          %2213 = vmatprep.subr.bf16.mxu0 0
          %2214 = vmatpush1.bf16.msra.mxu0 %v1990
          %2215 = vmatprep.subr.bf16.mxu0 0
          %2216 = vmatpush1.bf16.msra.mxu0 %v1987
          %2217 = vmatprep.subr.bf16.mxu0 0
          %2218 = vmatpush1.bf16.msra.mxu0 %v1984
          %2219 = vmatprep.subr.bf16.mxu0 0
          %2220 = vmatpush1.bf16.msra.mxu0 %v1981
          %2221 = vmatprep.subr.bf16.mxu0 0
          %2222 = vmatpush1.bf16.msra.mxu0 %v1978
          %2223 = vmatprep.subr.bf16.mxu0 0
          %2224 = vmatpush1.bf16.msra.mxu0 %v1975
          %2225 = vmatprep.subr.bf16.mxu0 0
          %2226 = vmatpush1.bf16.msra.mxu0 %v1972
          %2227 = vmatprep.subr.bf16.mxu0 0
          %2228 = vmatpush1.bf16.msra.mxu0 %v1969
          %2229 = vmatprep.subr.bf16.mxu0 0
          %2230 = vmatpush2.bf16.msra.mxu0 %v2014
          %2231 = vmatprep.subr.bf16.mxu0 0
          %2232 = vmatpush2.bf16.msra.mxu0 %v2011
          %2233 = vmatprep.subr.bf16.mxu0 0
          %2234 = vmatpush2.bf16.msra.mxu0 %v2008
          %2235 = vmatprep.subr.bf16.mxu0 0
          %2236 = vmatpush2.bf16.msra.mxu0 %v2005
          %2237 = vmatprep.subr.bf16.mxu0 0
          %2238 = vmatpush2.bf16.msra.mxu0 %v2002
          %2239 = vmatprep.subr.bf16.mxu0 0
          %2240 = vmatpush2.bf16.msra.mxu0 %v1999
          %2241 = vmatprep.subr.bf16.mxu0 0
          %2242 = vmatpush2.bf16.msra.mxu0 %v1996
          %2243 = vmatprep.subr.bf16.mxu0 0
          %2244 = vmatpush2.bf16.msra.mxu0 %v1993
          %2245 = vmatprep.mubr.bf16.mxu0 %v1609
          %2246 = vmatmul.mubr.bf16.gmra.mxu0 %v1608
          %v2247 = vpop.f32.mrf.mxu0
          %v2248 = vadd.f32 %v1723, %v2247
          %v2249 = vpop.f32.mrf.mxu0
          %v2250 = vpop.f32.mrf.mxu0
          %v2251 = vadd.f32 %v1723, %v2250
          %v2252 = vpop.f32.mrf.mxu0
          %2253 = vmatprep.mubr.bf16.mxu0 %v1612
          %2254 = vmatmul.mubr.bf16.gmra.mxu0 %v1611
          %v2255 = vpop.f32.mrf.mxu0
          %v2256 = vadd.f32 %v1723, %v2255
          %v2257 = vpop.f32.mrf.mxu0
          %v2258 = vpop.f32.mrf.mxu0
          %v2259 = vpop.f32.mrf.mxu0
          %2260 = vdwg.mxu0
          %2261 = vmatprep.subr.bf16.mxu0 0
          %2262 = vmatpush1.bf16.msra.mxu0 %v2038
          %2263 = vmatprep.subr.bf16.mxu0 0
          %2264 = vmatpush1.bf16.msra.mxu0 %v2035
          %2265 = vmatprep.subr.bf16.mxu0 0
          %2266 = vmatpush1.bf16.msra.mxu0 %v2032
          %2267 = vmatprep.subr.bf16.mxu0 0
          %2268 = vmatpush1.bf16.msra.mxu0 %v2029
          %2269 = vmatprep.subr.bf16.mxu0 0
          %2270 = vmatpush1.bf16.msra.mxu0 %v2026
          %2271 = vmatprep.subr.bf16.mxu0 0
          %2272 = vmatpush1.bf16.msra.mxu0 %v2023
          %2273 = vmatprep.subr.bf16.mxu0 0
          %2274 = vmatpush1.bf16.msra.mxu0 %v2020
          %2275 = vmatprep.subr.bf16.mxu0 0
          %2276 = vmatpush1.bf16.msra.mxu0 %v2017
          %2277 = vmatprep.subr.bf16.mxu0 0
          %2278 = vmatpush2.bf16.msra.mxu0 0
          %2279 = vmatprep.subr.bf16.mxu0 0
          %2280 = vmatpush2.bf16.msra.mxu0 0
          %2281 = vmatprep.subr.bf16.mxu0 0
          %2282 = vmatpush2.bf16.msra.mxu0 0
          %2283 = vmatprep.subr.bf16.mxu0 0
          %2284 = vmatpush2.bf16.msra.mxu0 0
          %2285 = vmatprep.subr.bf16.mxu0 0
          %2286 = vmatpush2.bf16.msra.mxu0 0
          %2287 = vmatprep.subr.bf16.mxu0 0
          %2288 = vmatpush2.bf16.msra.mxu0 0
          %2289 = vmatprep.subr.bf16.mxu0 0
          %2290 = vmatpush2.bf16.msra.mxu0 0
          %2291 = vmatprep.subr.bf16.mxu0 0
          %2292 = vmatpush2.bf16.msra.mxu0 0
          %2293 = vmatprep.mubr.bf16.mxu0 0
          %2294 = vmatmul.mubr.bf16.gmra.mxu0 %v1610
          %v2295 = vpop.f32.mrf.mxu0
          %v2296 = vadd.f32 %v2248, %v2295
          %v2297 = vpop.f32.mrf.mxu0
          %v2298 = vpop.f32.mrf.mxu0
          %v2299 = vadd.f32 %v2251, %v2298
          %v2300 = vpop.f32.mrf.mxu0
          %2301 = vmatprep.mubr.bf16.mxu0 0
          %2302 = vmatmul.mubr.bf16.gmra.mxu0 %v1613
          %v2303 = vpop.f32.mrf.mxu0
          %v2304 = vadd.f32 %v2256, %v2303
          %v2305 = vpop.f32.mrf.mxu0
          %v2306 = vpop.f32.mrf.mxu0
          %v2307 = vpop.f32.mrf.mxu0
          %2308 = vdwg.mxu0
          %v2309 = vmax.f32 %v2197, 0.0
          %v2310 = vmax.f32 %v2199, 0.0
          %v2311 = vmax.f32 %v2296, 0.0
          %v2312 = vmax.f32 %v2201, 0.0
          %v2313 = vmax.f32 %v2203, 0.0
          %v2314 = vmax.f32 %v2299, 0.0
          %v2315 = vmax.f32 %v2207, 0.0
          %v2316 = vmax.f32 %v2209, 0.0
          %v2317 = vmax.f32 %v2304, 0.0
          %2318 = vst [vmem:[%s368] sm:$0xff] %v2309
          %2319 = vst [vmem:[%s368 + $0x8] sm:$0xff] %v2310
          %2320 = vst [vmem:[%s368 + $0x10] sm:$0xff] %v2311
          %2321 = vst [vmem:[%s368 + $0x18] sm:$0xff] %v2312
          %2322 = vst [vmem:[%s368 + $0x20] sm:$0xff] %v2313
          %2323 = vst [vmem:[%s368 + $0x28] sm:$0xff] %v2314
          %2324 = vst [vmem:[%s368 + $0x30] sm:$0xff] %v2315
          %2325 = vst [vmem:[%s368 + $0x38] sm:$0xff] %v2316
          %2326 = vst [vmem:[%s368 + $0x40] sm:$0xff] %v2317
        $region94: #{nin_forward.12} parent=81 // pred_fallthru
          _
        %s2327 = smul.u32 3, %s22
        %p2328 = scmp.lt.s32.totalorder %s2327, 2
        %s2329 = scalar_select %p2328, %s2327, 2
        %s2330 = smul.addr %s2329, 3
        %s2331 = smul.addr %s2330, 8
        %s2332 = scalar_lea.vmem %s7, %s2331
        // Predicated region
        $region95: #{nin_forward.12} parent=81 // pred_check
          %p2333 = pneg %p207
        $region96: #{nin_forward.12} parent=81 // pred_check_branch
          %2335 = sbr.rel (%p2333) target = $region98
        $region97: #{nin_forward.12} parent=81 // pred_region
          %s2336 = smul.u32 3, %s22
        $region98: #{nin_forward.12} parent=81 // pred_fallthru
          _
        // Predicated region
        $region99: #{nin_forward.12} parent=81 // pred_check
          %p2337 = pneg %p207
        $region100: #{nin_forward.12} parent=81 // pred_check_branch
          %2339 = sbr.rel (%p2337) target = $region102
        $region101: #{nin_forward.12} parent=81 // pred_region
          %s2340 = smul.u32 3, %s22
          %p2341 = scmp.lt.s32.totalorder %s2340, 2
          %s2342 = scalar_select %p2341, %s2340, 2
          %s2343 = smul.addr %s2342, 3
          %s2344 = smul.addr %s2343, 8
          %s2345 = scalar_lea.vmem %s7, %s2344
        $region102: #{nin_forward.12} parent=81 // pred_fallthru
          _
      $region82: #{nin_forward.12} parent=5 // pred_fallthru
        _
      %p2346 = scmp.le.s32.totalorder 2, %s13
      // Predicated region
      $region103: #{nin_forward.12} parent=5 // pred_check
        %p2347 = pneg %p2346
      $region104: #{nin_forward.12} parent=5 // pred_check_branch
        %2349 = sbr.rel (%p2347) target = $region106
      $region105: #{nin_forward.12} parent=5 // pred_region
        %s2350 = ssub.s32 %s13, 2
      $region106: #{nin_forward.12} parent=5 // pred_fallthru
        _
    $region6: #{nin_forward.12} parent=1 // loop_footer
      %s17 = sadd.s32 1, %s13
    $region7: #{nin_forward.12} parent=1 // loop_footer_branch
      %12 = sbr.rel target = $region3
    $region8: #{nin_forward.12} parent=1 // loop_exit
      _

// kernel: nin_forward.15
$region0: #{nin_forward.15}
  #allocation0 [shape = 'u32[]', space=smem, size = 0x4, offset = 0x4, fixed_abs, tag = 'smem constant byte address 0x4 - core index']
  #allocation1 [shape = 'u32[144,128]{1,0:T(1,128)}', space=vmem, size = 0x12000, scoped, tag = 'internal scratch']
  %s0 = inlined_call_operand.vmem [shape: f32[2,1,128], index: 0, kind: input, shape index: {}]
  %s1 = inlined_call_operand.hbm [shape: f32[2,1,128], index: 1, kind: output, shape index: {}]
  %s2 = sld [smem:[#allocation0]]
  $region37: #{nin_forward.15} parent=0
    _
  %s4 = ssub.s32 1, %s2
  %s5 = scalar_select 0, %s4, %s2
  $region1: #{nin_forward.15} parent=0
    #allocation2 [shape = 'u8[1024]{0}', space=vmem, size = 0x400, scoped, tag = 'output window, operand 0']
    #allocation3 [shape = 's32[2]{0}', space=sflag, size = 0x8, scoped, tag = 'scoped memory for nin_forward.15']
    %6 = vsyncpa [#allocation3], 0
    %s7 = scalar_lea.sflag [#allocation3], 1
    %8 = vsyncpa %s7, 0
    loop: start=0, step=1, limit=4
    $region2: #{nin_forward.15} parent=1 // loop_pre_header
      _
    $region3: #{nin_forward.15} parent=1 // loop_header
      %s10 = sphi 0, %s14
      %p11 = scmp.ge.s32.totalorder %s10, 4
      %s20 = sphi 0, %s22
      %s23 = sphi 0, %s20
      %s24 = sphi 0, %s23
      %s40 = sphi 0, %s24
      %s46 = sphi 0, %s48
      %s49 = sphi 0, %s46
      %s50 = sphi 0, %s49
      %s66 = sphi 0, %s50
    $region4: #{nin_forward.15} parent=1 // loop_header_branch
      %13 = sbr.rel (%p11) target = $region8
    $region5: #{nin_forward.15} parent=1 // loop_body
      %s15 = ssub.s32 %s10, 1
      %s16 = ssub.s32 %s10, 2
      %s17 = sadd.s32 %s10, 1
      %s18 = ssub.s32 %s10, %s17
      %p19 = scmp.eq.s32.totalorder %s18, 0
      %s21 = sadd.s32 %s20, 1
      %s22 = scalar_select %p19, %s20, %s21
      %p25 = pneg %p19
      %p26 = scmp.eq.s32.totalorder %s10, 1
      %p27 = por %p25, %p26
      %p28 = scmp.ne.s32.totalorder %s20, %s23
      %p29 = scmp.eq.s32.totalorder %s10, 0
      %p30 = por %p28, %p29
      %p31 = scmp.ne.s32.totalorder %s20, %s23
      %p32 = scmp.eq.s32.totalorder %s15, 1
      %p33 = por %p31, %p32
      %p34 = scmp.ne.s32.totalorder %s23, %s24
      %p35 = scmp.eq.s32.totalorder %s15, 0
      %p36 = por %p34, %p35
      %p37 = scmp.ne.s32.totalorder %s23, %s24
      %p38 = scmp.eq.s32.totalorder %s16, 1
      %p39 = por %p37, %p38
      %p41 = scmp.ne.s32.totalorder %s24, %s40
      %p42 = scmp.eq.s32.totalorder %s16, 0
      %p43 = por %p41, %p42
      %s44 = ssub.s32 %s10, %s17
      %p45 = scmp.eq.s32.totalorder %s44, 0
      %s47 = sadd.s32 %s46, 1
      %s48 = scalar_select %p45, %s46, %s47
      %p51 = pneg %p45
      %p52 = scmp.eq.s32.totalorder %s10, 1
      %p53 = por %p51, %p52
      %p54 = scmp.ne.s32.totalorder %s46, %s49
      %p55 = scmp.eq.s32.totalorder %s10, 0
      %p56 = por %p54, %p55
      %p57 = scmp.ne.s32.totalorder %s46, %s49
      %p58 = scmp.eq.s32.totalorder %s15, 1
      %p59 = por %p57, %p58
      %p60 = scmp.ne.s32.totalorder %s49, %s50
      %p61 = scmp.eq.s32.totalorder %s15, 0
      %p62 = por %p60, %p61
      %p63 = scmp.ne.s32.totalorder %s49, %s50
      %p64 = scmp.eq.s32.totalorder %s16, 1
      %p65 = por %p63, %p64
      %p67 = scmp.ne.s32.totalorder %s50, %s66
      %p68 = scmp.eq.s32.totalorder %s16, 0
      %p69 = por %p67, %p68
      %p70 = scmp.le.s32.totalorder 1, %s10
      %p71 = scmp.lt.s32.totalorder %s10, 3
      %p72 = pnand %p70, %p71
      %p73 = pneg %p72
      // Predicated region
      $region9: #{nin_forward.15} parent=5 // pred_check
        _
      $region10: #{nin_forward.15} parent=5 // pred_check_branch
        %75 = sbr.rel (%p72) target = $region12
      $region11: #{nin_forward.15} parent=5 // pred_region
        %s76 = ssub.s32 %s10, 1
      $region12: #{nin_forward.15} parent=5 // pred_fallthru
        _
      %p77 = scmp.lt.s32.totalorder %s10, 2
      // Predicated region
      $region13: #{nin_forward.15} parent=5 // pred_check
        %p78 = pneg %p77
      $region14: #{nin_forward.15} parent=5 // pred_check_branch
        %80 = sbr.rel (%p78) target = $region16
      $region15: #{nin_forward.15} parent=5 // pred_region
        // Predicated region
        $region17: #{nin_forward.15} parent=15 // pred_check
          %p81 = pneg %p30
        $region18: #{nin_forward.15} parent=15 // pred_check_branch
          %83 = sbr.rel (%p81) target = $region20
        $region19: #{nin_forward.15} parent=15 // pred_region
          %p84 = scmp.lt.s32.totalorder %s10, 1
          %s85 = scalar_select %p84, %s10, 1
          %s86 = scalar_lea.vmem %s0, %s85
        $region20: #{nin_forward.15} parent=15 // pred_fallthru
          _
      $region16: #{nin_forward.15} parent=5 // pred_fallthru
        _
      %p87 = scmp.le.s32.totalorder 1, %s10
      %p88 = scmp.lt.s32.totalorder %s10, 3
      %p89 = pnand %p87, %p88
      %p90 = pneg %p89
      // Predicated region
      $region21: #{nin_forward.15} parent=5 // pred_check
        _
      $region22: #{nin_forward.15} parent=5 // pred_check_branch
        %92 = sbr.rel (%p89) target = $region24
      $region23: #{nin_forward.15} parent=5 // pred_region
        %s93 = ssub.s32 %s10, 1
        %p94 = scmp.lt.s32.totalorder %s15, 1
        %s95 = scalar_select %p94, %s15, 1
        %s96 = scalar_lea.vmem %s0, %s95
        %p97 = pneg %p36
        %p98 = pneg %p33
        %p99 = pneg %p62
        %p100 = pneg %p59
        %s101 = sand.u32 %s49, 1
        %s102 = scalar_lea.sflag [#allocation3], %s101
        %s103 = sand.u32 %s49, 1
        %s104 = scalar_lea.vmem [#allocation2], %s103
        %p105 = scmp.lt.s32.totalorder %s15, 1
        %s106 = scalar_select %p105, %s15, 1
        %s107 = scalar_lea.vmem %s0, %s106
        %v108 = vld [vmem:[%s107] sm:$0x1]
        %v109 = vadd.f32 %v108, 0.0
        %110 = vst [vmem:[%s104] sm:$0x1] %v109
        %s111 = sand.u32 %s49, 1
        %s112 = scalar_lea.sflag [#allocation3], %s111
        %s113 = sand.u32 %s49, 1
        %s114 = scalar_lea.vmem [#allocation2], %s113
        // Predicated region
        $region25: #{nin_forward.15} parent=23 // pred_check
          %p115 = pneg %p59
        $region26: #{nin_forward.15} parent=23 // pred_check_branch
          %117 = sbr.rel (%p115) target = $region28
        $region27: #{nin_forward.15} parent=23 // pred_region
          %s119 = ssub.s32 16, 16
          %120 = vsyncadd %s112, %s119
          %s121 = smul.addr %s15, 16
          %s122 = scalar_lea.hbm %s1, %s121
          %s124 = sshll.u32 %s114, 4
          %s125 = int_to_ptr.vmem [resolvable:$true] %s124
          %127 = dma.vmem_to_hbm [thread:$0]  %s125, 16, %s122, %s112
        $region28: #{nin_forward.15} parent=23 // pred_fallthru
          _
      $region24: #{nin_forward.15} parent=5 // pred_fallthru
        _
      %p128 = scmp.le.s32.totalorder 2, %s10
      // Predicated region
      $region29: #{nin_forward.15} parent=5 // pred_check
        %p129 = pneg %p128
      $region30: #{nin_forward.15} parent=5 // pred_check_branch
        %131 = sbr.rel (%p129) target = $region32
      $region31: #{nin_forward.15} parent=5 // pred_region
        %s132 = ssub.s32 %s10, 2
        // Predicated region
        $region33: #{nin_forward.15} parent=31 // pred_check
          %p133 = pneg %p65
        $region34: #{nin_forward.15} parent=31 // pred_check_branch
          %135 = sbr.rel (%p133) target = $region36
        $region35: #{nin_forward.15} parent=31 // pred_region
          %s136 = sand.u32 %s50, 1
          %s137 = scalar_lea.sflag [#allocation3], %s136
          %s138 = sand.u32 %s50, 1
          %s139 = scalar_lea.vmem [#allocation2], %s138
          %140 = dma.done %s137, 16
        $region36: #{nin_forward.15} parent=31 // pred_fallthru
          _
      $region32: #{nin_forward.15} parent=5 // pred_fallthru
        _
    $region6: #{nin_forward.15} parent=1 // loop_footer
      %s14 = sadd.s32 1, %s10
    $region7: #{nin_forward.15} parent=1 // loop_footer_branch
      %9 = sbr.rel target = $region3
    $region8: #{nin_forward.15} parent=1 // loop_exit
      _
    %141 = vsyncpa [#allocation3], 1
    %s142 = scalar_lea.sflag [#allocation3], 1
    %143 = vsyncpa %s142, 1

// kernel: nin_forward.14
$region0: #{nin_forward.14}
  #allocation0 [shape = 'u32[]', space=smem, size = 0x4, offset = 0x4, fixed_abs, tag = 'smem constant byte address 0x4 - core index']
  #allocation1 [shape = 'u32[144,128]{1,0:T(1,128)}', space=vmem, size = 0x12000, scoped, tag = 'internal scratch']
  %s0 = inlined_call_operand.vmem [shape: bf16[8,3456], index: 0, kind: input, shape index: {}]
  %s1 = inlined_call_operand.vmem [shape: bf16[3456,128], index: 1, kind: input, shape index: {}]
  %s2 = inlined_call_operand.vmem [shape: f32[1,128], index: 2, kind: input, shape index: {}]
  %s3 = inlined_call_operand.vmem [shape: bf16[128,128], index: 3, kind: input, shape index: {}]
  %s4 = inlined_call_operand.vmem [shape: f32[1,128], index: 4, kind: input, shape index: {}]
  %s5 = inlined_call_operand.vmem [shape: bf16[128,128], index: 5, kind: input, shape index: {}]
  %s6 = inlined_call_operand.vmem [shape: f32[1,128], index: 6, kind: input, shape index: {}]
  %s7 = inlined_call_operand.vmem [shape: f32[8,128], index: 7, kind: output, shape index: {}]
  %s8 = sld [smem:[#allocation0]]
  $region69: #{nin_forward.14} parent=0
    _
  %s10 = ssub.s32 1, %s8
  %s11 = scalar_select 0, %s10, %s8
  loop: start=0, step=1, limit=29
  $region2: #{nin_forward.14} parent=0 // loop_pre_header
    _
  $region3: #{nin_forward.14} parent=0 // loop_header
    %s13 = sphi 0, %s17
    %p14 = scmp.ge.s32.totalorder %s13, 29
    %s20 = sphi 0, %s32
    %s21 = sphi 0, %s28
    %s22 = sphi 0, %s20
    %s23 = sphi 0, %s21
    %s24 = sphi 0, %s22
    %s25 = sphi 0, %s23
    %s37 = sphi 0, %s39
    %s40 = sphi 0, %s37
    %s41 = sphi 0, %s40
    %s57 = sphi 0, %s41
    %s63 = sphi 0, %s65
    %s66 = sphi 0, %s63
    %s67 = sphi 0, %s66
    %s83 = sphi 0, %s67
    %s87 = sphi 0, %s87
    %s89 = sphi 0, %s87
    %s90 = sphi 0, %s89
    %s104 = sphi 0, %s90
    %s108 = sphi 0, %s108
    %s110 = sphi 0, %s108
    %s111 = sphi 0, %s110
    %s125 = sphi 0, %s111
    %s129 = sphi 0, %s129
    %s131 = sphi 0, %s129
    %s132 = sphi 0, %s131
    %s146 = sphi 0, %s132
    %s150 = sphi 0, %s150
    %s152 = sphi 0, %s150
    %s153 = sphi 0, %s152
    %s167 = sphi 0, %s153
    %s171 = sphi 0, %s171
    %s173 = sphi 0, %s171
    %s174 = sphi 0, %s173
    %s188 = sphi 0, %s174
    %s194 = sphi 0, %s196
    %s197 = sphi 0, %s194
    %s198 = sphi 0, %s197
    %s214 = sphi 0, %s198
  $region4: #{nin_forward.14} parent=0 // loop_header_branch
    %16 = sbr.rel (%p14) target = $region8
  $region5: #{nin_forward.14} parent=0 // loop_body
    %s18 = ssub.s32 %s13, 1
    %s19 = ssub.s32 %s13, 2
    %s26 = sadd.s32 1, %s21
    %p27 = scmp.ge.s32.totalorder %s26, 27
    %s28 = scalar_select %p27, 0, %s26
    %s29 = sadd.s32 1, %s20
    %s30 = scalar_select %p27, %s29, %s20
    %p31 = scmp.ge.s32.totalorder %s30, 1
    %s32 = scalar_select %p31, 0, %s30
    %s33 = ssub.s32 %s20, %s32
    %s34 = ssub.s32 %s21, %s28
    %s35 = sor.u32 %s33, %s34
    %p36 = scmp.eq.s32.totalorder %s35, 0
    %s38 = sadd.s32 %s37, 1
    %s39 = scalar_select %p36, %s37, %s38
    %p42 = pneg %p36
    %p43 = scmp.eq.s32.totalorder %s13, 26
    %p44 = por %p42, %p43
    %p45 = scmp.ne.s32.totalorder %s37, %s40
    %p46 = scmp.eq.s32.totalorder %s13, 0
    %p47 = por %p45, %p46
    %p48 = scmp.ne.s32.totalorder %s37, %s40
    %p49 = scmp.eq.s32.totalorder %s18, 26
    %p50 = por %p48, %p49
    %p51 = scmp.ne.s32.totalorder %s40, %s41
    %p52 = scmp.eq.s32.totalorder %s18, 0
    %p53 = por %p51, %p52
    %p54 = scmp.ne.s32.totalorder %s40, %s41
    %p55 = scmp.eq.s32.totalorder %s19, 26
    %p56 = por %p54, %p55
    %p58 = scmp.ne.s32.totalorder %s41, %s57
    %p59 = scmp.eq.s32.totalorder %s19, 0
    %p60 = por %p58, %p59
    %s61 = ssub.s32 %s21, %s28
    %p62 = scmp.eq.s32.totalorder %s61, 0
    %s64 = sadd.s32 %s63, 1
    %s65 = scalar_select %p62, %s63, %s64
    %p68 = pneg %p62
    %p69 = scmp.eq.s32.totalorder %s13, 26
    %p70 = por %p68, %p69
    %p71 = scmp.ne.s32.totalorder %s63, %s66
    %p72 = scmp.eq.s32.totalorder %s13, 0
    %p73 = por %p71, %p72
    %p74 = scmp.ne.s32.totalorder %s63, %s66
    %p75 = scmp.eq.s32.totalorder %s18, 26
    %p76 = por %p74, %p75
    %p77 = scmp.ne.s32.totalorder %s66, %s67
    %p78 = scmp.eq.s32.totalorder %s18, 0
    %p79 = por %p77, %p78
    %p80 = scmp.ne.s32.totalorder %s66, %s67
    %p81 = scmp.eq.s32.totalorder %s19, 26
    %p82 = por %p80, %p81
    %p84 = scmp.ne.s32.totalorder %s67, %s83
    %p85 = scmp.eq.s32.totalorder %s19, 0
    %p86 = por %p84, %p85
    %s88 = sadd.s32 %s87, 1
    %p91 = scmp.eq.s32.totalorder %s13, 26
    %p92 = scmp.ne.s32.totalorder %s87, %s89
    %p93 = scmp.eq.s32.totalorder %s13, 0
    %p94 = por %p92, %p93
    %p95 = scmp.ne.s32.totalorder %s87, %s89
    %p96 = scmp.eq.s32.totalorder %s18, 26
    %p97 = por %p95, %p96
    %p98 = scmp.ne.s32.totalorder %s89, %s90
    %p99 = scmp.eq.s32.totalorder %s18, 0
    %p100 = por %p98, %p99
    %p101 = scmp.ne.s32.totalorder %s89, %s90
    %p102 = scmp.eq.s32.totalorder %s19, 26
    %p103 = por %p101, %p102
    %p105 = scmp.ne.s32.totalorder %s90, %s104
    %p106 = scmp.eq.s32.totalorder %s19, 0
    %p107 = por %p105, %p106
    %s109 = sadd.s32 %s108, 1
    %p112 = scmp.eq.s32.totalorder %s13, 26
    %p113 = scmp.ne.s32.totalorder %s108, %s110
    %p114 = scmp.eq.s32.totalorder %s13, 0
    %p115 = por %p113, %p114
    %p116 = scmp.ne.s32.totalorder %s108, %s110
    %p117 = scmp.eq.s32.totalorder %s18, 26
    %p118 = por %p116, %p117
    %p119 = scmp.ne.s32.totalorder %s110, %s111
    %p120 = scmp.eq.s32.totalorder %s18, 0
    %p121 = por %p119, %p120
    %p122 = scmp.ne.s32.totalorder %s110, %s111
    %p123 = scmp.eq.s32.totalorder %s19, 26
    %p124 = por %p122, %p123
    %p126 = scmp.ne.s32.totalorder %s111, %s125
    %p127 = scmp.eq.s32.totalorder %s19, 0
    %p128 = por %p126, %p127
    %s130 = sadd.s32 %s129, 1
    %p133 = scmp.eq.s32.totalorder %s13, 26
    %p134 = scmp.ne.s32.totalorder %s129, %s131
    %p135 = scmp.eq.s32.totalorder %s13, 0
    %p136 = por %p134, %p135
    %p137 = scmp.ne.s32.totalorder %s129, %s131
    %p138 = scmp.eq.s32.totalorder %s18, 26
    %p139 = por %p137, %p138
    %p140 = scmp.ne.s32.totalorder %s131, %s132
    %p141 = scmp.eq.s32.totalorder %s18, 0
    %p142 = por %p140, %p141
    %p143 = scmp.ne.s32.totalorder %s131, %s132
    %p144 = scmp.eq.s32.totalorder %s19, 26
    %p145 = por %p143, %p144
    %p147 = scmp.ne.s32.totalorder %s132, %s146
    %p148 = scmp.eq.s32.totalorder %s19, 0
    %p149 = por %p147, %p148
    %s151 = sadd.s32 %s150, 1
    %p154 = scmp.eq.s32.totalorder %s13, 26
    %p155 = scmp.ne.s32.totalorder %s150, %s152
    %p156 = scmp.eq.s32.totalorder %s13, 0
    %p157 = por %p155, %p156
    %p158 = scmp.ne.s32.totalorder %s150, %s152
    %p159 = scmp.eq.s32.totalorder %s18, 26
    %p160 = por %p158, %p159
    %p161 = scmp.ne.s32.totalorder %s152, %s153
    %p162 = scmp.eq.s32.totalorder %s18, 0
    %p163 = por %p161, %p162
    %p164 = scmp.ne.s32.totalorder %s152, %s153
    %p165 = scmp.eq.s32.totalorder %s19, 26
    %p166 = por %p164, %p165
    %p168 = scmp.ne.s32.totalorder %s153, %s167
    %p169 = scmp.eq.s32.totalorder %s19, 0
    %p170 = por %p168, %p169
    %s172 = sadd.s32 %s171, 1
    %p175 = scmp.eq.s32.totalorder %s13, 26
    %p176 = scmp.ne.s32.totalorder %s171, %s173
    %p177 = scmp.eq.s32.totalorder %s13, 0
    %p178 = por %p176, %p177
    %p179 = scmp.ne.s32.totalorder %s171, %s173
    %p180 = scmp.eq.s32.totalorder %s18, 26
    %p181 = por %p179, %p180
    %p182 = scmp.ne.s32.totalorder %s173, %s174
    %p183 = scmp.eq.s32.totalorder %s18, 0
    %p184 = por %p182, %p183
    %p185 = scmp.ne.s32.totalorder %s173, %s174
    %p186 = scmp.eq.s32.totalorder %s19, 26
    %p187 = por %p185, %p186
    %p189 = scmp.ne.s32.totalorder %s174, %s188
    %p190 = scmp.eq.s32.totalorder %s19, 0
    %p191 = por %p189, %p190
    %s192 = ssub.s32 %s20, %s32
    %p193 = scmp.eq.s32.totalorder %s192, 0
    %s195 = sadd.s32 %s194, 1
    %s196 = scalar_select %p193, %s194, %s195
    %p199 = pneg %p193
    %p200 = scmp.eq.s32.totalorder %s13, 26
    %p201 = por %p199, %p200
    %p202 = scmp.ne.s32.totalorder %s194, %s197
    %p203 = scmp.eq.s32.totalorder %s13, 0
    %p204 = por %p202, %p203
    %p205 = scmp.ne.s32.totalorder %s194, %s197
    %p206 = scmp.eq.s32.totalorder %s18, 26
    %p207 = por %p205, %p206
    %p208 = scmp.ne.s32.totalorder %s197, %s198
    %p209 = scmp.eq.s32.totalorder %s18, 0
    %p210 = por %p208, %p209
    %p211 = scmp.ne.s32.totalorder %s197, %s198
    %p212 = scmp.eq.s32.totalorder %s19, 26
    %p213 = por %p211, %p212
    %p215 = scmp.ne.s32.totalorder %s198, %s214
    %p216 = scmp.eq.s32.totalorder %s19, 0
    %p217 = por %p215, %p216
    %p218 = scmp.le.s32.totalorder 1, %s13
    %p219 = scmp.lt.s32.totalorder %s13, 28
    %p220 = pnand %p218, %p219
    %p221 = pneg %p220
    // Predicated region
    $region9: #{nin_forward.14} parent=5 // pred_check
      _
    $region10: #{nin_forward.14} parent=5 // pred_check_branch
      %223 = sbr.rel (%p220) target = $region12
    $region11: #{nin_forward.14} parent=5 // pred_region
      %s224 = ssub.s32 %s13, 1
      // Predicated region
      $region13: #{nin_forward.14} parent=11 // pred_check
        %p225 = pneg %p100
      $region14: #{nin_forward.14} parent=11 // pred_check_branch
        %227 = sbr.rel (%p225) target = $region16
      $region15: #{nin_forward.14} parent=11 // pred_region
        _
      $region16: #{nin_forward.14} parent=11 // pred_fallthru
        _
      // Predicated region
      $region17: #{nin_forward.14} parent=11 // pred_check
        %p228 = pneg %p121
      $region18: #{nin_forward.14} parent=11 // pred_check_branch
        %230 = sbr.rel (%p228) target = $region20
      $region19: #{nin_forward.14} parent=11 // pred_region
        _
      $region20: #{nin_forward.14} parent=11 // pred_fallthru
        _
      // Predicated region
      $region21: #{nin_forward.14} parent=11 // pred_check
        %p231 = pneg %p142
      $region22: #{nin_forward.14} parent=11 // pred_check_branch
        %233 = sbr.rel (%p231) target = $region24
      $region23: #{nin_forward.14} parent=11 // pred_region
        _
      $region24: #{nin_forward.14} parent=11 // pred_fallthru
        _
      // Predicated region
      $region25: #{nin_forward.14} parent=11 // pred_check
        %p234 = pneg %p163
      $region26: #{nin_forward.14} parent=11 // pred_check_branch
        %236 = sbr.rel (%p234) target = $region28
      $region27: #{nin_forward.14} parent=11 // pred_region
        _
      $region28: #{nin_forward.14} parent=11 // pred_fallthru
        _
      // Predicated region
      $region29: #{nin_forward.14} parent=11 // pred_check
        %p237 = pneg %p184
      $region30: #{nin_forward.14} parent=11 // pred_check_branch
        %239 = sbr.rel (%p237) target = $region32
      $region31: #{nin_forward.14} parent=11 // pred_region
        _
      $region32: #{nin_forward.14} parent=11 // pred_fallthru
        _
    $region12: #{nin_forward.14} parent=5 // pred_fallthru
      _
    %p240 = scmp.lt.s32.totalorder %s13, 27
    // Predicated region
    $region33: #{nin_forward.14} parent=5 // pred_check
      %p241 = pneg %p240
    $region34: #{nin_forward.14} parent=5 // pred_check_branch
      %243 = sbr.rel (%p241) target = $region36
    $region35: #{nin_forward.14} parent=5 // pred_region
      // Predicated region
      $region37: #{nin_forward.14} parent=35 // pred_check
        %p244 = pneg %p47
      $region38: #{nin_forward.14} parent=35 // pred_check_branch
        %246 = sbr.rel (%p244) target = $region40
      $region39: #{nin_forward.14} parent=35 // pred_region
        %p247 = scmp.lt.s32.totalorder %s20, 0
        %s248 = scalar_select %p247, %s20, 0
        %p249 = scmp.lt.s32.totalorder %s21, 26
        %s250 = scalar_select %p249, %s21, 26
        %s251 = smul.addr %s248, 27
        %s252 = sadd.s32 %s250, %s251
        %s253 = smul.addr %s252, 4
        %s254 = scalar_lea.vmem %s0, %s253
      $region40: #{nin_forward.14} parent=35 // pred_fallthru
        _
      // Predicated region
      $region41: #{nin_forward.14} parent=35 // pred_check
        %p255 = pneg %p73
      $region42: #{nin_forward.14} parent=35 // pred_check_branch
        %257 = sbr.rel (%p255) target = $region44
      $region43: #{nin_forward.14} parent=35 // pred_region
        %s258 = smul.u32 16, %s21
        %p259 = scmp.lt.s32.totalorder %s258, 431
        %s260 = scalar_select %p259, %s258, 431
        %s261 = smul.addr %s260, 4
        %s262 = scalar_lea.vmem %s1, %s261
        %s263 = smul.u32 16, %s21
      $region44: #{nin_forward.14} parent=35 // pred_fallthru
        _
    $region36: #{nin_forward.14} parent=5 // pred_fallthru
      _
    %p264 = scmp.le.s32.totalorder 1, %s13
    %p265 = scmp.lt.s32.totalorder %s13, 28
    %p266 = pnand %p264, %p265
    %p267 = pneg %p266
    // Predicated region
    $region45: #{nin_forward.14} parent=5 // pred_check
      _
    $region46: #{nin_forward.14} parent=5 // pred_check_branch
      %269 = sbr.rel (%p266) target = $region48
    $region47: #{nin_forward.14} parent=5 // pred_region
      %s270 = ssub.s32 %s13, 1
      %p271 = scmp.lt.s32.totalorder %s22, 0
      %s272 = scalar_select %p271, %s22, 0
      %p273 = scmp.lt.s32.totalorder %s23, 26
      %s274 = scalar_select %p273, %s23, 26
      %s275 = smul.addr %s272, 27
      %s276 = sadd.s32 %s274, %s275
      %s277 = smul.addr %s276, 4
      %s278 = scalar_lea.vmem %s0, %s277
      %p279 = pneg %p53
      %p280 = pneg %p50
      %s281 = smul.u32 16, %s23
      %p282 = scmp.lt.s32.totalorder %s281, 431
      %s283 = scalar_select %p282, %s281, 431
      %s284 = smul.addr %s283, 4
      %s285 = scalar_lea.vmem %s1, %s284
      %p286 = pneg %p79
      %p287 = pneg %p76
      %p288 = pneg %p100
      %p289 = pneg %p97
      %p290 = pneg %p121
      %p291 = pneg %p118
      %p292 = pneg %p142
      %p293 = pneg %p139
      %p294 = pneg %p163
      %p295 = pneg %p160
      %p296 = pneg %p184
      %p297 = pneg %p181
      %p298 = pneg %p210
      %p299 = pneg %p207
      %p300 = scmp.lt.s32.totalorder %s22, 0
      %s301 = scalar_select %p300, %s22, 0
      %s302 = smul.addr %s301, 8
      %s303 = scalar_lea.vmem %s7, %s302
      %p304 = scmp.lt.s32.totalorder %s22, 0
      %s305 = scalar_select %p304, %s22, 0
      %p306 = scmp.lt.s32.totalorder %s23, 26
      %s307 = scalar_select %p306, %s23, 26
      %s308 = smul.addr %s305, 27
      %s309 = sadd.s32 %s307, %s308
      %s310 = smul.addr %s309, 4
      %s311 = scalar_lea.vmem %s0, %s310
      %s312 = smul.u32 16, %s23
      %p313 = scmp.lt.s32.totalorder %s312, 431
      %s314 = scalar_select %p313, %s312, 431
      %s315 = smul.addr %s314, 4
      %s316 = scalar_lea.vmem %s1, %s315
      %s317 = smul.u32 16, %s23
      %p318 = scmp.lt.s32.totalorder %s22, 0
      %s319 = scalar_select %p318, %s22, 0
      %s320 = smul.addr %s319, 8
      %s321 = scalar_lea.vmem %s7, %s320
      %p323 = scmp.eq.s32.totalorder %s23, 0
      // Predicated region
      $region49: #{nin_forward.14} parent=47 // pred_check
        %p324 = pneg %p323
      $region50: #{nin_forward.14} parent=47 // pred_check_branch
        %326 = sbr.rel (%p324) target = $region52
      $region51: #{nin_forward.14} parent=47 // pred_region
        %327 = vst [vmem:[%s321] sm:$0xff] 0.0
      $region52: #{nin_forward.14} parent=47 // pred_fallthru
        _
      %v328 = vld [vmem:[%s321] sm:$0xff]
      %v329 = vld [vmem:[%s311] sm:$0xf]
      %v330 = vld [vmem:[%s316] sm:$0xf]
      %v331 = vld [vmem:[%s316 + $0x4] sm:$0xf]
      %v332 = vld [vmem:[%s316 + $0x8] sm:$0xf]
      %v333 = vld [vmem:[%s316 + $0xc] sm:$0xf]
      %v334 = vld [vmem:[%s316 + $0x10] sm:$0xf]
      %v335 = vld [vmem:[%s316 + $0x14] sm:$0xf]
      %v336 = vld [vmem:[%s316 + $0x18] sm:$0xf]
      %v337 = vld [vmem:[%s316 + $0x1c] sm:$0xf]
      %v338 = vld [vmem:[%s316 + $0x20] sm:$0xf]
      %v339 = vld [vmem:[%s316 + $0x24] sm:$0xf]
      %v340 = vld [vmem:[%s316 + $0x28] sm:$0xf]
      %v341 = vld [vmem:[%s316 + $0x2c] sm:$0xf]
      %v342 = vld [vmem:[%s316 + $0x30] sm:$0xf]
      %v343 = vld [vmem:[%s316 + $0x34] sm:$0xf]
      %v344 = vld [vmem:[%s316 + $0x38] sm:$0xf]
      %v345 = vld [vmem:[%s316 + $0x3c] sm:$0xf]
      %v362 = vunpack.c.l.b16 %v330
      %v363 = vunpack.c.l.b16 %v331
      %v364 = vunpack.c.l.b16 %v332
      %v365 = vunpack.c.l.b16 %v333
      %v366 = vunpack.c.l.b16 %v334
      %v367 = vunpack.c.l.b16 %v335
      %v368 = vunpack.c.l.b16 %v336
      %v369 = vunpack.c.l.b16 %v337
      %v370 = vunpack.c.l.b16 %v338
      %v371 = vunpack.c.l.b16 %v339
      %v372 = vunpack.c.l.b16 %v340
      %v373 = vunpack.c.l.b16 %v341
      %v374 = vunpack.c.l.b16 %v342
      %v375 = vunpack.c.l.b16 %v343
      %v376 = vunpack.c.l.b16 %v344
      %v377 = vunpack.c.l.b16 %v345
      %v378 = vpack.c.b16 %v363, %v362
      %v379 = vpack.c.b16 %v365, %v364
      %v380 = vpack.c.b16 %v367, %v366
      %v381 = vpack.c.b16 %v369, %v368
      %v382 = vpack.c.b16 %v371, %v370
      %v383 = vpack.c.b16 %v373, %v372
      %v384 = vpack.c.b16 %v375, %v374
      %v385 = vpack.c.b16 %v377, %v376
      %394 = vmatprep.subr.bf16.mxu0 0
      %395 = vmatpush1.bf16.msra.mxu0 %v385
      %396 = vmatprep.subr.bf16.mxu0 0
      %397 = vmatpush1.bf16.msra.mxu0 %v384
      %398 = vmatprep.subr.bf16.mxu0 0
      %399 = vmatpush1.bf16.msra.mxu0 %v383
      %400 = vmatprep.subr.bf16.mxu0 0
      %401 = vmatpush1.bf16.msra.mxu0 %v382
      %402 = vmatprep.subr.bf16.mxu0 0
      %403 = vmatpush1.bf16.msra.mxu0 %v381
      %404 = vmatprep.subr.bf16.mxu0 0
      %405 = vmatpush1.bf16.msra.mxu0 %v380
      %406 = vmatprep.subr.bf16.mxu0 0
      %407 = vmatpush1.bf16.msra.mxu0 %v379
      %408 = vmatprep.subr.bf16.mxu0 0
      %409 = vmatpush1.bf16.msra.mxu0 %v378
      %410 = vmatprep.subr.bf16.mxu0 0
      %411 = vmatpush2.bf16.msra.mxu0 0
      %412 = vmatprep.subr.bf16.mxu0 0
      %413 = vmatpush2.bf16.msra.mxu0 0
      %414 = vmatprep.subr.bf16.mxu0 0
      %415 = vmatpush2.bf16.msra.mxu0 0
      %416 = vmatprep.subr.bf16.mxu0 0
      %417 = vmatpush2.bf16.msra.mxu0 0
      %418 = vmatprep.subr.bf16.mxu0 0
      %419 = vmatpush2.bf16.msra.mxu0 0
      %420 = vmatprep.subr.bf16.mxu0 0
      %421 = vmatpush2.bf16.msra.mxu0 0
      %422 = vmatprep.subr.bf16.mxu0 0
      %423 = vmatpush2.bf16.msra.mxu0 0
      %424 = vmatprep.subr.bf16.mxu0 0
      %425 = vmatpush2.bf16.msra.mxu0 0
      %426 = vmatprep.mubr.bf16.mxu0 0
      %427 = vmatmul.mubr.bf16.gmra.mxu0 %v329
      %v428 = vpop.f32.mrf.mxu0
      %v429 = vadd.f32 0.0, %v428
      %v430 = vpop.f32.mrf.mxu0
      %v431 = vpop.f32.mrf.mxu0
      %v432 = vpop.f32.mrf.mxu0
      %433 = vdwg.mxu0
      %v434 = vadd.f32 %v328, %v429
      %435 = vst [vmem:[%s321] sm:$0xff] %v434
      %p436 = scmp.eq.s32.totalorder %s23, 26
      // Predicated region
      $region53: #{nin_forward.14} parent=47 // pred_check
        %p437 = pneg %p436
      $region54: #{nin_forward.14} parent=47 // pred_check_branch
        %439 = sbr.rel (%p437) target = $region56
      $region55: #{nin_forward.14} parent=47 // pred_region
        %v440 = vld [vmem:[%s321] sm:$0xff]
        %v441 = vld [vmem:[%s2] sm:$0x1]
        %v443 = vlaneseq
        %v444 = vshrl.u32 %v443, 7
        %v445 = vsub.s32 0, %v444
        %v446 = vrot.slane %v441, %v445
        %v448 = vadd.f32 %v440, %v446
        %v449 = vmax.f32 %v448, 0.0
        %v450 = vpack.c.bf16 %v449, %v449
        %v451 = vld [vmem:[%s3] sm:$0xf]
        %v452 = vld [vmem:[%s3 + $0x4] sm:$0xf]
        %v453 = vld [vmem:[%s3 + $0x8] sm:$0xf]
        %v454 = vld [vmem:[%s3 + $0xc] sm:$0xf]
        %v455 = vld [vmem:[%s3 + $0x10] sm:$0xf]
        %v456 = vld [vmem:[%s3 + $0x14] sm:$0xf]
        %v457 = vld [vmem:[%s3 + $0x18] sm:$0xf]
        %v458 = vld [vmem:[%s3 + $0x1c] sm:$0xf]
        %v459 = vld [vmem:[%s3 + $0x20] sm:$0xf]
        %v460 = vld [vmem:[%s3 + $0x24] sm:$0xf]
        %v461 = vld [vmem:[%s3 + $0x28] sm:$0xf]
        %v462 = vld [vmem:[%s3 + $0x2c] sm:$0xf]
        %v463 = vld [vmem:[%s3 + $0x30] sm:$0xf]
        %v464 = vld [vmem:[%s3 + $0x34] sm:$0xf]
        %v465 = vld [vmem:[%s3 + $0x38] sm:$0xf]
        %v466 = vld [vmem:[%s3 + $0x3c] sm:$0xf]
        %v467 = vld [vmem:[%s4] sm:$0x1]
        %v469 = vlaneseq
        %v470 = vshrl.u32 %v469, 7
        %v471 = vsub.s32 0, %v470
        %v472 = vrot.slane %v467, %v471
        %v490 = vunpack.c.l.b16 %v451
        %v491 = vunpack.c.l.b16 %v452
        %v492 = vunpack.c.l.b16 %v453
        %v493 = vunpack.c.l.b16 %v454
        %v494 = vunpack.c.l.b16 %v455
        %v495 = vunpack.c.l.b16 %v456
        %v496 = vunpack.c.l.b16 %v457
        %v497 = vunpack.c.l.b16 %v458
        %v498 = vunpack.c.l.b16 %v459
        %v499 = vunpack.c.l.b16 %v460
        %v500 = vunpack.c.l.b16 %v461
        %v501 = vunpack.c.l.b16 %v462
        %v502 = vunpack.c.l.b16 %v463
        %v503 = vunpack.c.l.b16 %v464
        %v504 = vunpack.c.l.b16 %v465
        %v505 = vunpack.c.l.b16 %v466
        %v506 = vpack.c.b16 %v491, %v490
        %v507 = vpack.c.b16 %v493, %v492
        %v508 = vpack.c.b16 %v495, %v494
        %v509 = vpack.c.b16 %v497, %v496
        %v510 = vpack.c.b16 %v499, %v498
        %v511 = vpack.c.b16 %v501, %v500
        %v512 = vpack.c.b16 %v503, %v502
        %v513 = vpack.c.b16 %v505, %v504
        %522 = vmatprep.subr.bf16.mxu0 0
        %523 = vmatpush1.bf16.msra.mxu0 %v513
        %524 = vmatprep.subr.bf16.mxu0 0
        %525 = vmatpush1.bf16.msra.mxu0 %v512
        %526 = vmatprep.subr.bf16.mxu0 0
        %527 = vmatpush1.bf16.msra.mxu0 %v511
        %528 = vmatprep.subr.bf16.mxu0 0
        %529 = vmatpush1.bf16.msra.mxu0 %v510
        %530 = vmatprep.subr.bf16.mxu0 0
        %531 = vmatpush1.bf16.msra.mxu0 %v509
        %532 = vmatprep.subr.bf16.mxu0 0
        %533 = vmatpush1.bf16.msra.mxu0 %v508
        %534 = vmatprep.subr.bf16.mxu0 0
        %535 = vmatpush1.bf16.msra.mxu0 %v507
        %536 = vmatprep.subr.bf16.mxu0 0
        %537 = vmatpush1.bf16.msra.mxu0 %v506
        %538 = vmatprep.subr.bf16.mxu0 0
        %539 = vmatpush2.bf16.msra.mxu0 0
        %540 = vmatprep.subr.bf16.mxu0 0
        %541 = vmatpush2.bf16.msra.mxu0 0
        %542 = vmatprep.subr.bf16.mxu0 0
        %543 = vmatpush2.bf16.msra.mxu0 0
        %544 = vmatprep.subr.bf16.mxu0 0
        %545 = vmatpush2.bf16.msra.mxu0 0
        %546 = vmatprep.subr.bf16.mxu0 0
        %547 = vmatpush2.bf16.msra.mxu0 0
        %548 = vmatprep.subr.bf16.mxu0 0
        %549 = vmatpush2.bf16.msra.mxu0 0
        %550 = vmatprep.subr.bf16.mxu0 0
        %551 = vmatpush2.bf16.msra.mxu0 0
        %552 = vmatprep.subr.bf16.mxu0 0
        %553 = vmatpush2.bf16.msra.mxu0 0
        %554 = vmatprep.mubr.bf16.mxu0 0
        %555 = vmatmul.mubr.bf16.gmra.mxu0 %v450
        %v556 = vpop.f32.mrf.mxu0
        %v557 = vadd.f32 %v472, %v556
        %v558 = vpop.f32.mrf.mxu0
        %v559 = vpop.f32.mrf.mxu0
        %v560 = vpop.f32.mrf.mxu0
        %561 = vdwg.mxu0
        %v562 = vmax.f32 %v557, 0.0
        %v563 = vpack.c.bf16 %v562, %v562
        %v564 = vld [vmem:[%s5] sm:$0xf]
        %v565 = vld [vmem:[%s5 + $0x4] sm:$0xf]
        %v566 = vld [vmem:[%s5 + $0x8] sm:$0xf]
        %v567 = vld [vmem:[%s5 + $0xc] sm:$0xf]
        %v568 = vld [vmem:[%s5 + $0x10] sm:$0xf]
        %v569 = vld [vmem:[%s5 + $0x14] sm:$0xf]
        %v570 = vld [vmem:[%s5 + $0x18] sm:$0xf]
        %v571 = vld [vmem:[%s5 + $0x1c] sm:$0xf]
        %v572 = vld [vmem:[%s5 + $0x20] sm:$0xf]
        %v573 = vld [vmem:[%s5 + $0x24] sm:$0xf]
        %v574 = vld [vmem:[%s5 + $0x28] sm:$0xf]
        %v575 = vld [vmem:[%s5 + $0x2c] sm:$0xf]
        %v576 = vld [vmem:[%s5 + $0x30] sm:$0xf]
        %v577 = vld [vmem:[%s5 + $0x34] sm:$0xf]
        %v578 = vld [vmem:[%s5 + $0x38] sm:$0xf]
        %v579 = vld [vmem:[%s5 + $0x3c] sm:$0xf]
        %v580 = vld [vmem:[%s6] sm:$0x1]
        %v582 = vlaneseq
        %v583 = vshrl.u32 %v582, 7
        %v584 = vsub.s32 0, %v583
        %v585 = vrot.slane %v580, %v584
        %v603 = vunpack.c.l.b16 %v564
        %v604 = vunpack.c.l.b16 %v565
        %v605 = vunpack.c.l.b16 %v566
        %v606 = vunpack.c.l.b16 %v567
        %v607 = vunpack.c.l.b16 %v568
        %v608 = vunpack.c.l.b16 %v569
        %v609 = vunpack.c.l.b16 %v570
        %v610 = vunpack.c.l.b16 %v571
        %v611 = vunpack.c.l.b16 %v572
        %v612 = vunpack.c.l.b16 %v573
        %v613 = vunpack.c.l.b16 %v574
        %v614 = vunpack.c.l.b16 %v575
        %v615 = vunpack.c.l.b16 %v576
        %v616 = vunpack.c.l.b16 %v577
        %v617 = vunpack.c.l.b16 %v578
        %v618 = vunpack.c.l.b16 %v579
        %v619 = vpack.c.b16 %v604, %v603
        %v620 = vpack.c.b16 %v606, %v605
        %v621 = vpack.c.b16 %v608, %v607
        %v622 = vpack.c.b16 %v610, %v609
        %v623 = vpack.c.b16 %v612, %v611
        %v624 = vpack.c.b16 %v614, %v613
        %v625 = vpack.c.b16 %v616, %v615
        %v626 = vpack.c.b16 %v618, %v617
        %635 = vmatprep.subr.bf16.mxu0 0
        %636 = vmatpush1.bf16.msra.mxu0 %v626
        %637 = vmatprep.subr.bf16.mxu0 0
        %638 = vmatpush1.bf16.msra.mxu0 %v625
        %639 = vmatprep.subr.bf16.mxu0 0
        %640 = vmatpush1.bf16.msra.mxu0 %v624
        %641 = vmatprep.subr.bf16.mxu0 0
        %642 = vmatpush1.bf16.msra.mxu0 %v623
        %643 = vmatprep.subr.bf16.mxu0 0
        %644 = vmatpush1.bf16.msra.mxu0 %v622
        %645 = vmatprep.subr.bf16.mxu0 0
        %646 = vmatpush1.bf16.msra.mxu0 %v621
        %647 = vmatprep.subr.bf16.mxu0 0
        %648 = vmatpush1.bf16.msra.mxu0 %v620
        %649 = vmatprep.subr.bf16.mxu0 0
        %650 = vmatpush1.bf16.msra.mxu0 %v619
        %651 = vmatprep.subr.bf16.mxu0 0
        %652 = vmatpush2.bf16.msra.mxu0 0
        %653 = vmatprep.subr.bf16.mxu0 0
        %654 = vmatpush2.bf16.msra.mxu0 0
        %655 = vmatprep.subr.bf16.mxu0 0
        %656 = vmatpush2.bf16.msra.mxu0 0
        %657 = vmatprep.subr.bf16.mxu0 0
        %658 = vmatpush2.bf16.msra.mxu0 0
        %659 = vmatprep.subr.bf16.mxu0 0
        %660 = vmatpush2.bf16.msra.mxu0 0
        %661 = vmatprep.subr.bf16.mxu0 0
        %662 = vmatpush2.bf16.msra.mxu0 0
        %663 = vmatprep.subr.bf16.mxu0 0
        %664 = vmatpush2.bf16.msra.mxu0 0
        %665 = vmatprep.subr.bf16.mxu0 0
        %666 = vmatpush2.bf16.msra.mxu0 0
        %667 = vmatprep.mubr.bf16.mxu0 0
        %668 = vmatmul.mubr.bf16.gmra.mxu0 %v563
        %v669 = vpop.f32.mrf.mxu0
        %v670 = vadd.f32 %v585, %v669
        %v671 = vpop.f32.mrf.mxu0
        %v672 = vpop.f32.mrf.mxu0
        %v673 = vpop.f32.mrf.mxu0
        %674 = vdwg.mxu0
        %v675 = vmax.f32 %v670, 0.0
        %676 = vst [vmem:[%s321] sm:$0xff] %v675
      $region56: #{nin_forward.14} parent=47 // pred_fallthru
        _
      %p677 = scmp.lt.s32.totalorder %s22, 0
      %s678 = scalar_select %p677, %s22, 0
      %s679 = smul.addr %s678, 8
      %s680 = scalar_lea.vmem %s7, %s679
      // Predicated region
      $region57: #{nin_forward.14} parent=47 // pred_check
        %p681 = pneg %p207
      $region58: #{nin_forward.14} parent=47 // pred_check_branch
        %683 = sbr.rel (%p681) target = $region60
      $region59: #{nin_forward.14} parent=47 // pred_region
        _
      $region60: #{nin_forward.14} parent=47 // pred_fallthru
        _
      // Predicated region
      $region61: #{nin_forward.14} parent=47 // pred_check
        %p684 = pneg %p207
      $region62: #{nin_forward.14} parent=47 // pred_check_branch
        %686 = sbr.rel (%p684) target = $region64
      $region63: #{nin_forward.14} parent=47 // pred_region
        %p687 = scmp.lt.s32.totalorder %s22, 0
        %s688 = scalar_select %p687, %s22, 0
        %s689 = smul.addr %s688, 8
        %s690 = scalar_lea.vmem %s7, %s689
      $region64: #{nin_forward.14} parent=47 // pred_fallthru
        _
    $region48: #{nin_forward.14} parent=5 // pred_fallthru
      _
    %p691 = scmp.le.s32.totalorder 2, %s13
    // Predicated region
    $region65: #{nin_forward.14} parent=5 // pred_check
      %p692 = pneg %p691
    $region66: #{nin_forward.14} parent=5 // pred_check_branch
      %694 = sbr.rel (%p692) target = $region68
    $region67: #{nin_forward.14} parent=5 // pred_region
      %s695 = ssub.s32 %s13, 2
    $region68: #{nin_forward.14} parent=5 // pred_fallthru
      _
  $region6: #{nin_forward.14} parent=0 // loop_footer
    %s17 = sadd.s32 1, %s13
  $region7: #{nin_forward.14} parent=0 // loop_footer_branch
    %12 = sbr.rel target = $region3
  $region8: #{nin_forward.14} parent=0 // loop_exit
    _

</llo_original>
